<compile_context>
chip_gen: v5e
topology: v5e:2x2
jax: 0.10.0
libtpu: 0.0.40
codegen_flags: <defaults>
</compile_context>

<pallas_src>
import jax
import jax.numpy as jnp
from jax import lax
from jax.experimental import pallas as pl
from jax.experimental.pallas import tpu as pltpu

BN_EPS = 1e-5
LANE = 128   # TPU lane width; final logits are produced lane-dense (128 wide)


# ----------------------------------------------------------------------------
# In-kernel building blocks (operate on VMEM-resident values)
# ----------------------------------------------------------------------------
def _maxpool2x2(y):
    """MaxPool2d(kernel=2, stride=2) on an NHWC value (H, W even)."""
    n, h, w, c = y.shape
    y = y.reshape(n, h // 2, 2, w, c)
    y = jnp.maximum(y[:, :, 0, :, :], y[:, :, 1, :, :])
    y = y.reshape(n, h // 2, w // 2, 2, c)
    return jnp.maximum(y[:, :, :, 0, :], y[:, :, :, 1, :])


def _stage_vpu(xp, w_ref, shift_ref):
    """Stage 1 (Cin=1): conv as 9 VPU broadcast FMAs + BN shift + ReLU + pool.

    xp:        (bb, h+2, w+2, 1) zero-padded input value
    w_ref:     (9, cout)         BN-scaled conv weight, rows ordered (kh, kw)
    shift_ref: (1, cout)         beta + (conv_bias - running_mean) * scale
    """
    bb, hp, wp, _ = xp.shape
    h, w = hp - 2, wp - 2
    cout = w_ref.shape[-1]
    acc = jnp.zeros((bb * h * w, cout), jnp.float32)
    for kh in range(3):
        for kw in range(3):
            t = kh * 3 + kw
            tap = xp[:, kh:kh + h, kw:kw + w, :].reshape(bb * h * w, 1)
            acc = acc + tap * w_ref[t:t + 1, :]
    y = jnp.maximum(acc + shift_ref[...], 0.0)
    return _maxpool2x2(y.reshape(bb, h, w, cout))


def _stage_mxu(xp, w_ref, shift_ref):
    """Stages 2/3: conv as 9 accumulating MXU dots (K = Cin, no zero padding).

    xp:        (bb, h+2, w+2, cin) zero-padded input value (unpadded channels)
    w_ref:     (9, cin, cout)      BN-scaled weights, tap-major (kh, kw)
    shift_ref: (1, cout)
    """
    bb, hp, wp, cin = xp.shape
    h, w = hp - 2, wp - 2
    cout = w_ref.shape[-1]
    acc = jnp.zeros((bb * h * w, cout), jnp.float32)
    for kh in range(3):
        for kw in range(3):
            t = kh * 3 + kw
            tap = xp[:, kh:kh + h, kw:kw + w, :].reshape(bb * h * w, cin)
            acc = acc + jnp.dot(tap, w_ref[t],
                                preferred_element_type=jnp.float32)
    y = jnp.maximum(acc + shift_ref[...], 0.0)
    return _maxpool2x2(y.reshape(bb, h, w, cout))


def _cnn_kernel(x_ref, w1_ref, s1_ref, w2_ref, s2_ref, w3_ref, s3_ref,
                fw1_ref, fb1_ref, fw2_ref, fb2_ref, o_ref,
                pada_ref, padb_ref, padc_ref):
    bb, h, w, _ = x_ref.shape            # one batch block per grid step

    # ---- stage 1: zero-pad into VMEM scratch, conv on the VPU --------------
    pada_ref[...] = jnp.zeros(pada_ref.shape, pada_ref.dtype)
    pada_ref[:, 1:h + 1, 1:w + 1, :] = x_ref[...]
    y1 = _stage_vpu(pada_ref[...], w1_ref, s1_ref)          # (bb, h/2, w/2, 32)

    # ---- stage 2: pooled output lands in the interior of the padded scratch
    padb_ref[...] = jnp.zeros(padb_ref.shape, padb_ref.dtype)
    padb_ref[:, 1:h // 2 + 1, 1:w // 2 + 1, :] = y1          # full-lane store
    y2 = _stage_mxu(padb_ref[...], w2_ref, s2_ref)           # (bb, h/4, w/4, 64)

    # ---- stage 3 -------------------------------------------------------------
    padc_ref[...] = jnp.zeros(padc_ref.shape, padc_ref.dtype)
    padc_ref[:, 1:h // 4 + 1, 1:w // 4 + 1, :] = y2          # full-lane store
    y3 = _stage_mxu(padc_ref[...], w3_ref, s3_ref)           # (bb, h/8, w/8, 128)

    # ---- classifier: Linear(fc_in,128) + ReLU + Linear(128, n_cls) ----------
    # fc.w1 is pre-split per spatial position (NCHW flatten order folded in),
    # so the flatten becomes h3*w3 accumulating K=128 dots -- no lane concat.
    _, h3, w3, _ = y3.shape
    hidden = fw1_ref.shape[-1]
    acc = jnp.zeros((bb, hidden), jnp.float32)
    for p in range(h3 * w3):
        i, j = p // w3, p % w3
        acc = acc + jnp.dot(y3[:, i, j, :], fw1_ref[p],
                            preferred_element_type=jnp.float32)
    hdn = jnp.maximum(acc + fb1_ref[...], 0.0)
    # TODO(synk): nn.Dropout(0.5) is an inference-time identity; no mask applied.
    logits = jnp.dot(hdn, fw2_ref[...],
                     preferred_element_type=jnp.float32) + fb2_ref[...]
    o_ref[...] = logits.reshape(bb, 1, logits.shape[-1])     # lane-dense (bb,1,128)


# ----------------------------------------------------------------------------
# One-time weight preparation (outside the hot path)
# ----------------------------------------------------------------------------
def prepare_params(params, n_chan, seg_len, n_cls):
    """Fold BN scale into conv weights, flatten them to tap-major order,
    split fc.w1 per spatial position with the NCHW flatten permutation folded
    in, and pad the final projection to a lane-dense 128-wide output."""
    assert n_cls <= LANE
    conv = []
    for p in params["conv"]:
        cout, cin = int(p["w"].shape[0]), int(p["w"].shape[1])
        scale = p["gamma"] / jnp.sqrt(p["var"] + BN_EPS)             # (Cout,)
        shift = p["beta"] + (p["b"] - p["mean"]) * scale             # (Cout,)
        w_hwio = jnp.transpose(p["w"], (2, 3, 1, 0)) * scale         # (3,3,Cin,Cout)
        if cin == 1:
            wk = w_hwio.reshape(9, cout)             # stage 1 (VPU taps)
        else:
            wk = w_hwio.reshape(9, cin, cout)        # stages 2/3 (per-tap dot)
        conv.append((wk.astype(jnp.float32),
                     shift.reshape(1, cout).astype(jnp.float32)))

    h3, w3 = n_chan // 8, seg_len // 8                # three 2x2 maxpools
    c3 = int(params["conv"][-1]["w"].shape[0])
    fc = params["fc"]
    hidden = int(fc["w1"].shape[0])
    # fold PyTorch's (c, h, w) flatten order into w1 and split per (h, w) pos
    w1p = (fc["w1"].reshape(hidden, c3, h3, w3)
           .transpose(2, 3, 1, 0)                     # (h3, w3, c3, hidden)
           .reshape(h3 * w3, c3, hidden).astype(jnp.float32))
    b1 = fc["b1"].reshape(1, hidden).astype(jnp.float32)
    # pad the final projection to a lane-dense 128-wide output
    w2p = jnp.zeros((hidden, LANE), jnp.float32).at[:, :n_cls].set(fc["w2"].T)
    b2p = jnp.zeros((1, LANE), jnp.float32).at[0, :n_cls].set(fc["b2"])
    return dict(conv=conv, w1=w1p, b1=b1, w2=w2p, b2=b2p)


# ----------------------------------------------------------------------------
# Fused forward pass (single pallas_call, batch block per grid step)
# ----------------------------------------------------------------------------
def cnn_forward_pallas(x_nchw, prep, n_cls, block_batch=8):
    n, _, h, w = x_nchw.shape
    x = x_nchw.reshape(n, h, w, 1).astype(jnp.float32)   # NCHW (C=1) -> NHWC

    (wk1, s1), (wk2, s2), (wk3, s3) = prep["conv"]
    w1p, b1, w2p, b2p = prep["w1"], prep["b1"], prep["w2"], prep["b2"]
    c1, c2 = wk1.shape[-1], wk2.shape[-1]

    # batch block per grid step; keep grid length >= 2 (both TCs on v7x) and
    # the per-step working set modest.  Pad batch to a multiple of bb.
    bb = max(1, min(block_batch, (n + 1) // 2))
    n_pad = -(-n // bb) * bb
    if n_pad != n:
        x = jnp.pad(x, ((0, n_pad - n), (0, 0), (0, 0), (0, 0)))

    def _full(a):
        nd = a.ndim
        return pl.BlockSpec(a.shape, lambda i, _nd=nd: (0,) * _nd)

    out = pl.pallas_call(
        _cnn_kernel,
        out_shape=jax.ShapeDtypeStruct((n_pad, 1, LANE), jnp.float32),
        grid=(n_pad // bb,),                              # batch-block grid axis
        in_specs=[
            pl.BlockSpec((bb, h, w, 1), lambda i: (i, 0, 0, 0)),
            _full(wk1), _full(s1),
            _full(wk2), _full(s2),
            _full(wk3), _full(s3),
            _full(w1p), _full(b1), _full(w2p), _full(b2p),
        ],
        out_specs=pl.BlockSpec((bb, 1, LANE), lambda i: (i, 0, 0)),
        scratch_shapes=[
            pltpu.VMEM((bb, h + 2, w + 2, 1), jnp.float32),          # pad stage 1
            pltpu.VMEM((bb, h // 2 + 2, w // 2 + 2, c1), jnp.float32),
            pltpu.VMEM((bb, h // 4 + 2, w // 4 + 2, c2), jnp.float32),
        ],
        compiler_params=pltpu.CompilerParams(
            dimension_semantics=("parallel",),            # megacore sharding
            vmem_limit_bytes=32 * 1024 * 1024),           # > v5e 16 MiB default
    )(x, wk1, s1, wk2, s2, wk3, s3, w1p, b1, w2p, b2p)
    return out[:n, 0, :n_cls]


# ----------------------------------------------------------------------------
# Pure-JAX reference (PyTorch semantics) for verification
# ----------------------------------------------------------------------------
def cnn_forward_ref(x_nchw, params):
    y = x_nchw.astype(jnp.float32)
    for p in params["conv"]:
        y = lax.conv_general_dilated(
            y, p["w"], window_strides=(1, 1), padding=((1, 1), (1, 1)),
            dimension_numbers=("NCHW", "OIHW", "NCHW"))
        y = y + p["b"][None, :, None, None]
        y = (y - p["mean"][None, :, None, None]) / jnp.sqrt(
            p["var"][None, :, None, None] + BN_EPS) \
            * p["gamma"][None, :, None, None] + p["beta"][None, :, None, None]
        y = jnp.maximum(y, 0.0)
        y = lax.reduce_window(y, -jnp.inf, lax.max,
                              (1, 1, 2, 2), (1, 1, 2, 2), "VALID")
    flat = y.reshape(y.shape[0], -1)
    fc = params["fc"]
    hdn = jnp.maximum(flat @ fc["w1"].T + fc["b1"], 0.0)
    return hdn @ fc["w2"].T + fc["b2"]


# ----------------------------------------------------------------------------
# Parameter construction + main
# ----------------------------------------------------------------------------
def make_params(key, n_cls, n_chan, seg_len):
    params = {"conv": [], "fc": {}}
    keys = iter(jax.random.split(key, 32))
    for cin, cout in [(1, 32), (32, 64), (64, 128)]:
        params["conv"].append(dict(
            w=0.1 * jax.random.normal(next(keys), (cout, cin, 3, 3), jnp.float32),
            b=0.1 * jax.random.normal(next(keys), (cout,), jnp.float32),
            gamma=1.0 + 0.1 * jax.random.normal(next(keys), (cout,), jnp.float32),
            beta=0.1 * jax.random.normal(next(keys), (cout,), jnp.float32),
            mean=0.1 * jax.random.normal(next(keys), (cout,), jnp.float32),
            var=1.0 + 0.5 * jax.random.uniform(next(keys), (cout,), jnp.float32),
        ))
    fc_in = 128 * (n_chan // 8) * (seg_len // 8)  # three 2x2 maxpools
    params["fc"] = dict(
        w1=0.05 * jax.random.normal(next(keys), (128, fc_in), jnp.float32),
        b1=0.05 * jax.random.normal(next(keys), (128,), jnp.float32),
        w2=0.1 * jax.random.normal(next(keys), (n_cls, 128), jnp.float32),
        b2=0.1 * jax.random.normal(next(keys), (n_cls,), jnp.float32),
    )
    return params


if __name__ == "__main__":
    n_cls, n_chan, seg_len, batch = 4, 16, 16, 4  # Config.SEGMENT_LENGTH = 16
    key = jax.random.PRNGKey(0)
    k_param, k_x = jax.random.split(key)
    params = make_params(k_param, n_cls, n_chan, seg_len)
    x = jax.random.normal(k_x, (batch, 1, n_chan, seg_len), jnp.float32)

    prep = prepare_params(params, n_chan, seg_len, n_cls)   # one-time weight prep
    fwd = jax.jit(cnn_forward_pallas, static_argnames=("n_cls", "block_batch"))

    out = jax.block_until_ready(fwd(x, prep, n_cls=n_cls))
    ref = jax.block_until_ready(cnn_forward_ref(x, params))

    assert out.shape == (batch, n_cls), out.shape
    assert jnp.allclose(out, ref, atol=1e-3, rtol=1e-3), (out, ref)
    print("KERNEL_OK")
</pallas_src>

<mosaic_0001>
module attributes {stable_mosaic.version = 11 : i64} {
  func.func @_cnn_kernel(%arg0: i32, %arg1: memref<2x16x16x1xf32, #tpu.memory_space<vmem>>, %arg2: memref<9x32xf32, #tpu.memory_space<vmem>>, %arg3: memref<1x32xf32, #tpu.memory_space<vmem>>, %arg4: memref<9x32x64xf32, #tpu.memory_space<vmem>>, %arg5: memref<1x64xf32, #tpu.memory_space<vmem>>, %arg6: memref<9x64x128xf32, #tpu.memory_space<vmem>>, %arg7: memref<1x128xf32, #tpu.memory_space<vmem>>, %arg8: memref<4x128x128xf32, #tpu.memory_space<vmem>>, %arg9: memref<1x128xf32, #tpu.memory_space<vmem>>, %arg10: memref<128x128xf32, #tpu.memory_space<vmem>>, %arg11: memref<1x128xf32, #tpu.memory_space<vmem>>, %arg12: memref<2x1x128xf32, #tpu.memory_space<vmem>>, %arg13: memref<2x18x18x1xf32, #tpu.memory_space<vmem>>, %arg14: memref<2x10x10x32xf32, #tpu.memory_space<vmem>>, %arg15: memref<2x6x6x64xf32, #tpu.memory_space<vmem>>) attributes {dimension_semantics = [#tpu.dimension_semantics<parallel>], iteration_bounds = array<i64: 2>, scalar_prefetch = 0 : i64, scratch_operands = 3 : i64, tpu.core_type = #tpu.core_type<tc>, window_params = [{transform_indices = @transform_0, window_bounds = array<i64: 2, 16, 16, 1>}, {pipeline_mode = #tpu.pipeline_mode<synchronous>, transform_indices = @transform_1, window_bounds = array<i64: 9, 32>}, {pipeline_mode = #tpu.pipeline_mode<synchronous>, transform_indices = @transform_2, window_bounds = array<i64: 1, 32>}, {pipeline_mode = #tpu.pipeline_mode<synchronous>, transform_indices = @transform_3, window_bounds = array<i64: 9, 32, 64>}, {pipeline_mode = #tpu.pipeline_mode<synchronous>, transform_indices = @transform_4, window_bounds = array<i64: 1, 64>}, {pipeline_mode = #tpu.pipeline_mode<synchronous>, transform_indices = @transform_5, window_bounds = array<i64: 9, 64, 128>}, {pipeline_mode = #tpu.pipeline_mode<synchronous>, transform_indices = @transform_6, window_bounds = array<i64: 1, 128>}, {pipeline_mode = #tpu.pipeline_mode<synchronous>, transform_indices = @transform_7, window_bounds = array<i64: 4, 128, 128>}, {pipeline_mode = #tpu.pipeline_mode<synchronous>, transform_indices = @transform_8, window_bounds = array<i64: 1, 128>}, {pipeline_mode = #tpu.pipeline_mode<synchronous>, transform_indices = @transform_9, window_bounds = array<i64: 128, 128>}, {pipeline_mode = #tpu.pipeline_mode<synchronous>, transform_indices = @transform_10, window_bounds = array<i64: 1, 128>}, {transform_indices = @transform_11, window_bounds = array<i64: 2, 1, 128>}]} {
    %cst = arith.constant 0.000000e+00 : f32
    %0 = vector.broadcast %cst : f32 to vector<2x18x18x1xf32>
    %c0 = arith.constant 0 : index
    %c0_0 = arith.constant 0 : index
    %c0_1 = arith.constant 0 : index
    %c0_2 = arith.constant 0 : index
    %1 = vector.load %arg13[%c0, %c0_0, %c0_1, %c0_2] : memref<2x18x18x1xf32, #tpu.memory_space<vmem>>, vector<2x18x18x1xf32>
    tpu.vector_store %arg13[%c0, %c0_0, %c0_1, %c0_2], %0 {strides = array<i32>} : memref<2x18x18x1xf32, #tpu.memory_space<vmem>>, vector<2x18x18x1xf32>,
    %c0_3 = arith.constant 0 : index
    %c0_4 = arith.constant 0 : index
    %c0_5 = arith.constant 0 : index
    %c0_6 = arith.constant 0 : index
    %2 = vector.load %arg1[%c0_3, %c0_4, %c0_5, %c0_6] : memref<2x16x16x1xf32, #tpu.memory_space<vmem>>, vector<2x16x16x1xf32>
    %c0_7 = arith.constant 0 : index
    %c1 = arith.constant 1 : index
    %c1_8 = arith.constant 1 : index
    %c0_9 = arith.constant 0 : index
    %3 = vector.load %arg13[%c0_7, %c1, %c1_8, %c0_9] : memref<2x18x18x1xf32, #tpu.memory_space<vmem>>, vector<2x16x16x1xf32>
    tpu.vector_store %arg13[%c0_7, %c1, %c1_8, %c0_9], %2 {strides = array<i32>} : memref<2x18x18x1xf32, #tpu.memory_space<vmem>>, vector<2x16x16x1xf32>,
    %c0_10 = arith.constant 0 : index
    %c0_11 = arith.constant 0 : index
    %c0_12 = arith.constant 0 : index
    %c0_13 = arith.constant 0 : index
    %4 = vector.load %arg13[%c0_10, %c0_11, %c0_12, %c0_13] : memref<2x18x18x1xf32, #tpu.memory_space<vmem>>, vector<2x18x18x1xf32>
    %cst_14 = arith.constant 0.000000e+00 : f32
    %5 = vector.broadcast %cst_14 : f32 to vector<512x32xf32>
    %6 = vector.extract_strided_slice %4 {offsets = [0, 0, 0, 0], sizes = [2, 16, 16, 1], strides = [1, 1, 1, 1]} : vector<2x18x18x1xf32> to vector<2x16x16x1xf32>
    %7 = vector.shape_cast %6 : vector<2x16x16x1xf32> to vector<512x1xf32>
    %c0_15 = arith.constant 0 : index
    %c0_16 = arith.constant 0 : index
    %8 = vector.load %arg2[%c0_15, %c0_16] : memref<9x32xf32, #tpu.memory_space<vmem>>, vector<1x32xf32>
    %9 = vector.broadcast %7 : vector<512x1xf32> to vector<512x32xf32>
    %10 = vector.broadcast %8 : vector<1x32xf32> to vector<512x32xf32>
    %11 = arith.mulf %9, %10 : vector<512x32xf32>
    %12 = arith.addf %5, %11 : vector<512x32xf32>
    %13 = vector.extract_strided_slice %4 {offsets = [0, 0, 1, 0], sizes = [2, 16, 16, 1], strides = [1, 1, 1, 1]} : vector<2x18x18x1xf32> to vector<2x16x16x1xf32>
    %14 = vector.shape_cast %13 : vector<2x16x16x1xf32> to vector<512x1xf32>
    %c1_17 = arith.constant 1 : index
    %c0_18 = arith.constant 0 : index
    %15 = vector.load %arg2[%c1_17, %c0_18] : memref<9x32xf32, #tpu.memory_space<vmem>>, vector<1x32xf32>
    %16 = vector.broadcast %14 : vector<512x1xf32> to vector<512x32xf32>
    %17 = vector.broadcast %15 : vector<1x32xf32> to vector<512x32xf32>
    %18 = arith.mulf %16, %17 : vector<512x32xf32>
    %19 = arith.addf %12, %18 : vector<512x32xf32>
    %20 = vector.extract_strided_slice %4 {offsets = [0, 0, 2, 0], sizes = [2, 16, 16, 1], strides = [1, 1, 1, 1]} : vector<2x18x18x1xf32> to vector<2x16x16x1xf32>
    %21 = vector.shape_cast %20 : vector<2x16x16x1xf32> to vector<512x1xf32>
    %c2 = arith.constant 2 : index
    %c0_19 = arith.constant 0 : index
    %22 = vector.load %arg2[%c2, %c0_19] : memref<9x32xf32, #tpu.memory_space<vmem>>, vector<1x32xf32>
    %23 = vector.broadcast %21 : vector<512x1xf32> to vector<512x32xf32>
    %24 = vector.broadcast %22 : vector<1x32xf32> to vector<512x32xf32>
    %25 = arith.mulf %23, %24 : vector<512x32xf32>
    %26 = arith.addf %19, %25 : vector<512x32xf32>
    %27 = vector.extract_strided_slice %4 {offsets = [0, 1, 0, 0], sizes = [2, 16, 16, 1], strides = [1, 1, 1, 1]} : vector<2x18x18x1xf32> to vector<2x16x16x1xf32>
    %28 = vector.shape_cast %27 : vector<2x16x16x1xf32> to vector<512x1xf32>
    %c3 = arith.constant 3 : index
    %c0_20 = arith.constant 0 : index
    %29 = vector.load %arg2[%c3, %c0_20] : memref<9x32xf32, #tpu.memory_space<vmem>>, vector<1x32xf32>
    %30 = vector.broadcast %28 : vector<512x1xf32> to vector<512x32xf32>
    %31 = vector.broadcast %29 : vector<1x32xf32> to vector<512x32xf32>
    %32 = arith.mulf %30, %31 : vector<512x32xf32>
    %33 = arith.addf %26, %32 : vector<512x32xf32>
    %34 = vector.extract_strided_slice %4 {offsets = [0, 1, 1, 0], sizes = [2, 16, 16, 1], strides = [1, 1, 1, 1]} : vector<2x18x18x1xf32> to vector<2x16x16x1xf32>
    %35 = vector.shape_cast %34 : vector<2x16x16x1xf32> to vector<512x1xf32>
    %c4 = arith.constant 4 : index
    %c0_21 = arith.constant 0 : index
    %36 = vector.load %arg2[%c4, %c0_21] : memref<9x32xf32, #tpu.memory_space<vmem>>, vector<1x32xf32>
    %37 = vector.broadcast %35 : vector<512x1xf32> to vector<512x32xf32>
    %38 = vector.broadcast %36 : vector<1x32xf32> to vector<512x32xf32>
    %39 = arith.mulf %37, %38 : vector<512x32xf32>
    %40 = arith.addf %33, %39 : vector<512x32xf32>
    %41 = vector.extract_strided_slice %4 {offsets = [0, 1, 2, 0], sizes = [2, 16, 16, 1], strides = [1, 1, 1, 1]} : vector<2x18x18x1xf32> to vector<2x16x16x1xf32>
    %42 = vector.shape_cast %41 : vector<2x16x16x1xf32> to vector<512x1xf32>
    %c5 = arith.constant 5 : index
    %c0_22 = arith.constant 0 : index
    %43 = vector.load %arg2[%c5, %c0_22] : memref<9x32xf32, #tpu.memory_space<vmem>>, vector<1x32xf32>
    %44 = vector.broadcast %42 : vector<512x1xf32> to vector<512x32xf32>
    %45 = vector.broadcast %43 : vector<1x32xf32> to vector<512x32xf32>
    %46 = arith.mulf %44, %45 : vector<512x32xf32>
    %47 = arith.addf %40, %46 : vector<512x32xf32>
    %48 = vector.extract_strided_slice %4 {offsets = [0, 2, 0, 0], sizes = [2, 16, 16, 1], strides = [1, 1, 1, 1]} : vector<2x18x18x1xf32> to vector<2x16x16x1xf32>
    %49 = vector.shape_cast %48 : vector<2x16x16x1xf32> to vector<512x1xf32>
    %c6 = arith.constant 6 : index
    %c0_23 = arith.constant 0 : index
    %50 = vector.load %arg2[%c6, %c0_23] : memref<9x32xf32, #tpu.memory_space<vmem>>, vector<1x32xf32>
    %51 = vector.broadcast %49 : vector<512x1xf32> to vector<512x32xf32>
    %52 = vector.broadcast %50 : vector<1x32xf32> to vector<512x32xf32>
    %53 = arith.mulf %51, %52 : vector<512x32xf32>
    %54 = arith.addf %47, %53 : vector<512x32xf32>
    %55 = vector.extract_strided_slice %4 {offsets = [0, 2, 1, 0], sizes = [2, 16, 16, 1], strides = [1, 1, 1, 1]} : vector<2x18x18x1xf32> to vector<2x16x16x1xf32>
    %56 = vector.shape_cast %55 : vector<2x16x16x1xf32> to vector<512x1xf32>
    %c7 = arith.constant 7 : index
    %c0_24 = arith.constant 0 : index
    %57 = vector.load %arg2[%c7, %c0_24] : memref<9x32xf32, #tpu.memory_space<vmem>>, vector<1x32xf32>
    %58 = vector.broadcast %56 : vector<512x1xf32> to vector<512x32xf32>
    %59 = vector.broadcast %57 : vector<1x32xf32> to vector<512x32xf32>
    %60 = arith.mulf %58, %59 : vector<512x32xf32>
    %61 = arith.addf %54, %60 : vector<512x32xf32>
    %62 = vector.extract_strided_slice %4 {offsets = [0, 2, 2, 0], sizes = [2, 16, 16, 1], strides = [1, 1, 1, 1]} : vector<2x18x18x1xf32> to vector<2x16x16x1xf32>
    %63 = vector.shape_cast %62 : vector<2x16x16x1xf32> to vector<512x1xf32>
    %c8 = arith.constant 8 : index
    %c0_25 = arith.constant 0 : index
    %64 = vector.load %arg2[%c8, %c0_25] : memref<9x32xf32, #tpu.memory_space<vmem>>, vector<1x32xf32>
    %65 = vector.broadcast %63 : vector<512x1xf32> to vector<512x32xf32>
    %66 = vector.broadcast %64 : vector<1x32xf32> to vector<512x32xf32>
    %67 = arith.mulf %65, %66 : vector<512x32xf32>
    %68 = arith.addf %61, %67 : vector<512x32xf32>
    %c0_26 = arith.constant 0 : index
    %c0_27 = arith.constant 0 : index
    %69 = vector.load %arg3[%c0_26, %c0_27] : memref<1x32xf32, #tpu.memory_space<vmem>>, vector<1x32xf32>
    %70 = vector.broadcast %69 : vector<1x32xf32> to vector<512x32xf32>
    %71 = arith.addf %68, %70 : vector<512x32xf32>
    %cst_28 = arith.constant 0.000000e+00 : f32
    %72 = vector.broadcast %cst_28 : f32 to vector<512x32xf32>
    %73 = arith.maximumf %71, %72 : vector<512x32xf32>
    %74 = vector.shape_cast %73 : vector<512x32xf32> to vector<2x16x16x32xf32>
    %75 = vector.shape_cast %74 : vector<2x16x16x32xf32> to vector<2x8x2x16x32xf32>
    %76 = vector.extract_strided_slice %75 {offsets = [0, 0, 0, 0, 0], sizes = [2, 8, 1, 16, 32], strides = [1, 1, 1, 1, 1]} : vector<2x8x2x16x32xf32> to vector<2x8x1x16x32xf32>
    %77 = vector.shape_cast %76 : vector<2x8x1x16x32xf32> to vector<2x8x16x32xf32>
    %78 = vector.extract_strided_slice %75 {offsets = [0, 0, 1, 0, 0], sizes = [2, 8, 1, 16, 32], strides = [1, 1, 1, 1, 1]} : vector<2x8x2x16x32xf32> to vector<2x8x1x16x32xf32>
    %79 = vector.shape_cast %78 : vector<2x8x1x16x32xf32> to vector<2x8x16x32xf32>
    %80 = arith.maximumf %77, %79 : vector<2x8x16x32xf32>
    %81 = vector.shape_cast %80 : vector<2x8x16x32xf32> to vector<2x8x8x2x32xf32>
    %82 = vector.extract_strided_slice %81 {offsets = [0, 0, 0, 0, 0], sizes = [2, 8, 8, 1, 32], strides = [1, 1, 1, 1, 1]} : vector<2x8x8x2x32xf32> to vector<2x8x8x1x32xf32>
    %83 = vector.shape_cast %82 : vector<2x8x8x1x32xf32> to vector<2x8x8x32xf32>
    %84 = vector.extract_strided_slice %81 {offsets = [0, 0, 0, 1, 0], sizes = [2, 8, 8, 1, 32], strides = [1, 1, 1, 1, 1]} : vector<2x8x8x2x32xf32> to vector<2x8x8x1x32xf32>
    %85 = vector.shape_cast %84 : vector<2x8x8x1x32xf32> to vector<2x8x8x32xf32>
    %86 = arith.maximumf %83, %85 : vector<2x8x8x32xf32>
    %cst_29 = arith.constant 0.000000e+00 : f32
    %87 = vector.broadcast %cst_29 : f32 to vector<2x10x10x32xf32>
    %c0_30 = arith.constant 0 : index
    %c0_31 = arith.constant 0 : index
    %c0_32 = arith.constant 0 : index
    %c0_33 = arith.constant 0 : index
    %88 = vector.load %arg14[%c0_30, %c0_31, %c0_32, %c0_33] : memref<2x10x10x32xf32, #tpu.memory_space<vmem>>, vector<2x10x10x32xf32>
    tpu.vector_store %arg14[%c0_30, %c0_31, %c0_32, %c0_33], %87 {strides = array<i32>} : memref<2x10x10x32xf32, #tpu.memory_space<vmem>>, vector<2x10x10x32xf32>,
    %c0_34 = arith.constant 0 : index
    %c1_35 = arith.constant 1 : index
    %c1_36 = arith.constant 1 : index
    %c0_37 = arith.constant 0 : index
    %89 = vector.load %arg14[%c0_34, %c1_35, %c1_36, %c0_37] : memref<2x10x10x32xf32, #tpu.memory_space<vmem>>, vector<2x8x8x32xf32>
    tpu.vector_store %arg14[%c0_34, %c1_35, %c1_36, %c0_37], %86 {strides = array<i32>} : memref<2x10x10x32xf32, #tpu.memory_space<vmem>>, vector<2x8x8x32xf32>,
    %c0_38 = arith.constant 0 : index
    %c0_39 = arith.constant 0 : index
    %c0_40 = arith.constant 0 : index
    %c0_41 = arith.constant 0 : index
    %90 = vector.load %arg14[%c0_38, %c0_39, %c0_40, %c0_41] : memref<2x10x10x32xf32, #tpu.memory_space<vmem>>, vector<2x10x10x32xf32>
    %cst_42 = arith.constant 0.000000e+00 : f32
    %91 = vector.broadcast %cst_42 : f32 to vector<128x64xf32>
    %92 = vector.extract_strided_slice %90 {offsets = [0, 0, 0, 0], sizes = [2, 8, 8, 32], strides = [1, 1, 1, 1]} : vector<2x10x10x32xf32> to vector<2x8x8x32xf32>
    %93 = vector.shape_cast %92 : vector<2x8x8x32xf32> to vector<128x32xf32>
    %c0_43 = arith.constant 0 : index
    %c0_44 = arith.constant 0 : index
    %c0_45 = arith.constant 0 : index
    %94 = vector.load %arg4[%c0_43, %c0_44, %c0_45] : memref<9x32x64xf32, #tpu.memory_space<vmem>>, vector<1x32x64xf32>
    %95 = vector.shape_cast %94 : vector<1x32x64xf32> to vector<32x64xf32>
    %cst_46 = arith.constant dense<0.000000e+00> : vector<128x64xf32>
    %96 = tpu.matmul %93, %95, %cst_46 {dimension_numbers = #tpu.dot_dimension_numbers<[1], [0], [0], [1], [0, 0, 1, 1], [], []>} : vector<128x32xf32>, vector<32x64xf32>, vector<128x64xf32> -> vector<128x64xf32>
    %97 = arith.addf %91, %96 : vector<128x64xf32>
    %98 = vector.extract_strided_slice %90 {offsets = [0, 0, 1, 0], sizes = [2, 8, 8, 32], strides = [1, 1, 1, 1]} : vector<2x10x10x32xf32> to vector<2x8x8x32xf32>
    %99 = vector.shape_cast %98 : vector<2x8x8x32xf32> to vector<128x32xf32>
    %c1_47 = arith.constant 1 : index
    %c0_48 = arith.constant 0 : index
    %c0_49 = arith.constant 0 : index
    %100 = vector.load %arg4[%c1_47, %c0_48, %c0_49] : memref<9x32x64xf32, #tpu.memory_space<vmem>>, vector<1x32x64xf32>
    %101 = vector.shape_cast %100 : vector<1x32x64xf32> to vector<32x64xf32>
    %cst_50 = arith.constant dense<0.000000e+00> : vector<128x64xf32>
    %102 = tpu.matmul %99, %101, %cst_50 {dimension_numbers = #tpu.dot_dimension_numbers<[1], [0], [0], [1], [0, 0, 1, 1], [], []>} : vector<128x32xf32>, vector<32x64xf32>, vector<128x64xf32> -> vector<128x64xf32>
    %103 = arith.addf %97, %102 : vector<128x64xf32>
    %104 = vector.extract_strided_slice %90 {offsets = [0, 0, 2, 0], sizes = [2, 8, 8, 32], strides = [1, 1, 1, 1]} : vector<2x10x10x32xf32> to vector<2x8x8x32xf32>
    %105 = vector.shape_cast %104 : vector<2x8x8x32xf32> to vector<128x32xf32>
    %c2_51 = arith.constant 2 : index
    %c0_52 = arith.constant 0 : index
    %c0_53 = arith.constant 0 : index
    %106 = vector.load %arg4[%c2_51, %c0_52, %c0_53] : memref<9x32x64xf32, #tpu.memory_space<vmem>>, vector<1x32x64xf32>
    %107 = vector.shape_cast %106 : vector<1x32x64xf32> to vector<32x64xf32>
    %cst_54 = arith.constant dense<0.000000e+00> : vector<128x64xf32>
    %108 = tpu.matmul %105, %107, %cst_54 {dimension_numbers = #tpu.dot_dimension_numbers<[1], [0], [0], [1], [0, 0, 1, 1], [], []>} : vector<128x32xf32>, vector<32x64xf32>, vector<128x64xf32> -> vector<128x64xf32>
    %109 = arith.addf %103, %108 : vector<128x64xf32>
    %110 = vector.extract_strided_slice %90 {offsets = [0, 1, 0, 0], sizes = [2, 8, 8, 32], strides = [1, 1, 1, 1]} : vector<2x10x10x32xf32> to vector<2x8x8x32xf32>
    %111 = vector.shape_cast %110 : vector<2x8x8x32xf32> to vector<128x32xf32>
    %c3_55 = arith.constant 3 : index
    %c0_56 = arith.constant 0 : index
    %c0_57 = arith.constant 0 : index
    %112 = vector.load %arg4[%c3_55, %c0_56, %c0_57] : memref<9x32x64xf32, #tpu.memory_space<vmem>>, vector<1x32x64xf32>
    %113 = vector.shape_cast %112 : vector<1x32x64xf32> to vector<32x64xf32>
    %cst_58 = arith.constant dense<0.000000e+00> : vector<128x64xf32>
    %114 = tpu.matmul %111, %113, %cst_58 {dimension_numbers = #tpu.dot_dimension_numbers<[1], [0], [0], [1], [0, 0, 1, 1], [], []>} : vector<128x32xf32>, vector<32x64xf32>, vector<128x64xf32> -> vector<128x64xf32>
    %115 = arith.addf %109, %114 : vector<128x64xf32>
    %116 = vector.extract_strided_slice %90 {offsets = [0, 1, 1, 0], sizes = [2, 8, 8, 32], strides = [1, 1, 1, 1]} : vector<2x10x10x32xf32> to vector<2x8x8x32xf32>
    %117 = vector.shape_cast %116 : vector<2x8x8x32xf32> to vector<128x32xf32>
    %c4_59 = arith.constant 4 : index
    %c0_60 = arith.constant 0 : index
    %c0_61 = arith.constant 0 : index
    %118 = vector.load %arg4[%c4_59, %c0_60, %c0_61] : memref<9x32x64xf32, #tpu.memory_space<vmem>>, vector<1x32x64xf32>
    %119 = vector.shape_cast %118 : vector<1x32x64xf32> to vector<32x64xf32>
    %cst_62 = arith.constant dense<0.000000e+00> : vector<128x64xf32>
    %120 = tpu.matmul %117, %119, %cst_62 {dimension_numbers = #tpu.dot_dimension_numbers<[1], [0], [0], [1], [0, 0, 1, 1], [], []>} : vector<128x32xf32>, vector<32x64xf32>, vector<128x64xf32> -> vector<128x64xf32>
    %121 = arith.addf %115, %120 : vector<128x64xf32>
    %122 = vector.extract_strided_slice %90 {offsets = [0, 1, 2, 0], sizes = [2, 8, 8, 32], strides = [1, 1, 1, 1]} : vector<2x10x10x32xf32> to vector<2x8x8x32xf32>
    %123 = vector.shape_cast %122 : vector<2x8x8x32xf32> to vector<128x32xf32>
    %c5_63 = arith.constant 5 : index
    %c0_64 = arith.constant 0 : index
    %c0_65 = arith.constant 0 : index
    %124 = vector.load %arg4[%c5_63, %c0_64, %c0_65] : memref<9x32x64xf32, #tpu.memory_space<vmem>>, vector<1x32x64xf32>
    %125 = vector.shape_cast %124 : vector<1x32x64xf32> to vector<32x64xf32>
    %cst_66 = arith.constant dense<0.000000e+00> : vector<128x64xf32>
    %126 = tpu.matmul %123, %125, %cst_66 {dimension_numbers = #tpu.dot_dimension_numbers<[1], [0], [0], [1], [0, 0, 1, 1], [], []>} : vector<128x32xf32>, vector<32x64xf32>, vector<128x64xf32> -> vector<128x64xf32>
    %127 = arith.addf %121, %126 : vector<128x64xf32>
    %128 = vector.extract_strided_slice %90 {offsets = [0, 2, 0, 0], sizes = [2, 8, 8, 32], strides = [1, 1, 1, 1]} : vector<2x10x10x32xf32> to vector<2x8x8x32xf32>
    %129 = vector.shape_cast %128 : vector<2x8x8x32xf32> to vector<128x32xf32>
    %c6_67 = arith.constant 6 : index
    %c0_68 = arith.constant 0 : index
    %c0_69 = arith.constant 0 : index
    %130 = vector.load %arg4[%c6_67, %c0_68, %c0_69] : memref<9x32x64xf32, #tpu.memory_space<vmem>>, vector<1x32x64xf32>
    %131 = vector.shape_cast %130 : vector<1x32x64xf32> to vector<32x64xf32>
    %cst_70 = arith.constant dense<0.000000e+00> : vector<128x64xf32>
    %132 = tpu.matmul %129, %131, %cst_70 {dimension_numbers = #tpu.dot_dimension_numbers<[1], [0], [0], [1], [0, 0, 1, 1], [], []>} : vector<128x32xf32>, vector<32x64xf32>, vector<128x64xf32> -> vector<128x64xf32>
    %133 = arith.addf %127, %132 : vector<128x64xf32>
    %134 = vector.extract_strided_slice %90 {offsets = [0, 2, 1, 0], sizes = [2, 8, 8, 32], strides = [1, 1, 1, 1]} : vector<2x10x10x32xf32> to vector<2x8x8x32xf32>
    %135 = vector.shape_cast %134 : vector<2x8x8x32xf32> to vector<128x32xf32>
    %c7_71 = arith.constant 7 : index
    %c0_72 = arith.constant 0 : index
    %c0_73 = arith.constant 0 : index
    %136 = vector.load %arg4[%c7_71, %c0_72, %c0_73] : memref<9x32x64xf32, #tpu.memory_space<vmem>>, vector<1x32x64xf32>
    %137 = vector.shape_cast %136 : vector<1x32x64xf32> to vector<32x64xf32>
    %cst_74 = arith.constant dense<0.000000e+00> : vector<128x64xf32>
    %138 = tpu.matmul %135, %137, %cst_74 {dimension_numbers = #tpu.dot_dimension_numbers<[1], [0], [0], [1], [0, 0, 1, 1], [], []>} : vector<128x32xf32>, vector<32x64xf32>, vector<128x64xf32> -> vector<128x64xf32>
    %139 = arith.addf %133, %138 : vector<128x64xf32>
    %140 = vector.extract_strided_slice %90 {offsets = [0, 2, 2, 0], sizes = [2, 8, 8, 32], strides = [1, 1, 1, 1]} : vector<2x10x10x32xf32> to vector<2x8x8x32xf32>
    %141 = vector.shape_cast %140 : vector<2x8x8x32xf32> to vector<128x32xf32>
    %c8_75 = arith.constant 8 : index
    %c0_76 = arith.constant 0 : index
    %c0_77 = arith.constant 0 : index
    %142 = vector.load %arg4[%c8_75, %c0_76, %c0_77] : memref<9x32x64xf32, #tpu.memory_space<vmem>>, vector<1x32x64xf32>
    %143 = vector.shape_cast %142 : vector<1x32x64xf32> to vector<32x64xf32>
    %cst_78 = arith.constant dense<0.000000e+00> : vector<128x64xf32>
    %144 = tpu.matmul %141, %143, %cst_78 {dimension_numbers = #tpu.dot_dimension_numbers<[1], [0], [0], [1], [0, 0, 1, 1], [], []>} : vector<128x32xf32>, vector<32x64xf32>, vector<128x64xf32> -> vector<128x64xf32>
    %145 = arith.addf %139, %144 : vector<128x64xf32>
    %c0_79 = arith.constant 0 : index
    %c0_80 = arith.constant 0 : index
    %146 = vector.load %arg5[%c0_79, %c0_80] : memref<1x64xf32, #tpu.memory_space<vmem>>, vector<1x64xf32>
    %147 = vector.broadcast %146 : vector<1x64xf32> to vector<128x64xf32>
    %148 = arith.addf %145, %147 : vector<128x64xf32>
    %cst_81 = arith.constant 0.000000e+00 : f32
    %149 = vector.broadcast %cst_81 : f32 to vector<128x64xf32>
    %150 = arith.maximumf %148, %149 : vector<128x64xf32>
    %151 = vector.shape_cast %150 : vector<128x64xf32> to vector<2x8x8x64xf32>
    %152 = vector.shape_cast %151 : vector<2x8x8x64xf32> to vector<2x4x2x8x64xf32>
    %153 = vector.extract_strided_slice %152 {offsets = [0, 0, 0, 0, 0], sizes = [2, 4, 1, 8, 64], strides = [1, 1, 1, 1, 1]} : vector<2x4x2x8x64xf32> to vector<2x4x1x8x64xf32>
    %154 = vector.shape_cast %153 : vector<2x4x1x8x64xf32> to vector<2x4x8x64xf32>
    %155 = vector.extract_strided_slice %152 {offsets = [0, 0, 1, 0, 0], sizes = [2, 4, 1, 8, 64], strides = [1, 1, 1, 1, 1]} : vector<2x4x2x8x64xf32> to vector<2x4x1x8x64xf32>
    %156 = vector.shape_cast %155 : vector<2x4x1x8x64xf32> to vector<2x4x8x64xf32>
    %157 = arith.maximumf %154, %156 : vector<2x4x8x64xf32>
    %158 = vector.shape_cast %157 : vector<2x4x8x64xf32> to vector<2x4x4x2x64xf32>
    %159 = vector.extract_strided_slice %158 {offsets = [0, 0, 0, 0, 0], sizes = [2, 4, 4, 1, 64], strides = [1, 1, 1, 1, 1]} : vector<2x4x4x2x64xf32> to vector<2x4x4x1x64xf32>
    %160 = vector.shape_cast %159 : vector<2x4x4x1x64xf32> to vector<2x4x4x64xf32>
    %161 = vector.extract_strided_slice %158 {offsets = [0, 0, 0, 1, 0], sizes = [2, 4, 4, 1, 64], strides = [1, 1, 1, 1, 1]} : vector<2x4x4x2x64xf32> to vector<2x4x4x1x64xf32>
    %162 = vector.shape_cast %161 : vector<2x4x4x1x64xf32> to vector<2x4x4x64xf32>
    %163 = arith.maximumf %160, %162 : vector<2x4x4x64xf32>
    %cst_82 = arith.constant 0.000000e+00 : f32
    %164 = vector.broadcast %cst_82 : f32 to vector<2x6x6x64xf32>
    %c0_83 = arith.constant 0 : index
    %c0_84 = arith.constant 0 : index
    %c0_85 = arith.constant 0 : index
    %c0_86 = arith.constant 0 : index
    %165 = vector.load %arg15[%c0_83, %c0_84, %c0_85, %c0_86] : memref<2x6x6x64xf32, #tpu.memory_space<vmem>>, vector<2x6x6x64xf32>
    tpu.vector_store %arg15[%c0_83, %c0_84, %c0_85, %c0_86], %164 {strides = array<i32>} : memref<2x6x6x64xf32, #tpu.memory_space<vmem>>, vector<2x6x6x64xf32>,
    %c0_87 = arith.constant 0 : index
    %c1_88 = arith.constant 1 : index
    %c1_89 = arith.constant 1 : index
    %c0_90 = arith.constant 0 : index
    %166 = vector.load %arg15[%c0_87, %c1_88, %c1_89, %c0_90] : memref<2x6x6x64xf32, #tpu.memory_space<vmem>>, vector<2x4x4x64xf32>
    tpu.vector_store %arg15[%c0_87, %c1_88, %c1_89, %c0_90], %163 {strides = array<i32>} : memref<2x6x6x64xf32, #tpu.memory_space<vmem>>, vector<2x4x4x64xf32>,
    %c0_91 = arith.constant 0 : index
    %c0_92 = arith.constant 0 : index
    %c0_93 = arith.constant 0 : index
    %c0_94 = arith.constant 0 : index
    %167 = vector.load %arg15[%c0_91, %c0_92, %c0_93, %c0_94] : memref<2x6x6x64xf32, #tpu.memory_space<vmem>>, vector<2x6x6x64xf32>
    %cst_95 = arith.constant 0.000000e+00 : f32
    %168 = vector.broadcast %cst_95 : f32 to vector<32x128xf32>
    %169 = vector.extract_strided_slice %167 {offsets = [0, 0, 0, 0], sizes = [2, 4, 4, 64], strides = [1, 1, 1, 1]} : vector<2x6x6x64xf32> to vector<2x4x4x64xf32>
    %170 = vector.shape_cast %169 : vector<2x4x4x64xf32> to vector<32x64xf32>
    %c0_96 = arith.constant 0 : index
    %c0_97 = arith.constant 0 : index
    %c0_98 = arith.constant 0 : index
    %171 = vector.load %arg6[%c0_96, %c0_97, %c0_98] : memref<9x64x128xf32, #tpu.memory_space<vmem>>, vector<1x64x128xf32>
    %172 = vector.shape_cast %171 : vector<1x64x128xf32> to vector<64x128xf32>
    %cst_99 = arith.constant dense<0.000000e+00> : vector<32x128xf32>
    %173 = tpu.matmul %170, %172, %cst_99 {dimension_numbers = #tpu.dot_dimension_numbers<[1], [0], [0], [1], [0, 0, 1, 1], [], []>} : vector<32x64xf32>, vector<64x128xf32>, vector<32x128xf32> -> vector<32x128xf32>
    %174 = arith.addf %168, %173 : vector<32x128xf32>
    %175 = vector.extract_strided_slice %167 {offsets = [0, 0, 1, 0], sizes = [2, 4, 4, 64], strides = [1, 1, 1, 1]} : vector<2x6x6x64xf32> to vector<2x4x4x64xf32>
    %176 = vector.shape_cast %175 : vector<2x4x4x64xf32> to vector<32x64xf32>
    %c1_100 = arith.constant 1 : index
    %c0_101 = arith.constant 0 : index
    %c0_102 = arith.constant 0 : index
    %177 = vector.load %arg6[%c1_100, %c0_101, %c0_102] : memref<9x64x128xf32, #tpu.memory_space<vmem>>, vector<1x64x128xf32>
    %178 = vector.shape_cast %177 : vector<1x64x128xf32> to vector<64x128xf32>
    %cst_103 = arith.constant dense<0.000000e+00> : vector<32x128xf32>
    %179 = tpu.matmul %176, %178, %cst_103 {dimension_numbers = #tpu.dot_dimension_numbers<[1], [0], [0], [1], [0, 0, 1, 1], [], []>} : vector<32x64xf32>, vector<64x128xf32>, vector<32x128xf32> -> vector<32x128xf32>
    %180 = arith.addf %174, %179 : vector<32x128xf32>
    %181 = vector.extract_strided_slice %167 {offsets = [0, 0, 2, 0], sizes = [2, 4, 4, 64], strides = [1, 1, 1, 1]} : vector<2x6x6x64xf32> to vector<2x4x4x64xf32>
    %182 = vector.shape_cast %181 : vector<2x4x4x64xf32> to vector<32x64xf32>
    %c2_104 = arith.constant 2 : index
    %c0_105 = arith.constant 0 : index
    %c0_106 = arith.constant 0 : index
    %183 = vector.load %arg6[%c2_104, %c0_105, %c0_106] : memref<9x64x128xf32, #tpu.memory_space<vmem>>, vector<1x64x128xf32>
    %184 = vector.shape_cast %183 : vector<1x64x128xf32> to vector<64x128xf32>
    %cst_107 = arith.constant dense<0.000000e+00> : vector<32x128xf32>
    %185 = tpu.matmul %182, %184, %cst_107 {dimension_numbers = #tpu.dot_dimension_numbers<[1], [0], [0], [1], [0, 0, 1, 1], [], []>} : vector<32x64xf32>, vector<64x128xf32>, vector<32x128xf32> -> vector<32x128xf32>
    %186 = arith.addf %180, %185 : vector<32x128xf32>
    %187 = vector.extract_strided_slice %167 {offsets = [0, 1, 0, 0], sizes = [2, 4, 4, 64], strides = [1, 1, 1, 1]} : vector<2x6x6x64xf32> to vector<2x4x4x64xf32>
    %188 = vector.shape_cast %187 : vector<2x4x4x64xf32> to vector<32x64xf32>
    %c3_108 = arith.constant 3 : index
    %c0_109 = arith.constant 0 : index
    %c0_110 = arith.constant 0 : index
    %189 = vector.load %arg6[%c3_108, %c0_109, %c0_110] : memref<9x64x128xf32, #tpu.memory_space<vmem>>, vector<1x64x128xf32>
    %190 = vector.shape_cast %189 : vector<1x64x128xf32> to vector<64x128xf32>
    %cst_111 = arith.constant dense<0.000000e+00> : vector<32x128xf32>
    %191 = tpu.matmul %188, %190, %cst_111 {dimension_numbers = #tpu.dot_dimension_numbers<[1], [0], [0], [1], [0, 0, 1, 1], [], []>} : vector<32x64xf32>, vector<64x128xf32>, vector<32x128xf32> -> vector<32x128xf32>
    %192 = arith.addf %186, %191 : vector<32x128xf32>
    %193 = vector.extract_strided_slice %167 {offsets = [0, 1, 1, 0], sizes = [2, 4, 4, 64], strides = [1, 1, 1, 1]} : vector<2x6x6x64xf32> to vector<2x4x4x64xf32>
    %194 = vector.shape_cast %193 : vector<2x4x4x64xf32> to vector<32x64xf32>
    %c4_112 = arith.constant 4 : index
    %c0_113 = arith.constant 0 : index
    %c0_114 = arith.constant 0 : index
    %195 = vector.load %arg6[%c4_112, %c0_113, %c0_114] : memref<9x64x128xf32, #tpu.memory_space<vmem>>, vector<1x64x128xf32>
    %196 = vector.shape_cast %195 : vector<1x64x128xf32> to vector<64x128xf32>
    %cst_115 = arith.constant dense<0.000000e+00> : vector<32x128xf32>
    %197 = tpu.matmul %194, %196, %cst_115 {dimension_numbers = #tpu.dot_dimension_numbers<[1], [0], [0], [1], [0, 0, 1, 1], [], []>} : vector<32x64xf32>, vector<64x128xf32>, vector<32x128xf32> -> vector<32x128xf32>
    %198 = arith.addf %192, %197 : vector<32x128xf32>
    %199 = vector.extract_strided_slice %167 {offsets = [0, 1, 2, 0], sizes = [2, 4, 4, 64], strides = [1, 1, 1, 1]} : vector<2x6x6x64xf32> to vector<2x4x4x64xf32>
    %200 = vector.shape_cast %199 : vector<2x4x4x64xf32> to vector<32x64xf32>
    %c5_116 = arith.constant 5 : index
    %c0_117 = arith.constant 0 : index
    %c0_118 = arith.constant 0 : index
    %201 = vector.load %arg6[%c5_116, %c0_117, %c0_118] : memref<9x64x128xf32, #tpu.memory_space<vmem>>, vector<1x64x128xf32>
    %202 = vector.shape_cast %201 : vector<1x64x128xf32> to vector<64x128xf32>
    %cst_119 = arith.constant dense<0.000000e+00> : vector<32x128xf32>
    %203 = tpu.matmul %200, %202, %cst_119 {dimension_numbers = #tpu.dot_dimension_numbers<[1], [0], [0], [1], [0, 0, 1, 1], [], []>} : vector<32x64xf32>, vector<64x128xf32>, vector<32x128xf32> -> vector<32x128xf32>
    %204 = arith.addf %198, %203 : vector<32x128xf32>
    %205 = vector.extract_strided_slice %167 {offsets = [0, 2, 0, 0], sizes = [2, 4, 4, 64], strides = [1, 1, 1, 1]} : vector<2x6x6x64xf32> to vector<2x4x4x64xf32>
    %206 = vector.shape_cast %205 : vector<2x4x4x64xf32> to vector<32x64xf32>
    %c6_120 = arith.constant 6 : index
    %c0_121 = arith.constant 0 : index
    %c0_122 = arith.constant 0 : index
    %207 = vector.load %arg6[%c6_120, %c0_121, %c0_122] : memref<9x64x128xf32, #tpu.memory_space<vmem>>, vector<1x64x128xf32>
    %208 = vector.shape_cast %207 : vector<1x64x128xf32> to vector<64x128xf32>
    %cst_123 = arith.constant dense<0.000000e+00> : vector<32x128xf32>
    %209 = tpu.matmul %206, %208, %cst_123 {dimension_numbers = #tpu.dot_dimension_numbers<[1], [0], [0], [1], [0, 0, 1, 1], [], []>} : vector<32x64xf32>, vector<64x128xf32>, vector<32x128xf32> -> vector<32x128xf32>
    %210 = arith.addf %204, %209 : vector<32x128xf32>
    %211 = vector.extract_strided_slice %167 {offsets = [0, 2, 1, 0], sizes = [2, 4, 4, 64], strides = [1, 1, 1, 1]} : vector<2x6x6x64xf32> to vector<2x4x4x64xf32>
    %212 = vector.shape_cast %211 : vector<2x4x4x64xf32> to vector<32x64xf32>
    %c7_124 = arith.constant 7 : index
    %c0_125 = arith.constant 0 : index
    %c0_126 = arith.constant 0 : index
    %213 = vector.load %arg6[%c7_124, %c0_125, %c0_126] : memref<9x64x128xf32, #tpu.memory_space<vmem>>, vector<1x64x128xf32>
    %214 = vector.shape_cast %213 : vector<1x64x128xf32> to vector<64x128xf32>
    %cst_127 = arith.constant dense<0.000000e+00> : vector<32x128xf32>
    %215 = tpu.matmul %212, %214, %cst_127 {dimension_numbers = #tpu.dot_dimension_numbers<[1], [0], [0], [1], [0, 0, 1, 1], [], []>} : vector<32x64xf32>, vector<64x128xf32>, vector<32x128xf32> -> vector<32x128xf32>
    %216 = arith.addf %210, %215 : vector<32x128xf32>
    %217 = vector.extract_strided_slice %167 {offsets = [0, 2, 2, 0], sizes = [2, 4, 4, 64], strides = [1, 1, 1, 1]} : vector<2x6x6x64xf32> to vector<2x4x4x64xf32>
    %218 = vector.shape_cast %217 : vector<2x4x4x64xf32> to vector<32x64xf32>
    %c8_128 = arith.constant 8 : index
    %c0_129 = arith.constant 0 : index
    %c0_130 = arith.constant 0 : index
    %219 = vector.load %arg6[%c8_128, %c0_129, %c0_130] : memref<9x64x128xf32, #tpu.memory_space<vmem>>, vector<1x64x128xf32>
    %220 = vector.shape_cast %219 : vector<1x64x128xf32> to vector<64x128xf32>
    %cst_131 = arith.constant dense<0.000000e+00> : vector<32x128xf32>
    %221 = tpu.matmul %218, %220, %cst_131 {dimension_numbers = #tpu.dot_dimension_numbers<[1], [0], [0], [1], [0, 0, 1, 1], [], []>} : vector<32x64xf32>, vector<64x128xf32>, vector<32x128xf32> -> vector<32x128xf32>
    %222 = arith.addf %216, %221 : vector<32x128xf32>
    %c0_132 = arith.constant 0 : index
    %c0_133 = arith.constant 0 : index
    %223 = vector.load %arg7[%c0_132, %c0_133] : memref<1x128xf32, #tpu.memory_space<vmem>>, vector<1x128xf32>
    %224 = vector.broadcast %223 : vector<1x128xf32> to vector<32x128xf32>
    %225 = arith.addf %222, %224 : vector<32x128xf32>
    %cst_134 = arith.constant 0.000000e+00 : f32
    %226 = vector.broadcast %cst_134 : f32 to vector<32x128xf32>
    %227 = arith.maximumf %225, %226 : vector<32x128xf32>
    %228 = vector.shape_cast %227 : vector<32x128xf32> to vector<2x4x4x128xf32>
    %229 = vector.shape_cast %228 : vector<2x4x4x128xf32> to vector<2x2x2x4x128xf32>
    %230 = vector.extract_strided_slice %229 {offsets = [0, 0, 0, 0, 0], sizes = [2, 2, 1, 4, 128], strides = [1, 1, 1, 1, 1]} : vector<2x2x2x4x128xf32> to vector<2x2x1x4x128xf32>
    %231 = vector.shape_cast %230 : vector<2x2x1x4x128xf32> to vector<2x2x4x128xf32>
    %232 = vector.extract_strided_slice %229 {offsets = [0, 0, 1, 0, 0], sizes = [2, 2, 1, 4, 128], strides = [1, 1, 1, 1, 1]} : vector<2x2x2x4x128xf32> to vector<2x2x1x4x128xf32>
    %233 = vector.shape_cast %232 : vector<2x2x1x4x128xf32> to vector<2x2x4x128xf32>
    %234 = arith.maximumf %231, %233 : vector<2x2x4x128xf32>
    %235 = vector.shape_cast %234 : vector<2x2x4x128xf32> to vector<2x2x2x2x128xf32>
    %236 = vector.extract_strided_slice %235 {offsets = [0, 0, 0, 0, 0], sizes = [2, 2, 2, 1, 128], strides = [1, 1, 1, 1, 1]} : vector<2x2x2x2x128xf32> to vector<2x2x2x1x128xf32>
    %237 = vector.shape_cast %236 : vector<2x2x2x1x128xf32> to vector<2x2x2x128xf32>
    %238 = vector.extract_strided_slice %235 {offsets = [0, 0, 0, 1, 0], sizes = [2, 2, 2, 1, 128], strides = [1, 1, 1, 1, 1]} : vector<2x2x2x2x128xf32> to vector<2x2x2x1x128xf32>
    %239 = vector.shape_cast %238 : vector<2x2x2x1x128xf32> to vector<2x2x2x128xf32>
    %240 = arith.maximumf %237, %239 : vector<2x2x2x128xf32>
    %cst_135 = arith.constant 0.000000e+00 : f32
    %241 = vector.broadcast %cst_135 : f32 to vector<2x128xf32>
    %242 = vector.extract_strided_slice %240 {offsets = [0, 0, 0, 0], sizes = [2, 1, 1, 128], strides = [1, 1, 1, 1]} : vector<2x2x2x128xf32> to vector<2x1x1x128xf32>
    %243 = vector.shape_cast %242 : vector<2x1x1x128xf32> to vector<2x128xf32>
    %c0_136 = arith.constant 0 : index
    %c0_137 = arith.constant 0 : index
    %c0_138 = arith.constant 0 : index
    %244 = vector.load %arg8[%c0_136, %c0_137, %c0_138] : memref<4x128x128xf32, #tpu.memory_space<vmem>>, vector<1x128x128xf32>
    %245 = vector.shape_cast %244 : vector<1x128x128xf32> to vector<128x128xf32>
    %cst_139 = arith.constant dense<0.000000e+00> : vector<2x128xf32>
    %246 = tpu.matmul %243, %245, %cst_139 {dimension_numbers = #tpu.dot_dimension_numbers<[1], [0], [0], [1], [0, 0, 1, 1], [], []>} : vector<2x128xf32>, vector<128x128xf32>, vector<2x128xf32> -> vector<2x128xf32>
    %247 = arith.addf %241, %246 : vector<2x128xf32>
    %248 = vector.extract_strided_slice %240 {offsets = [0, 0, 1, 0], sizes = [2, 1, 1, 128], strides = [1, 1, 1, 1]} : vector<2x2x2x128xf32> to vector<2x1x1x128xf32>
    %249 = vector.shape_cast %248 : vector<2x1x1x128xf32> to vector<2x128xf32>
    %c1_140 = arith.constant 1 : index
    %c0_141 = arith.constant 0 : index
    %c0_142 = arith.constant 0 : index
    %250 = vector.load %arg8[%c1_140, %c0_141, %c0_142] : memref<4x128x128xf32, #tpu.memory_space<vmem>>, vector<1x128x128xf32>
    %251 = vector.shape_cast %250 : vector<1x128x128xf32> to vector<128x128xf32>
    %cst_143 = arith.constant dense<0.000000e+00> : vector<2x128xf32>
    %252 = tpu.matmul %249, %251, %cst_143 {dimension_numbers = #tpu.dot_dimension_numbers<[1], [0], [0], [1], [0, 0, 1, 1], [], []>} : vector<2x128xf32>, vector<128x128xf32>, vector<2x128xf32> -> vector<2x128xf32>
    %253 = arith.addf %247, %252 : vector<2x128xf32>
    %254 = vector.extract_strided_slice %240 {offsets = [0, 1, 0, 0], sizes = [2, 1, 1, 128], strides = [1, 1, 1, 1]} : vector<2x2x2x128xf32> to vector<2x1x1x128xf32>
    %255 = vector.shape_cast %254 : vector<2x1x1x128xf32> to vector<2x128xf32>
    %c2_144 = arith.constant 2 : index
    %c0_145 = arith.constant 0 : index
    %c0_146 = arith.constant 0 : index
    %256 = vector.load %arg8[%c2_144, %c0_145, %c0_146] : memref<4x128x128xf32, #tpu.memory_space<vmem>>, vector<1x128x128xf32>
    %257 = vector.shape_cast %256 : vector<1x128x128xf32> to vector<128x128xf32>
    %cst_147 = arith.constant dense<0.000000e+00> : vector<2x128xf32>
    %258 = tpu.matmul %255, %257, %cst_147 {dimension_numbers = #tpu.dot_dimension_numbers<[1], [0], [0], [1], [0, 0, 1, 1], [], []>} : vector<2x128xf32>, vector<128x128xf32>, vector<2x128xf32> -> vector<2x128xf32>
    %259 = arith.addf %253, %258 : vector<2x128xf32>
    %260 = vector.extract_strided_slice %240 {offsets = [0, 1, 1, 0], sizes = [2, 1, 1, 128], strides = [1, 1, 1, 1]} : vector<2x2x2x128xf32> to vector<2x1x1x128xf32>
    %261 = vector.shape_cast %260 : vector<2x1x1x128xf32> to vector<2x128xf32>
    %c3_148 = arith.constant 3 : index
    %c0_149 = arith.constant 0 : index
    %c0_150 = arith.constant 0 : index
    %262 = vector.load %arg8[%c3_148, %c0_149, %c0_150] : memref<4x128x128xf32, #tpu.memory_space<vmem>>, vector<1x128x128xf32>
    %263 = vector.shape_cast %262 : vector<1x128x128xf32> to vector<128x128xf32>
    %cst_151 = arith.constant dense<0.000000e+00> : vector<2x128xf32>
    %264 = tpu.matmul %261, %263, %cst_151 {dimension_numbers = #tpu.dot_dimension_numbers<[1], [0], [0], [1], [0, 0, 1, 1], [], []>} : vector<2x128xf32>, vector<128x128xf32>, vector<2x128xf32> -> vector<2x128xf32>
    %265 = arith.addf %259, %264 : vector<2x128xf32>
    %c0_152 = arith.constant 0 : index
    %c0_153 = arith.constant 0 : index
    %266 = vector.load %arg9[%c0_152, %c0_153] : memref<1x128xf32, #tpu.memory_space<vmem>>, vector<1x128xf32>
    %267 = vector.broadcast %266 : vector<1x128xf32> to vector<2x128xf32>
    %268 = arith.addf %265, %267 : vector<2x128xf32>
    %cst_154 = arith.constant 0.000000e+00 : f32
    %269 = vector.broadcast %cst_154 : f32 to vector<2x128xf32>
    %270 = arith.maximumf %268, %269 : vector<2x128xf32>
    %c0_155 = arith.constant 0 : index
    %c0_156 = arith.constant 0 : index
    %271 = vector.load %arg10[%c0_155, %c0_156] : memref<128x128xf32, #tpu.memory_space<vmem>>, vector<128x128xf32>
    %cst_157 = arith.constant dense<0.000000e+00> : vector<2x128xf32>
    %272 = tpu.matmul %270, %271, %cst_157 {dimension_numbers = #tpu.dot_dimension_numbers<[1], [0], [0], [1], [0, 0, 1, 1], [], []>} : vector<2x128xf32>, vector<128x128xf32>, vector<2x128xf32> -> vector<2x128xf32>
    %c0_158 = arith.constant 0 : index
    %c0_159 = arith.constant 0 : index
    %273 = vector.load %arg11[%c0_158, %c0_159] : memref<1x128xf32, #tpu.memory_space<vmem>>, vector<1x128xf32>
    %274 = vector.broadcast %273 : vector<1x128xf32> to vector<2x128xf32>
    %275 = arith.addf %272, %274 : vector<2x128xf32>
    %276 = vector.shape_cast %275 : vector<2x128xf32> to vector<2x1x128xf32>
    %c0_160 = arith.constant 0 : index
    %c0_161 = arith.constant 0 : index
    %c0_162 = arith.constant 0 : index
    %277 = vector.load %arg12[%c0_160, %c0_161, %c0_162] : memref<2x1x128xf32, #tpu.memory_space<vmem>>, vector<2x1x128xf32>
    tpu.vector_store %arg12[%c0_160, %c0_161, %c0_162], %276 {strides = array<i32>} : memref<2x1x128xf32, #tpu.memory_space<vmem>>, vector<2x1x128xf32>,
    return
  }
  func.func @transform_0(%arg0: i32) -> (i32, i32, i32, i32) {
    %c0_i32 = arith.constant 0 : i32
    %c0_i32_0 = arith.constant 0 : i32
    %c0_i32_1 = arith.constant 0 : i32
    %c0_i32_2 = arith.constant 0 : i32
    return %arg0, %c0_i32, %c0_i32_0, %c0_i32_1 : i32, i32, i32, i32
  }
  func.func @transform_1(%arg0: i32) -> (i32, i32) {
    %c0_i32 = arith.constant 0 : i32
    %c0_i32_0 = arith.constant 0 : i32
    %c0_i32_1 = arith.constant 0 : i32
    return %c0_i32, %c0_i32_0 : i32, i32
  }
  func.func @transform_2(%arg0: i32) -> (i32, i32) {
    %c0_i32 = arith.constant 0 : i32
    %c0_i32_0 = arith.constant 0 : i32
    %c0_i32_1 = arith.constant 0 : i32
    return %c0_i32, %c0_i32_0 : i32, i32
  }
  func.func @transform_3(%arg0: i32) -> (i32, i32, i32) {
    %c0_i32 = arith.constant 0 : i32
    %c0_i32_0 = arith.constant 0 : i32
    %c0_i32_1 = arith.constant 0 : i32
    %c0_i32_2 = arith.constant 0 : i32
    return %c0_i32, %c0_i32_0, %c0_i32_1 : i32, i32, i32
  }
  func.func @transform_4(%arg0: i32) -> (i32, i32) {
    %c0_i32 = arith.constant 0 : i32
    %c0_i32_0 = arith.constant 0 : i32
    %c0_i32_1 = arith.constant 0 : i32
    return %c0_i32, %c0_i32_0 : i32, i32
  }
  func.func @transform_5(%arg0: i32) -> (i32, i32, i32) {
    %c0_i32 = arith.constant 0 : i32
    %c0_i32_0 = arith.constant 0 : i32
    %c0_i32_1 = arith.constant 0 : i32
    %c0_i32_2 = arith.constant 0 : i32
    return %c0_i32, %c0_i32_0, %c0_i32_1 : i32, i32, i32
  }
  func.func @transform_6(%arg0: i32) -> (i32, i32) {
    %c0_i32 = arith.constant 0 : i32
    %c0_i32_0 = arith.constant 0 : i32
    %c0_i32_1 = arith.constant 0 : i32
    return %c0_i32, %c0_i32_0 : i32, i32
  }
  func.func @transform_7(%arg0: i32) -> (i32, i32, i32) {
    %c0_i32 = arith.constant 0 : i32
    %c0_i32_0 = arith.constant 0 : i32
    %c0_i32_1 = arith.constant 0 : i32
    %c0_i32_2 = arith.constant 0 : i32
    return %c0_i32, %c0_i32_0, %c0_i32_1 : i32, i32, i32
  }
  func.func @transform_8(%arg0: i32) -> (i32, i32) {
    %c0_i32 = arith.constant 0 : i32
    %c0_i32_0 = arith.constant 0 : i32
    %c0_i32_1 = arith.constant 0 : i32
    return %c0_i32, %c0_i32_0 : i32, i32
  }
  func.func @transform_9(%arg0: i32) -> (i32, i32) {
    %c0_i32 = arith.constant 0 : i32
    %c0_i32_0 = arith.constant 0 : i32
    %c0_i32_1 = arith.constant 0 : i32
    return %c0_i32, %c0_i32_0 : i32, i32
  }
  func.func @transform_10(%arg0: i32) -> (i32, i32) {
    %c0_i32 = arith.constant 0 : i32
    %c0_i32_0 = arith.constant 0 : i32
    %c0_i32_1 = arith.constant 0 : i32
    return %c0_i32, %c0_i32_0 : i32, i32
  }
  func.func @transform_11(%arg0: i32) -> (i32, i32, i32) {
    %c0_i32 = arith.constant 0 : i32
    %c0_i32_0 = arith.constant 0 : i32
    %c0_i32_1 = arith.constant 0 : i32
    return %arg0, %c0_i32, %c0_i32_0 : i32, i32, i32
  }
}

</mosaic_0001>

<llo_original>
// kernel: cnn_forward_pallas.1
$region0: #{cnn_forward_pallas.1}
  #allocation0 [shape = 'u32[]', space=smem, size = 0x4, offset = 0x4, fixed_abs, tag = 'smem constant byte address 0x4 - core index']
  #allocation1 [shape = 'u32[72,128]{1,0:T(1,128)}', space=vmem, size = 0x9000, scoped, tag = 'internal scratch']
  #allocation2 [shape = 'f32[2,18,18,1]{3,2,1,0:T(8,128)}', space=vmem, size = 0x6c000, scoped, tag = 'scratch operand']
  #allocation3 [shape = 'f32[2,10,10,32]{3,2,1,0:T(8,128)}', space=vmem, size = 0x28000, scoped, tag = 'scratch operand']
  #allocation4 [shape = 'f32[2,6,6,64]{3,2,1,0:T(8,128)}', space=vmem, size = 0xc000, scoped, tag = 'scratch operand']
  %s0 = inlined_call_operand.vmem [shape: f32[4,16,16,1], index: 0, kind: input, shape index: {}]
  %s1 = inlined_call_operand.hbm [shape: f32[9,32], index: 1, kind: input, shape index: {}]
  %s2 = inlined_call_operand.vmem [shape: f32[1,32], index: 2, kind: input, shape index: {}]
  %s3 = inlined_call_operand.hbm [shape: f32[9,32,64], index: 3, kind: input, shape index: {}]
  %s4 = inlined_call_operand.vmem [shape: f32[1,64], index: 4, kind: input, shape index: {}]
  %s5 = inlined_call_operand.vmem [shape: f32[9,64,128], index: 5, kind: input, shape index: {}]
  %s6 = inlined_call_operand.vmem [shape: f32[1,128], index: 6, kind: input, shape index: {}]
  %s7 = inlined_call_operand.vmem [shape: f32[4,128,128], index: 7, kind: input, shape index: {}]
  %s8 = inlined_call_operand.vmem [shape: f32[1,128], index: 8, kind: input, shape index: {}]
  %s9 = inlined_call_operand.hbm [shape: f32[128,128], index: 9, kind: input, shape index: {}]
  %s10 = inlined_call_operand.vmem [shape: f32[1,128], index: 10, kind: input, shape index: {}]
  %s11 = inlined_call_operand.hbm [shape: f32[4,1,128], index: 11, kind: output, shape index: {}]
  %s12 = sld [smem:[#allocation0]]
  $region89: #{cnn_forward_pallas.1} parent=0
    _
  %s14 = ssub.s32 1, %s12
  %s15 = scalar_select 0, %s14, %s12
  $region1: #{cnn_forward_pallas.1} parent=0
    #allocation5 [shape = 'u8[8192]{0}', space=vmem, size = 0x2000, scoped, tag = 'input window, operand 1, single buffered']
    #allocation6 [shape = 's32[2]{0}', space=sflag, size = 0x8, scoped, tag = 'scoped memory for cnn_forward_pallas.1']
    #allocation7 [shape = 's32[2]{0}', space=sflag, size = 0x8, scoped, tag = 'scoped memory for cnn_forward_pallas.1']
    #allocation8 [shape = 'u8[147456]{0}', space=vmem, size = 0x24000, scoped, tag = 'input window, operand 3, single buffered']
    #allocation9 [shape = 's32[1]{0}', space=sflag, size = 0x4, scoped, tag = 'scoped memory for cnn_forward_pallas.1']
    #allocation10 [shape = 'u8[65536]{0}', space=vmem, size = 0x10000, scoped, tag = 'input window, operand 9, single buffered']
    #allocation11 [shape = 'u8[2048]{0}', space=vmem, size = 0x800, scoped, tag = 'output window, operand 0']
    %16 = vsyncpa [#allocation6], 0
    %17 = vsyncpa [#allocation9], 0
    %18 = vsyncpa [#allocation7], 0
    %s19 = scalar_lea.sflag [#allocation7], 1
    %20 = vsyncpa %s19, 0
    loop: start=0, step=1, limit=4
    $region2: #{cnn_forward_pallas.1} parent=1 // loop_pre_header
      _
    $region3: #{cnn_forward_pallas.1} parent=1 // loop_header
      %s22 = sphi 0, %s26
      %p23 = scmp.ge.s32.totalorder %s22, 4
      %s32 = sphi 0, %s34
      %s35 = sphi 0, %s32
      %s36 = sphi 0, %s35
      %s52 = sphi 0, %s36
      %s56 = sphi 0, %s56
      %s58 = sphi 0, %s56
      %s59 = sphi 0, %s58
      %s73 = sphi 0, %s59
      %s77 = sphi 0, %s77
      %s79 = sphi 0, %s77
      %s80 = sphi 0, %s79
      %s94 = sphi 0, %s80
      %s98 = sphi 0, %s98
      %s100 = sphi 0, %s98
      %s101 = sphi 0, %s100
      %s115 = sphi 0, %s101
      %s119 = sphi 0, %s119
      %s121 = sphi 0, %s119
      %s122 = sphi 0, %s121
      %s136 = sphi 0, %s122
      %s140 = sphi 0, %s140
      %s142 = sphi 0, %s140
      %s143 = sphi 0, %s142
      %s157 = sphi 0, %s143
      %s161 = sphi 0, %s161
      %s163 = sphi 0, %s161
      %s164 = sphi 0, %s163
      %s178 = sphi 0, %s164
      %s182 = sphi 0, %s182
      %s184 = sphi 0, %s182
      %s185 = sphi 0, %s184
      %s199 = sphi 0, %s185
      %s203 = sphi 0, %s203
      %s205 = sphi 0, %s203
      %s206 = sphi 0, %s205
      %s220 = sphi 0, %s206
      %s224 = sphi 0, %s224
      %s226 = sphi 0, %s224
      %s227 = sphi 0, %s226
      %s241 = sphi 0, %s227
      %s245 = sphi 0, %s245
      %s247 = sphi 0, %s245
      %s248 = sphi 0, %s247
      %s262 = sphi 0, %s248
      %s268 = sphi 0, %s270
      %s271 = sphi 0, %s268
      %s272 = sphi 0, %s271
      %s288 = sphi 0, %s272
    $region4: #{cnn_forward_pallas.1} parent=1 // loop_header_branch
      %25 = sbr.rel (%p23) target = $region8
    $region5: #{cnn_forward_pallas.1} parent=1 // loop_body
      %s27 = ssub.s32 %s22, 1
      %s28 = ssub.s32 %s22, 2
      %s29 = sadd.s32 %s22, 1
      %s30 = ssub.s32 %s22, %s29
      %p31 = scmp.eq.s32.totalorder %s30, 0
      %s33 = sadd.s32 %s32, 1
      %s34 = scalar_select %p31, %s32, %s33
      %p37 = pneg %p31
      %p38 = scmp.eq.s32.totalorder %s22, 1
      %p39 = por %p37, %p38
      %p40 = scmp.ne.s32.totalorder %s32, %s35
      %p41 = scmp.eq.s32.totalorder %s22, 0
      %p42 = por %p40, %p41
      %p43 = scmp.ne.s32.totalorder %s32, %s35
      %p44 = scmp.eq.s32.totalorder %s27, 1
      %p45 = por %p43, %p44
      %p46 = scmp.ne.s32.totalorder %s35, %s36
      %p47 = scmp.eq.s32.totalorder %s27, 0
      %p48 = por %p46, %p47
      %p49 = scmp.ne.s32.totalorder %s35, %s36
      %p50 = scmp.eq.s32.totalorder %s28, 1
      %p51 = por %p49, %p50
      %p53 = scmp.ne.s32.totalorder %s36, %s52
      %p54 = scmp.eq.s32.totalorder %s28, 0
      %p55 = por %p53, %p54
      %s57 = sadd.s32 %s56, 1
      %p60 = scmp.eq.s32.totalorder %s22, 1
      %p61 = scmp.ne.s32.totalorder %s56, %s58
      %p62 = scmp.eq.s32.totalorder %s22, 0
      %p63 = por %p61, %p62
      %p64 = scmp.ne.s32.totalorder %s56, %s58
      %p65 = scmp.eq.s32.totalorder %s27, 1
      %p66 = por %p64, %p65
      %p67 = scmp.ne.s32.totalorder %s58, %s59
      %p68 = scmp.eq.s32.totalorder %s27, 0
      %p69 = por %p67, %p68
      %p70 = scmp.ne.s32.totalorder %s58, %s59
      %p71 = scmp.eq.s32.totalorder %s28, 1
      %p72 = por %p70, %p71
      %p74 = scmp.ne.s32.totalorder %s59, %s73
      %p75 = scmp.eq.s32.totalorder %s28, 0
      %p76 = por %p74, %p75
      %s78 = sadd.s32 %s77, 1
      %p81 = scmp.eq.s32.totalorder %s22, 1
      %p82 = scmp.ne.s32.totalorder %s77, %s79
      %p83 = scmp.eq.s32.totalorder %s22, 0
      %p84 = por %p82, %p83
      %p85 = scmp.ne.s32.totalorder %s77, %s79
      %p86 = scmp.eq.s32.totalorder %s27, 1
      %p87 = por %p85, %p86
      %p88 = scmp.ne.s32.totalorder %s79, %s80
      %p89 = scmp.eq.s32.totalorder %s27, 0
      %p90 = por %p88, %p89
      %p91 = scmp.ne.s32.totalorder %s79, %s80
      %p92 = scmp.eq.s32.totalorder %s28, 1
      %p93 = por %p91, %p92
      %p95 = scmp.ne.s32.totalorder %s80, %s94
      %p96 = scmp.eq.s32.totalorder %s28, 0
      %p97 = por %p95, %p96
      %s99 = sadd.s32 %s98, 1
      %p102 = scmp.eq.s32.totalorder %s22, 1
      %p103 = scmp.ne.s32.totalorder %s98, %s100
      %p104 = scmp.eq.s32.totalorder %s22, 0
      %p105 = por %p103, %p104
      %p106 = scmp.ne.s32.totalorder %s98, %s100
      %p107 = scmp.eq.s32.totalorder %s27, 1
      %p108 = por %p106, %p107
      %p109 = scmp.ne.s32.totalorder %s100, %s101
      %p110 = scmp.eq.s32.totalorder %s27, 0
      %p111 = por %p109, %p110
      %p112 = scmp.ne.s32.totalorder %s100, %s101
      %p113 = scmp.eq.s32.totalorder %s28, 1
      %p114 = por %p112, %p113
      %p116 = scmp.ne.s32.totalorder %s101, %s115
      %p117 = scmp.eq.s32.totalorder %s28, 0
      %p118 = por %p116, %p117
      %s120 = sadd.s32 %s119, 1
      %p123 = scmp.eq.s32.totalorder %s22, 1
      %p124 = scmp.ne.s32.totalorder %s119, %s121
      %p125 = scmp.eq.s32.totalorder %s22, 0
      %p126 = por %p124, %p125
      %p127 = scmp.ne.s32.totalorder %s119, %s121
      %p128 = scmp.eq.s32.totalorder %s27, 1
      %p129 = por %p127, %p128
      %p130 = scmp.ne.s32.totalorder %s121, %s122
      %p131 = scmp.eq.s32.totalorder %s27, 0
      %p132 = por %p130, %p131
      %p133 = scmp.ne.s32.totalorder %s121, %s122
      %p134 = scmp.eq.s32.totalorder %s28, 1
      %p135 = por %p133, %p134
      %p137 = scmp.ne.s32.totalorder %s122, %s136
      %p138 = scmp.eq.s32.totalorder %s28, 0
      %p139 = por %p137, %p138
      %s141 = sadd.s32 %s140, 1
      %p144 = scmp.eq.s32.totalorder %s22, 1
      %p145 = scmp.ne.s32.totalorder %s140, %s142
      %p146 = scmp.eq.s32.totalorder %s22, 0
      %p147 = por %p145, %p146
      %p148 = scmp.ne.s32.totalorder %s140, %s142
      %p149 = scmp.eq.s32.totalorder %s27, 1
      %p150 = por %p148, %p149
      %p151 = scmp.ne.s32.totalorder %s142, %s143
      %p152 = scmp.eq.s32.totalorder %s27, 0
      %p153 = por %p151, %p152
      %p154 = scmp.ne.s32.totalorder %s142, %s143
      %p155 = scmp.eq.s32.totalorder %s28, 1
      %p156 = por %p154, %p155
      %p158 = scmp.ne.s32.totalorder %s143, %s157
      %p159 = scmp.eq.s32.totalorder %s28, 0
      %p160 = por %p158, %p159
      %s162 = sadd.s32 %s161, 1
      %p165 = scmp.eq.s32.totalorder %s22, 1
      %p166 = scmp.ne.s32.totalorder %s161, %s163
      %p167 = scmp.eq.s32.totalorder %s22, 0
      %p168 = por %p166, %p167
      %p169 = scmp.ne.s32.totalorder %s161, %s163
      %p170 = scmp.eq.s32.totalorder %s27, 1
      %p171 = por %p169, %p170
      %p172 = scmp.ne.s32.totalorder %s163, %s164
      %p173 = scmp.eq.s32.totalorder %s27, 0
      %p174 = por %p172, %p173
      %p175 = scmp.ne.s32.totalorder %s163, %s164
      %p176 = scmp.eq.s32.totalorder %s28, 1
      %p177 = por %p175, %p176
      %p179 = scmp.ne.s32.totalorder %s164, %s178
      %p180 = scmp.eq.s32.totalorder %s28, 0
      %p181 = por %p179, %p180
      %s183 = sadd.s32 %s182, 1
      %p186 = scmp.eq.s32.totalorder %s22, 1
      %p187 = scmp.ne.s32.totalorder %s182, %s184
      %p188 = scmp.eq.s32.totalorder %s22, 0
      %p189 = por %p187, %p188
      %p190 = scmp.ne.s32.totalorder %s182, %s184
      %p191 = scmp.eq.s32.totalorder %s27, 1
      %p192 = por %p190, %p191
      %p193 = scmp.ne.s32.totalorder %s184, %s185
      %p194 = scmp.eq.s32.totalorder %s27, 0
      %p195 = por %p193, %p194
      %p196 = scmp.ne.s32.totalorder %s184, %s185
      %p197 = scmp.eq.s32.totalorder %s28, 1
      %p198 = por %p196, %p197
      %p200 = scmp.ne.s32.totalorder %s185, %s199
      %p201 = scmp.eq.s32.totalorder %s28, 0
      %p202 = por %p200, %p201
      %s204 = sadd.s32 %s203, 1
      %p207 = scmp.eq.s32.totalorder %s22, 1
      %p208 = scmp.ne.s32.totalorder %s203, %s205
      %p209 = scmp.eq.s32.totalorder %s22, 0
      %p210 = por %p208, %p209
      %p211 = scmp.ne.s32.totalorder %s203, %s205
      %p212 = scmp.eq.s32.totalorder %s27, 1
      %p213 = por %p211, %p212
      %p214 = scmp.ne.s32.totalorder %s205, %s206
      %p215 = scmp.eq.s32.totalorder %s27, 0
      %p216 = por %p214, %p215
      %p217 = scmp.ne.s32.totalorder %s205, %s206
      %p218 = scmp.eq.s32.totalorder %s28, 1
      %p219 = por %p217, %p218
      %p221 = scmp.ne.s32.totalorder %s206, %s220
      %p222 = scmp.eq.s32.totalorder %s28, 0
      %p223 = por %p221, %p222
      %s225 = sadd.s32 %s224, 1
      %p228 = scmp.eq.s32.totalorder %s22, 1
      %p229 = scmp.ne.s32.totalorder %s224, %s226
      %p230 = scmp.eq.s32.totalorder %s22, 0
      %p231 = por %p229, %p230
      %p232 = scmp.ne.s32.totalorder %s224, %s226
      %p233 = scmp.eq.s32.totalorder %s27, 1
      %p234 = por %p232, %p233
      %p235 = scmp.ne.s32.totalorder %s226, %s227
      %p236 = scmp.eq.s32.totalorder %s27, 0
      %p237 = por %p235, %p236
      %p238 = scmp.ne.s32.totalorder %s226, %s227
      %p239 = scmp.eq.s32.totalorder %s28, 1
      %p240 = por %p238, %p239
      %p242 = scmp.ne.s32.totalorder %s227, %s241
      %p243 = scmp.eq.s32.totalorder %s28, 0
      %p244 = por %p242, %p243
      %s246 = sadd.s32 %s245, 1
      %p249 = scmp.eq.s32.totalorder %s22, 1
      %p250 = scmp.ne.s32.totalorder %s245, %s247
      %p251 = scmp.eq.s32.totalorder %s22, 0
      %p252 = por %p250, %p251
      %p253 = scmp.ne.s32.totalorder %s245, %s247
      %p254 = scmp.eq.s32.totalorder %s27, 1
      %p255 = por %p253, %p254
      %p256 = scmp.ne.s32.totalorder %s247, %s248
      %p257 = scmp.eq.s32.totalorder %s27, 0
      %p258 = por %p256, %p257
      %p259 = scmp.ne.s32.totalorder %s247, %s248
      %p260 = scmp.eq.s32.totalorder %s28, 1
      %p261 = por %p259, %p260
      %p263 = scmp.ne.s32.totalorder %s248, %s262
      %p264 = scmp.eq.s32.totalorder %s28, 0
      %p265 = por %p263, %p264
      %s266 = ssub.s32 %s22, %s29
      %p267 = scmp.eq.s32.totalorder %s266, 0
      %s269 = sadd.s32 %s268, 1
      %s270 = scalar_select %p267, %s268, %s269
      %p273 = pneg %p267
      %p274 = scmp.eq.s32.totalorder %s22, 1
      %p275 = por %p273, %p274
      %p276 = scmp.ne.s32.totalorder %s268, %s271
      %p277 = scmp.eq.s32.totalorder %s22, 0
      %p278 = por %p276, %p277
      %p279 = scmp.ne.s32.totalorder %s268, %s271
      %p280 = scmp.eq.s32.totalorder %s27, 1
      %p281 = por %p279, %p280
      %p282 = scmp.ne.s32.totalorder %s271, %s272
      %p283 = scmp.eq.s32.totalorder %s27, 0
      %p284 = por %p282, %p283
      %p285 = scmp.ne.s32.totalorder %s271, %s272
      %p286 = scmp.eq.s32.totalorder %s28, 1
      %p287 = por %p285, %p286
      %p289 = scmp.ne.s32.totalorder %s272, %s288
      %p290 = scmp.eq.s32.totalorder %s28, 0
      %p291 = por %p289, %p290
      %p292 = scmp.le.s32.totalorder 1, %s22
      %p293 = scmp.lt.s32.totalorder %s22, 3
      %p294 = pnand %p292, %p293
      %p295 = pneg %p294
      // Predicated region
      $region9: #{cnn_forward_pallas.1} parent=5 // pred_check
        _
      $region10: #{cnn_forward_pallas.1} parent=5 // pred_check_branch
        %297 = sbr.rel (%p294) target = $region12
      $region11: #{cnn_forward_pallas.1} parent=5 // pred_region
        %s298 = ssub.s32 %s22, 1
        // Predicated region
        $region13: #{cnn_forward_pallas.1} parent=11 // pred_check
          %p299 = pneg %p69
        $region14: #{cnn_forward_pallas.1} parent=11 // pred_check_branch
          %301 = sbr.rel (%p299) target = $region16
        $region15: #{cnn_forward_pallas.1} parent=11 // pred_region
          %303 = vsyncadd [#allocation6], 0
          %s304 = sshll.u32 %s1, 4
          %s305 = int_to_ptr.hbm [resolvable:$true] %s304
          %s306 = sshll.u32 [#allocation5], 4
          %s307 = int_to_ptr.vmem [resolvable:$true] %s306
          %312 = dma.hbm_to_vmem [thread:$0]  %s305, 256, %s307, [#allocation6], 128, 128, 8
        $region16: #{cnn_forward_pallas.1} parent=11 // pred_fallthru
          _
        // Predicated region
        $region17: #{cnn_forward_pallas.1} parent=11 // pred_check
          %p313 = pneg %p90
        $region18: #{cnn_forward_pallas.1} parent=11 // pred_check_branch
          %315 = sbr.rel (%p313) target = $region20
        $region19: #{cnn_forward_pallas.1} parent=11 // pred_region
          _
        $region20: #{cnn_forward_pallas.1} parent=11 // pred_fallthru
          _
        // Predicated region
        $region21: #{cnn_forward_pallas.1} parent=11 // pred_check
          %p316 = pneg %p111
        $region22: #{cnn_forward_pallas.1} parent=11 // pred_check_branch
          %318 = sbr.rel (%p316) target = $region24
        $region23: #{cnn_forward_pallas.1} parent=11 // pred_region
          %320 = vsyncadd [#allocation9], 0
          %s321 = sshll.u32 %s3, 4
          %s322 = int_to_ptr.hbm [resolvable:$true] %s321
          %s323 = sshll.u32 [#allocation8], 4
          %s324 = int_to_ptr.vmem [resolvable:$true] %s323
          %329 = dma.hbm_to_vmem [thread:$0]  %s322, 4608, %s324, [#allocation9], 128, 128, 8
        $region24: #{cnn_forward_pallas.1} parent=11 // pred_fallthru
          _
        // Predicated region
        $region25: #{cnn_forward_pallas.1} parent=11 // pred_check
          %p330 = pneg %p132
        $region26: #{cnn_forward_pallas.1} parent=11 // pred_check_branch
          %332 = sbr.rel (%p330) target = $region28
        $region27: #{cnn_forward_pallas.1} parent=11 // pred_region
          _
        $region28: #{cnn_forward_pallas.1} parent=11 // pred_fallthru
          _
        // Predicated region
        $region29: #{cnn_forward_pallas.1} parent=11 // pred_check
          %p333 = pneg %p153
        $region30: #{cnn_forward_pallas.1} parent=11 // pred_check_branch
          %335 = sbr.rel (%p333) target = $region32
        $region31: #{cnn_forward_pallas.1} parent=11 // pred_region
          _
        $region32: #{cnn_forward_pallas.1} parent=11 // pred_fallthru
          _
        // Predicated region
        $region33: #{cnn_forward_pallas.1} parent=11 // pred_check
          %p336 = pneg %p174
        $region34: #{cnn_forward_pallas.1} parent=11 // pred_check_branch
          %338 = sbr.rel (%p336) target = $region36
        $region35: #{cnn_forward_pallas.1} parent=11 // pred_region
          _
        $region36: #{cnn_forward_pallas.1} parent=11 // pred_fallthru
          _
        // Predicated region
        $region37: #{cnn_forward_pallas.1} parent=11 // pred_check
          %p339 = pneg %p195
        $region38: #{cnn_forward_pallas.1} parent=11 // pred_check_branch
          %341 = sbr.rel (%p339) target = $region40
        $region39: #{cnn_forward_pallas.1} parent=11 // pred_region
          _
        $region40: #{cnn_forward_pallas.1} parent=11 // pred_fallthru
          _
        // Predicated region
        $region41: #{cnn_forward_pallas.1} parent=11 // pred_check
          %p342 = pneg %p216
        $region42: #{cnn_forward_pallas.1} parent=11 // pred_check_branch
          %344 = sbr.rel (%p342) target = $region44
        $region43: #{cnn_forward_pallas.1} parent=11 // pred_region
          _
        $region44: #{cnn_forward_pallas.1} parent=11 // pred_fallthru
          _
        // Predicated region
        $region45: #{cnn_forward_pallas.1} parent=11 // pred_check
          %p345 = pneg %p237
        $region46: #{cnn_forward_pallas.1} parent=11 // pred_check_branch
          %347 = sbr.rel (%p345) target = $region48
        $region47: #{cnn_forward_pallas.1} parent=11 // pred_region
          %349 = vsyncadd [#allocation9], 0
          %s350 = sshll.u32 %s9, 4
          %s351 = int_to_ptr.hbm [resolvable:$true] %s350
          %s352 = sshll.u32 [#allocation10], 4
          %s353 = int_to_ptr.vmem [resolvable:$true] %s352
          %358 = dma.hbm_to_vmem [thread:$0]  %s351, 2048, %s353, [#allocation9], 128, 128, 8
        $region48: #{cnn_forward_pallas.1} parent=11 // pred_fallthru
          _
        // Predicated region
        $region49: #{cnn_forward_pallas.1} parent=11 // pred_check
          %p359 = pneg %p258
        $region50: #{cnn_forward_pallas.1} parent=11 // pred_check_branch
          %361 = sbr.rel (%p359) target = $region52
        $region51: #{cnn_forward_pallas.1} parent=11 // pred_region
          _
        $region52: #{cnn_forward_pallas.1} parent=11 // pred_fallthru
          _
      $region12: #{cnn_forward_pallas.1} parent=5 // pred_fallthru
        _
      %p362 = scmp.lt.s32.totalorder %s22, 2
      // Predicated region
      $region53: #{cnn_forward_pallas.1} parent=5 // pred_check
        %p363 = pneg %p362
      $region54: #{cnn_forward_pallas.1} parent=5 // pred_check_branch
        %365 = sbr.rel (%p363) target = $region56
      $region55: #{cnn_forward_pallas.1} parent=5 // pred_region
        // Predicated region
        $region57: #{cnn_forward_pallas.1} parent=55 // pred_check
          %p366 = pneg %p42
        $region58: #{cnn_forward_pallas.1} parent=55 // pred_check_branch
          %368 = sbr.rel (%p366) target = $region60
        $region59: #{cnn_forward_pallas.1} parent=55 // pred_region
          %s369 = smul.u32 2, %s22
          %p370 = scmp.lt.s32.totalorder %s369, 3
          %s371 = scalar_select %p370, %s369, 3
          %s372 = smul.addr %s371, 32
          %s373 = smul.addr %s372, 8
          %s374 = scalar_lea.vmem %s0, %s373
          %s375 = smul.u32 2, %s22
        $region60: #{cnn_forward_pallas.1} parent=55 // pred_fallthru
          _
      $region56: #{cnn_forward_pallas.1} parent=5 // pred_fallthru
        _
      %p376 = scmp.le.s32.totalorder 1, %s22
      %p377 = scmp.lt.s32.totalorder %s22, 3
      %p378 = pnand %p376, %p377
      %p379 = pneg %p378
      // Predicated region
      $region61: #{cnn_forward_pallas.1} parent=5 // pred_check
        _
      $region62: #{cnn_forward_pallas.1} parent=5 // pred_check_branch
        %381 = sbr.rel (%p378) target = $region64
      $region63: #{cnn_forward_pallas.1} parent=5 // pred_region
        %s382 = ssub.s32 %s22, 1
        // Predicated region
        $region65: #{cnn_forward_pallas.1} parent=63 // pred_check
          %p383 = pneg %p69
        $region66: #{cnn_forward_pallas.1} parent=63 // pred_check_branch
          %385 = sbr.rel (%p383) target = $region68
        $region67: #{cnn_forward_pallas.1} parent=63 // pred_region
          %387 = dma.done [#allocation6], 256
        $region68: #{cnn_forward_pallas.1} parent=63 // pred_fallthru
          _
        // Predicated region
        $region69: #{cnn_forward_pallas.1} parent=63 // pred_check
          %p388 = pneg %p111
        $region70: #{cnn_forward_pallas.1} parent=63 // pred_check_branch
          %390 = sbr.rel (%p388) target = $region72
        $region71: #{cnn_forward_pallas.1} parent=63 // pred_region
          %392 = dma.done [#allocation9], 4608
        $region72: #{cnn_forward_pallas.1} parent=63 // pred_fallthru
          _
        // Predicated region
        $region73: #{cnn_forward_pallas.1} parent=63 // pred_check
          %p393 = pneg %p237
        $region74: #{cnn_forward_pallas.1} parent=63 // pred_check_branch
          %395 = sbr.rel (%p393) target = $region76
        $region75: #{cnn_forward_pallas.1} parent=63 // pred_region
          %397 = dma.done [#allocation9], 2048
        $region76: #{cnn_forward_pallas.1} parent=63 // pred_fallthru
          _
        %s398 = smul.u32 2, %s27
        %p399 = scmp.lt.s32.totalorder %s398, 3
        %s400 = scalar_select %p399, %s398, 3
        %s401 = smul.addr %s400, 32
        %s402 = smul.addr %s401, 8
        %s403 = scalar_lea.vmem %s0, %s402
        %p404 = pneg %p48
        %p405 = pneg %p45
        %p406 = pneg %p69
        %p407 = pneg %p66
        %p408 = pneg %p90
        %p409 = pneg %p87
        %p410 = pneg %p111
        %p411 = pneg %p108
        %p412 = pneg %p132
        %p413 = pneg %p129
        %p414 = pneg %p153
        %p415 = pneg %p150
        %p416 = pneg %p174
        %p417 = pneg %p171
        %p418 = pneg %p195
        %p419 = pneg %p192
        %p420 = pneg %p216
        %p421 = pneg %p213
        %p422 = pneg %p237
        %p423 = pneg %p234
        %p424 = pneg %p258
        %p425 = pneg %p255
        %p426 = pneg %p284
        %p427 = pneg %p281
        %s428 = sand.u32 %s271, 1
        %s429 = scalar_lea.sflag [#allocation7], %s428
        %s430 = sand.u32 %s271, 1
        %s431 = smul.addr %s430, 2
        %s432 = scalar_lea.vmem [#allocation11], %s431
        %s433 = smul.u32 2, %s27
        %p434 = scmp.lt.s32.totalorder %s433, 3
        %s435 = scalar_select %p434, %s433, 3
        %s436 = smul.addr %s435, 32
        %s437 = smul.addr %s436, 8
        %s438 = scalar_lea.vmem %s0, %s437
        %s439 = smul.u32 2, %s27
        %s440 = smul.u32 2, %s27
        %vm441 = vcmask 7168
        %442 = vst.msk [vmem:[#allocation2] sm:$0xff] %vm441, 0.0
        %443 = vst.msk [vmem:[#allocation2 + $0x8] sm:$0xff] %vm441, 0.0
        %vm444 = vcmask 1024
        %445 = vst.msk [vmem:[#allocation2 + $0x10] sm:$0x3] %vm444, 0.0
        %446 = vst.msk [vmem:[#allocation2 + $0x18] sm:$0xff] %vm441, 0.0
        %447 = vst.msk [vmem:[#allocation2 + $0x20] sm:$0xff] %vm441, 0.0
        %448 = vst.msk [vmem:[#allocation2 + $0x28] sm:$0x3] %vm444, 0.0
        %449 = vst.msk [vmem:[#allocation2 + $0x30] sm:$0xff] %vm441, 0.0
        %450 = vst.msk [vmem:[#allocation2 + $0x38] sm:$0xff] %vm441, 0.0
        %451 = vst.msk [vmem:[#allocation2 + $0x40] sm:$0x3] %vm444, 0.0
        %452 = vst.msk [vmem:[#allocation2 + $0x48] sm:$0xff] %vm441, 0.0
        %453 = vst.msk [vmem:[#allocation2 + $0x50] sm:$0xff] %vm441, 0.0
        %454 = vst.msk [vmem:[#allocation2 + $0x58] sm:$0x3] %vm444, 0.0
        %455 = vst.msk [vmem:[#allocation2 + $0x60] sm:$0xff] %vm441, 0.0
        %456 = vst.msk [vmem:[#allocation2 + $0x68] sm:$0xff] %vm441, 0.0
        %457 = vst.msk [vmem:[#allocation2 + $0x70] sm:$0x3] %vm444, 0.0
        %458 = vst.msk [vmem:[#allocation2 + $0x78] sm:$0xff] %vm441, 0.0
        %459 = vst.msk [vmem:[#allocation2 + $0x80] sm:$0xff] %vm441, 0.0
        %460 = vst.msk [vmem:[#allocation2 + $0x88] sm:$0x3] %vm444, 0.0
        %461 = vst.msk [vmem:[#allocation2 + $0x90] sm:$0xff] %vm441, 0.0
        %462 = vst.msk [vmem:[#allocation2 + $0x98] sm:$0xff] %vm441, 0.0
        %463 = vst.msk [vmem:[#allocation2 + $0xa0] sm:$0x3] %vm444, 0.0
        %464 = vst.msk [vmem:[#allocation2 + $0xa8] sm:$0xff] %vm441, 0.0
        %465 = vst.msk [vmem:[#allocation2 + $0xb0] sm:$0xff] %vm441, 0.0
        %466 = vst.msk [vmem:[#allocation2 + $0xb8] sm:$0x3] %vm444, 0.0
        %467 = vst.msk [vmem:[#allocation2 + $0xc0] sm:$0xff] %vm441, 0.0
        %468 = vst.msk [vmem:[#allocation2 + $0xc8] sm:$0xff] %vm441, 0.0
        %469 = vst.msk [vmem:[#allocation2 + $0xd0] sm:$0x3] %vm444, 0.0
        %470 = vst.msk [vmem:[#allocation2 + $0xd8] sm:$0xff] %vm441, 0.0
        %471 = vst.msk [vmem:[#allocation2 + $0xe0] sm:$0xff] %vm441, 0.0
        %472 = vst.msk [vmem:[#allocation2 + $0xe8] sm:$0x3] %vm444, 0.0
        %473 = vst.msk [vmem:[#allocation2 + $0xf0] sm:$0xff] %vm441, 0.0
        %474 = vst.msk [vmem:[#allocation2 + $0xf8] sm:$0xff] %vm441, 0.0
        %475 = vst.msk [vmem:[#allocation2 + $0x100] sm:$0x3] %vm444, 0.0
        %476 = vst.msk [vmem:[#allocation2 + $0x108] sm:$0xff] %vm441, 0.0
        %477 = vst.msk [vmem:[#allocation2 + $0x110] sm:$0xff] %vm441, 0.0
        %478 = vst.msk [vmem:[#allocation2 + $0x118] sm:$0x3] %vm444, 0.0
        %479 = vst.msk [vmem:[#allocation2 + $0x120] sm:$0xff] %vm441, 0.0
        %480 = vst.msk [vmem:[#allocation2 + $0x128] sm:$0xff] %vm441, 0.0
        %481 = vst.msk [vmem:[#allocation2 + $0x130] sm:$0x3] %vm444, 0.0
        %482 = vst.msk [vmem:[#allocation2 + $0x138] sm:$0xff] %vm441, 0.0
        %483 = vst.msk [vmem:[#allocation2 + $0x140] sm:$0xff] %vm441, 0.0
        %484 = vst.msk [vmem:[#allocation2 + $0x148] sm:$0x3] %vm444, 0.0
        %485 = vst.msk [vmem:[#allocation2 + $0x150] sm:$0xff] %vm441, 0.0
        %486 = vst.msk [vmem:[#allocation2 + $0x158] sm:$0xff] %vm441, 0.0
        %487 = vst.msk [vmem:[#allocation2 + $0x160] sm:$0x3] %vm444, 0.0
        %488 = vst.msk [vmem:[#allocation2 + $0x168] sm:$0xff] %vm441, 0.0
        %489 = vst.msk [vmem:[#allocation2 + $0x170] sm:$0xff] %vm441, 0.0
        %490 = vst.msk [vmem:[#allocation2 + $0x178] sm:$0x3] %vm444, 0.0
        %491 = vst.msk [vmem:[#allocation2 + $0x180] sm:$0xff] %vm441, 0.0
        %492 = vst.msk [vmem:[#allocation2 + $0x188] sm:$0xff] %vm441, 0.0
        %493 = vst.msk [vmem:[#allocation2 + $0x190] sm:$0x3] %vm444, 0.0
        %494 = vst.msk [vmem:[#allocation2 + $0x198] sm:$0xff] %vm441, 0.0
        %495 = vst.msk [vmem:[#allocation2 + $0x1a0] sm:$0xff] %vm441, 0.0
        %496 = vst.msk [vmem:[#allocation2 + $0x1a8] sm:$0x3] %vm444, 0.0
        %497 = vst.msk [vmem:[#allocation2 + $0x1b0] sm:$0xff] %vm441, 0.0
        %498 = vst.msk [vmem:[#allocation2 + $0x1b8] sm:$0xff] %vm441, 0.0
        %499 = vst.msk [vmem:[#allocation2 + $0x1c0] sm:$0x3] %vm444, 0.0
        %500 = vst.msk [vmem:[#allocation2 + $0x1c8] sm:$0xff] %vm441, 0.0
        %501 = vst.msk [vmem:[#allocation2 + $0x1d0] sm:$0xff] %vm441, 0.0
        %502 = vst.msk [vmem:[#allocation2 + $0x1d8] sm:$0x3] %vm444, 0.0
        %503 = vst.msk [vmem:[#allocation2 + $0x1e0] sm:$0xff] %vm441, 0.0
        %504 = vst.msk [vmem:[#allocation2 + $0x1e8] sm:$0xff] %vm441, 0.0
        %505 = vst.msk [vmem:[#allocation2 + $0x1f0] sm:$0x3] %vm444, 0.0
        %506 = vst.msk [vmem:[#allocation2 + $0x1f8] sm:$0xff] %vm441, 0.0
        %507 = vst.msk [vmem:[#allocation2 + $0x200] sm:$0xff] %vm441, 0.0
        %508 = vst.msk [vmem:[#allocation2 + $0x208] sm:$0x3] %vm444, 0.0
        %509 = vst.msk [vmem:[#allocation2 + $0x210] sm:$0xff] %vm441, 0.0
        %510 = vst.msk [vmem:[#allocation2 + $0x218] sm:$0xff] %vm441, 0.0
        %511 = vst.msk [vmem:[#allocation2 + $0x220] sm:$0x3] %vm444, 0.0
        %512 = vst.msk [vmem:[#allocation2 + $0x228] sm:$0xff] %vm441, 0.0
        %513 = vst.msk [vmem:[#allocation2 + $0x230] sm:$0xff] %vm441, 0.0
        %514 = vst.msk [vmem:[#allocation2 + $0x238] sm:$0x3] %vm444, 0.0
        %515 = vst.msk [vmem:[#allocation2 + $0x240] sm:$0xff] %vm441, 0.0
        %516 = vst.msk [vmem:[#allocation2 + $0x248] sm:$0xff] %vm441, 0.0
        %517 = vst.msk [vmem:[#allocation2 + $0x250] sm:$0x3] %vm444, 0.0
        %518 = vst.msk [vmem:[#allocation2 + $0x258] sm:$0xff] %vm441, 0.0
        %519 = vst.msk [vmem:[#allocation2 + $0x260] sm:$0xff] %vm441, 0.0
        %520 = vst.msk [vmem:[#allocation2 + $0x268] sm:$0x3] %vm444, 0.0
        %521 = vst.msk [vmem:[#allocation2 + $0x270] sm:$0xff] %vm441, 0.0
        %522 = vst.msk [vmem:[#allocation2 + $0x278] sm:$0xff] %vm441, 0.0
        %523 = vst.msk [vmem:[#allocation2 + $0x280] sm:$0x3] %vm444, 0.0
        %524 = vst.msk [vmem:[#allocation2 + $0x288] sm:$0xff] %vm441, 0.0
        %525 = vst.msk [vmem:[#allocation2 + $0x290] sm:$0xff] %vm441, 0.0
        %526 = vst.msk [vmem:[#allocation2 + $0x298] sm:$0x3] %vm444, 0.0
        %527 = vst.msk [vmem:[#allocation2 + $0x2a0] sm:$0xff] %vm441, 0.0
        %528 = vst.msk [vmem:[#allocation2 + $0x2a8] sm:$0xff] %vm441, 0.0
        %529 = vst.msk [vmem:[#allocation2 + $0x2b0] sm:$0x3] %vm444, 0.0
        %530 = vst.msk [vmem:[#allocation2 + $0x2b8] sm:$0xff] %vm441, 0.0
        %531 = vst.msk [vmem:[#allocation2 + $0x2c0] sm:$0xff] %vm441, 0.0
        %532 = vst.msk [vmem:[#allocation2 + $0x2c8] sm:$0x3] %vm444, 0.0
        %533 = vst.msk [vmem:[#allocation2 + $0x2d0] sm:$0xff] %vm441, 0.0
        %534 = vst.msk [vmem:[#allocation2 + $0x2d8] sm:$0xff] %vm441, 0.0
        %535 = vst.msk [vmem:[#allocation2 + $0x2e0] sm:$0x3] %vm444, 0.0
        %536 = vst.msk [vmem:[#allocation2 + $0x2e8] sm:$0xff] %vm441, 0.0
        %537 = vst.msk [vmem:[#allocation2 + $0x2f0] sm:$0xff] %vm441, 0.0
        %538 = vst.msk [vmem:[#allocation2 + $0x2f8] sm:$0x3] %vm444, 0.0
        %539 = vst.msk [vmem:[#allocation2 + $0x300] sm:$0xff] %vm441, 0.0
        %540 = vst.msk [vmem:[#allocation2 + $0x308] sm:$0xff] %vm441, 0.0
        %541 = vst.msk [vmem:[#allocation2 + $0x310] sm:$0x3] %vm444, 0.0
        %542 = vst.msk [vmem:[#allocation2 + $0x318] sm:$0xff] %vm441, 0.0
        %543 = vst.msk [vmem:[#allocation2 + $0x320] sm:$0xff] %vm441, 0.0
        %544 = vst.msk [vmem:[#allocation2 + $0x328] sm:$0x3] %vm444, 0.0
        %545 = vst.msk [vmem:[#allocation2 + $0x330] sm:$0xff] %vm441, 0.0
        %546 = vst.msk [vmem:[#allocation2 + $0x338] sm:$0xff] %vm441, 0.0
        %547 = vst.msk [vmem:[#allocation2 + $0x340] sm:$0x3] %vm444, 0.0
        %548 = vst.msk [vmem:[#allocation2 + $0x348] sm:$0xff] %vm441, 0.0
        %549 = vst.msk [vmem:[#allocation2 + $0x350] sm:$0xff] %vm441, 0.0
        %550 = vst.msk [vmem:[#allocation2 + $0x358] sm:$0x3] %vm444, 0.0
        %v551 = vld [vmem:[%s438] sm:$0xff]
        %v552 = vld [vmem:[%s438 + $0x8] sm:$0xff]
        %v553 = vld [vmem:[%s438 + $0x10] sm:$0xff]
        %v554 = vld [vmem:[%s438 + $0x18] sm:$0xff]
        %v555 = vld [vmem:[%s438 + $0x20] sm:$0xff]
        %v556 = vld [vmem:[%s438 + $0x28] sm:$0xff]
        %v557 = vld [vmem:[%s438 + $0x30] sm:$0xff]
        %v558 = vld [vmem:[%s438 + $0x38] sm:$0xff]
        %v559 = vld [vmem:[%s438 + $0x40] sm:$0xff]
        %v560 = vld [vmem:[%s438 + $0x48] sm:$0xff]
        %v561 = vld [vmem:[%s438 + $0x50] sm:$0xff]
        %v562 = vld [vmem:[%s438 + $0x58] sm:$0xff]
        %v563 = vld [vmem:[%s438 + $0x60] sm:$0xff]
        %v564 = vld [vmem:[%s438 + $0x68] sm:$0xff]
        %v565 = vld [vmem:[%s438 + $0x70] sm:$0xff]
        %v566 = vld [vmem:[%s438 + $0x78] sm:$0xff]
        %v567 = vld [vmem:[%s438 + $0x80] sm:$0xff]
        %v568 = vld [vmem:[%s438 + $0x88] sm:$0xff]
        %v569 = vld [vmem:[%s438 + $0x90] sm:$0xff]
        %v570 = vld [vmem:[%s438 + $0x98] sm:$0xff]
        %v571 = vld [vmem:[%s438 + $0xa0] sm:$0xff]
        %v572 = vld [vmem:[%s438 + $0xa8] sm:$0xff]
        %v573 = vld [vmem:[%s438 + $0xb0] sm:$0xff]
        %v574 = vld [vmem:[%s438 + $0xb8] sm:$0xff]
        %v575 = vld [vmem:[%s438 + $0xc0] sm:$0xff]
        %v576 = vld [vmem:[%s438 + $0xc8] sm:$0xff]
        %v577 = vld [vmem:[%s438 + $0xd0] sm:$0xff]
        %v578 = vld [vmem:[%s438 + $0xd8] sm:$0xff]
        %v579 = vld [vmem:[%s438 + $0xe0] sm:$0xff]
        %v580 = vld [vmem:[%s438 + $0xe8] sm:$0xff]
        %v581 = vld [vmem:[%s438 + $0xf0] sm:$0xff]
        %v582 = vld [vmem:[%s438 + $0xf8] sm:$0xff]
        %v583 = vld [vmem:[%s438 + $0x100] sm:$0xff]
        %v584 = vld [vmem:[%s438 + $0x108] sm:$0xff]
        %v585 = vld [vmem:[%s438 + $0x110] sm:$0xff]
        %v586 = vld [vmem:[%s438 + $0x118] sm:$0xff]
        %v587 = vld [vmem:[%s438 + $0x120] sm:$0xff]
        %v588 = vld [vmem:[%s438 + $0x128] sm:$0xff]
        %v589 = vld [vmem:[%s438 + $0x130] sm:$0xff]
        %v590 = vld [vmem:[%s438 + $0x138] sm:$0xff]
        %v591 = vld [vmem:[%s438 + $0x140] sm:$0xff]
        %v592 = vld [vmem:[%s438 + $0x148] sm:$0xff]
        %v593 = vld [vmem:[%s438 + $0x150] sm:$0xff]
        %v594 = vld [vmem:[%s438 + $0x158] sm:$0xff]
        %v595 = vld [vmem:[%s438 + $0x160] sm:$0xff]
        %v596 = vld [vmem:[%s438 + $0x168] sm:$0xff]
        %v597 = vld [vmem:[%s438 + $0x170] sm:$0xff]
        %v598 = vld [vmem:[%s438 + $0x178] sm:$0xff]
        %v599 = vld [vmem:[%s438 + $0x180] sm:$0xff]
        %v600 = vld [vmem:[%s438 + $0x188] sm:$0xff]
        %v601 = vld [vmem:[%s438 + $0x190] sm:$0xff]
        %v602 = vld [vmem:[%s438 + $0x198] sm:$0xff]
        %v603 = vld [vmem:[%s438 + $0x1a0] sm:$0xff]
        %v604 = vld [vmem:[%s438 + $0x1a8] sm:$0xff]
        %v605 = vld [vmem:[%s438 + $0x1b0] sm:$0xff]
        %v606 = vld [vmem:[%s438 + $0x1b8] sm:$0xff]
        %v607 = vld [vmem:[%s438 + $0x1c0] sm:$0xff]
        %v608 = vld [vmem:[%s438 + $0x1c8] sm:$0xff]
        %v609 = vld [vmem:[%s438 + $0x1d0] sm:$0xff]
        %v610 = vld [vmem:[%s438 + $0x1d8] sm:$0xff]
        %v611 = vld [vmem:[%s438 + $0x1e0] sm:$0xff]
        %v612 = vld [vmem:[%s438 + $0x1e8] sm:$0xff]
        %v613 = vld [vmem:[%s438 + $0x1f0] sm:$0xff]
        %v614 = vld [vmem:[%s438 + $0x1f8] sm:$0xff]
        %s615 = scalar_lea.vmem [#allocation2], 24
        %616 = vst.msk [vmem:[%s615 + $0x1] sm:$0xff] %vm441, %v551
        %617 = vst.msk [vmem:[%s615 + $0x9] sm:$0xff] %vm441, %v552
        %618 = vst.msk [vmem:[%s615 + $0x19] sm:$0xff] %vm441, %v553
        %619 = vst.msk [vmem:[%s615 + $0x21] sm:$0xff] %vm441, %v554
        %620 = vst.msk [vmem:[%s615 + $0x31] sm:$0xff] %vm441, %v555
        %621 = vst.msk [vmem:[%s615 + $0x39] sm:$0xff] %vm441, %v556
        %622 = vst.msk [vmem:[%s615 + $0x49] sm:$0xff] %vm441, %v557
        %623 = vst.msk [vmem:[%s615 + $0x51] sm:$0xff] %vm441, %v558
        %624 = vst.msk [vmem:[%s615 + $0x61] sm:$0xff] %vm441, %v559
        %625 = vst.msk [vmem:[%s615 + $0x69] sm:$0xff] %vm441, %v560
        %626 = vst.msk [vmem:[%s615 + $0x79] sm:$0xff] %vm441, %v561
        %627 = vst.msk [vmem:[%s615 + $0x81] sm:$0xff] %vm441, %v562
        %628 = vst.msk [vmem:[%s615 + $0x91] sm:$0xff] %vm441, %v563
        %629 = vst.msk [vmem:[%s615 + $0x99] sm:$0xff] %vm441, %v564
        %630 = vst.msk [vmem:[%s615 + $0xa9] sm:$0xff] %vm441, %v565
        %631 = vst.msk [vmem:[%s615 + $0xb1] sm:$0xff] %vm441, %v566
        %632 = vst.msk [vmem:[%s615 + $0xc1] sm:$0xff] %vm441, %v567
        %633 = vst.msk [vmem:[%s615 + $0xc9] sm:$0xff] %vm441, %v568
        %634 = vst.msk [vmem:[%s615 + $0xd9] sm:$0xff] %vm441, %v569
        %635 = vst.msk [vmem:[%s615 + $0xe1] sm:$0xff] %vm441, %v570
        %636 = vst.msk [vmem:[%s615 + $0xf1] sm:$0xff] %vm441, %v571
        %637 = vst.msk [vmem:[%s615 + $0xf9] sm:$0xff] %vm441, %v572
        %638 = vst.msk [vmem:[%s615 + $0x109] sm:$0xff] %vm441, %v573
        %639 = vst.msk [vmem:[%s615 + $0x111] sm:$0xff] %vm441, %v574
        %640 = vst.msk [vmem:[%s615 + $0x121] sm:$0xff] %vm441, %v575
        %641 = vst.msk [vmem:[%s615 + $0x129] sm:$0xff] %vm441, %v576
        %642 = vst.msk [vmem:[%s615 + $0x139] sm:$0xff] %vm441, %v577
        %643 = vst.msk [vmem:[%s615 + $0x141] sm:$0xff] %vm441, %v578
        %644 = vst.msk [vmem:[%s615 + $0x151] sm:$0xff] %vm441, %v579
        %645 = vst.msk [vmem:[%s615 + $0x159] sm:$0xff] %vm441, %v580
        %646 = vst.msk [vmem:[%s615 + $0x169] sm:$0xff] %vm441, %v581
        %647 = vst.msk [vmem:[%s615 + $0x171] sm:$0xff] %vm441, %v582
        %648 = vst.msk [vmem:[%s615 + $0x1b1] sm:$0xff] %vm441, %v583
        %649 = vst.msk [vmem:[%s615 + $0x1b9] sm:$0xff] %vm441, %v584
        %650 = vst.msk [vmem:[%s615 + $0x1c9] sm:$0xff] %vm441, %v585
        %651 = vst.msk [vmem:[%s615 + $0x1d1] sm:$0xff] %vm441, %v586
        %652 = vst.msk [vmem:[%s615 + $0x1e1] sm:$0xff] %vm441, %v587
        %653 = vst.msk [vmem:[%s615 + $0x1e9] sm:$0xff] %vm441, %v588
        %654 = vst.msk [vmem:[%s615 + $0x1f9] sm:$0xff] %vm441, %v589
        %655 = vst.msk [vmem:[%s615 + $0x201] sm:$0xff] %vm441, %v590
        %656 = vst.msk [vmem:[%s615 + $0x211] sm:$0xff] %vm441, %v591
        %657 = vst.msk [vmem:[%s615 + $0x219] sm:$0xff] %vm441, %v592
        %658 = vst.msk [vmem:[%s615 + $0x229] sm:$0xff] %vm441, %v593
        %659 = vst.msk [vmem:[%s615 + $0x231] sm:$0xff] %vm441, %v594
        %660 = vst.msk [vmem:[%s615 + $0x241] sm:$0xff] %vm441, %v595
        %661 = vst.msk [vmem:[%s615 + $0x249] sm:$0xff] %vm441, %v596
        %662 = vst.msk [vmem:[%s615 + $0x259] sm:$0xff] %vm441, %v597
        %663 = vst.msk [vmem:[%s615 + $0x261] sm:$0xff] %vm441, %v598
        %664 = vst.msk [vmem:[%s615 + $0x271] sm:$0xff] %vm441, %v599
        %665 = vst.msk [vmem:[%s615 + $0x279] sm:$0xff] %vm441, %v600
        %666 = vst.msk [vmem:[%s615 + $0x289] sm:$0xff] %vm441, %v601
        %667 = vst.msk [vmem:[%s615 + $0x291] sm:$0xff] %vm441, %v602
        %668 = vst.msk [vmem:[%s615 + $0x2a1] sm:$0xff] %vm441, %v603
        %669 = vst.msk [vmem:[%s615 + $0x2a9] sm:$0xff] %vm441, %v604
        %670 = vst.msk [vmem:[%s615 + $0x2b9] sm:$0xff] %vm441, %v605
        %671 = vst.msk [vmem:[%s615 + $0x2c1] sm:$0xff] %vm441, %v606
        %672 = vst.msk [vmem:[%s615 + $0x2d1] sm:$0xff] %vm441, %v607
        %673 = vst.msk [vmem:[%s615 + $0x2d9] sm:$0xff] %vm441, %v608
        %674 = vst.msk [vmem:[%s615 + $0x2e9] sm:$0xff] %vm441, %v609
        %675 = vst.msk [vmem:[%s615 + $0x2f1] sm:$0xff] %vm441, %v610
        %676 = vst.msk [vmem:[%s615 + $0x301] sm:$0xff] %vm441, %v611
        %677 = vst.msk [vmem:[%s615 + $0x309] sm:$0xff] %vm441, %v612
        %678 = vst.msk [vmem:[%s615 + $0x319] sm:$0xff] %vm441, %v613
        %679 = vst.msk [vmem:[%s615 + $0x321] sm:$0xff] %vm441, %v614
        %v680 = vld [vmem:[#allocation2] sm:$0xff]
        %v681 = vld [vmem:[#allocation2 + $0x8] sm:$0xff]
        %v682 = vld [vmem:[#allocation2 + $0x10] sm:$0x3]
        %v683 = vld [vmem:[#allocation2 + $0x18] sm:$0xff]
        %v684 = vld [vmem:[#allocation2 + $0x20] sm:$0xff]
        %v685 = vld [vmem:[#allocation2 + $0x28] sm:$0x3]
        %v686 = vld [vmem:[#allocation2 + $0x30] sm:$0xff]
        %v687 = vld [vmem:[#allocation2 + $0x38] sm:$0xff]
        %v688 = vld [vmem:[#allocation2 + $0x40] sm:$0x3]
        %v689 = vld [vmem:[#allocation2 + $0x48] sm:$0xff]
        %v690 = vld [vmem:[#allocation2 + $0x50] sm:$0xff]
        %v691 = vld [vmem:[#allocation2 + $0x58] sm:$0x3]
        %v692 = vld [vmem:[#allocation2 + $0x60] sm:$0xff]
        %v693 = vld [vmem:[#allocation2 + $0x68] sm:$0xff]
        %v694 = vld [vmem:[#allocation2 + $0x70] sm:$0x3]
        %v695 = vld [vmem:[#allocation2 + $0x78] sm:$0xff]
        %v696 = vld [vmem:[#allocation2 + $0x80] sm:$0xff]
        %v697 = vld [vmem:[#allocation2 + $0x88] sm:$0x3]
        %v698 = vld [vmem:[#allocation2 + $0x90] sm:$0xff]
        %v699 = vld [vmem:[#allocation2 + $0x98] sm:$0xff]
        %v700 = vld [vmem:[#allocation2 + $0xa0] sm:$0x3]
        %v701 = vld [vmem:[#allocation2 + $0xa8] sm:$0xff]
        %v702 = vld [vmem:[#allocation2 + $0xb0] sm:$0xff]
        %v703 = vld [vmem:[#allocation2 + $0xb8] sm:$0x3]
        %v704 = vld [vmem:[#allocation2 + $0xc0] sm:$0xff]
        %v705 = vld [vmem:[#allocation2 + $0xc8] sm:$0xff]
        %v706 = vld [vmem:[#allocation2 + $0xd0] sm:$0x3]
        %v707 = vld [vmem:[#allocation2 + $0xd8] sm:$0xff]
        %v708 = vld [vmem:[#allocation2 + $0xe0] sm:$0xff]
        %v709 = vld [vmem:[#allocation2 + $0xe8] sm:$0x3]
        %v710 = vld [vmem:[#allocation2 + $0xf0] sm:$0xff]
        %v711 = vld [vmem:[#allocation2 + $0xf8] sm:$0xff]
        %v712 = vld [vmem:[#allocation2 + $0x100] sm:$0x3]
        %v713 = vld [vmem:[#allocation2 + $0x108] sm:$0xff]
        %v714 = vld [vmem:[#allocation2 + $0x110] sm:$0xff]
        %v715 = vld [vmem:[#allocation2 + $0x118] sm:$0x3]
        %v716 = vld [vmem:[#allocation2 + $0x120] sm:$0xff]
        %v717 = vld [vmem:[#allocation2 + $0x128] sm:$0xff]
        %v718 = vld [vmem:[#allocation2 + $0x130] sm:$0x3]
        %v719 = vld [vmem:[#allocation2 + $0x138] sm:$0xff]
        %v720 = vld [vmem:[#allocation2 + $0x140] sm:$0xff]
        %v721 = vld [vmem:[#allocation2 + $0x148] sm:$0x3]
        %v722 = vld [vmem:[#allocation2 + $0x150] sm:$0xff]
        %v723 = vld [vmem:[#allocation2 + $0x158] sm:$0xff]
        %v724 = vld [vmem:[#allocation2 + $0x160] sm:$0x3]
        %v725 = vld [vmem:[#allocation2 + $0x168] sm:$0xff]
        %v726 = vld [vmem:[#allocation2 + $0x170] sm:$0xff]
        %v727 = vld [vmem:[#allocation2 + $0x178] sm:$0x3]
        %v728 = vld [vmem:[#allocation2 + $0x180] sm:$0xff]
        %v729 = vld [vmem:[#allocation2 + $0x188] sm:$0xff]
        %v730 = vld [vmem:[#allocation2 + $0x190] sm:$0x3]
        %v731 = vld [vmem:[#allocation2 + $0x198] sm:$0xff]
        %v732 = vld [vmem:[#allocation2 + $0x1a0] sm:$0xff]
        %v733 = vld [vmem:[#allocation2 + $0x1a8] sm:$0x3]
        %v734 = vld [vmem:[#allocation2 + $0x1b0] sm:$0xff]
        %v735 = vld [vmem:[#allocation2 + $0x1b8] sm:$0xff]
        %v736 = vld [vmem:[#allocation2 + $0x1c0] sm:$0x3]
        %v737 = vld [vmem:[#allocation2 + $0x1c8] sm:$0xff]
        %v738 = vld [vmem:[#allocation2 + $0x1d0] sm:$0xff]
        %v739 = vld [vmem:[#allocation2 + $0x1d8] sm:$0x3]
        %v740 = vld [vmem:[#allocation2 + $0x1e0] sm:$0xff]
        %v741 = vld [vmem:[#allocation2 + $0x1e8] sm:$0xff]
        %v742 = vld [vmem:[#allocation2 + $0x1f0] sm:$0x3]
        %v743 = vld [vmem:[#allocation2 + $0x1f8] sm:$0xff]
        %v744 = vld [vmem:[#allocation2 + $0x200] sm:$0xff]
        %v745 = vld [vmem:[#allocation2 + $0x208] sm:$0x3]
        %v746 = vld [vmem:[#allocation2 + $0x210] sm:$0xff]
        %v747 = vld [vmem:[#allocation2 + $0x218] sm:$0xff]
        %v748 = vld [vmem:[#allocation2 + $0x220] sm:$0x3]
        %v749 = vld [vmem:[#allocation2 + $0x228] sm:$0xff]
        %v750 = vld [vmem:[#allocation2 + $0x230] sm:$0xff]
        %v751 = vld [vmem:[#allocation2 + $0x238] sm:$0x3]
        %v752 = vld [vmem:[#allocation2 + $0x240] sm:$0xff]
        %v753 = vld [vmem:[#allocation2 + $0x248] sm:$0xff]
        %v754 = vld [vmem:[#allocation2 + $0x250] sm:$0x3]
        %v755 = vld [vmem:[#allocation2 + $0x258] sm:$0xff]
        %v756 = vld [vmem:[#allocation2 + $0x260] sm:$0xff]
        %v757 = vld [vmem:[#allocation2 + $0x268] sm:$0x3]
        %v758 = vld [vmem:[#allocation2 + $0x270] sm:$0xff]
        %v759 = vld [vmem:[#allocation2 + $0x278] sm:$0xff]
        %v760 = vld [vmem:[#allocation2 + $0x280] sm:$0x3]
        %v761 = vld [vmem:[#allocation2 + $0x288] sm:$0xff]
        %v762 = vld [vmem:[#allocation2 + $0x290] sm:$0xff]
        %v763 = vld [vmem:[#allocation2 + $0x298] sm:$0x3]
        %v764 = vld [vmem:[#allocation2 + $0x2a0] sm:$0xff]
        %v765 = vld [vmem:[#allocation2 + $0x2a8] sm:$0xff]
        %v766 = vld [vmem:[#allocation2 + $0x2b0] sm:$0x3]
        %v767 = vld [vmem:[#allocation2 + $0x2b8] sm:$0xff]
        %v768 = vld [vmem:[#allocation2 + $0x2c0] sm:$0xff]
        %v769 = vld [vmem:[#allocation2 + $0x2c8] sm:$0x3]
        %v770 = vld [vmem:[#allocation2 + $0x2d0] sm:$0xff]
        %v771 = vld [vmem:[#allocation2 + $0x2d8] sm:$0xff]
        %v772 = vld [vmem:[#allocation2 + $0x2e0] sm:$0x3]
        %v773 = vld [vmem:[#allocation2 + $0x2e8] sm:$0xff]
        %v774 = vld [vmem:[#allocation2 + $0x2f0] sm:$0xff]
        %v775 = vld [vmem:[#allocation2 + $0x2f8] sm:$0x3]
        %v776 = vld [vmem:[#allocation2 + $0x300] sm:$0xff]
        %v777 = vld [vmem:[#allocation2 + $0x308] sm:$0xff]
        %v778 = vld [vmem:[#allocation2 + $0x310] sm:$0x3]
        %v779 = vld [vmem:[#allocation2 + $0x318] sm:$0xff]
        %v780 = vld [vmem:[#allocation2 + $0x320] sm:$0xff]
        %v781 = vld [vmem:[#allocation2 + $0x328] sm:$0x3]
        %v782 = vld [vmem:[#allocation2 + $0x330] sm:$0xff]
        %v783 = vld [vmem:[#allocation2 + $0x338] sm:$0xff]
        %v784 = vld [vmem:[#allocation2 + $0x340] sm:$0x3]
        %v785 = vld [vmem:[#allocation2 + $0x348] sm:$0xff]
        %v786 = vld [vmem:[#allocation2 + $0x350] sm:$0xff]
        %v787 = vld [vmem:[#allocation2 + $0x358] sm:$0x3]
        %v788 = vld [vmem:[#allocation5] sm:$0x1]
        %790 = vset.pattern.permute.xlu0 0
        %791 = vperm.xlu0 %790, %v680
        %v792 = vpop.permute.xlu0 %791
        %795 = vset.pattern.permute.xlu0 0
        %796 = vperm.xlu0 %795, %v681
        %v797 = vpop.permute.xlu0 %796
        %800 = vset.pattern.permute.xlu0 0
        %801 = vperm.xlu0 %800, %v683
        %v802 = vpop.permute.xlu0 %801
        %805 = vset.pattern.permute.xlu0 0
        %806 = vperm.xlu0 %805, %v684
        %v807 = vpop.permute.xlu0 %806
        %810 = vset.pattern.permute.xlu0 0
        %811 = vperm.xlu0 %810, %v686
        %v812 = vpop.permute.xlu0 %811
        %815 = vset.pattern.permute.xlu0 0
        %816 = vperm.xlu0 %815, %v687
        %v817 = vpop.permute.xlu0 %816
        %820 = vset.pattern.permute.xlu0 0
        %821 = vperm.xlu0 %820, %v689
        %v822 = vpop.permute.xlu0 %821
        %825 = vset.pattern.permute.xlu0 0
        %826 = vperm.xlu0 %825, %v690
        %v827 = vpop.permute.xlu0 %826
        %830 = vset.pattern.permute.xlu0 0
        %831 = vperm.xlu0 %830, %v692
        %v832 = vpop.permute.xlu0 %831
        %835 = vset.pattern.permute.xlu0 0
        %836 = vperm.xlu0 %835, %v693
        %v837 = vpop.permute.xlu0 %836
        %840 = vset.pattern.permute.xlu0 0
        %841 = vperm.xlu0 %840, %v695
        %v842 = vpop.permute.xlu0 %841
        %845 = vset.pattern.permute.xlu0 0
        %846 = vperm.xlu0 %845, %v696
        %v847 = vpop.permute.xlu0 %846
        %850 = vset.pattern.permute.xlu0 0
        %851 = vperm.xlu0 %850, %v698
        %v852 = vpop.permute.xlu0 %851
        %855 = vset.pattern.permute.xlu0 0
        %856 = vperm.xlu0 %855, %v699
        %v857 = vpop.permute.xlu0 %856
        %860 = vset.pattern.permute.xlu0 0
        %861 = vperm.xlu0 %860, %v701
        %v862 = vpop.permute.xlu0 %861
        %865 = vset.pattern.permute.xlu0 0
        %866 = vperm.xlu0 %865, %v702
        %v867 = vpop.permute.xlu0 %866
        %870 = vset.pattern.permute.xlu0 0
        %871 = vperm.xlu0 %870, %v704
        %v872 = vpop.permute.xlu0 %871
        %875 = vset.pattern.permute.xlu0 0
        %876 = vperm.xlu0 %875, %v705
        %v877 = vpop.permute.xlu0 %876
        %880 = vset.pattern.permute.xlu0 0
        %881 = vperm.xlu0 %880, %v707
        %v882 = vpop.permute.xlu0 %881
        %885 = vset.pattern.permute.xlu0 0
        %886 = vperm.xlu0 %885, %v708
        %v887 = vpop.permute.xlu0 %886
        %890 = vset.pattern.permute.xlu0 0
        %891 = vperm.xlu0 %890, %v710
        %v892 = vpop.permute.xlu0 %891
        %895 = vset.pattern.permute.xlu0 0
        %896 = vperm.xlu0 %895, %v711
        %v897 = vpop.permute.xlu0 %896
        %900 = vset.pattern.permute.xlu0 0
        %901 = vperm.xlu0 %900, %v713
        %v902 = vpop.permute.xlu0 %901
        %905 = vset.pattern.permute.xlu0 0
        %906 = vperm.xlu0 %905, %v714
        %v907 = vpop.permute.xlu0 %906
        %910 = vset.pattern.permute.xlu0 0
        %911 = vperm.xlu0 %910, %v716
        %v912 = vpop.permute.xlu0 %911
        %915 = vset.pattern.permute.xlu0 0
        %916 = vperm.xlu0 %915, %v717
        %v917 = vpop.permute.xlu0 %916
        %920 = vset.pattern.permute.xlu0 0
        %921 = vperm.xlu0 %920, %v719
        %v922 = vpop.permute.xlu0 %921
        %925 = vset.pattern.permute.xlu0 0
        %926 = vperm.xlu0 %925, %v720
        %v927 = vpop.permute.xlu0 %926
        %930 = vset.pattern.permute.xlu0 0
        %931 = vperm.xlu0 %930, %v722
        %v932 = vpop.permute.xlu0 %931
        %935 = vset.pattern.permute.xlu0 0
        %936 = vperm.xlu0 %935, %v723
        %v937 = vpop.permute.xlu0 %936
        %940 = vset.pattern.permute.xlu0 0
        %941 = vperm.xlu0 %940, %v725
        %v942 = vpop.permute.xlu0 %941
        %945 = vset.pattern.permute.xlu0 0
        %946 = vperm.xlu0 %945, %v726
        %v947 = vpop.permute.xlu0 %946
        %950 = vset.pattern.permute.xlu0 0
        %951 = vperm.xlu0 %950, %v734
        %v952 = vpop.permute.xlu0 %951
        %955 = vset.pattern.permute.xlu0 0
        %956 = vperm.xlu0 %955, %v735
        %v957 = vpop.permute.xlu0 %956
        %960 = vset.pattern.permute.xlu0 0
        %961 = vperm.xlu0 %960, %v737
        %v962 = vpop.permute.xlu0 %961
        %965 = vset.pattern.permute.xlu0 0
        %966 = vperm.xlu0 %965, %v738
        %v967 = vpop.permute.xlu0 %966
        %970 = vset.pattern.permute.xlu0 0
        %971 = vperm.xlu0 %970, %v740
        %v972 = vpop.permute.xlu0 %971
        %975 = vset.pattern.permute.xlu0 0
        %976 = vperm.xlu0 %975, %v741
        %v977 = vpop.permute.xlu0 %976
        %980 = vset.pattern.permute.xlu0 0
        %981 = vperm.xlu0 %980, %v743
        %v982 = vpop.permute.xlu0 %981
        %985 = vset.pattern.permute.xlu0 0
        %986 = vperm.xlu0 %985, %v744
        %v987 = vpop.permute.xlu0 %986
        %990 = vset.pattern.permute.xlu0 0
        %991 = vperm.xlu0 %990, %v746
        %v992 = vpop.permute.xlu0 %991
        %995 = vset.pattern.permute.xlu0 0
        %996 = vperm.xlu0 %995, %v747
        %v997 = vpop.permute.xlu0 %996
        %1000 = vset.pattern.permute.xlu0 0
        %1001 = vperm.xlu0 %1000, %v749
        %v1002 = vpop.permute.xlu0 %1001
        %1005 = vset.pattern.permute.xlu0 0
        %1006 = vperm.xlu0 %1005, %v750
        %v1007 = vpop.permute.xlu0 %1006
        %1010 = vset.pattern.permute.xlu0 0
        %1011 = vperm.xlu0 %1010, %v752
        %v1012 = vpop.permute.xlu0 %1011
        %1015 = vset.pattern.permute.xlu0 0
        %1016 = vperm.xlu0 %1015, %v753
        %v1017 = vpop.permute.xlu0 %1016
        %1020 = vset.pattern.permute.xlu0 0
        %1021 = vperm.xlu0 %1020, %v755
        %v1022 = vpop.permute.xlu0 %1021
        %1025 = vset.pattern.permute.xlu0 0
        %1026 = vperm.xlu0 %1025, %v756
        %v1027 = vpop.permute.xlu0 %1026
        %1030 = vset.pattern.permute.xlu0 0
        %1031 = vperm.xlu0 %1030, %v758
        %v1032 = vpop.permute.xlu0 %1031
        %1035 = vset.pattern.permute.xlu0 0
        %1036 = vperm.xlu0 %1035, %v759
        %v1037 = vpop.permute.xlu0 %1036
        %1040 = vset.pattern.permute.xlu0 0
        %1041 = vperm.xlu0 %1040, %v761
        %v1042 = vpop.permute.xlu0 %1041
        %1045 = vset.pattern.permute.xlu0 0
        %1046 = vperm.xlu0 %1045, %v762
        %v1047 = vpop.permute.xlu0 %1046
        %1050 = vset.pattern.permute.xlu0 0
        %1051 = vperm.xlu0 %1050, %v764
        %v1052 = vpop.permute.xlu0 %1051
        %1055 = vset.pattern.permute.xlu0 0
        %1056 = vperm.xlu0 %1055, %v765
        %v1057 = vpop.permute.xlu0 %1056
        %1060 = vset.pattern.permute.xlu0 0
        %1061 = vperm.xlu0 %1060, %v767
        %v1062 = vpop.permute.xlu0 %1061
        %1065 = vset.pattern.permute.xlu0 0
        %1066 = vperm.xlu0 %1065, %v768
        %v1067 = vpop.permute.xlu0 %1066
        %1070 = vset.pattern.permute.xlu0 0
        %1071 = vperm.xlu0 %1070, %v770
        %v1072 = vpop.permute.xlu0 %1071
        %1075 = vset.pattern.permute.xlu0 0
        %1076 = vperm.xlu0 %1075, %v771
        %v1077 = vpop.permute.xlu0 %1076
        %1080 = vset.pattern.permute.xlu0 0
        %1081 = vperm.xlu0 %1080, %v773
        %v1082 = vpop.permute.xlu0 %1081
        %1085 = vset.pattern.permute.xlu0 0
        %1086 = vperm.xlu0 %1085, %v774
        %v1087 = vpop.permute.xlu0 %1086
        %1090 = vset.pattern.permute.xlu0 0
        %1091 = vperm.xlu0 %1090, %v776
        %v1092 = vpop.permute.xlu0 %1091
        %1095 = vset.pattern.permute.xlu0 0
        %1096 = vperm.xlu0 %1095, %v777
        %v1097 = vpop.permute.xlu0 %1096
        %1100 = vset.pattern.permute.xlu0 0
        %1101 = vperm.xlu0 %1100, %v779
        %v1102 = vpop.permute.xlu0 %1101
        %1105 = vset.pattern.permute.xlu0 0
        %1106 = vperm.xlu0 %1105, %v780
        %v1107 = vpop.permute.xlu0 %1106
        %v1109 = vperm.slane %v788, 0
        %v1110 = vmul.f32 %v792, %v1109
        %v1111 = vmul.f32 %v797, %v1109
        %v1112 = vmul.f32 %v802, %v1109
        %v1113 = vmul.f32 %v807, %v1109
        %v1114 = vmul.f32 %v812, %v1109
        %v1115 = vmul.f32 %v817, %v1109
        %v1116 = vmul.f32 %v822, %v1109
        %v1117 = vmul.f32 %v827, %v1109
        %v1118 = vmul.f32 %v832, %v1109
        %v1119 = vmul.f32 %v837, %v1109
        %v1120 = vmul.f32 %v842, %v1109
        %v1121 = vmul.f32 %v847, %v1109
        %v1122 = vmul.f32 %v852, %v1109
        %v1123 = vmul.f32 %v857, %v1109
        %v1124 = vmul.f32 %v862, %v1109
        %v1125 = vmul.f32 %v867, %v1109
        %v1126 = vmul.f32 %v872, %v1109
        %v1127 = vmul.f32 %v877, %v1109
        %v1128 = vmul.f32 %v882, %v1109
        %v1129 = vmul.f32 %v887, %v1109
        %v1130 = vmul.f32 %v892, %v1109
        %v1131 = vmul.f32 %v897, %v1109
        %v1132 = vmul.f32 %v902, %v1109
        %v1133 = vmul.f32 %v907, %v1109
        %v1134 = vmul.f32 %v912, %v1109
        %v1135 = vmul.f32 %v917, %v1109
        %v1136 = vmul.f32 %v922, %v1109
        %v1137 = vmul.f32 %v927, %v1109
        %v1138 = vmul.f32 %v932, %v1109
        %v1139 = vmul.f32 %v937, %v1109
        %v1140 = vmul.f32 %v942, %v1109
        %v1141 = vmul.f32 %v947, %v1109
        %v1142 = vmul.f32 %v952, %v1109
        %v1143 = vmul.f32 %v957, %v1109
        %v1144 = vmul.f32 %v962, %v1109
        %v1145 = vmul.f32 %v967, %v1109
        %v1146 = vmul.f32 %v972, %v1109
        %v1147 = vmul.f32 %v977, %v1109
        %v1148 = vmul.f32 %v982, %v1109
        %v1149 = vmul.f32 %v987, %v1109
        %v1150 = vmul.f32 %v992, %v1109
        %v1151 = vmul.f32 %v997, %v1109
        %v1152 = vmul.f32 %v1002, %v1109
        %v1153 = vmul.f32 %v1007, %v1109
        %v1154 = vmul.f32 %v1012, %v1109
        %v1155 = vmul.f32 %v1017, %v1109
        %v1156 = vmul.f32 %v1022, %v1109
        %v1157 = vmul.f32 %v1027, %v1109
        %v1158 = vmul.f32 %v1032, %v1109
        %v1159 = vmul.f32 %v1037, %v1109
        %v1160 = vmul.f32 %v1042, %v1109
        %v1161 = vmul.f32 %v1047, %v1109
        %v1162 = vmul.f32 %v1052, %v1109
        %v1163 = vmul.f32 %v1057, %v1109
        %v1164 = vmul.f32 %v1062, %v1109
        %v1165 = vmul.f32 %v1067, %v1109
        %v1166 = vmul.f32 %v1072, %v1109
        %v1167 = vmul.f32 %v1077, %v1109
        %v1168 = vmul.f32 %v1082, %v1109
        %v1169 = vmul.f32 %v1087, %v1109
        %v1170 = vmul.f32 %v1092, %v1109
        %v1171 = vmul.f32 %v1097, %v1109
        %v1172 = vmul.f32 %v1102, %v1109
        %v1173 = vmul.f32 %v1107, %v1109
        %v1174 = vadd.f32 %v1110, 0.0
        %v1175 = vadd.f32 %v1111, 0.0
        %v1176 = vadd.f32 %v1112, 0.0
        %v1177 = vadd.f32 %v1113, 0.0
        %v1178 = vadd.f32 %v1114, 0.0
        %v1179 = vadd.f32 %v1115, 0.0
        %v1180 = vadd.f32 %v1116, 0.0
        %v1181 = vadd.f32 %v1117, 0.0
        %v1182 = vadd.f32 %v1118, 0.0
        %v1183 = vadd.f32 %v1119, 0.0
        %v1184 = vadd.f32 %v1120, 0.0
        %v1185 = vadd.f32 %v1121, 0.0
        %v1186 = vadd.f32 %v1122, 0.0
        %v1187 = vadd.f32 %v1123, 0.0
        %v1188 = vadd.f32 %v1124, 0.0
        %v1189 = vadd.f32 %v1125, 0.0
        %v1190 = vadd.f32 %v1126, 0.0
        %v1191 = vadd.f32 %v1127, 0.0
        %v1192 = vadd.f32 %v1128, 0.0
        %v1193 = vadd.f32 %v1129, 0.0
        %v1194 = vadd.f32 %v1130, 0.0
        %v1195 = vadd.f32 %v1131, 0.0
        %v1196 = vadd.f32 %v1132, 0.0
        %v1197 = vadd.f32 %v1133, 0.0
        %v1198 = vadd.f32 %v1134, 0.0
        %v1199 = vadd.f32 %v1135, 0.0
        %v1200 = vadd.f32 %v1136, 0.0
        %v1201 = vadd.f32 %v1137, 0.0
        %v1202 = vadd.f32 %v1138, 0.0
        %v1203 = vadd.f32 %v1139, 0.0
        %v1204 = vadd.f32 %v1140, 0.0
        %v1205 = vadd.f32 %v1141, 0.0
        %v1206 = vadd.f32 %v1142, 0.0
        %v1207 = vadd.f32 %v1143, 0.0
        %v1208 = vadd.f32 %v1144, 0.0
        %v1209 = vadd.f32 %v1145, 0.0
        %v1210 = vadd.f32 %v1146, 0.0
        %v1211 = vadd.f32 %v1147, 0.0
        %v1212 = vadd.f32 %v1148, 0.0
        %v1213 = vadd.f32 %v1149, 0.0
        %v1214 = vadd.f32 %v1150, 0.0
        %v1215 = vadd.f32 %v1151, 0.0
        %v1216 = vadd.f32 %v1152, 0.0
        %v1217 = vadd.f32 %v1153, 0.0
        %v1218 = vadd.f32 %v1154, 0.0
        %v1219 = vadd.f32 %v1155, 0.0
        %v1220 = vadd.f32 %v1156, 0.0
        %v1221 = vadd.f32 %v1157, 0.0
        %v1222 = vadd.f32 %v1158, 0.0
        %v1223 = vadd.f32 %v1159, 0.0
        %v1224 = vadd.f32 %v1160, 0.0
        %v1225 = vadd.f32 %v1161, 0.0
        %v1226 = vadd.f32 %v1162, 0.0
        %v1227 = vadd.f32 %v1163, 0.0
        %v1228 = vadd.f32 %v1164, 0.0
        %v1229 = vadd.f32 %v1165, 0.0
        %v1230 = vadd.f32 %v1166, 0.0
        %v1231 = vadd.f32 %v1167, 0.0
        %v1232 = vadd.f32 %v1168, 0.0
        %v1233 = vadd.f32 %v1169, 0.0
        %v1234 = vadd.f32 %v1170, 0.0
        %v1235 = vadd.f32 %v1171, 0.0
        %v1236 = vadd.f32 %v1172, 0.0
        %v1237 = vadd.f32 %v1173, 0.0
        %vm1270 = vcmask 1046528
        %v1271 = vrot.slane %v680, 1
        %v1272 = vrot.slane %v681, 1
        %v1273 = vsel %vm1270, %v1271, %v1272
        %v1274 = vrot.slane %v682, 1
        %v1275 = vsel %vm1270, %v1272, %v1274
        %v1276 = vrot.slane %v683, 1
        %v1277 = vrot.slane %v684, 1
        %v1278 = vsel %vm1270, %v1276, %v1277
        %v1279 = vrot.slane %v685, 1
        %v1280 = vsel %vm1270, %v1277, %v1279
        %v1281 = vrot.slane %v686, 1
        %v1282 = vrot.slane %v687, 1
        %v1283 = vsel %vm1270, %v1281, %v1282
        %v1284 = vrot.slane %v688, 1
        %v1285 = vsel %vm1270, %v1282, %v1284
        %v1286 = vrot.slane %v689, 1
        %v1287 = vrot.slane %v690, 1
        %v1288 = vsel %vm1270, %v1286, %v1287
        %v1289 = vrot.slane %v691, 1
        %v1290 = vsel %vm1270, %v1287, %v1289
        %v1291 = vrot.slane %v692, 1
        %v1292 = vrot.slane %v693, 1
        %v1293 = vsel %vm1270, %v1291, %v1292
        %v1294 = vrot.slane %v694, 1
        %v1295 = vsel %vm1270, %v1292, %v1294
        %v1296 = vrot.slane %v695, 1
        %v1297 = vrot.slane %v696, 1
        %v1298 = vsel %vm1270, %v1296, %v1297
        %v1299 = vrot.slane %v697, 1
        %v1300 = vsel %vm1270, %v1297, %v1299
        %v1301 = vrot.slane %v698, 1
        %v1302 = vrot.slane %v699, 1
        %v1303 = vsel %vm1270, %v1301, %v1302
        %v1304 = vrot.slane %v700, 1
        %v1305 = vsel %vm1270, %v1302, %v1304
        %v1306 = vrot.slane %v701, 1
        %v1307 = vrot.slane %v702, 1
        %v1308 = vsel %vm1270, %v1306, %v1307
        %v1309 = vrot.slane %v703, 1
        %v1310 = vsel %vm1270, %v1307, %v1309
        %v1311 = vrot.slane %v704, 1
        %v1312 = vrot.slane %v705, 1
        %v1313 = vsel %vm1270, %v1311, %v1312
        %v1314 = vrot.slane %v706, 1
        %v1315 = vsel %vm1270, %v1312, %v1314
        %v1316 = vrot.slane %v707, 1
        %v1317 = vrot.slane %v708, 1
        %v1318 = vsel %vm1270, %v1316, %v1317
        %v1319 = vrot.slane %v709, 1
        %v1320 = vsel %vm1270, %v1317, %v1319
        %v1321 = vrot.slane %v710, 1
        %v1322 = vrot.slane %v711, 1
        %v1323 = vsel %vm1270, %v1321, %v1322
        %v1324 = vrot.slane %v712, 1
        %v1325 = vsel %vm1270, %v1322, %v1324
        %v1326 = vrot.slane %v713, 1
        %v1327 = vrot.slane %v714, 1
        %v1328 = vsel %vm1270, %v1326, %v1327
        %v1329 = vrot.slane %v715, 1
        %v1330 = vsel %vm1270, %v1327, %v1329
        %v1331 = vrot.slane %v716, 1
        %v1332 = vrot.slane %v717, 1
        %v1333 = vsel %vm1270, %v1331, %v1332
        %v1334 = vrot.slane %v718, 1
        %v1335 = vsel %vm1270, %v1332, %v1334
        %v1336 = vrot.slane %v719, 1
        %v1337 = vrot.slane %v720, 1
        %v1338 = vsel %vm1270, %v1336, %v1337
        %v1339 = vrot.slane %v721, 1
        %v1340 = vsel %vm1270, %v1337, %v1339
        %v1341 = vrot.slane %v722, 1
        %v1342 = vrot.slane %v723, 1
        %v1343 = vsel %vm1270, %v1341, %v1342
        %v1344 = vrot.slane %v724, 1
        %v1345 = vsel %vm1270, %v1342, %v1344
        %v1346 = vrot.slane %v725, 1
        %v1347 = vrot.slane %v726, 1
        %v1348 = vsel %vm1270, %v1346, %v1347
        %v1349 = vrot.slane %v727, 1
        %v1350 = vsel %vm1270, %v1347, %v1349
        %v1351 = vrot.slane %v734, 1
        %v1352 = vrot.slane %v735, 1
        %v1353 = vsel %vm1270, %v1351, %v1352
        %v1354 = vrot.slane %v736, 1
        %v1355 = vsel %vm1270, %v1352, %v1354
        %v1356 = vrot.slane %v737, 1
        %v1357 = vrot.slane %v738, 1
        %v1358 = vsel %vm1270, %v1356, %v1357
        %v1359 = vrot.slane %v739, 1
        %v1360 = vsel %vm1270, %v1357, %v1359
        %v1361 = vrot.slane %v740, 1
        %v1362 = vrot.slane %v741, 1
        %v1363 = vsel %vm1270, %v1361, %v1362
        %v1364 = vrot.slane %v742, 1
        %v1365 = vsel %vm1270, %v1362, %v1364
        %v1366 = vrot.slane %v743, 1
        %v1367 = vrot.slane %v744, 1
        %v1368 = vsel %vm1270, %v1366, %v1367
        %v1369 = vrot.slane %v745, 1
        %v1370 = vsel %vm1270, %v1367, %v1369
        %v1371 = vrot.slane %v746, 1
        %v1372 = vrot.slane %v747, 1
        %v1373 = vsel %vm1270, %v1371, %v1372
        %v1374 = vrot.slane %v748, 1
        %v1375 = vsel %vm1270, %v1372, %v1374
        %v1376 = vrot.slane %v749, 1
        %v1377 = vrot.slane %v750, 1
        %v1378 = vsel %vm1270, %v1376, %v1377
        %v1379 = vrot.slane %v751, 1
        %v1380 = vsel %vm1270, %v1377, %v1379
        %v1381 = vrot.slane %v752, 1
        %v1382 = vrot.slane %v753, 1
        %v1383 = vsel %vm1270, %v1381, %v1382
        %v1384 = vrot.slane %v754, 1
        %v1385 = vsel %vm1270, %v1382, %v1384
        %v1386 = vrot.slane %v755, 1
        %v1387 = vrot.slane %v756, 1
        %v1388 = vsel %vm1270, %v1386, %v1387
        %v1389 = vrot.slane %v757, 1
        %v1390 = vsel %vm1270, %v1387, %v1389
        %v1391 = vrot.slane %v758, 1
        %v1392 = vrot.slane %v759, 1
        %v1393 = vsel %vm1270, %v1391, %v1392
        %v1394 = vrot.slane %v760, 1
        %v1395 = vsel %vm1270, %v1392, %v1394
        %v1396 = vrot.slane %v761, 1
        %v1397 = vrot.slane %v762, 1
        %v1398 = vsel %vm1270, %v1396, %v1397
        %v1399 = vrot.slane %v763, 1
        %v1400 = vsel %vm1270, %v1397, %v1399
        %v1401 = vrot.slane %v764, 1
        %v1402 = vrot.slane %v765, 1
        %v1403 = vsel %vm1270, %v1401, %v1402
        %v1404 = vrot.slane %v766, 1
        %v1405 = vsel %vm1270, %v1402, %v1404
        %v1406 = vrot.slane %v767, 1
        %v1407 = vrot.slane %v768, 1
        %v1408 = vsel %vm1270, %v1406, %v1407
        %v1409 = vrot.slane %v769, 1
        %v1410 = vsel %vm1270, %v1407, %v1409
        %v1411 = vrot.slane %v770, 1
        %v1412 = vrot.slane %v771, 1
        %v1413 = vsel %vm1270, %v1411, %v1412
        %v1414 = vrot.slane %v772, 1
        %v1415 = vsel %vm1270, %v1412, %v1414
        %v1416 = vrot.slane %v773, 1
        %v1417 = vrot.slane %v774, 1
        %v1418 = vsel %vm1270, %v1416, %v1417
        %v1419 = vrot.slane %v775, 1
        %v1420 = vsel %vm1270, %v1417, %v1419
        %v1421 = vrot.slane %v776, 1
        %v1422 = vrot.slane %v777, 1
        %v1423 = vsel %vm1270, %v1421, %v1422
        %v1424 = vrot.slane %v778, 1
        %v1425 = vsel %vm1270, %v1422, %v1424
        %v1426 = vrot.slane %v779, 1
        %v1427 = vrot.slane %v780, 1
        %v1428 = vsel %vm1270, %v1426, %v1427
        %v1429 = vrot.slane %v781, 1
        %v1430 = vsel %vm1270, %v1427, %v1429
        %v1431 = vld [vmem:[#allocation5 + $0x1] sm:$0x1]
        %1432 = vset.pattern.permute.xlu0 0
        %1433 = vperm.xlu0 %1432, %v1273
        %v1434 = vpop.permute.xlu0 %1433
        %1436 = vset.pattern.permute.xlu0 0
        %1437 = vperm.xlu0 %1436, %v1275
        %v1438 = vpop.permute.xlu0 %1437
        %1440 = vset.pattern.permute.xlu0 0
        %1441 = vperm.xlu0 %1440, %v1278
        %v1442 = vpop.permute.xlu0 %1441
        %1444 = vset.pattern.permute.xlu0 0
        %1445 = vperm.xlu0 %1444, %v1280
        %v1446 = vpop.permute.xlu0 %1445
        %1448 = vset.pattern.permute.xlu0 0
        %1449 = vperm.xlu0 %1448, %v1283
        %v1450 = vpop.permute.xlu0 %1449
        %1452 = vset.pattern.permute.xlu0 0
        %1453 = vperm.xlu0 %1452, %v1285
        %v1454 = vpop.permute.xlu0 %1453
        %1456 = vset.pattern.permute.xlu0 0
        %1457 = vperm.xlu0 %1456, %v1288
        %v1458 = vpop.permute.xlu0 %1457
        %1460 = vset.pattern.permute.xlu0 0
        %1461 = vperm.xlu0 %1460, %v1290
        %v1462 = vpop.permute.xlu0 %1461
        %1464 = vset.pattern.permute.xlu0 0
        %1465 = vperm.xlu0 %1464, %v1293
        %v1466 = vpop.permute.xlu0 %1465
        %1468 = vset.pattern.permute.xlu0 0
        %1469 = vperm.xlu0 %1468, %v1295
        %v1470 = vpop.permute.xlu0 %1469
        %1472 = vset.pattern.permute.xlu0 0
        %1473 = vperm.xlu0 %1472, %v1298
        %v1474 = vpop.permute.xlu0 %1473
        %1476 = vset.pattern.permute.xlu0 0
        %1477 = vperm.xlu0 %1476, %v1300
        %v1478 = vpop.permute.xlu0 %1477
        %1480 = vset.pattern.permute.xlu0 0
        %1481 = vperm.xlu0 %1480, %v1303
        %v1482 = vpop.permute.xlu0 %1481
        %1484 = vset.pattern.permute.xlu0 0
        %1485 = vperm.xlu0 %1484, %v1305
        %v1486 = vpop.permute.xlu0 %1485
        %1488 = vset.pattern.permute.xlu0 0
        %1489 = vperm.xlu0 %1488, %v1308
        %v1490 = vpop.permute.xlu0 %1489
        %1492 = vset.pattern.permute.xlu0 0
        %1493 = vperm.xlu0 %1492, %v1310
        %v1494 = vpop.permute.xlu0 %1493
        %1496 = vset.pattern.permute.xlu0 0
        %1497 = vperm.xlu0 %1496, %v1313
        %v1498 = vpop.permute.xlu0 %1497
        %1500 = vset.pattern.permute.xlu0 0
        %1501 = vperm.xlu0 %1500, %v1315
        %v1502 = vpop.permute.xlu0 %1501
        %1504 = vset.pattern.permute.xlu0 0
        %1505 = vperm.xlu0 %1504, %v1318
        %v1506 = vpop.permute.xlu0 %1505
        %1508 = vset.pattern.permute.xlu0 0
        %1509 = vperm.xlu0 %1508, %v1320
        %v1510 = vpop.permute.xlu0 %1509
        %1512 = vset.pattern.permute.xlu0 0
        %1513 = vperm.xlu0 %1512, %v1323
        %v1514 = vpop.permute.xlu0 %1513
        %1516 = vset.pattern.permute.xlu0 0
        %1517 = vperm.xlu0 %1516, %v1325
        %v1518 = vpop.permute.xlu0 %1517
        %1520 = vset.pattern.permute.xlu0 0
        %1521 = vperm.xlu0 %1520, %v1328
        %v1522 = vpop.permute.xlu0 %1521
        %1524 = vset.pattern.permute.xlu0 0
        %1525 = vperm.xlu0 %1524, %v1330
        %v1526 = vpop.permute.xlu0 %1525
        %1528 = vset.pattern.permute.xlu0 0
        %1529 = vperm.xlu0 %1528, %v1333
        %v1530 = vpop.permute.xlu0 %1529
        %1532 = vset.pattern.permute.xlu0 0
        %1533 = vperm.xlu0 %1532, %v1335
        %v1534 = vpop.permute.xlu0 %1533
        %1536 = vset.pattern.permute.xlu0 0
        %1537 = vperm.xlu0 %1536, %v1338
        %v1538 = vpop.permute.xlu0 %1537
        %1540 = vset.pattern.permute.xlu0 0
        %1541 = vperm.xlu0 %1540, %v1340
        %v1542 = vpop.permute.xlu0 %1541
        %1544 = vset.pattern.permute.xlu0 0
        %1545 = vperm.xlu0 %1544, %v1343
        %v1546 = vpop.permute.xlu0 %1545
        %1548 = vset.pattern.permute.xlu0 0
        %1549 = vperm.xlu0 %1548, %v1345
        %v1550 = vpop.permute.xlu0 %1549
        %1552 = vset.pattern.permute.xlu0 0
        %1553 = vperm.xlu0 %1552, %v1348
        %v1554 = vpop.permute.xlu0 %1553
        %1556 = vset.pattern.permute.xlu0 0
        %1557 = vperm.xlu0 %1556, %v1350
        %v1558 = vpop.permute.xlu0 %1557
        %1560 = vset.pattern.permute.xlu0 0
        %1561 = vperm.xlu0 %1560, %v1353
        %v1562 = vpop.permute.xlu0 %1561
        %1564 = vset.pattern.permute.xlu0 0
        %1565 = vperm.xlu0 %1564, %v1355
        %v1566 = vpop.permute.xlu0 %1565
        %1568 = vset.pattern.permute.xlu0 0
        %1569 = vperm.xlu0 %1568, %v1358
        %v1570 = vpop.permute.xlu0 %1569
        %1572 = vset.pattern.permute.xlu0 0
        %1573 = vperm.xlu0 %1572, %v1360
        %v1574 = vpop.permute.xlu0 %1573
        %1576 = vset.pattern.permute.xlu0 0
        %1577 = vperm.xlu0 %1576, %v1363
        %v1578 = vpop.permute.xlu0 %1577
        %1580 = vset.pattern.permute.xlu0 0
        %1581 = vperm.xlu0 %1580, %v1365
        %v1582 = vpop.permute.xlu0 %1581
        %1584 = vset.pattern.permute.xlu0 0
        %1585 = vperm.xlu0 %1584, %v1368
        %v1586 = vpop.permute.xlu0 %1585
        %1588 = vset.pattern.permute.xlu0 0
        %1589 = vperm.xlu0 %1588, %v1370
        %v1590 = vpop.permute.xlu0 %1589
        %1592 = vset.pattern.permute.xlu0 0
        %1593 = vperm.xlu0 %1592, %v1373
        %v1594 = vpop.permute.xlu0 %1593
        %1596 = vset.pattern.permute.xlu0 0
        %1597 = vperm.xlu0 %1596, %v1375
        %v1598 = vpop.permute.xlu0 %1597
        %1600 = vset.pattern.permute.xlu0 0
        %1601 = vperm.xlu0 %1600, %v1378
        %v1602 = vpop.permute.xlu0 %1601
        %1604 = vset.pattern.permute.xlu0 0
        %1605 = vperm.xlu0 %1604, %v1380
        %v1606 = vpop.permute.xlu0 %1605
        %1608 = vset.pattern.permute.xlu0 0
        %1609 = vperm.xlu0 %1608, %v1383
        %v1610 = vpop.permute.xlu0 %1609
        %1612 = vset.pattern.permute.xlu0 0
        %1613 = vperm.xlu0 %1612, %v1385
        %v1614 = vpop.permute.xlu0 %1613
        %1616 = vset.pattern.permute.xlu0 0
        %1617 = vperm.xlu0 %1616, %v1388
        %v1618 = vpop.permute.xlu0 %1617
        %1620 = vset.pattern.permute.xlu0 0
        %1621 = vperm.xlu0 %1620, %v1390
        %v1622 = vpop.permute.xlu0 %1621
        %1624 = vset.pattern.permute.xlu0 0
        %1625 = vperm.xlu0 %1624, %v1393
        %v1626 = vpop.permute.xlu0 %1625
        %1628 = vset.pattern.permute.xlu0 0
        %1629 = vperm.xlu0 %1628, %v1395
        %v1630 = vpop.permute.xlu0 %1629
        %1632 = vset.pattern.permute.xlu0 0
        %1633 = vperm.xlu0 %1632, %v1398
        %v1634 = vpop.permute.xlu0 %1633
        %1636 = vset.pattern.permute.xlu0 0
        %1637 = vperm.xlu0 %1636, %v1400
        %v1638 = vpop.permute.xlu0 %1637
        %1640 = vset.pattern.permute.xlu0 0
        %1641 = vperm.xlu0 %1640, %v1403
        %v1642 = vpop.permute.xlu0 %1641
        %1644 = vset.pattern.permute.xlu0 0
        %1645 = vperm.xlu0 %1644, %v1405
        %v1646 = vpop.permute.xlu0 %1645
        %1648 = vset.pattern.permute.xlu0 0
        %1649 = vperm.xlu0 %1648, %v1408
        %v1650 = vpop.permute.xlu0 %1649
        %1652 = vset.pattern.permute.xlu0 0
        %1653 = vperm.xlu0 %1652, %v1410
        %v1654 = vpop.permute.xlu0 %1653
        %1656 = vset.pattern.permute.xlu0 0
        %1657 = vperm.xlu0 %1656, %v1413
        %v1658 = vpop.permute.xlu0 %1657
        %1660 = vset.pattern.permute.xlu0 0
        %1661 = vperm.xlu0 %1660, %v1415
        %v1662 = vpop.permute.xlu0 %1661
        %1664 = vset.pattern.permute.xlu0 0
        %1665 = vperm.xlu0 %1664, %v1418
        %v1666 = vpop.permute.xlu0 %1665
        %1668 = vset.pattern.permute.xlu0 0
        %1669 = vperm.xlu0 %1668, %v1420
        %v1670 = vpop.permute.xlu0 %1669
        %1672 = vset.pattern.permute.xlu0 0
        %1673 = vperm.xlu0 %1672, %v1423
        %v1674 = vpop.permute.xlu0 %1673
        %1676 = vset.pattern.permute.xlu0 0
        %1677 = vperm.xlu0 %1676, %v1425
        %v1678 = vpop.permute.xlu0 %1677
        %1680 = vset.pattern.permute.xlu0 0
        %1681 = vperm.xlu0 %1680, %v1428
        %v1682 = vpop.permute.xlu0 %1681
        %1684 = vset.pattern.permute.xlu0 0
        %1685 = vperm.xlu0 %1684, %v1430
        %v1686 = vpop.permute.xlu0 %1685
        %v1688 = vperm.slane %v1431, 0
        %v1689 = vmul.f32 %v1434, %v1688
        %v1690 = vmul.f32 %v1438, %v1688
        %v1691 = vmul.f32 %v1442, %v1688
        %v1692 = vmul.f32 %v1446, %v1688
        %v1693 = vmul.f32 %v1450, %v1688
        %v1694 = vmul.f32 %v1454, %v1688
        %v1695 = vmul.f32 %v1458, %v1688
        %v1696 = vmul.f32 %v1462, %v1688
        %v1697 = vmul.f32 %v1466, %v1688
        %v1698 = vmul.f32 %v1470, %v1688
        %v1699 = vmul.f32 %v1474, %v1688
        %v1700 = vmul.f32 %v1478, %v1688
        %v1701 = vmul.f32 %v1482, %v1688
        %v1702 = vmul.f32 %v1486, %v1688
        %v1703 = vmul.f32 %v1490, %v1688
        %v1704 = vmul.f32 %v1494, %v1688
        %v1705 = vmul.f32 %v1498, %v1688
        %v1706 = vmul.f32 %v1502, %v1688
        %v1707 = vmul.f32 %v1506, %v1688
        %v1708 = vmul.f32 %v1510, %v1688
        %v1709 = vmul.f32 %v1514, %v1688
        %v1710 = vmul.f32 %v1518, %v1688
        %v1711 = vmul.f32 %v1522, %v1688
        %v1712 = vmul.f32 %v1526, %v1688
        %v1713 = vmul.f32 %v1530, %v1688
        %v1714 = vmul.f32 %v1534, %v1688
        %v1715 = vmul.f32 %v1538, %v1688
        %v1716 = vmul.f32 %v1542, %v1688
        %v1717 = vmul.f32 %v1546, %v1688
        %v1718 = vmul.f32 %v1550, %v1688
        %v1719 = vmul.f32 %v1554, %v1688
        %v1720 = vmul.f32 %v1558, %v1688
        %v1721 = vmul.f32 %v1562, %v1688
        %v1722 = vmul.f32 %v1566, %v1688
        %v1723 = vmul.f32 %v1570, %v1688
        %v1724 = vmul.f32 %v1574, %v1688
        %v1725 = vmul.f32 %v1578, %v1688
        %v1726 = vmul.f32 %v1582, %v1688
        %v1727 = vmul.f32 %v1586, %v1688
        %v1728 = vmul.f32 %v1590, %v1688
        %v1729 = vmul.f32 %v1594, %v1688
        %v1730 = vmul.f32 %v1598, %v1688
        %v1731 = vmul.f32 %v1602, %v1688
        %v1732 = vmul.f32 %v1606, %v1688
        %v1733 = vmul.f32 %v1610, %v1688
        %v1734 = vmul.f32 %v1614, %v1688
        %v1735 = vmul.f32 %v1618, %v1688
        %v1736 = vmul.f32 %v1622, %v1688
        %v1737 = vmul.f32 %v1626, %v1688
        %v1738 = vmul.f32 %v1630, %v1688
        %v1739 = vmul.f32 %v1634, %v1688
        %v1740 = vmul.f32 %v1638, %v1688
        %v1741 = vmul.f32 %v1642, %v1688
        %v1742 = vmul.f32 %v1646, %v1688
        %v1743 = vmul.f32 %v1650, %v1688
        %v1744 = vmul.f32 %v1654, %v1688
        %v1745 = vmul.f32 %v1658, %v1688
        %v1746 = vmul.f32 %v1662, %v1688
        %v1747 = vmul.f32 %v1666, %v1688
        %v1748 = vmul.f32 %v1670, %v1688
        %v1749 = vmul.f32 %v1674, %v1688
        %v1750 = vmul.f32 %v1678, %v1688
        %v1751 = vmul.f32 %v1682, %v1688
        %v1752 = vmul.f32 %v1686, %v1688
        %v1753 = vadd.f32 %v1174, %v1689
        %v1754 = vadd.f32 %v1175, %v1690
        %v1755 = vadd.f32 %v1176, %v1691
        %v1756 = vadd.f32 %v1177, %v1692
        %v1757 = vadd.f32 %v1178, %v1693
        %v1758 = vadd.f32 %v1179, %v1694
        %v1759 = vadd.f32 %v1180, %v1695
        %v1760 = vadd.f32 %v1181, %v1696
        %v1761 = vadd.f32 %v1182, %v1697
        %v1762 = vadd.f32 %v1183, %v1698
        %v1763 = vadd.f32 %v1184, %v1699
        %v1764 = vadd.f32 %v1185, %v1700
        %v1765 = vadd.f32 %v1186, %v1701
        %v1766 = vadd.f32 %v1187, %v1702
        %v1767 = vadd.f32 %v1188, %v1703
        %v1768 = vadd.f32 %v1189, %v1704
        %v1769 = vadd.f32 %v1190, %v1705
        %v1770 = vadd.f32 %v1191, %v1706
        %v1771 = vadd.f32 %v1192, %v1707
        %v1772 = vadd.f32 %v1193, %v1708
        %v1773 = vadd.f32 %v1194, %v1709
        %v1774 = vadd.f32 %v1195, %v1710
        %v1775 = vadd.f32 %v1196, %v1711
        %v1776 = vadd.f32 %v1197, %v1712
        %v1777 = vadd.f32 %v1198, %v1713
        %v1778 = vadd.f32 %v1199, %v1714
        %v1779 = vadd.f32 %v1200, %v1715
        %v1780 = vadd.f32 %v1201, %v1716
        %v1781 = vadd.f32 %v1202, %v1717
        %v1782 = vadd.f32 %v1203, %v1718
        %v1783 = vadd.f32 %v1204, %v1719
        %v1784 = vadd.f32 %v1205, %v1720
        %v1785 = vadd.f32 %v1206, %v1721
        %v1786 = vadd.f32 %v1207, %v1722
        %v1787 = vadd.f32 %v1208, %v1723
        %v1788 = vadd.f32 %v1209, %v1724
        %v1789 = vadd.f32 %v1210, %v1725
        %v1790 = vadd.f32 %v1211, %v1726
        %v1791 = vadd.f32 %v1212, %v1727
        %v1792 = vadd.f32 %v1213, %v1728
        %v1793 = vadd.f32 %v1214, %v1729
        %v1794 = vadd.f32 %v1215, %v1730
        %v1795 = vadd.f32 %v1216, %v1731
        %v1796 = vadd.f32 %v1217, %v1732
        %v1797 = vadd.f32 %v1218, %v1733
        %v1798 = vadd.f32 %v1219, %v1734
        %v1799 = vadd.f32 %v1220, %v1735
        %v1800 = vadd.f32 %v1221, %v1736
        %v1801 = vadd.f32 %v1222, %v1737
        %v1802 = vadd.f32 %v1223, %v1738
        %v1803 = vadd.f32 %v1224, %v1739
        %v1804 = vadd.f32 %v1225, %v1740
        %v1805 = vadd.f32 %v1226, %v1741
        %v1806 = vadd.f32 %v1227, %v1742
        %v1807 = vadd.f32 %v1228, %v1743
        %v1808 = vadd.f32 %v1229, %v1744
        %v1809 = vadd.f32 %v1230, %v1745
        %v1810 = vadd.f32 %v1231, %v1746
        %v1811 = vadd.f32 %v1232, %v1747
        %v1812 = vadd.f32 %v1233, %v1748
        %v1813 = vadd.f32 %v1234, %v1749
        %v1814 = vadd.f32 %v1235, %v1750
        %v1815 = vadd.f32 %v1236, %v1751
        %v1816 = vadd.f32 %v1237, %v1752
        %vm1817 = vcmask 1045504
        %v1818 = vrot.slane %v680, 2
        %v1819 = vrot.slane %v681, 2
        %v1820 = vsel %vm1817, %v1818, %v1819
        %v1821 = vrot.slane %v682, 2
        %v1822 = vsel %vm1817, %v1819, %v1821
        %v1823 = vrot.slane %v683, 2
        %v1824 = vrot.slane %v684, 2
        %v1825 = vsel %vm1817, %v1823, %v1824
        %v1826 = vrot.slane %v685, 2
        %v1827 = vsel %vm1817, %v1824, %v1826
        %v1828 = vrot.slane %v686, 2
        %v1829 = vrot.slane %v687, 2
        %v1830 = vsel %vm1817, %v1828, %v1829
        %v1831 = vrot.slane %v688, 2
        %v1832 = vsel %vm1817, %v1829, %v1831
        %v1833 = vrot.slane %v689, 2
        %v1834 = vrot.slane %v690, 2
        %v1835 = vsel %vm1817, %v1833, %v1834
        %v1836 = vrot.slane %v691, 2
        %v1837 = vsel %vm1817, %v1834, %v1836
        %v1838 = vrot.slane %v692, 2
        %v1839 = vrot.slane %v693, 2
        %v1840 = vsel %vm1817, %v1838, %v1839
        %v1841 = vrot.slane %v694, 2
        %v1842 = vsel %vm1817, %v1839, %v1841
        %v1843 = vrot.slane %v695, 2
        %v1844 = vrot.slane %v696, 2
        %v1845 = vsel %vm1817, %v1843, %v1844
        %v1846 = vrot.slane %v697, 2
        %v1847 = vsel %vm1817, %v1844, %v1846
        %v1848 = vrot.slane %v698, 2
        %v1849 = vrot.slane %v699, 2
        %v1850 = vsel %vm1817, %v1848, %v1849
        %v1851 = vrot.slane %v700, 2
        %v1852 = vsel %vm1817, %v1849, %v1851
        %v1853 = vrot.slane %v701, 2
        %v1854 = vrot.slane %v702, 2
        %v1855 = vsel %vm1817, %v1853, %v1854
        %v1856 = vrot.slane %v703, 2
        %v1857 = vsel %vm1817, %v1854, %v1856
        %v1858 = vrot.slane %v704, 2
        %v1859 = vrot.slane %v705, 2
        %v1860 = vsel %vm1817, %v1858, %v1859
        %v1861 = vrot.slane %v706, 2
        %v1862 = vsel %vm1817, %v1859, %v1861
        %v1863 = vrot.slane %v707, 2
        %v1864 = vrot.slane %v708, 2
        %v1865 = vsel %vm1817, %v1863, %v1864
        %v1866 = vrot.slane %v709, 2
        %v1867 = vsel %vm1817, %v1864, %v1866
        %v1868 = vrot.slane %v710, 2
        %v1869 = vrot.slane %v711, 2
        %v1870 = vsel %vm1817, %v1868, %v1869
        %v1871 = vrot.slane %v712, 2
        %v1872 = vsel %vm1817, %v1869, %v1871
        %v1873 = vrot.slane %v713, 2
        %v1874 = vrot.slane %v714, 2
        %v1875 = vsel %vm1817, %v1873, %v1874
        %v1876 = vrot.slane %v715, 2
        %v1877 = vsel %vm1817, %v1874, %v1876
        %v1878 = vrot.slane %v716, 2
        %v1879 = vrot.slane %v717, 2
        %v1880 = vsel %vm1817, %v1878, %v1879
        %v1881 = vrot.slane %v718, 2
        %v1882 = vsel %vm1817, %v1879, %v1881
        %v1883 = vrot.slane %v719, 2
        %v1884 = vrot.slane %v720, 2
        %v1885 = vsel %vm1817, %v1883, %v1884
        %v1886 = vrot.slane %v721, 2
        %v1887 = vsel %vm1817, %v1884, %v1886
        %v1888 = vrot.slane %v722, 2
        %v1889 = vrot.slane %v723, 2
        %v1890 = vsel %vm1817, %v1888, %v1889
        %v1891 = vrot.slane %v724, 2
        %v1892 = vsel %vm1817, %v1889, %v1891
        %v1893 = vrot.slane %v725, 2
        %v1894 = vrot.slane %v726, 2
        %v1895 = vsel %vm1817, %v1893, %v1894
        %v1896 = vrot.slane %v727, 2
        %v1897 = vsel %vm1817, %v1894, %v1896
        %v1898 = vrot.slane %v734, 2
        %v1899 = vrot.slane %v735, 2
        %v1900 = vsel %vm1817, %v1898, %v1899
        %v1901 = vrot.slane %v736, 2
        %v1902 = vsel %vm1817, %v1899, %v1901
        %v1903 = vrot.slane %v737, 2
        %v1904 = vrot.slane %v738, 2
        %v1905 = vsel %vm1817, %v1903, %v1904
        %v1906 = vrot.slane %v739, 2
        %v1907 = vsel %vm1817, %v1904, %v1906
        %v1908 = vrot.slane %v740, 2
        %v1909 = vrot.slane %v741, 2
        %v1910 = vsel %vm1817, %v1908, %v1909
        %v1911 = vrot.slane %v742, 2
        %v1912 = vsel %vm1817, %v1909, %v1911
        %v1913 = vrot.slane %v743, 2
        %v1914 = vrot.slane %v744, 2
        %v1915 = vsel %vm1817, %v1913, %v1914
        %v1916 = vrot.slane %v745, 2
        %v1917 = vsel %vm1817, %v1914, %v1916
        %v1918 = vrot.slane %v746, 2
        %v1919 = vrot.slane %v747, 2
        %v1920 = vsel %vm1817, %v1918, %v1919
        %v1921 = vrot.slane %v748, 2
        %v1922 = vsel %vm1817, %v1919, %v1921
        %v1923 = vrot.slane %v749, 2
        %v1924 = vrot.slane %v750, 2
        %v1925 = vsel %vm1817, %v1923, %v1924
        %v1926 = vrot.slane %v751, 2
        %v1927 = vsel %vm1817, %v1924, %v1926
        %v1928 = vrot.slane %v752, 2
        %v1929 = vrot.slane %v753, 2
        %v1930 = vsel %vm1817, %v1928, %v1929
        %v1931 = vrot.slane %v754, 2
        %v1932 = vsel %vm1817, %v1929, %v1931
        %v1933 = vrot.slane %v755, 2
        %v1934 = vrot.slane %v756, 2
        %v1935 = vsel %vm1817, %v1933, %v1934
        %v1936 = vrot.slane %v757, 2
        %v1937 = vsel %vm1817, %v1934, %v1936
        %v1938 = vrot.slane %v758, 2
        %v1939 = vrot.slane %v759, 2
        %v1940 = vsel %vm1817, %v1938, %v1939
        %v1941 = vrot.slane %v760, 2
        %v1942 = vsel %vm1817, %v1939, %v1941
        %v1943 = vrot.slane %v761, 2
        %v1944 = vrot.slane %v762, 2
        %v1945 = vsel %vm1817, %v1943, %v1944
        %v1946 = vrot.slane %v763, 2
        %v1947 = vsel %vm1817, %v1944, %v1946
        %v1948 = vrot.slane %v764, 2
        %v1949 = vrot.slane %v765, 2
        %v1950 = vsel %vm1817, %v1948, %v1949
        %v1951 = vrot.slane %v766, 2
        %v1952 = vsel %vm1817, %v1949, %v1951
        %v1953 = vrot.slane %v767, 2
        %v1954 = vrot.slane %v768, 2
        %v1955 = vsel %vm1817, %v1953, %v1954
        %v1956 = vrot.slane %v769, 2
        %v1957 = vsel %vm1817, %v1954, %v1956
        %v1958 = vrot.slane %v770, 2
        %v1959 = vrot.slane %v771, 2
        %v1960 = vsel %vm1817, %v1958, %v1959
        %v1961 = vrot.slane %v772, 2
        %v1962 = vsel %vm1817, %v1959, %v1961
        %v1963 = vrot.slane %v773, 2
        %v1964 = vrot.slane %v774, 2
        %v1965 = vsel %vm1817, %v1963, %v1964
        %v1966 = vrot.slane %v775, 2
        %v1967 = vsel %vm1817, %v1964, %v1966
        %v1968 = vrot.slane %v776, 2
        %v1969 = vrot.slane %v777, 2
        %v1970 = vsel %vm1817, %v1968, %v1969
        %v1971 = vrot.slane %v778, 2
        %v1972 = vsel %vm1817, %v1969, %v1971
        %v1973 = vrot.slane %v779, 2
        %v1974 = vrot.slane %v780, 2
        %v1975 = vsel %vm1817, %v1973, %v1974
        %v1976 = vrot.slane %v781, 2
        %v1977 = vsel %vm1817, %v1974, %v1976
        %v1978 = vld [vmem:[#allocation5 + $0x2] sm:$0x1]
        %1979 = vset.pattern.permute.xlu0 0
        %1980 = vperm.xlu0 %1979, %v1820
        %v1981 = vpop.permute.xlu0 %1980
        %1983 = vset.pattern.permute.xlu0 0
        %1984 = vperm.xlu0 %1983, %v1822
        %v1985 = vpop.permute.xlu0 %1984
        %1987 = vset.pattern.permute.xlu0 0
        %1988 = vperm.xlu0 %1987, %v1825
        %v1989 = vpop.permute.xlu0 %1988
        %1991 = vset.pattern.permute.xlu0 0
        %1992 = vperm.xlu0 %1991, %v1827
        %v1993 = vpop.permute.xlu0 %1992
        %1995 = vset.pattern.permute.xlu0 0
        %1996 = vperm.xlu0 %1995, %v1830
        %v1997 = vpop.permute.xlu0 %1996
        %1999 = vset.pattern.permute.xlu0 0
        %2000 = vperm.xlu0 %1999, %v1832
        %v2001 = vpop.permute.xlu0 %2000
        %2003 = vset.pattern.permute.xlu0 0
        %2004 = vperm.xlu0 %2003, %v1835
        %v2005 = vpop.permute.xlu0 %2004
        %2007 = vset.pattern.permute.xlu0 0
        %2008 = vperm.xlu0 %2007, %v1837
        %v2009 = vpop.permute.xlu0 %2008
        %2011 = vset.pattern.permute.xlu0 0
        %2012 = vperm.xlu0 %2011, %v1840
        %v2013 = vpop.permute.xlu0 %2012
        %2015 = vset.pattern.permute.xlu0 0
        %2016 = vperm.xlu0 %2015, %v1842
        %v2017 = vpop.permute.xlu0 %2016
        %2019 = vset.pattern.permute.xlu0 0
        %2020 = vperm.xlu0 %2019, %v1845
        %v2021 = vpop.permute.xlu0 %2020
        %2023 = vset.pattern.permute.xlu0 0
        %2024 = vperm.xlu0 %2023, %v1847
        %v2025 = vpop.permute.xlu0 %2024
        %2027 = vset.pattern.permute.xlu0 0
        %2028 = vperm.xlu0 %2027, %v1850
        %v2029 = vpop.permute.xlu0 %2028
        %2031 = vset.pattern.permute.xlu0 0
        %2032 = vperm.xlu0 %2031, %v1852
        %v2033 = vpop.permute.xlu0 %2032
        %2035 = vset.pattern.permute.xlu0 0
        %2036 = vperm.xlu0 %2035, %v1855
        %v2037 = vpop.permute.xlu0 %2036
        %2039 = vset.pattern.permute.xlu0 0
        %2040 = vperm.xlu0 %2039, %v1857
        %v2041 = vpop.permute.xlu0 %2040
        %2043 = vset.pattern.permute.xlu0 0
        %2044 = vperm.xlu0 %2043, %v1860
        %v2045 = vpop.permute.xlu0 %2044
        %2047 = vset.pattern.permute.xlu0 0
        %2048 = vperm.xlu0 %2047, %v1862
        %v2049 = vpop.permute.xlu0 %2048
        %2051 = vset.pattern.permute.xlu0 0
        %2052 = vperm.xlu0 %2051, %v1865
        %v2053 = vpop.permute.xlu0 %2052
        %2055 = vset.pattern.permute.xlu0 0
        %2056 = vperm.xlu0 %2055, %v1867
        %v2057 = vpop.permute.xlu0 %2056
        %2059 = vset.pattern.permute.xlu0 0
        %2060 = vperm.xlu0 %2059, %v1870
        %v2061 = vpop.permute.xlu0 %2060
        %2063 = vset.pattern.permute.xlu0 0
        %2064 = vperm.xlu0 %2063, %v1872
        %v2065 = vpop.permute.xlu0 %2064
        %2067 = vset.pattern.permute.xlu0 0
        %2068 = vperm.xlu0 %2067, %v1875
        %v2069 = vpop.permute.xlu0 %2068
        %2071 = vset.pattern.permute.xlu0 0
        %2072 = vperm.xlu0 %2071, %v1877
        %v2073 = vpop.permute.xlu0 %2072
        %2075 = vset.pattern.permute.xlu0 0
        %2076 = vperm.xlu0 %2075, %v1880
        %v2077 = vpop.permute.xlu0 %2076
        %2079 = vset.pattern.permute.xlu0 0
        %2080 = vperm.xlu0 %2079, %v1882
        %v2081 = vpop.permute.xlu0 %2080
        %2083 = vset.pattern.permute.xlu0 0
        %2084 = vperm.xlu0 %2083, %v1885
        %v2085 = vpop.permute.xlu0 %2084
        %2087 = vset.pattern.permute.xlu0 0
        %2088 = vperm.xlu0 %2087, %v1887
        %v2089 = vpop.permute.xlu0 %2088
        %2091 = vset.pattern.permute.xlu0 0
        %2092 = vperm.xlu0 %2091, %v1890
        %v2093 = vpop.permute.xlu0 %2092
        %2095 = vset.pattern.permute.xlu0 0
        %2096 = vperm.xlu0 %2095, %v1892
        %v2097 = vpop.permute.xlu0 %2096
        %2099 = vset.pattern.permute.xlu0 0
        %2100 = vperm.xlu0 %2099, %v1895
        %v2101 = vpop.permute.xlu0 %2100
        %2103 = vset.pattern.permute.xlu0 0
        %2104 = vperm.xlu0 %2103, %v1897
        %v2105 = vpop.permute.xlu0 %2104
        %2107 = vset.pattern.permute.xlu0 0
        %2108 = vperm.xlu0 %2107, %v1900
        %v2109 = vpop.permute.xlu0 %2108
        %2111 = vset.pattern.permute.xlu0 0
        %2112 = vperm.xlu0 %2111, %v1902
        %v2113 = vpop.permute.xlu0 %2112
        %2115 = vset.pattern.permute.xlu0 0
        %2116 = vperm.xlu0 %2115, %v1905
        %v2117 = vpop.permute.xlu0 %2116
        %2119 = vset.pattern.permute.xlu0 0
        %2120 = vperm.xlu0 %2119, %v1907
        %v2121 = vpop.permute.xlu0 %2120
        %2123 = vset.pattern.permute.xlu0 0
        %2124 = vperm.xlu0 %2123, %v1910
        %v2125 = vpop.permute.xlu0 %2124
        %2127 = vset.pattern.permute.xlu0 0
        %2128 = vperm.xlu0 %2127, %v1912
        %v2129 = vpop.permute.xlu0 %2128
        %2131 = vset.pattern.permute.xlu0 0
        %2132 = vperm.xlu0 %2131, %v1915
        %v2133 = vpop.permute.xlu0 %2132
        %2135 = vset.pattern.permute.xlu0 0
        %2136 = vperm.xlu0 %2135, %v1917
        %v2137 = vpop.permute.xlu0 %2136
        %2139 = vset.pattern.permute.xlu0 0
        %2140 = vperm.xlu0 %2139, %v1920
        %v2141 = vpop.permute.xlu0 %2140
        %2143 = vset.pattern.permute.xlu0 0
        %2144 = vperm.xlu0 %2143, %v1922
        %v2145 = vpop.permute.xlu0 %2144
        %2147 = vset.pattern.permute.xlu0 0
        %2148 = vperm.xlu0 %2147, %v1925
        %v2149 = vpop.permute.xlu0 %2148
        %2151 = vset.pattern.permute.xlu0 0
        %2152 = vperm.xlu0 %2151, %v1927
        %v2153 = vpop.permute.xlu0 %2152
        %2155 = vset.pattern.permute.xlu0 0
        %2156 = vperm.xlu0 %2155, %v1930
        %v2157 = vpop.permute.xlu0 %2156
        %2159 = vset.pattern.permute.xlu0 0
        %2160 = vperm.xlu0 %2159, %v1932
        %v2161 = vpop.permute.xlu0 %2160
        %2163 = vset.pattern.permute.xlu0 0
        %2164 = vperm.xlu0 %2163, %v1935
        %v2165 = vpop.permute.xlu0 %2164
        %2167 = vset.pattern.permute.xlu0 0
        %2168 = vperm.xlu0 %2167, %v1937
        %v2169 = vpop.permute.xlu0 %2168
        %2171 = vset.pattern.permute.xlu0 0
        %2172 = vperm.xlu0 %2171, %v1940
        %v2173 = vpop.permute.xlu0 %2172
        %2175 = vset.pattern.permute.xlu0 0
        %2176 = vperm.xlu0 %2175, %v1942
        %v2177 = vpop.permute.xlu0 %2176
        %2179 = vset.pattern.permute.xlu0 0
        %2180 = vperm.xlu0 %2179, %v1945
        %v2181 = vpop.permute.xlu0 %2180
        %2183 = vset.pattern.permute.xlu0 0
        %2184 = vperm.xlu0 %2183, %v1947
        %v2185 = vpop.permute.xlu0 %2184
        %2187 = vset.pattern.permute.xlu0 0
        %2188 = vperm.xlu0 %2187, %v1950
        %v2189 = vpop.permute.xlu0 %2188
        %2191 = vset.pattern.permute.xlu0 0
        %2192 = vperm.xlu0 %2191, %v1952
        %v2193 = vpop.permute.xlu0 %2192
        %2195 = vset.pattern.permute.xlu0 0
        %2196 = vperm.xlu0 %2195, %v1955
        %v2197 = vpop.permute.xlu0 %2196
        %2199 = vset.pattern.permute.xlu0 0
        %2200 = vperm.xlu0 %2199, %v1957
        %v2201 = vpop.permute.xlu0 %2200
        %2203 = vset.pattern.permute.xlu0 0
        %2204 = vperm.xlu0 %2203, %v1960
        %v2205 = vpop.permute.xlu0 %2204
        %2207 = vset.pattern.permute.xlu0 0
        %2208 = vperm.xlu0 %2207, %v1962
        %v2209 = vpop.permute.xlu0 %2208
        %2211 = vset.pattern.permute.xlu0 0
        %2212 = vperm.xlu0 %2211, %v1965
        %v2213 = vpop.permute.xlu0 %2212
        %2215 = vset.pattern.permute.xlu0 0
        %2216 = vperm.xlu0 %2215, %v1967
        %v2217 = vpop.permute.xlu0 %2216
        %2219 = vset.pattern.permute.xlu0 0
        %2220 = vperm.xlu0 %2219, %v1970
        %v2221 = vpop.permute.xlu0 %2220
        %2223 = vset.pattern.permute.xlu0 0
        %2224 = vperm.xlu0 %2223, %v1972
        %v2225 = vpop.permute.xlu0 %2224
        %2227 = vset.pattern.permute.xlu0 0
        %2228 = vperm.xlu0 %2227, %v1975
        %v2229 = vpop.permute.xlu0 %2228
        %2231 = vset.pattern.permute.xlu0 0
        %2232 = vperm.xlu0 %2231, %v1977
        %v2233 = vpop.permute.xlu0 %2232
        %v2235 = vperm.slane %v1978, 0
        %v2236 = vmul.f32 %v1981, %v2235
        %v2237 = vmul.f32 %v1985, %v2235
        %v2238 = vmul.f32 %v1989, %v2235
        %v2239 = vmul.f32 %v1993, %v2235
        %v2240 = vmul.f32 %v1997, %v2235
        %v2241 = vmul.f32 %v2001, %v2235
        %v2242 = vmul.f32 %v2005, %v2235
        %v2243 = vmul.f32 %v2009, %v2235
        %v2244 = vmul.f32 %v2013, %v2235
        %v2245 = vmul.f32 %v2017, %v2235
        %v2246 = vmul.f32 %v2021, %v2235
        %v2247 = vmul.f32 %v2025, %v2235
        %v2248 = vmul.f32 %v2029, %v2235
        %v2249 = vmul.f32 %v2033, %v2235
        %v2250 = vmul.f32 %v2037, %v2235
        %v2251 = vmul.f32 %v2041, %v2235
        %v2252 = vmul.f32 %v2045, %v2235
        %v2253 = vmul.f32 %v2049, %v2235
        %v2254 = vmul.f32 %v2053, %v2235
        %v2255 = vmul.f32 %v2057, %v2235
        %v2256 = vmul.f32 %v2061, %v2235
        %v2257 = vmul.f32 %v2065, %v2235
        %v2258 = vmul.f32 %v2069, %v2235
        %v2259 = vmul.f32 %v2073, %v2235
        %v2260 = vmul.f32 %v2077, %v2235
        %v2261 = vmul.f32 %v2081, %v2235
        %v2262 = vmul.f32 %v2085, %v2235
        %v2263 = vmul.f32 %v2089, %v2235
        %v2264 = vmul.f32 %v2093, %v2235
        %v2265 = vmul.f32 %v2097, %v2235
        %v2266 = vmul.f32 %v2101, %v2235
        %v2267 = vmul.f32 %v2105, %v2235
        %v2268 = vmul.f32 %v2109, %v2235
        %v2269 = vmul.f32 %v2113, %v2235
        %v2270 = vmul.f32 %v2117, %v2235
        %v2271 = vmul.f32 %v2121, %v2235
        %v2272 = vmul.f32 %v2125, %v2235
        %v2273 = vmul.f32 %v2129, %v2235
        %v2274 = vmul.f32 %v2133, %v2235
        %v2275 = vmul.f32 %v2137, %v2235
        %v2276 = vmul.f32 %v2141, %v2235
        %v2277 = vmul.f32 %v2145, %v2235
        %v2278 = vmul.f32 %v2149, %v2235
        %v2279 = vmul.f32 %v2153, %v2235
        %v2280 = vmul.f32 %v2157, %v2235
        %v2281 = vmul.f32 %v2161, %v2235
        %v2282 = vmul.f32 %v2165, %v2235
        %v2283 = vmul.f32 %v2169, %v2235
        %v2284 = vmul.f32 %v2173, %v2235
        %v2285 = vmul.f32 %v2177, %v2235
        %v2286 = vmul.f32 %v2181, %v2235
        %v2287 = vmul.f32 %v2185, %v2235
        %v2288 = vmul.f32 %v2189, %v2235
        %v2289 = vmul.f32 %v2193, %v2235
        %v2290 = vmul.f32 %v2197, %v2235
        %v2291 = vmul.f32 %v2201, %v2235
        %v2292 = vmul.f32 %v2205, %v2235
        %v2293 = vmul.f32 %v2209, %v2235
        %v2294 = vmul.f32 %v2213, %v2235
        %v2295 = vmul.f32 %v2217, %v2235
        %v2296 = vmul.f32 %v2221, %v2235
        %v2297 = vmul.f32 %v2225, %v2235
        %v2298 = vmul.f32 %v2229, %v2235
        %v2299 = vmul.f32 %v2233, %v2235
        %v2300 = vadd.f32 %v1753, %v2236
        %v2301 = vadd.f32 %v1754, %v2237
        %v2302 = vadd.f32 %v1755, %v2238
        %v2303 = vadd.f32 %v1756, %v2239
        %v2304 = vadd.f32 %v1757, %v2240
        %v2305 = vadd.f32 %v1758, %v2241
        %v2306 = vadd.f32 %v1759, %v2242
        %v2307 = vadd.f32 %v1760, %v2243
        %v2308 = vadd.f32 %v1761, %v2244
        %v2309 = vadd.f32 %v1762, %v2245
        %v2310 = vadd.f32 %v1763, %v2246
        %v2311 = vadd.f32 %v1764, %v2247
        %v2312 = vadd.f32 %v1765, %v2248
        %v2313 = vadd.f32 %v1766, %v2249
        %v2314 = vadd.f32 %v1767, %v2250
        %v2315 = vadd.f32 %v1768, %v2251
        %v2316 = vadd.f32 %v1769, %v2252
        %v2317 = vadd.f32 %v1770, %v2253
        %v2318 = vadd.f32 %v1771, %v2254
        %v2319 = vadd.f32 %v1772, %v2255
        %v2320 = vadd.f32 %v1773, %v2256
        %v2321 = vadd.f32 %v1774, %v2257
        %v2322 = vadd.f32 %v1775, %v2258
        %v2323 = vadd.f32 %v1776, %v2259
        %v2324 = vadd.f32 %v1777, %v2260
        %v2325 = vadd.f32 %v1778, %v2261
        %v2326 = vadd.f32 %v1779, %v2262
        %v2327 = vadd.f32 %v1780, %v2263
        %v2328 = vadd.f32 %v1781, %v2264
        %v2329 = vadd.f32 %v1782, %v2265
        %v2330 = vadd.f32 %v1783, %v2266
        %v2331 = vadd.f32 %v1784, %v2267
        %v2332 = vadd.f32 %v1785, %v2268
        %v2333 = vadd.f32 %v1786, %v2269
        %v2334 = vadd.f32 %v1787, %v2270
        %v2335 = vadd.f32 %v1788, %v2271
        %v2336 = vadd.f32 %v1789, %v2272
        %v2337 = vadd.f32 %v1790, %v2273
        %v2338 = vadd.f32 %v1791, %v2274
        %v2339 = vadd.f32 %v1792, %v2275
        %v2340 = vadd.f32 %v1793, %v2276
        %v2341 = vadd.f32 %v1794, %v2277
        %v2342 = vadd.f32 %v1795, %v2278
        %v2343 = vadd.f32 %v1796, %v2279
        %v2344 = vadd.f32 %v1797, %v2280
        %v2345 = vadd.f32 %v1798, %v2281
        %v2346 = vadd.f32 %v1799, %v2282
        %v2347 = vadd.f32 %v1800, %v2283
        %v2348 = vadd.f32 %v1801, %v2284
        %v2349 = vadd.f32 %v1802, %v2285
        %v2350 = vadd.f32 %v1803, %v2286
        %v2351 = vadd.f32 %v1804, %v2287
        %v2352 = vadd.f32 %v1805, %v2288
        %v2353 = vadd.f32 %v1806, %v2289
        %v2354 = vadd.f32 %v1807, %v2290
        %v2355 = vadd.f32 %v1808, %v2291
        %v2356 = vadd.f32 %v1809, %v2292
        %v2357 = vadd.f32 %v1810, %v2293
        %v2358 = vadd.f32 %v1811, %v2294
        %v2359 = vadd.f32 %v1812, %v2295
        %v2360 = vadd.f32 %v1813, %v2296
        %v2361 = vadd.f32 %v1814, %v2297
        %v2362 = vadd.f32 %v1815, %v2298
        %v2363 = vadd.f32 %v1816, %v2299
        %v2364 = vld [vmem:[#allocation5 + $0x3] sm:$0x1]
        %2366 = vset.pattern.permute.xlu0 0
        %2367 = vperm.xlu0 %2366, %v728
        %v2368 = vpop.permute.xlu0 %2367
        %2371 = vset.pattern.permute.xlu0 0
        %2372 = vperm.xlu0 %2371, %v729
        %v2373 = vpop.permute.xlu0 %2372
        %2376 = vset.pattern.permute.xlu0 0
        %2377 = vperm.xlu0 %2376, %v782
        %v2378 = vpop.permute.xlu0 %2377
        %2381 = vset.pattern.permute.xlu0 0
        %2382 = vperm.xlu0 %2381, %v783
        %v2383 = vpop.permute.xlu0 %2382
        %v2385 = vperm.slane %v2364, 0
        %v2386 = vmul.f32 %v802, %v2385
        %v2387 = vmul.f32 %v807, %v2385
        %v2388 = vmul.f32 %v812, %v2385
        %v2389 = vmul.f32 %v817, %v2385
        %v2390 = vmul.f32 %v822, %v2385
        %v2391 = vmul.f32 %v827, %v2385
        %v2392 = vmul.f32 %v832, %v2385
        %v2393 = vmul.f32 %v837, %v2385
        %v2394 = vmul.f32 %v842, %v2385
        %v2395 = vmul.f32 %v847, %v2385
        %v2396 = vmul.f32 %v852, %v2385
        %v2397 = vmul.f32 %v857, %v2385
        %v2398 = vmul.f32 %v862, %v2385
        %v2399 = vmul.f32 %v867, %v2385
        %v2400 = vmul.f32 %v872, %v2385
        %v2401 = vmul.f32 %v877, %v2385
        %v2402 = vmul.f32 %v882, %v2385
        %v2403 = vmul.f32 %v887, %v2385
        %v2404 = vmul.f32 %v892, %v2385
        %v2405 = vmul.f32 %v897, %v2385
        %v2406 = vmul.f32 %v902, %v2385
        %v2407 = vmul.f32 %v907, %v2385
        %v2408 = vmul.f32 %v912, %v2385
        %v2409 = vmul.f32 %v917, %v2385
        %v2410 = vmul.f32 %v922, %v2385
        %v2411 = vmul.f32 %v927, %v2385
        %v2412 = vmul.f32 %v932, %v2385
        %v2413 = vmul.f32 %v937, %v2385
        %v2414 = vmul.f32 %v942, %v2385
        %v2415 = vmul.f32 %v947, %v2385
        %v2416 = vmul.f32 %v2368, %v2385
        %v2417 = vmul.f32 %v2373, %v2385
        %v2418 = vmul.f32 %v962, %v2385
        %v2419 = vmul.f32 %v967, %v2385
        %v2420 = vmul.f32 %v972, %v2385
        %v2421 = vmul.f32 %v977, %v2385
        %v2422 = vmul.f32 %v982, %v2385
        %v2423 = vmul.f32 %v987, %v2385
        %v2424 = vmul.f32 %v992, %v2385
        %v2425 = vmul.f32 %v997, %v2385
        %v2426 = vmul.f32 %v1002, %v2385
        %v2427 = vmul.f32 %v1007, %v2385
        %v2428 = vmul.f32 %v1012, %v2385
        %v2429 = vmul.f32 %v1017, %v2385
        %v2430 = vmul.f32 %v1022, %v2385
        %v2431 = vmul.f32 %v1027, %v2385
        %v2432 = vmul.f32 %v1032, %v2385
        %v2433 = vmul.f32 %v1037, %v2385
        %v2434 = vmul.f32 %v1042, %v2385
        %v2435 = vmul.f32 %v1047, %v2385
        %v2436 = vmul.f32 %v1052, %v2385
        %v2437 = vmul.f32 %v1057, %v2385
        %v2438 = vmul.f32 %v1062, %v2385
        %v2439 = vmul.f32 %v1067, %v2385
        %v2440 = vmul.f32 %v1072, %v2385
        %v2441 = vmul.f32 %v1077, %v2385
        %v2442 = vmul.f32 %v1082, %v2385
        %v2443 = vmul.f32 %v1087, %v2385
        %v2444 = vmul.f32 %v1092, %v2385
        %v2445 = vmul.f32 %v1097, %v2385
        %v2446 = vmul.f32 %v1102, %v2385
        %v2447 = vmul.f32 %v1107, %v2385
        %v2448 = vmul.f32 %v2378, %v2385
        %v2449 = vmul.f32 %v2383, %v2385
        %v2450 = vadd.f32 %v2300, %v2386
        %v2451 = vadd.f32 %v2301, %v2387
        %v2452 = vadd.f32 %v2302, %v2388
        %v2453 = vadd.f32 %v2303, %v2389
        %v2454 = vadd.f32 %v2304, %v2390
        %v2455 = vadd.f32 %v2305, %v2391
        %v2456 = vadd.f32 %v2306, %v2392
        %v2457 = vadd.f32 %v2307, %v2393
        %v2458 = vadd.f32 %v2308, %v2394
        %v2459 = vadd.f32 %v2309, %v2395
        %v2460 = vadd.f32 %v2310, %v2396
        %v2461 = vadd.f32 %v2311, %v2397
        %v2462 = vadd.f32 %v2312, %v2398
        %v2463 = vadd.f32 %v2313, %v2399
        %v2464 = vadd.f32 %v2314, %v2400
        %v2465 = vadd.f32 %v2315, %v2401
        %v2466 = vadd.f32 %v2316, %v2402
        %v2467 = vadd.f32 %v2317, %v2403
        %v2468 = vadd.f32 %v2318, %v2404
        %v2469 = vadd.f32 %v2319, %v2405
        %v2470 = vadd.f32 %v2320, %v2406
        %v2471 = vadd.f32 %v2321, %v2407
        %v2472 = vadd.f32 %v2322, %v2408
        %v2473 = vadd.f32 %v2323, %v2409
        %v2474 = vadd.f32 %v2324, %v2410
        %v2475 = vadd.f32 %v2325, %v2411
        %v2476 = vadd.f32 %v2326, %v2412
        %v2477 = vadd.f32 %v2327, %v2413
        %v2478 = vadd.f32 %v2328, %v2414
        %v2479 = vadd.f32 %v2329, %v2415
        %v2480 = vadd.f32 %v2330, %v2416
        %v2481 = vadd.f32 %v2331, %v2417
        %v2482 = vadd.f32 %v2332, %v2418
        %v2483 = vadd.f32 %v2333, %v2419
        %v2484 = vadd.f32 %v2334, %v2420
        %v2485 = vadd.f32 %v2335, %v2421
        %v2486 = vadd.f32 %v2336, %v2422
        %v2487 = vadd.f32 %v2337, %v2423
        %v2488 = vadd.f32 %v2338, %v2424
        %v2489 = vadd.f32 %v2339, %v2425
        %v2490 = vadd.f32 %v2340, %v2426
        %v2491 = vadd.f32 %v2341, %v2427
        %v2492 = vadd.f32 %v2342, %v2428
        %v2493 = vadd.f32 %v2343, %v2429
        %v2494 = vadd.f32 %v2344, %v2430
        %v2495 = vadd.f32 %v2345, %v2431
        %v2496 = vadd.f32 %v2346, %v2432
        %v2497 = vadd.f32 %v2347, %v2433
        %v2498 = vadd.f32 %v2348, %v2434
        %v2499 = vadd.f32 %v2349, %v2435
        %v2500 = vadd.f32 %v2350, %v2436
        %v2501 = vadd.f32 %v2351, %v2437
        %v2502 = vadd.f32 %v2352, %v2438
        %v2503 = vadd.f32 %v2353, %v2439
        %v2504 = vadd.f32 %v2354, %v2440
        %v2505 = vadd.f32 %v2355, %v2441
        %v2506 = vadd.f32 %v2356, %v2442
        %v2507 = vadd.f32 %v2357, %v2443
        %v2508 = vadd.f32 %v2358, %v2444
        %v2509 = vadd.f32 %v2359, %v2445
        %v2510 = vadd.f32 %v2360, %v2446
        %v2511 = vadd.f32 %v2361, %v2447
        %v2512 = vadd.f32 %v2362, %v2448
        %v2513 = vadd.f32 %v2363, %v2449
        %v2516 = vrot.slane %v728, 1
        %v2517 = vrot.slane %v729, 1
        %v2518 = vsel %vm1270, %v2516, %v2517
        %v2519 = vrot.slane %v730, 1
        %v2520 = vsel %vm1270, %v2517, %v2519
        %v2521 = vrot.slane %v782, 1
        %v2522 = vrot.slane %v783, 1
        %v2523 = vsel %vm1270, %v2521, %v2522
        %v2524 = vrot.slane %v784, 1
        %v2525 = vsel %vm1270, %v2522, %v2524
        %v2526 = vld [vmem:[#allocation5 + $0x4] sm:$0x1]
        %2527 = vset.pattern.permute.xlu0 0
        %2528 = vperm.xlu0 %2527, %v2518
        %v2529 = vpop.permute.xlu0 %2528
        %2531 = vset.pattern.permute.xlu0 0
        %2532 = vperm.xlu0 %2531, %v2520
        %v2533 = vpop.permute.xlu0 %2532
        %2535 = vset.pattern.permute.xlu0 0
        %2536 = vperm.xlu0 %2535, %v2523
        %v2537 = vpop.permute.xlu0 %2536
        %2539 = vset.pattern.permute.xlu0 0
        %2540 = vperm.xlu0 %2539, %v2525
        %v2541 = vpop.permute.xlu0 %2540
        %v2543 = vperm.slane %v2526, 0
        %v2544 = vmul.f32 %v1442, %v2543
        %v2545 = vmul.f32 %v1446, %v2543
        %v2546 = vmul.f32 %v1450, %v2543
        %v2547 = vmul.f32 %v1454, %v2543
        %v2548 = vmul.f32 %v1458, %v2543
        %v2549 = vmul.f32 %v1462, %v2543
        %v2550 = vmul.f32 %v1466, %v2543
        %v2551 = vmul.f32 %v1470, %v2543
        %v2552 = vmul.f32 %v1474, %v2543
        %v2553 = vmul.f32 %v1478, %v2543
        %v2554 = vmul.f32 %v1482, %v2543
        %v2555 = vmul.f32 %v1486, %v2543
        %v2556 = vmul.f32 %v1490, %v2543
        %v2557 = vmul.f32 %v1494, %v2543
        %v2558 = vmul.f32 %v1498, %v2543
        %v2559 = vmul.f32 %v1502, %v2543
        %v2560 = vmul.f32 %v1506, %v2543
        %v2561 = vmul.f32 %v1510, %v2543
        %v2562 = vmul.f32 %v1514, %v2543
        %v2563 = vmul.f32 %v1518, %v2543
        %v2564 = vmul.f32 %v1522, %v2543
        %v2565 = vmul.f32 %v1526, %v2543
        %v2566 = vmul.f32 %v1530, %v2543
        %v2567 = vmul.f32 %v1534, %v2543
        %v2568 = vmul.f32 %v1538, %v2543
        %v2569 = vmul.f32 %v1542, %v2543
        %v2570 = vmul.f32 %v1546, %v2543
        %v2571 = vmul.f32 %v1550, %v2543
        %v2572 = vmul.f32 %v1554, %v2543
        %v2573 = vmul.f32 %v1558, %v2543
        %v2574 = vmul.f32 %v2529, %v2543
        %v2575 = vmul.f32 %v2533, %v2543
        %v2576 = vmul.f32 %v1570, %v2543
        %v2577 = vmul.f32 %v1574, %v2543
        %v2578 = vmul.f32 %v1578, %v2543
        %v2579 = vmul.f32 %v1582, %v2543
        %v2580 = vmul.f32 %v1586, %v2543
        %v2581 = vmul.f32 %v1590, %v2543
        %v2582 = vmul.f32 %v1594, %v2543
        %v2583 = vmul.f32 %v1598, %v2543
        %v2584 = vmul.f32 %v1602, %v2543
        %v2585 = vmul.f32 %v1606, %v2543
        %v2586 = vmul.f32 %v1610, %v2543
        %v2587 = vmul.f32 %v1614, %v2543
        %v2588 = vmul.f32 %v1618, %v2543
        %v2589 = vmul.f32 %v1622, %v2543
        %v2590 = vmul.f32 %v1626, %v2543
        %v2591 = vmul.f32 %v1630, %v2543
        %v2592 = vmul.f32 %v1634, %v2543
        %v2593 = vmul.f32 %v1638, %v2543
        %v2594 = vmul.f32 %v1642, %v2543
        %v2595 = vmul.f32 %v1646, %v2543
        %v2596 = vmul.f32 %v1650, %v2543
        %v2597 = vmul.f32 %v1654, %v2543
        %v2598 = vmul.f32 %v1658, %v2543
        %v2599 = vmul.f32 %v1662, %v2543
        %v2600 = vmul.f32 %v1666, %v2543
        %v2601 = vmul.f32 %v1670, %v2543
        %v2602 = vmul.f32 %v1674, %v2543
        %v2603 = vmul.f32 %v1678, %v2543
        %v2604 = vmul.f32 %v1682, %v2543
        %v2605 = vmul.f32 %v1686, %v2543
        %v2606 = vmul.f32 %v2537, %v2543
        %v2607 = vmul.f32 %v2541, %v2543
        %v2608 = vadd.f32 %v2450, %v2544
        %v2609 = vadd.f32 %v2451, %v2545
        %v2610 = vadd.f32 %v2452, %v2546
        %v2611 = vadd.f32 %v2453, %v2547
        %v2612 = vadd.f32 %v2454, %v2548
        %v2613 = vadd.f32 %v2455, %v2549
        %v2614 = vadd.f32 %v2456, %v2550
        %v2615 = vadd.f32 %v2457, %v2551
        %v2616 = vadd.f32 %v2458, %v2552
        %v2617 = vadd.f32 %v2459, %v2553
        %v2618 = vadd.f32 %v2460, %v2554
        %v2619 = vadd.f32 %v2461, %v2555
        %v2620 = vadd.f32 %v2462, %v2556
        %v2621 = vadd.f32 %v2463, %v2557
        %v2622 = vadd.f32 %v2464, %v2558
        %v2623 = vadd.f32 %v2465, %v2559
        %v2624 = vadd.f32 %v2466, %v2560
        %v2625 = vadd.f32 %v2467, %v2561
        %v2626 = vadd.f32 %v2468, %v2562
        %v2627 = vadd.f32 %v2469, %v2563
        %v2628 = vadd.f32 %v2470, %v2564
        %v2629 = vadd.f32 %v2471, %v2565
        %v2630 = vadd.f32 %v2472, %v2566
        %v2631 = vadd.f32 %v2473, %v2567
        %v2632 = vadd.f32 %v2474, %v2568
        %v2633 = vadd.f32 %v2475, %v2569
        %v2634 = vadd.f32 %v2476, %v2570
        %v2635 = vadd.f32 %v2477, %v2571
        %v2636 = vadd.f32 %v2478, %v2572
        %v2637 = vadd.f32 %v2479, %v2573
        %v2638 = vadd.f32 %v2480, %v2574
        %v2639 = vadd.f32 %v2481, %v2575
        %v2640 = vadd.f32 %v2482, %v2576
        %v2641 = vadd.f32 %v2483, %v2577
        %v2642 = vadd.f32 %v2484, %v2578
        %v2643 = vadd.f32 %v2485, %v2579
        %v2644 = vadd.f32 %v2486, %v2580
        %v2645 = vadd.f32 %v2487, %v2581
        %v2646 = vadd.f32 %v2488, %v2582
        %v2647 = vadd.f32 %v2489, %v2583
        %v2648 = vadd.f32 %v2490, %v2584
        %v2649 = vadd.f32 %v2491, %v2585
        %v2650 = vadd.f32 %v2492, %v2586
        %v2651 = vadd.f32 %v2493, %v2587
        %v2652 = vadd.f32 %v2494, %v2588
        %v2653 = vadd.f32 %v2495, %v2589
        %v2654 = vadd.f32 %v2496, %v2590
        %v2655 = vadd.f32 %v2497, %v2591
        %v2656 = vadd.f32 %v2498, %v2592
        %v2657 = vadd.f32 %v2499, %v2593
        %v2658 = vadd.f32 %v2500, %v2594
        %v2659 = vadd.f32 %v2501, %v2595
        %v2660 = vadd.f32 %v2502, %v2596
        %v2661 = vadd.f32 %v2503, %v2597
        %v2662 = vadd.f32 %v2504, %v2598
        %v2663 = vadd.f32 %v2505, %v2599
        %v2664 = vadd.f32 %v2506, %v2600
        %v2665 = vadd.f32 %v2507, %v2601
        %v2666 = vadd.f32 %v2508, %v2602
        %v2667 = vadd.f32 %v2509, %v2603
        %v2668 = vadd.f32 %v2510, %v2604
        %v2669 = vadd.f32 %v2511, %v2605
        %v2670 = vadd.f32 %v2512, %v2606
        %v2671 = vadd.f32 %v2513, %v2607
        %v2672 = vrot.slane %v728, 2
        %v2673 = vrot.slane %v729, 2
        %v2674 = vsel %vm1817, %v2672, %v2673
        %v2675 = vrot.slane %v730, 2
        %v2676 = vsel %vm1817, %v2673, %v2675
        %v2677 = vrot.slane %v782, 2
        %v2678 = vrot.slane %v783, 2
        %v2679 = vsel %vm1817, %v2677, %v2678
        %v2680 = vrot.slane %v784, 2
        %v2681 = vsel %vm1817, %v2678, %v2680
        %v2682 = vld [vmem:[#allocation5 + $0x5] sm:$0x1]
        %2683 = vset.pattern.permute.xlu0 0
        %2684 = vperm.xlu0 %2683, %v2674
        %v2685 = vpop.permute.xlu0 %2684
        %2687 = vset.pattern.permute.xlu0 0
        %2688 = vperm.xlu0 %2687, %v2676
        %v2689 = vpop.permute.xlu0 %2688
        %2691 = vset.pattern.permute.xlu0 0
        %2692 = vperm.xlu0 %2691, %v2679
        %v2693 = vpop.permute.xlu0 %2692
        %2695 = vset.pattern.permute.xlu0 0
        %2696 = vperm.xlu0 %2695, %v2681
        %v2697 = vpop.permute.xlu0 %2696
        %v2699 = vperm.slane %v2682, 0
        %v2700 = vmul.f32 %v1989, %v2699
        %v2701 = vmul.f32 %v1993, %v2699
        %v2702 = vmul.f32 %v1997, %v2699
        %v2703 = vmul.f32 %v2001, %v2699
        %v2704 = vmul.f32 %v2005, %v2699
        %v2705 = vmul.f32 %v2009, %v2699
        %v2706 = vmul.f32 %v2013, %v2699
        %v2707 = vmul.f32 %v2017, %v2699
        %v2708 = vmul.f32 %v2021, %v2699
        %v2709 = vmul.f32 %v2025, %v2699
        %v2710 = vmul.f32 %v2029, %v2699
        %v2711 = vmul.f32 %v2033, %v2699
        %v2712 = vmul.f32 %v2037, %v2699
        %v2713 = vmul.f32 %v2041, %v2699
        %v2714 = vmul.f32 %v2045, %v2699
        %v2715 = vmul.f32 %v2049, %v2699
        %v2716 = vmul.f32 %v2053, %v2699
        %v2717 = vmul.f32 %v2057, %v2699
        %v2718 = vmul.f32 %v2061, %v2699
        %v2719 = vmul.f32 %v2065, %v2699
        %v2720 = vmul.f32 %v2069, %v2699
        %v2721 = vmul.f32 %v2073, %v2699
        %v2722 = vmul.f32 %v2077, %v2699
        %v2723 = vmul.f32 %v2081, %v2699
        %v2724 = vmul.f32 %v2085, %v2699
        %v2725 = vmul.f32 %v2089, %v2699
        %v2726 = vmul.f32 %v2093, %v2699
        %v2727 = vmul.f32 %v2097, %v2699
        %v2728 = vmul.f32 %v2101, %v2699
        %v2729 = vmul.f32 %v2105, %v2699
        %v2730 = vmul.f32 %v2685, %v2699
        %v2731 = vmul.f32 %v2689, %v2699
        %v2732 = vmul.f32 %v2117, %v2699
        %v2733 = vmul.f32 %v2121, %v2699
        %v2734 = vmul.f32 %v2125, %v2699
        %v2735 = vmul.f32 %v2129, %v2699
        %v2736 = vmul.f32 %v2133, %v2699
        %v2737 = vmul.f32 %v2137, %v2699
        %v2738 = vmul.f32 %v2141, %v2699
        %v2739 = vmul.f32 %v2145, %v2699
        %v2740 = vmul.f32 %v2149, %v2699
        %v2741 = vmul.f32 %v2153, %v2699
        %v2742 = vmul.f32 %v2157, %v2699
        %v2743 = vmul.f32 %v2161, %v2699
        %v2744 = vmul.f32 %v2165, %v2699
        %v2745 = vmul.f32 %v2169, %v2699
        %v2746 = vmul.f32 %v2173, %v2699
        %v2747 = vmul.f32 %v2177, %v2699
        %v2748 = vmul.f32 %v2181, %v2699
        %v2749 = vmul.f32 %v2185, %v2699
        %v2750 = vmul.f32 %v2189, %v2699
        %v2751 = vmul.f32 %v2193, %v2699
        %v2752 = vmul.f32 %v2197, %v2699
        %v2753 = vmul.f32 %v2201, %v2699
        %v2754 = vmul.f32 %v2205, %v2699
        %v2755 = vmul.f32 %v2209, %v2699
        %v2756 = vmul.f32 %v2213, %v2699
        %v2757 = vmul.f32 %v2217, %v2699
        %v2758 = vmul.f32 %v2221, %v2699
        %v2759 = vmul.f32 %v2225, %v2699
        %v2760 = vmul.f32 %v2229, %v2699
        %v2761 = vmul.f32 %v2233, %v2699
        %v2762 = vmul.f32 %v2693, %v2699
        %v2763 = vmul.f32 %v2697, %v2699
        %v2764 = vadd.f32 %v2608, %v2700
        %v2765 = vadd.f32 %v2609, %v2701
        %v2766 = vadd.f32 %v2610, %v2702
        %v2767 = vadd.f32 %v2611, %v2703
        %v2768 = vadd.f32 %v2612, %v2704
        %v2769 = vadd.f32 %v2613, %v2705
        %v2770 = vadd.f32 %v2614, %v2706
        %v2771 = vadd.f32 %v2615, %v2707
        %v2772 = vadd.f32 %v2616, %v2708
        %v2773 = vadd.f32 %v2617, %v2709
        %v2774 = vadd.f32 %v2618, %v2710
        %v2775 = vadd.f32 %v2619, %v2711
        %v2776 = vadd.f32 %v2620, %v2712
        %v2777 = vadd.f32 %v2621, %v2713
        %v2778 = vadd.f32 %v2622, %v2714
        %v2779 = vadd.f32 %v2623, %v2715
        %v2780 = vadd.f32 %v2624, %v2716
        %v2781 = vadd.f32 %v2625, %v2717
        %v2782 = vadd.f32 %v2626, %v2718
        %v2783 = vadd.f32 %v2627, %v2719
        %v2784 = vadd.f32 %v2628, %v2720
        %v2785 = vadd.f32 %v2629, %v2721
        %v2786 = vadd.f32 %v2630, %v2722
        %v2787 = vadd.f32 %v2631, %v2723
        %v2788 = vadd.f32 %v2632, %v2724
        %v2789 = vadd.f32 %v2633, %v2725
        %v2790 = vadd.f32 %v2634, %v2726
        %v2791 = vadd.f32 %v2635, %v2727
        %v2792 = vadd.f32 %v2636, %v2728
        %v2793 = vadd.f32 %v2637, %v2729
        %v2794 = vadd.f32 %v2638, %v2730
        %v2795 = vadd.f32 %v2639, %v2731
        %v2796 = vadd.f32 %v2640, %v2732
        %v2797 = vadd.f32 %v2641, %v2733
        %v2798 = vadd.f32 %v2642, %v2734
        %v2799 = vadd.f32 %v2643, %v2735
        %v2800 = vadd.f32 %v2644, %v2736
        %v2801 = vadd.f32 %v2645, %v2737
        %v2802 = vadd.f32 %v2646, %v2738
        %v2803 = vadd.f32 %v2647, %v2739
        %v2804 = vadd.f32 %v2648, %v2740
        %v2805 = vadd.f32 %v2649, %v2741
        %v2806 = vadd.f32 %v2650, %v2742
        %v2807 = vadd.f32 %v2651, %v2743
        %v2808 = vadd.f32 %v2652, %v2744
        %v2809 = vadd.f32 %v2653, %v2745
        %v2810 = vadd.f32 %v2654, %v2746
        %v2811 = vadd.f32 %v2655, %v2747
        %v2812 = vadd.f32 %v2656, %v2748
        %v2813 = vadd.f32 %v2657, %v2749
        %v2814 = vadd.f32 %v2658, %v2750
        %v2815 = vadd.f32 %v2659, %v2751
        %v2816 = vadd.f32 %v2660, %v2752
        %v2817 = vadd.f32 %v2661, %v2753
        %v2818 = vadd.f32 %v2662, %v2754
        %v2819 = vadd.f32 %v2663, %v2755
        %v2820 = vadd.f32 %v2664, %v2756
        %v2821 = vadd.f32 %v2665, %v2757
        %v2822 = vadd.f32 %v2666, %v2758
        %v2823 = vadd.f32 %v2667, %v2759
        %v2824 = vadd.f32 %v2668, %v2760
        %v2825 = vadd.f32 %v2669, %v2761
        %v2826 = vadd.f32 %v2670, %v2762
        %v2827 = vadd.f32 %v2671, %v2763
        %v2828 = vld [vmem:[#allocation5 + $0x6] sm:$0x1]
        %2830 = vset.pattern.permute.xlu0 0
        %2831 = vperm.xlu0 %2830, %v731
        %v2832 = vpop.permute.xlu0 %2831
        %2835 = vset.pattern.permute.xlu0 0
        %2836 = vperm.xlu0 %2835, %v732
        %v2837 = vpop.permute.xlu0 %2836
        %2840 = vset.pattern.permute.xlu0 0
        %2841 = vperm.xlu0 %2840, %v785
        %v2842 = vpop.permute.xlu0 %2841
        %2845 = vset.pattern.permute.xlu0 0
        %2846 = vperm.xlu0 %2845, %v786
        %v2847 = vpop.permute.xlu0 %2846
        %v2849 = vperm.slane %v2828, 0
        %v2850 = vmul.f32 %v812, %v2849
        %v2851 = vmul.f32 %v817, %v2849
        %v2852 = vmul.f32 %v822, %v2849
        %v2853 = vmul.f32 %v827, %v2849
        %v2854 = vmul.f32 %v832, %v2849
        %v2855 = vmul.f32 %v837, %v2849
        %v2856 = vmul.f32 %v842, %v2849
        %v2857 = vmul.f32 %v847, %v2849
        %v2858 = vmul.f32 %v852, %v2849
        %v2859 = vmul.f32 %v857, %v2849
        %v2860 = vmul.f32 %v862, %v2849
        %v2861 = vmul.f32 %v867, %v2849
        %v2862 = vmul.f32 %v872, %v2849
        %v2863 = vmul.f32 %v877, %v2849
        %v2864 = vmul.f32 %v882, %v2849
        %v2865 = vmul.f32 %v887, %v2849
        %v2866 = vmul.f32 %v892, %v2849
        %v2867 = vmul.f32 %v897, %v2849
        %v2868 = vmul.f32 %v902, %v2849
        %v2869 = vmul.f32 %v907, %v2849
        %v2870 = vmul.f32 %v912, %v2849
        %v2871 = vmul.f32 %v917, %v2849
        %v2872 = vmul.f32 %v922, %v2849
        %v2873 = vmul.f32 %v927, %v2849
        %v2874 = vmul.f32 %v932, %v2849
        %v2875 = vmul.f32 %v937, %v2849
        %v2876 = vmul.f32 %v942, %v2849
        %v2877 = vmul.f32 %v947, %v2849
        %v2878 = vmul.f32 %v2368, %v2849
        %v2879 = vmul.f32 %v2373, %v2849
        %v2880 = vmul.f32 %v2832, %v2849
        %v2881 = vmul.f32 %v2837, %v2849
        %v2882 = vmul.f32 %v972, %v2849
        %v2883 = vmul.f32 %v977, %v2849
        %v2884 = vmul.f32 %v982, %v2849
        %v2885 = vmul.f32 %v987, %v2849
        %v2886 = vmul.f32 %v992, %v2849
        %v2887 = vmul.f32 %v997, %v2849
        %v2888 = vmul.f32 %v1002, %v2849
        %v2889 = vmul.f32 %v1007, %v2849
        %v2890 = vmul.f32 %v1012, %v2849
        %v2891 = vmul.f32 %v1017, %v2849
        %v2892 = vmul.f32 %v1022, %v2849
        %v2893 = vmul.f32 %v1027, %v2849
        %v2894 = vmul.f32 %v1032, %v2849
        %v2895 = vmul.f32 %v1037, %v2849
        %v2896 = vmul.f32 %v1042, %v2849
        %v2897 = vmul.f32 %v1047, %v2849
        %v2898 = vmul.f32 %v1052, %v2849
        %v2899 = vmul.f32 %v1057, %v2849
        %v2900 = vmul.f32 %v1062, %v2849
        %v2901 = vmul.f32 %v1067, %v2849
        %v2902 = vmul.f32 %v1072, %v2849
        %v2903 = vmul.f32 %v1077, %v2849
        %v2904 = vmul.f32 %v1082, %v2849
        %v2905 = vmul.f32 %v1087, %v2849
        %v2906 = vmul.f32 %v1092, %v2849
        %v2907 = vmul.f32 %v1097, %v2849
        %v2908 = vmul.f32 %v1102, %v2849
        %v2909 = vmul.f32 %v1107, %v2849
        %v2910 = vmul.f32 %v2378, %v2849
        %v2911 = vmul.f32 %v2383, %v2849
        %v2912 = vmul.f32 %v2842, %v2849
        %v2913 = vmul.f32 %v2847, %v2849
        %v2914 = vadd.f32 %v2764, %v2850
        %v2915 = vadd.f32 %v2765, %v2851
        %v2916 = vadd.f32 %v2766, %v2852
        %v2917 = vadd.f32 %v2767, %v2853
        %v2918 = vadd.f32 %v2768, %v2854
        %v2919 = vadd.f32 %v2769, %v2855
        %v2920 = vadd.f32 %v2770, %v2856
        %v2921 = vadd.f32 %v2771, %v2857
        %v2922 = vadd.f32 %v2772, %v2858
        %v2923 = vadd.f32 %v2773, %v2859
        %v2924 = vadd.f32 %v2774, %v2860
        %v2925 = vadd.f32 %v2775, %v2861
        %v2926 = vadd.f32 %v2776, %v2862
        %v2927 = vadd.f32 %v2777, %v2863
        %v2928 = vadd.f32 %v2778, %v2864
        %v2929 = vadd.f32 %v2779, %v2865
        %v2930 = vadd.f32 %v2780, %v2866
        %v2931 = vadd.f32 %v2781, %v2867
        %v2932 = vadd.f32 %v2782, %v2868
        %v2933 = vadd.f32 %v2783, %v2869
        %v2934 = vadd.f32 %v2784, %v2870
        %v2935 = vadd.f32 %v2785, %v2871
        %v2936 = vadd.f32 %v2786, %v2872
        %v2937 = vadd.f32 %v2787, %v2873
        %v2938 = vadd.f32 %v2788, %v2874
        %v2939 = vadd.f32 %v2789, %v2875
        %v2940 = vadd.f32 %v2790, %v2876
        %v2941 = vadd.f32 %v2791, %v2877
        %v2942 = vadd.f32 %v2792, %v2878
        %v2943 = vadd.f32 %v2793, %v2879
        %v2944 = vadd.f32 %v2794, %v2880
        %v2945 = vadd.f32 %v2795, %v2881
        %v2946 = vadd.f32 %v2796, %v2882
        %v2947 = vadd.f32 %v2797, %v2883
        %v2948 = vadd.f32 %v2798, %v2884
        %v2949 = vadd.f32 %v2799, %v2885
        %v2950 = vadd.f32 %v2800, %v2886
        %v2951 = vadd.f32 %v2801, %v2887
        %v2952 = vadd.f32 %v2802, %v2888
        %v2953 = vadd.f32 %v2803, %v2889
        %v2954 = vadd.f32 %v2804, %v2890
        %v2955 = vadd.f32 %v2805, %v2891
        %v2956 = vadd.f32 %v2806, %v2892
        %v2957 = vadd.f32 %v2807, %v2893
        %v2958 = vadd.f32 %v2808, %v2894
        %v2959 = vadd.f32 %v2809, %v2895
        %v2960 = vadd.f32 %v2810, %v2896
        %v2961 = vadd.f32 %v2811, %v2897
        %v2962 = vadd.f32 %v2812, %v2898
        %v2963 = vadd.f32 %v2813, %v2899
        %v2964 = vadd.f32 %v2814, %v2900
        %v2965 = vadd.f32 %v2815, %v2901
        %v2966 = vadd.f32 %v2816, %v2902
        %v2967 = vadd.f32 %v2817, %v2903
        %v2968 = vadd.f32 %v2818, %v2904
        %v2969 = vadd.f32 %v2819, %v2905
        %v2970 = vadd.f32 %v2820, %v2906
        %v2971 = vadd.f32 %v2821, %v2907
        %v2972 = vadd.f32 %v2822, %v2908
        %v2973 = vadd.f32 %v2823, %v2909
        %v2974 = vadd.f32 %v2824, %v2910
        %v2975 = vadd.f32 %v2825, %v2911
        %v2976 = vadd.f32 %v2826, %v2912
        %v2977 = vadd.f32 %v2827, %v2913
        %v2980 = vrot.slane %v731, 1
        %v2981 = vrot.slane %v732, 1
        %v2982 = vsel %vm1270, %v2980, %v2981
        %v2983 = vrot.slane %v733, 1
        %v2984 = vsel %vm1270, %v2981, %v2983
        %v2985 = vrot.slane %v785, 1
        %v2986 = vrot.slane %v786, 1
        %v2987 = vsel %vm1270, %v2985, %v2986
        %v2988 = vrot.slane %v787, 1
        %v2989 = vsel %vm1270, %v2986, %v2988
        %v2990 = vld [vmem:[#allocation5 + $0x7] sm:$0x1]
        %2991 = vset.pattern.permute.xlu0 0
        %2992 = vperm.xlu0 %2991, %v2982
        %v2993 = vpop.permute.xlu0 %2992
        %2995 = vset.pattern.permute.xlu0 0
        %2996 = vperm.xlu0 %2995, %v2984
        %v2997 = vpop.permute.xlu0 %2996
        %2999 = vset.pattern.permute.xlu0 0
        %3000 = vperm.xlu0 %2999, %v2987
        %v3001 = vpop.permute.xlu0 %3000
        %3003 = vset.pattern.permute.xlu0 0
        %3004 = vperm.xlu0 %3003, %v2989
        %v3005 = vpop.permute.xlu0 %3004
        %v3007 = vperm.slane %v2990, 0
        %v3008 = vmul.f32 %v1450, %v3007
        %v3009 = vmul.f32 %v1454, %v3007
        %v3010 = vmul.f32 %v1458, %v3007
        %v3011 = vmul.f32 %v1462, %v3007
        %v3012 = vmul.f32 %v1466, %v3007
        %v3013 = vmul.f32 %v1470, %v3007
        %v3014 = vmul.f32 %v1474, %v3007
        %v3015 = vmul.f32 %v1478, %v3007
        %v3016 = vmul.f32 %v1482, %v3007
        %v3017 = vmul.f32 %v1486, %v3007
        %v3018 = vmul.f32 %v1490, %v3007
        %v3019 = vmul.f32 %v1494, %v3007
        %v3020 = vmul.f32 %v1498, %v3007
        %v3021 = vmul.f32 %v1502, %v3007
        %v3022 = vmul.f32 %v1506, %v3007
        %v3023 = vmul.f32 %v1510, %v3007
        %v3024 = vmul.f32 %v1514, %v3007
        %v3025 = vmul.f32 %v1518, %v3007
        %v3026 = vmul.f32 %v1522, %v3007
        %v3027 = vmul.f32 %v1526, %v3007
        %v3028 = vmul.f32 %v1530, %v3007
        %v3029 = vmul.f32 %v1534, %v3007
        %v3030 = vmul.f32 %v1538, %v3007
        %v3031 = vmul.f32 %v1542, %v3007
        %v3032 = vmul.f32 %v1546, %v3007
        %v3033 = vmul.f32 %v1550, %v3007
        %v3034 = vmul.f32 %v1554, %v3007
        %v3035 = vmul.f32 %v1558, %v3007
        %v3036 = vmul.f32 %v2529, %v3007
        %v3037 = vmul.f32 %v2533, %v3007
        %v3038 = vmul.f32 %v2993, %v3007
        %v3039 = vmul.f32 %v2997, %v3007
        %v3040 = vmul.f32 %v1578, %v3007
        %v3041 = vmul.f32 %v1582, %v3007
        %v3042 = vmul.f32 %v1586, %v3007
        %v3043 = vmul.f32 %v1590, %v3007
        %v3044 = vmul.f32 %v1594, %v3007
        %v3045 = vmul.f32 %v1598, %v3007
        %v3046 = vmul.f32 %v1602, %v3007
        %v3047 = vmul.f32 %v1606, %v3007
        %v3048 = vmul.f32 %v1610, %v3007
        %v3049 = vmul.f32 %v1614, %v3007
        %v3050 = vmul.f32 %v1618, %v3007
        %v3051 = vmul.f32 %v1622, %v3007
        %v3052 = vmul.f32 %v1626, %v3007
        %v3053 = vmul.f32 %v1630, %v3007
        %v3054 = vmul.f32 %v1634, %v3007
        %v3055 = vmul.f32 %v1638, %v3007
        %v3056 = vmul.f32 %v1642, %v3007
        %v3057 = vmul.f32 %v1646, %v3007
        %v3058 = vmul.f32 %v1650, %v3007
        %v3059 = vmul.f32 %v1654, %v3007
        %v3060 = vmul.f32 %v1658, %v3007
        %v3061 = vmul.f32 %v1662, %v3007
        %v3062 = vmul.f32 %v1666, %v3007
        %v3063 = vmul.f32 %v1670, %v3007
        %v3064 = vmul.f32 %v1674, %v3007
        %v3065 = vmul.f32 %v1678, %v3007
        %v3066 = vmul.f32 %v1682, %v3007
        %v3067 = vmul.f32 %v1686, %v3007
        %v3068 = vmul.f32 %v2537, %v3007
        %v3069 = vmul.f32 %v2541, %v3007
        %v3070 = vmul.f32 %v3001, %v3007
        %v3071 = vmul.f32 %v3005, %v3007
        %v3072 = vadd.f32 %v2914, %v3008
        %v3073 = vadd.f32 %v2915, %v3009
        %v3074 = vadd.f32 %v2916, %v3010
        %v3075 = vadd.f32 %v2917, %v3011
        %v3076 = vadd.f32 %v2918, %v3012
        %v3077 = vadd.f32 %v2919, %v3013
        %v3078 = vadd.f32 %v2920, %v3014
        %v3079 = vadd.f32 %v2921, %v3015
        %v3080 = vadd.f32 %v2922, %v3016
        %v3081 = vadd.f32 %v2923, %v3017
        %v3082 = vadd.f32 %v2924, %v3018
        %v3083 = vadd.f32 %v2925, %v3019
        %v3084 = vadd.f32 %v2926, %v3020
        %v3085 = vadd.f32 %v2927, %v3021
        %v3086 = vadd.f32 %v2928, %v3022
        %v3087 = vadd.f32 %v2929, %v3023
        %v3088 = vadd.f32 %v2930, %v3024
        %v3089 = vadd.f32 %v2931, %v3025
        %v3090 = vadd.f32 %v2932, %v3026
        %v3091 = vadd.f32 %v2933, %v3027
        %v3092 = vadd.f32 %v2934, %v3028
        %v3093 = vadd.f32 %v2935, %v3029
        %v3094 = vadd.f32 %v2936, %v3030
        %v3095 = vadd.f32 %v2937, %v3031
        %v3096 = vadd.f32 %v2938, %v3032
        %v3097 = vadd.f32 %v2939, %v3033
        %v3098 = vadd.f32 %v2940, %v3034
        %v3099 = vadd.f32 %v2941, %v3035
        %v3100 = vadd.f32 %v2942, %v3036
        %v3101 = vadd.f32 %v2943, %v3037
        %v3102 = vadd.f32 %v2944, %v3038
        %v3103 = vadd.f32 %v2945, %v3039
        %v3104 = vadd.f32 %v2946, %v3040
        %v3105 = vadd.f32 %v2947, %v3041
        %v3106 = vadd.f32 %v2948, %v3042
        %v3107 = vadd.f32 %v2949, %v3043
        %v3108 = vadd.f32 %v2950, %v3044
        %v3109 = vadd.f32 %v2951, %v3045
        %v3110 = vadd.f32 %v2952, %v3046
        %v3111 = vadd.f32 %v2953, %v3047
        %v3112 = vadd.f32 %v2954, %v3048
        %v3113 = vadd.f32 %v2955, %v3049
        %v3114 = vadd.f32 %v2956, %v3050
        %v3115 = vadd.f32 %v2957, %v3051
        %v3116 = vadd.f32 %v2958, %v3052
        %v3117 = vadd.f32 %v2959, %v3053
        %v3118 = vadd.f32 %v2960, %v3054
        %v3119 = vadd.f32 %v2961, %v3055
        %v3120 = vadd.f32 %v2962, %v3056
        %v3121 = vadd.f32 %v2963, %v3057
        %v3122 = vadd.f32 %v2964, %v3058
        %v3123 = vadd.f32 %v2965, %v3059
        %v3124 = vadd.f32 %v2966, %v3060
        %v3125 = vadd.f32 %v2967, %v3061
        %v3126 = vadd.f32 %v2968, %v3062
        %v3127 = vadd.f32 %v2969, %v3063
        %v3128 = vadd.f32 %v2970, %v3064
        %v3129 = vadd.f32 %v2971, %v3065
        %v3130 = vadd.f32 %v2972, %v3066
        %v3131 = vadd.f32 %v2973, %v3067
        %v3132 = vadd.f32 %v2974, %v3068
        %v3133 = vadd.f32 %v2975, %v3069
        %v3134 = vadd.f32 %v2976, %v3070
        %v3135 = vadd.f32 %v2977, %v3071
        %v3136 = vrot.slane %v731, 2
        %v3137 = vrot.slane %v732, 2
        %v3138 = vsel %vm1817, %v3136, %v3137
        %v3139 = vrot.slane %v733, 2
        %v3140 = vsel %vm1817, %v3137, %v3139
        %v3141 = vrot.slane %v785, 2
        %v3142 = vrot.slane %v786, 2
        %v3143 = vsel %vm1817, %v3141, %v3142
        %v3144 = vrot.slane %v787, 2
        %v3145 = vsel %vm1817, %v3142, %v3144
        %v3146 = vld [vmem:[#allocation5 + $0x8] sm:$0x1]
        %3147 = vset.pattern.permute.xlu0 0
        %3148 = vperm.xlu0 %3147, %v3138
        %v3149 = vpop.permute.xlu0 %3148
        %3151 = vset.pattern.permute.xlu0 0
        %3152 = vperm.xlu0 %3151, %v3140
        %v3153 = vpop.permute.xlu0 %3152
        %3155 = vset.pattern.permute.xlu0 0
        %3156 = vperm.xlu0 %3155, %v3143
        %v3157 = vpop.permute.xlu0 %3156
        %3159 = vset.pattern.permute.xlu0 0
        %3160 = vperm.xlu0 %3159, %v3145
        %v3161 = vpop.permute.xlu0 %3160
        %v3163 = vperm.slane %v3146, 0
        %v3164 = vmul.f32 %v1997, %v3163
        %v3165 = vmul.f32 %v2001, %v3163
        %v3166 = vmul.f32 %v2005, %v3163
        %v3167 = vmul.f32 %v2009, %v3163
        %v3168 = vmul.f32 %v2013, %v3163
        %v3169 = vmul.f32 %v2017, %v3163
        %v3170 = vmul.f32 %v2021, %v3163
        %v3171 = vmul.f32 %v2025, %v3163
        %v3172 = vmul.f32 %v2029, %v3163
        %v3173 = vmul.f32 %v2033, %v3163
        %v3174 = vmul.f32 %v2037, %v3163
        %v3175 = vmul.f32 %v2041, %v3163
        %v3176 = vmul.f32 %v2045, %v3163
        %v3177 = vmul.f32 %v2049, %v3163
        %v3178 = vmul.f32 %v2053, %v3163
        %v3179 = vmul.f32 %v2057, %v3163
        %v3180 = vmul.f32 %v2061, %v3163
        %v3181 = vmul.f32 %v2065, %v3163
        %v3182 = vmul.f32 %v2069, %v3163
        %v3183 = vmul.f32 %v2073, %v3163
        %v3184 = vmul.f32 %v2077, %v3163
        %v3185 = vmul.f32 %v2081, %v3163
        %v3186 = vmul.f32 %v2085, %v3163
        %v3187 = vmul.f32 %v2089, %v3163
        %v3188 = vmul.f32 %v2093, %v3163
        %v3189 = vmul.f32 %v2097, %v3163
        %v3190 = vmul.f32 %v2101, %v3163
        %v3191 = vmul.f32 %v2105, %v3163
        %v3192 = vmul.f32 %v2685, %v3163
        %v3193 = vmul.f32 %v2689, %v3163
        %v3194 = vmul.f32 %v3149, %v3163
        %v3195 = vmul.f32 %v3153, %v3163
        %v3196 = vmul.f32 %v2125, %v3163
        %v3197 = vmul.f32 %v2129, %v3163
        %v3198 = vmul.f32 %v2133, %v3163
        %v3199 = vmul.f32 %v2137, %v3163
        %v3200 = vmul.f32 %v2141, %v3163
        %v3201 = vmul.f32 %v2145, %v3163
        %v3202 = vmul.f32 %v2149, %v3163
        %v3203 = vmul.f32 %v2153, %v3163
        %v3204 = vmul.f32 %v2157, %v3163
        %v3205 = vmul.f32 %v2161, %v3163
        %v3206 = vmul.f32 %v2165, %v3163
        %v3207 = vmul.f32 %v2169, %v3163
        %v3208 = vmul.f32 %v2173, %v3163
        %v3209 = vmul.f32 %v2177, %v3163
        %v3210 = vmul.f32 %v2181, %v3163
        %v3211 = vmul.f32 %v2185, %v3163
        %v3212 = vmul.f32 %v2189, %v3163
        %v3213 = vmul.f32 %v2193, %v3163
        %v3214 = vmul.f32 %v2197, %v3163
        %v3215 = vmul.f32 %v2201, %v3163
        %v3216 = vmul.f32 %v2205, %v3163
        %v3217 = vmul.f32 %v2209, %v3163
        %v3218 = vmul.f32 %v2213, %v3163
        %v3219 = vmul.f32 %v2217, %v3163
        %v3220 = vmul.f32 %v2221, %v3163
        %v3221 = vmul.f32 %v2225, %v3163
        %v3222 = vmul.f32 %v2229, %v3163
        %v3223 = vmul.f32 %v2233, %v3163
        %v3224 = vmul.f32 %v2693, %v3163
        %v3225 = vmul.f32 %v2697, %v3163
        %v3226 = vmul.f32 %v3157, %v3163
        %v3227 = vmul.f32 %v3161, %v3163
        %v3228 = vadd.f32 %v3072, %v3164
        %v3229 = vadd.f32 %v3073, %v3165
        %v3230 = vadd.f32 %v3074, %v3166
        %v3231 = vadd.f32 %v3075, %v3167
        %v3232 = vadd.f32 %v3076, %v3168
        %v3233 = vadd.f32 %v3077, %v3169
        %v3234 = vadd.f32 %v3078, %v3170
        %v3235 = vadd.f32 %v3079, %v3171
        %v3236 = vadd.f32 %v3080, %v3172
        %v3237 = vadd.f32 %v3081, %v3173
        %v3238 = vadd.f32 %v3082, %v3174
        %v3239 = vadd.f32 %v3083, %v3175
        %v3240 = vadd.f32 %v3084, %v3176
        %v3241 = vadd.f32 %v3085, %v3177
        %v3242 = vadd.f32 %v3086, %v3178
        %v3243 = vadd.f32 %v3087, %v3179
        %v3244 = vadd.f32 %v3088, %v3180
        %v3245 = vadd.f32 %v3089, %v3181
        %v3246 = vadd.f32 %v3090, %v3182
        %v3247 = vadd.f32 %v3091, %v3183
        %v3248 = vadd.f32 %v3092, %v3184
        %v3249 = vadd.f32 %v3093, %v3185
        %v3250 = vadd.f32 %v3094, %v3186
        %v3251 = vadd.f32 %v3095, %v3187
        %v3252 = vadd.f32 %v3096, %v3188
        %v3253 = vadd.f32 %v3097, %v3189
        %v3254 = vadd.f32 %v3098, %v3190
        %v3255 = vadd.f32 %v3099, %v3191
        %v3256 = vadd.f32 %v3100, %v3192
        %v3257 = vadd.f32 %v3101, %v3193
        %v3258 = vadd.f32 %v3102, %v3194
        %v3259 = vadd.f32 %v3103, %v3195
        %v3260 = vadd.f32 %v3104, %v3196
        %v3261 = vadd.f32 %v3105, %v3197
        %v3262 = vadd.f32 %v3106, %v3198
        %v3263 = vadd.f32 %v3107, %v3199
        %v3264 = vadd.f32 %v3108, %v3200
        %v3265 = vadd.f32 %v3109, %v3201
        %v3266 = vadd.f32 %v3110, %v3202
        %v3267 = vadd.f32 %v3111, %v3203
        %v3268 = vadd.f32 %v3112, %v3204
        %v3269 = vadd.f32 %v3113, %v3205
        %v3270 = vadd.f32 %v3114, %v3206
        %v3271 = vadd.f32 %v3115, %v3207
        %v3272 = vadd.f32 %v3116, %v3208
        %v3273 = vadd.f32 %v3117, %v3209
        %v3274 = vadd.f32 %v3118, %v3210
        %v3275 = vadd.f32 %v3119, %v3211
        %v3276 = vadd.f32 %v3120, %v3212
        %v3277 = vadd.f32 %v3121, %v3213
        %v3278 = vadd.f32 %v3122, %v3214
        %v3279 = vadd.f32 %v3123, %v3215
        %v3280 = vadd.f32 %v3124, %v3216
        %v3281 = vadd.f32 %v3125, %v3217
        %v3282 = vadd.f32 %v3126, %v3218
        %v3283 = vadd.f32 %v3127, %v3219
        %v3284 = vadd.f32 %v3128, %v3220
        %v3285 = vadd.f32 %v3129, %v3221
        %v3286 = vadd.f32 %v3130, %v3222
        %v3287 = vadd.f32 %v3131, %v3223
        %v3288 = vadd.f32 %v3132, %v3224
        %v3289 = vadd.f32 %v3133, %v3225
        %v3290 = vadd.f32 %v3134, %v3226
        %v3291 = vadd.f32 %v3135, %v3227
        %v3292 = vld [vmem:[%s2] sm:$0x1]
        %v3294 = vperm.slane %v3292, 0
        %v3296 = vadd.f32 %v3228, %v3294
        %v3297 = vadd.f32 %v3229, %v3294
        %v3298 = vadd.f32 %v3230, %v3294
        %v3299 = vadd.f32 %v3231, %v3294
        %v3300 = vadd.f32 %v3232, %v3294
        %v3301 = vadd.f32 %v3233, %v3294
        %v3302 = vadd.f32 %v3234, %v3294
        %v3303 = vadd.f32 %v3235, %v3294
        %v3304 = vadd.f32 %v3236, %v3294
        %v3305 = vadd.f32 %v3237, %v3294
        %v3306 = vadd.f32 %v3238, %v3294
        %v3307 = vadd.f32 %v3239, %v3294
        %v3308 = vadd.f32 %v3240, %v3294
        %v3309 = vadd.f32 %v3241, %v3294
        %v3310 = vadd.f32 %v3242, %v3294
        %v3311 = vadd.f32 %v3243, %v3294
        %v3312 = vadd.f32 %v3244, %v3294
        %v3313 = vadd.f32 %v3245, %v3294
        %v3314 = vadd.f32 %v3246, %v3294
        %v3315 = vadd.f32 %v3247, %v3294
        %v3316 = vadd.f32 %v3248, %v3294
        %v3317 = vadd.f32 %v3249, %v3294
        %v3318 = vadd.f32 %v3250, %v3294
        %v3319 = vadd.f32 %v3251, %v3294
        %v3320 = vadd.f32 %v3252, %v3294
        %v3321 = vadd.f32 %v3253, %v3294
        %v3322 = vadd.f32 %v3254, %v3294
        %v3323 = vadd.f32 %v3255, %v3294
        %v3324 = vadd.f32 %v3256, %v3294
        %v3325 = vadd.f32 %v3257, %v3294
        %v3326 = vadd.f32 %v3258, %v3294
        %v3327 = vadd.f32 %v3259, %v3294
        %v3328 = vadd.f32 %v3260, %v3294
        %v3329 = vadd.f32 %v3261, %v3294
        %v3330 = vadd.f32 %v3262, %v3294
        %v3331 = vadd.f32 %v3263, %v3294
        %v3332 = vadd.f32 %v3264, %v3294
        %v3333 = vadd.f32 %v3265, %v3294
        %v3334 = vadd.f32 %v3266, %v3294
        %v3335 = vadd.f32 %v3267, %v3294
        %v3336 = vadd.f32 %v3268, %v3294
        %v3337 = vadd.f32 %v3269, %v3294
        %v3338 = vadd.f32 %v3270, %v3294
        %v3339 = vadd.f32 %v3271, %v3294
        %v3340 = vadd.f32 %v3272, %v3294
        %v3341 = vadd.f32 %v3273, %v3294
        %v3342 = vadd.f32 %v3274, %v3294
        %v3343 = vadd.f32 %v3275, %v3294
        %v3344 = vadd.f32 %v3276, %v3294
        %v3345 = vadd.f32 %v3277, %v3294
        %v3346 = vadd.f32 %v3278, %v3294
        %v3347 = vadd.f32 %v3279, %v3294
        %v3348 = vadd.f32 %v3280, %v3294
        %v3349 = vadd.f32 %v3281, %v3294
        %v3350 = vadd.f32 %v3282, %v3294
        %v3351 = vadd.f32 %v3283, %v3294
        %v3352 = vadd.f32 %v3284, %v3294
        %v3353 = vadd.f32 %v3285, %v3294
        %v3354 = vadd.f32 %v3286, %v3294
        %v3355 = vadd.f32 %v3287, %v3294
        %v3356 = vadd.f32 %v3288, %v3294
        %v3357 = vadd.f32 %v3289, %v3294
        %v3358 = vadd.f32 %v3290, %v3294
        %v3359 = vadd.f32 %v3291, %v3294
        %v3360 = vmax.f32 %v3296, 0.0
        %v3361 = vmax.f32 %v3297, 0.0
        %v3362 = vmax.f32 %v3298, 0.0
        %v3363 = vmax.f32 %v3299, 0.0
        %v3364 = vmax.f32 %v3300, 0.0
        %v3365 = vmax.f32 %v3301, 0.0
        %v3366 = vmax.f32 %v3302, 0.0
        %v3367 = vmax.f32 %v3303, 0.0
        %v3368 = vmax.f32 %v3304, 0.0
        %v3369 = vmax.f32 %v3305, 0.0
        %v3370 = vmax.f32 %v3306, 0.0
        %v3371 = vmax.f32 %v3307, 0.0
        %v3372 = vmax.f32 %v3308, 0.0
        %v3373 = vmax.f32 %v3309, 0.0
        %v3374 = vmax.f32 %v3310, 0.0
        %v3375 = vmax.f32 %v3311, 0.0
        %v3376 = vmax.f32 %v3312, 0.0
        %v3377 = vmax.f32 %v3313, 0.0
        %v3378 = vmax.f32 %v3314, 0.0
        %v3379 = vmax.f32 %v3315, 0.0
        %v3380 = vmax.f32 %v3316, 0.0
        %v3381 = vmax.f32 %v3317, 0.0
        %v3382 = vmax.f32 %v3318, 0.0
        %v3383 = vmax.f32 %v3319, 0.0
        %v3384 = vmax.f32 %v3320, 0.0
        %v3385 = vmax.f32 %v3321, 0.0
        %v3386 = vmax.f32 %v3322, 0.0
        %v3387 = vmax.f32 %v3323, 0.0
        %v3388 = vmax.f32 %v3324, 0.0
        %v3389 = vmax.f32 %v3325, 0.0
        %v3390 = vmax.f32 %v3326, 0.0
        %v3391 = vmax.f32 %v3327, 0.0
        %v3392 = vmax.f32 %v3328, 0.0
        %v3393 = vmax.f32 %v3329, 0.0
        %v3394 = vmax.f32 %v3330, 0.0
        %v3395 = vmax.f32 %v3331, 0.0
        %v3396 = vmax.f32 %v3332, 0.0
        %v3397 = vmax.f32 %v3333, 0.0
        %v3398 = vmax.f32 %v3334, 0.0
        %v3399 = vmax.f32 %v3335, 0.0
        %v3400 = vmax.f32 %v3336, 0.0
        %v3401 = vmax.f32 %v3337, 0.0
        %v3402 = vmax.f32 %v3338, 0.0
        %v3403 = vmax.f32 %v3339, 0.0
        %v3404 = vmax.f32 %v3340, 0.0
        %v3405 = vmax.f32 %v3341, 0.0
        %v3406 = vmax.f32 %v3342, 0.0
        %v3407 = vmax.f32 %v3343, 0.0
        %v3408 = vmax.f32 %v3344, 0.0
        %v3409 = vmax.f32 %v3345, 0.0
        %v3410 = vmax.f32 %v3346, 0.0
        %v3411 = vmax.f32 %v3347, 0.0
        %v3412 = vmax.f32 %v3348, 0.0
        %v3413 = vmax.f32 %v3349, 0.0
        %v3414 = vmax.f32 %v3350, 0.0
        %v3415 = vmax.f32 %v3351, 0.0
        %v3416 = vmax.f32 %v3352, 0.0
        %v3417 = vmax.f32 %v3353, 0.0
        %v3418 = vmax.f32 %v3354, 0.0
        %v3419 = vmax.f32 %v3355, 0.0
        %v3420 = vmax.f32 %v3356, 0.0
        %v3421 = vmax.f32 %v3357, 0.0
        %v3422 = vmax.f32 %v3358, 0.0
        %v3423 = vmax.f32 %v3359, 0.0
        %v3424 = vmax.f32 %v3360, %v3362
        %v3425 = vmax.f32 %v3361, %v3363
        %v3426 = vmax.f32 %v3364, %v3366
        %v3427 = vmax.f32 %v3365, %v3367
        %v3428 = vmax.f32 %v3368, %v3370
        %v3429 = vmax.f32 %v3369, %v3371
        %v3430 = vmax.f32 %v3372, %v3374
        %v3431 = vmax.f32 %v3373, %v3375
        %v3432 = vmax.f32 %v3376, %v3378
        %v3433 = vmax.f32 %v3377, %v3379
        %v3434 = vmax.f32 %v3380, %v3382
        %v3435 = vmax.f32 %v3381, %v3383
        %v3436 = vmax.f32 %v3384, %v3386
        %v3437 = vmax.f32 %v3385, %v3387
        %v3438 = vmax.f32 %v3388, %v3390
        %v3439 = vmax.f32 %v3389, %v3391
        %v3440 = vmax.f32 %v3392, %v3394
        %v3441 = vmax.f32 %v3393, %v3395
        %v3442 = vmax.f32 %v3396, %v3398
        %v3443 = vmax.f32 %v3397, %v3399
        %v3444 = vmax.f32 %v3400, %v3402
        %v3445 = vmax.f32 %v3401, %v3403
        %v3446 = vmax.f32 %v3404, %v3406
        %v3447 = vmax.f32 %v3405, %v3407
        %v3448 = vmax.f32 %v3408, %v3410
        %v3449 = vmax.f32 %v3409, %v3411
        %v3450 = vmax.f32 %v3412, %v3414
        %v3451 = vmax.f32 %v3413, %v3415
        %v3452 = vmax.f32 %v3416, %v3418
        %v3453 = vmax.f32 %v3417, %v3419
        %v3454 = vmax.f32 %v3420, %v3422
        %v3455 = vmax.f32 %v3421, %v3423
        %v3488 = vrot.slane %v3424, 2
        %v3489 = vrot.slane %v3424, 4
        %v3490 = vrot.slane %v3424, 6
        %v3491 = vrot.slane %v3425, 2
        %v3492 = vrot.slane %v3425, 4
        %v3493 = vrot.slane %v3425, 6
        %v3494 = vrot.slane %v3426, 2
        %v3495 = vrot.slane %v3426, 4
        %v3496 = vrot.slane %v3426, 6
        %v3497 = vrot.slane %v3427, 2
        %v3498 = vrot.slane %v3427, 4
        %v3499 = vrot.slane %v3427, 6
        %v3500 = vrot.slane %v3428, 2
        %v3501 = vrot.slane %v3428, 4
        %v3502 = vrot.slane %v3428, 6
        %v3503 = vrot.slane %v3429, 2
        %v3504 = vrot.slane %v3429, 4
        %v3505 = vrot.slane %v3429, 6
        %v3506 = vrot.slane %v3430, 2
        %v3507 = vrot.slane %v3430, 4
        %v3508 = vrot.slane %v3430, 6
        %v3509 = vrot.slane %v3431, 2
        %v3510 = vrot.slane %v3431, 4
        %v3511 = vrot.slane %v3431, 6
        %v3512 = vrot.slane %v3432, 2
        %v3513 = vrot.slane %v3432, 4
        %v3514 = vrot.slane %v3432, 6
        %v3515 = vrot.slane %v3433, 2
        %v3516 = vrot.slane %v3433, 4
        %v3517 = vrot.slane %v3433, 6
        %v3518 = vrot.slane %v3434, 2
        %v3519 = vrot.slane %v3434, 4
        %v3520 = vrot.slane %v3434, 6
        %v3521 = vrot.slane %v3435, 2
        %v3522 = vrot.slane %v3435, 4
        %v3523 = vrot.slane %v3435, 6
        %v3524 = vrot.slane %v3436, 2
        %v3525 = vrot.slane %v3436, 4
        %v3526 = vrot.slane %v3436, 6
        %v3527 = vrot.slane %v3437, 2
        %v3528 = vrot.slane %v3437, 4
        %v3529 = vrot.slane %v3437, 6
        %v3530 = vrot.slane %v3438, 2
        %v3531 = vrot.slane %v3438, 4
        %v3532 = vrot.slane %v3438, 6
        %v3533 = vrot.slane %v3439, 2
        %v3534 = vrot.slane %v3439, 4
        %v3535 = vrot.slane %v3439, 6
        %v3536 = vrot.slane %v3440, 2
        %v3537 = vrot.slane %v3440, 4
        %v3538 = vrot.slane %v3440, 6
        %v3539 = vrot.slane %v3441, 2
        %v3540 = vrot.slane %v3441, 4
        %v3541 = vrot.slane %v3441, 6
        %v3542 = vrot.slane %v3442, 2
        %v3543 = vrot.slane %v3442, 4
        %v3544 = vrot.slane %v3442, 6
        %v3545 = vrot.slane %v3443, 2
        %v3546 = vrot.slane %v3443, 4
        %v3547 = vrot.slane %v3443, 6
        %v3548 = vrot.slane %v3444, 2
        %v3549 = vrot.slane %v3444, 4
        %v3550 = vrot.slane %v3444, 6
        %v3551 = vrot.slane %v3445, 2
        %v3552 = vrot.slane %v3445, 4
        %v3553 = vrot.slane %v3445, 6
        %v3554 = vrot.slane %v3446, 2
        %v3555 = vrot.slane %v3446, 4
        %v3556 = vrot.slane %v3446, 6
        %v3557 = vrot.slane %v3447, 2
        %v3558 = vrot.slane %v3447, 4
        %v3559 = vrot.slane %v3447, 6
        %v3560 = vrot.slane %v3448, 2
        %v3561 = vrot.slane %v3448, 4
        %v3562 = vrot.slane %v3448, 6
        %v3563 = vrot.slane %v3449, 2
        %v3564 = vrot.slane %v3449, 4
        %v3565 = vrot.slane %v3449, 6
        %v3566 = vrot.slane %v3450, 2
        %v3567 = vrot.slane %v3450, 4
        %v3568 = vrot.slane %v3450, 6
        %v3569 = vrot.slane %v3451, 2
        %v3570 = vrot.slane %v3451, 4
        %v3571 = vrot.slane %v3451, 6
        %v3572 = vrot.slane %v3452, 2
        %v3573 = vrot.slane %v3452, 4
        %v3574 = vrot.slane %v3452, 6
        %v3575 = vrot.slane %v3453, 2
        %v3576 = vrot.slane %v3453, 4
        %v3577 = vrot.slane %v3453, 6
        %v3578 = vrot.slane %v3454, 2
        %v3579 = vrot.slane %v3454, 4
        %v3580 = vrot.slane %v3454, 6
        %v3581 = vrot.slane %v3455, 2
        %v3582 = vrot.slane %v3455, 4
        %v3583 = vrot.slane %v3455, 6
        %v3680 = vrot.slane %v3424, 7
        %v3681 = vrot.slane %v3680, 2
        %v3682 = vrot.slane %v3488, 7
        %v3683 = vrot.slane %v3682, 2
        %v3684 = vrot.slane %v3489, 7
        %v3685 = vrot.slane %v3684, 2
        %v3686 = vrot.slane %v3490, 7
        %v3687 = vrot.slane %v3686, 2
        %v3688 = vrot.slane %v3425, 7
        %v3689 = vrot.slane %v3688, 2
        %v3690 = vrot.slane %v3491, 7
        %v3691 = vrot.slane %v3690, 2
        %v3692 = vrot.slane %v3492, 7
        %v3693 = vrot.slane %v3692, 2
        %v3694 = vrot.slane %v3493, 7
        %v3695 = vrot.slane %v3694, 2
        %v3696 = vrot.slane %v3426, 7
        %v3697 = vrot.slane %v3696, 2
        %v3698 = vrot.slane %v3494, 7
        %v3699 = vrot.slane %v3698, 2
        %v3700 = vrot.slane %v3495, 7
        %v3701 = vrot.slane %v3700, 2
        %v3702 = vrot.slane %v3496, 7
        %v3703 = vrot.slane %v3702, 2
        %v3704 = vrot.slane %v3427, 7
        %v3705 = vrot.slane %v3704, 2
        %v3706 = vrot.slane %v3497, 7
        %v3707 = vrot.slane %v3706, 2
        %v3708 = vrot.slane %v3498, 7
        %v3709 = vrot.slane %v3708, 2
        %v3710 = vrot.slane %v3499, 7
        %v3711 = vrot.slane %v3710, 2
        %v3712 = vrot.slane %v3428, 7
        %v3713 = vrot.slane %v3712, 2
        %v3714 = vrot.slane %v3500, 7
        %v3715 = vrot.slane %v3714, 2
        %v3716 = vrot.slane %v3501, 7
        %v3717 = vrot.slane %v3716, 2
        %v3718 = vrot.slane %v3502, 7
        %v3719 = vrot.slane %v3718, 2
        %v3720 = vrot.slane %v3429, 7
        %v3721 = vrot.slane %v3720, 2
        %v3722 = vrot.slane %v3503, 7
        %v3723 = vrot.slane %v3722, 2
        %v3724 = vrot.slane %v3504, 7
        %v3725 = vrot.slane %v3724, 2
        %v3726 = vrot.slane %v3505, 7
        %v3727 = vrot.slane %v3726, 2
        %v3728 = vrot.slane %v3430, 7
        %v3729 = vrot.slane %v3728, 2
        %v3730 = vrot.slane %v3506, 7
        %v3731 = vrot.slane %v3730, 2
        %v3732 = vrot.slane %v3507, 7
        %v3733 = vrot.slane %v3732, 2
        %v3734 = vrot.slane %v3508, 7
        %v3735 = vrot.slane %v3734, 2
        %v3736 = vrot.slane %v3431, 7
        %v3737 = vrot.slane %v3736, 2
        %v3738 = vrot.slane %v3509, 7
        %v3739 = vrot.slane %v3738, 2
        %v3740 = vrot.slane %v3510, 7
        %v3741 = vrot.slane %v3740, 2
        %v3742 = vrot.slane %v3511, 7
        %v3743 = vrot.slane %v3742, 2
        %v3744 = vrot.slane %v3432, 7
        %v3745 = vrot.slane %v3744, 2
        %v3746 = vrot.slane %v3512, 7
        %v3747 = vrot.slane %v3746, 2
        %v3748 = vrot.slane %v3513, 7
        %v3749 = vrot.slane %v3748, 2
        %v3750 = vrot.slane %v3514, 7
        %v3751 = vrot.slane %v3750, 2
        %v3752 = vrot.slane %v3433, 7
        %v3753 = vrot.slane %v3752, 2
        %v3754 = vrot.slane %v3515, 7
        %v3755 = vrot.slane %v3754, 2
        %v3756 = vrot.slane %v3516, 7
        %v3757 = vrot.slane %v3756, 2
        %v3758 = vrot.slane %v3517, 7
        %v3759 = vrot.slane %v3758, 2
        %v3760 = vrot.slane %v3434, 7
        %v3761 = vrot.slane %v3760, 2
        %v3762 = vrot.slane %v3518, 7
        %v3763 = vrot.slane %v3762, 2
        %v3764 = vrot.slane %v3519, 7
        %v3765 = vrot.slane %v3764, 2
        %v3766 = vrot.slane %v3520, 7
        %v3767 = vrot.slane %v3766, 2
        %v3768 = vrot.slane %v3435, 7
        %v3769 = vrot.slane %v3768, 2
        %v3770 = vrot.slane %v3521, 7
        %v3771 = vrot.slane %v3770, 2
        %v3772 = vrot.slane %v3522, 7
        %v3773 = vrot.slane %v3772, 2
        %v3774 = vrot.slane %v3523, 7
        %v3775 = vrot.slane %v3774, 2
        %v3776 = vrot.slane %v3436, 7
        %v3777 = vrot.slane %v3776, 2
        %v3778 = vrot.slane %v3524, 7
        %v3779 = vrot.slane %v3778, 2
        %v3780 = vrot.slane %v3525, 7
        %v3781 = vrot.slane %v3780, 2
        %v3782 = vrot.slane %v3526, 7
        %v3783 = vrot.slane %v3782, 2
        %v3784 = vrot.slane %v3437, 7
        %v3785 = vrot.slane %v3784, 2
        %v3786 = vrot.slane %v3527, 7
        %v3787 = vrot.slane %v3786, 2
        %v3788 = vrot.slane %v3528, 7
        %v3789 = vrot.slane %v3788, 2
        %v3790 = vrot.slane %v3529, 7
        %v3791 = vrot.slane %v3790, 2
        %v3792 = vrot.slane %v3438, 7
        %v3793 = vrot.slane %v3792, 2
        %v3794 = vrot.slane %v3530, 7
        %v3795 = vrot.slane %v3794, 2
        %v3796 = vrot.slane %v3531, 7
        %v3797 = vrot.slane %v3796, 2
        %v3798 = vrot.slane %v3532, 7
        %v3799 = vrot.slane %v3798, 2
        %v3800 = vrot.slane %v3439, 7
        %v3801 = vrot.slane %v3800, 2
        %v3802 = vrot.slane %v3533, 7
        %v3803 = vrot.slane %v3802, 2
        %v3804 = vrot.slane %v3534, 7
        %v3805 = vrot.slane %v3804, 2
        %v3806 = vrot.slane %v3535, 7
        %v3807 = vrot.slane %v3806, 2
        %v3808 = vrot.slane %v3440, 7
        %v3809 = vrot.slane %v3808, 2
        %v3810 = vrot.slane %v3536, 7
        %v3811 = vrot.slane %v3810, 2
        %v3812 = vrot.slane %v3537, 7
        %v3813 = vrot.slane %v3812, 2
        %v3814 = vrot.slane %v3538, 7
        %v3815 = vrot.slane %v3814, 2
        %v3816 = vrot.slane %v3441, 7
        %v3817 = vrot.slane %v3816, 2
        %v3818 = vrot.slane %v3539, 7
        %v3819 = vrot.slane %v3818, 2
        %v3820 = vrot.slane %v3540, 7
        %v3821 = vrot.slane %v3820, 2
        %v3822 = vrot.slane %v3541, 7
        %v3823 = vrot.slane %v3822, 2
        %v3824 = vrot.slane %v3442, 7
        %v3825 = vrot.slane %v3824, 2
        %v3826 = vrot.slane %v3542, 7
        %v3827 = vrot.slane %v3826, 2
        %v3828 = vrot.slane %v3543, 7
        %v3829 = vrot.slane %v3828, 2
        %v3830 = vrot.slane %v3544, 7
        %v3831 = vrot.slane %v3830, 2
        %v3832 = vrot.slane %v3443, 7
        %v3833 = vrot.slane %v3832, 2
        %v3834 = vrot.slane %v3545, 7
        %v3835 = vrot.slane %v3834, 2
        %v3836 = vrot.slane %v3546, 7
        %v3837 = vrot.slane %v3836, 2
        %v3838 = vrot.slane %v3547, 7
        %v3839 = vrot.slane %v3838, 2
        %v3840 = vrot.slane %v3444, 7
        %v3841 = vrot.slane %v3840, 2
        %v3842 = vrot.slane %v3548, 7
        %v3843 = vrot.slane %v3842, 2
        %v3844 = vrot.slane %v3549, 7
        %v3845 = vrot.slane %v3844, 2
        %v3846 = vrot.slane %v3550, 7
        %v3847 = vrot.slane %v3846, 2
        %v3848 = vrot.slane %v3445, 7
        %v3849 = vrot.slane %v3848, 2
        %v3850 = vrot.slane %v3551, 7
        %v3851 = vrot.slane %v3850, 2
        %v3852 = vrot.slane %v3552, 7
        %v3853 = vrot.slane %v3852, 2
        %v3854 = vrot.slane %v3553, 7
        %v3855 = vrot.slane %v3854, 2
        %v3856 = vrot.slane %v3446, 7
        %v3857 = vrot.slane %v3856, 2
        %v3858 = vrot.slane %v3554, 7
        %v3859 = vrot.slane %v3858, 2
        %v3860 = vrot.slane %v3555, 7
        %v3861 = vrot.slane %v3860, 2
        %v3862 = vrot.slane %v3556, 7
        %v3863 = vrot.slane %v3862, 2
        %v3864 = vrot.slane %v3447, 7
        %v3865 = vrot.slane %v3864, 2
        %v3866 = vrot.slane %v3557, 7
        %v3867 = vrot.slane %v3866, 2
        %v3868 = vrot.slane %v3558, 7
        %v3869 = vrot.slane %v3868, 2
        %v3870 = vrot.slane %v3559, 7
        %v3871 = vrot.slane %v3870, 2
        %v3872 = vrot.slane %v3448, 7
        %v3873 = vrot.slane %v3872, 2
        %v3874 = vrot.slane %v3560, 7
        %v3875 = vrot.slane %v3874, 2
        %v3876 = vrot.slane %v3561, 7
        %v3877 = vrot.slane %v3876, 2
        %v3878 = vrot.slane %v3562, 7
        %v3879 = vrot.slane %v3878, 2
        %v3880 = vrot.slane %v3449, 7
        %v3881 = vrot.slane %v3880, 2
        %v3882 = vrot.slane %v3563, 7
        %v3883 = vrot.slane %v3882, 2
        %v3884 = vrot.slane %v3564, 7
        %v3885 = vrot.slane %v3884, 2
        %v3886 = vrot.slane %v3565, 7
        %v3887 = vrot.slane %v3886, 2
        %v3888 = vrot.slane %v3450, 7
        %v3889 = vrot.slane %v3888, 2
        %v3890 = vrot.slane %v3566, 7
        %v3891 = vrot.slane %v3890, 2
        %v3892 = vrot.slane %v3567, 7
        %v3893 = vrot.slane %v3892, 2
        %v3894 = vrot.slane %v3568, 7
        %v3895 = vrot.slane %v3894, 2
        %v3896 = vrot.slane %v3451, 7
        %v3897 = vrot.slane %v3896, 2
        %v3898 = vrot.slane %v3569, 7
        %v3899 = vrot.slane %v3898, 2
        %v3900 = vrot.slane %v3570, 7
        %v3901 = vrot.slane %v3900, 2
        %v3902 = vrot.slane %v3571, 7
        %v3903 = vrot.slane %v3902, 2
        %v3904 = vrot.slane %v3452, 7
        %v3905 = vrot.slane %v3904, 2
        %v3906 = vrot.slane %v3572, 7
        %v3907 = vrot.slane %v3906, 2
        %v3908 = vrot.slane %v3573, 7
        %v3909 = vrot.slane %v3908, 2
        %v3910 = vrot.slane %v3574, 7
        %v3911 = vrot.slane %v3910, 2
        %v3912 = vrot.slane %v3453, 7
        %v3913 = vrot.slane %v3912, 2
        %v3914 = vrot.slane %v3575, 7
        %v3915 = vrot.slane %v3914, 2
        %v3916 = vrot.slane %v3576, 7
        %v3917 = vrot.slane %v3916, 2
        %v3918 = vrot.slane %v3577, 7
        %v3919 = vrot.slane %v3918, 2
        %v3920 = vrot.slane %v3454, 7
        %v3921 = vrot.slane %v3920, 2
        %v3922 = vrot.slane %v3578, 7
        %v3923 = vrot.slane %v3922, 2
        %v3924 = vrot.slane %v3579, 7
        %v3925 = vrot.slane %v3924, 2
        %v3926 = vrot.slane %v3580, 7
        %v3927 = vrot.slane %v3926, 2
        %v3928 = vrot.slane %v3455, 7
        %v3929 = vrot.slane %v3928, 2
        %v3930 = vrot.slane %v3581, 7
        %v3931 = vrot.slane %v3930, 2
        %v3932 = vrot.slane %v3582, 7
        %v3933 = vrot.slane %v3932, 2
        %v3934 = vrot.slane %v3583, 7
        %v3935 = vrot.slane %v3934, 2
        %v4064 = vmax.f32 %v3424, %v3681
        %v4065 = vmax.f32 %v3488, %v3683
        %v4066 = vmax.f32 %v3489, %v3685
        %v4067 = vmax.f32 %v3490, %v3687
        %v4068 = vmax.f32 %v3425, %v3689
        %v4069 = vmax.f32 %v3491, %v3691
        %v4070 = vmax.f32 %v3492, %v3693
        %v4071 = vmax.f32 %v3493, %v3695
        %v4072 = vmax.f32 %v3426, %v3697
        %v4073 = vmax.f32 %v3494, %v3699
        %v4074 = vmax.f32 %v3495, %v3701
        %v4075 = vmax.f32 %v3496, %v3703
        %v4076 = vmax.f32 %v3427, %v3705
        %v4077 = vmax.f32 %v3497, %v3707
        %v4078 = vmax.f32 %v3498, %v3709
        %v4079 = vmax.f32 %v3499, %v3711
        %v4080 = vmax.f32 %v3428, %v3713
        %v4081 = vmax.f32 %v3500, %v3715
        %v4082 = vmax.f32 %v3501, %v3717
        %v4083 = vmax.f32 %v3502, %v3719
        %v4084 = vmax.f32 %v3429, %v3721
        %v4085 = vmax.f32 %v3503, %v3723
        %v4086 = vmax.f32 %v3504, %v3725
        %v4087 = vmax.f32 %v3505, %v3727
        %v4088 = vmax.f32 %v3430, %v3729
        %v4089 = vmax.f32 %v3506, %v3731
        %v4090 = vmax.f32 %v3507, %v3733
        %v4091 = vmax.f32 %v3508, %v3735
        %v4092 = vmax.f32 %v3431, %v3737
        %v4093 = vmax.f32 %v3509, %v3739
        %v4094 = vmax.f32 %v3510, %v3741
        %v4095 = vmax.f32 %v3511, %v3743
        %v4096 = vmax.f32 %v3432, %v3745
        %v4097 = vmax.f32 %v3512, %v3747
        %v4098 = vmax.f32 %v3513, %v3749
        %v4099 = vmax.f32 %v3514, %v3751
        %v4100 = vmax.f32 %v3433, %v3753
        %v4101 = vmax.f32 %v3515, %v3755
        %v4102 = vmax.f32 %v3516, %v3757
        %v4103 = vmax.f32 %v3517, %v3759
        %v4104 = vmax.f32 %v3434, %v3761
        %v4105 = vmax.f32 %v3518, %v3763
        %v4106 = vmax.f32 %v3519, %v3765
        %v4107 = vmax.f32 %v3520, %v3767
        %v4108 = vmax.f32 %v3435, %v3769
        %v4109 = vmax.f32 %v3521, %v3771
        %v4110 = vmax.f32 %v3522, %v3773
        %v4111 = vmax.f32 %v3523, %v3775
        %v4112 = vmax.f32 %v3436, %v3777
        %v4113 = vmax.f32 %v3524, %v3779
        %v4114 = vmax.f32 %v3525, %v3781
        %v4115 = vmax.f32 %v3526, %v3783
        %v4116 = vmax.f32 %v3437, %v3785
        %v4117 = vmax.f32 %v3527, %v3787
        %v4118 = vmax.f32 %v3528, %v3789
        %v4119 = vmax.f32 %v3529, %v3791
        %v4120 = vmax.f32 %v3438, %v3793
        %v4121 = vmax.f32 %v3530, %v3795
        %v4122 = vmax.f32 %v3531, %v3797
        %v4123 = vmax.f32 %v3532, %v3799
        %v4124 = vmax.f32 %v3439, %v3801
        %v4125 = vmax.f32 %v3533, %v3803
        %v4126 = vmax.f32 %v3534, %v3805
        %v4127 = vmax.f32 %v3535, %v3807
        %v4128 = vmax.f32 %v3440, %v3809
        %v4129 = vmax.f32 %v3536, %v3811
        %v4130 = vmax.f32 %v3537, %v3813
        %v4131 = vmax.f32 %v3538, %v3815
        %v4132 = vmax.f32 %v3441, %v3817
        %v4133 = vmax.f32 %v3539, %v3819
        %v4134 = vmax.f32 %v3540, %v3821
        %v4135 = vmax.f32 %v3541, %v3823
        %v4136 = vmax.f32 %v3442, %v3825
        %v4137 = vmax.f32 %v3542, %v3827
        %v4138 = vmax.f32 %v3543, %v3829
        %v4139 = vmax.f32 %v3544, %v3831
        %v4140 = vmax.f32 %v3443, %v3833
        %v4141 = vmax.f32 %v3545, %v3835
        %v4142 = vmax.f32 %v3546, %v3837
        %v4143 = vmax.f32 %v3547, %v3839
        %v4144 = vmax.f32 %v3444, %v3841
        %v4145 = vmax.f32 %v3548, %v3843
        %v4146 = vmax.f32 %v3549, %v3845
        %v4147 = vmax.f32 %v3550, %v3847
        %v4148 = vmax.f32 %v3445, %v3849
        %v4149 = vmax.f32 %v3551, %v3851
        %v4150 = vmax.f32 %v3552, %v3853
        %v4151 = vmax.f32 %v3553, %v3855
        %v4152 = vmax.f32 %v3446, %v3857
        %v4153 = vmax.f32 %v3554, %v3859
        %v4154 = vmax.f32 %v3555, %v3861
        %v4155 = vmax.f32 %v3556, %v3863
        %v4156 = vmax.f32 %v3447, %v3865
        %v4157 = vmax.f32 %v3557, %v3867
        %v4158 = vmax.f32 %v3558, %v3869
        %v4159 = vmax.f32 %v3559, %v3871
        %v4160 = vmax.f32 %v3448, %v3873
        %v4161 = vmax.f32 %v3560, %v3875
        %v4162 = vmax.f32 %v3561, %v3877
        %v4163 = vmax.f32 %v3562, %v3879
        %v4164 = vmax.f32 %v3449, %v3881
        %v4165 = vmax.f32 %v3563, %v3883
        %v4166 = vmax.f32 %v3564, %v3885
        %v4167 = vmax.f32 %v3565, %v3887
        %v4168 = vmax.f32 %v3450, %v3889
        %v4169 = vmax.f32 %v3566, %v3891
        %v4170 = vmax.f32 %v3567, %v3893
        %v4171 = vmax.f32 %v3568, %v3895
        %v4172 = vmax.f32 %v3451, %v3897
        %v4173 = vmax.f32 %v3569, %v3899
        %v4174 = vmax.f32 %v3570, %v3901
        %v4175 = vmax.f32 %v3571, %v3903
        %v4176 = vmax.f32 %v3452, %v3905
        %v4177 = vmax.f32 %v3572, %v3907
        %v4178 = vmax.f32 %v3573, %v3909
        %v4179 = vmax.f32 %v3574, %v3911
        %v4180 = vmax.f32 %v3453, %v3913
        %v4181 = vmax.f32 %v3575, %v3915
        %v4182 = vmax.f32 %v3576, %v3917
        %v4183 = vmax.f32 %v3577, %v3919
        %v4184 = vmax.f32 %v3454, %v3921
        %v4185 = vmax.f32 %v3578, %v3923
        %v4186 = vmax.f32 %v3579, %v3925
        %v4187 = vmax.f32 %v3580, %v3927
        %v4188 = vmax.f32 %v3455, %v3929
        %v4189 = vmax.f32 %v3581, %v3931
        %v4190 = vmax.f32 %v3582, %v3933
        %v4191 = vmax.f32 %v3583, %v3935
        %vm4192 = vcmask 261120
        %4193 = vst.msk [vmem:[#allocation3] sm:$0xff] %vm4192, 0.0
        %vm4194 = vcmask 254976
        %4195 = vst.msk [vmem:[#allocation3 + $0x8] sm:$0x3] %vm4194, 0.0
        %4196 = vst.msk [vmem:[#allocation3 + $0x10] sm:$0xff] %vm4192, 0.0
        %4197 = vst.msk [vmem:[#allocation3 + $0x18] sm:$0x3] %vm4194, 0.0
        %4198 = vst.msk [vmem:[#allocation3 + $0x20] sm:$0xff] %vm4192, 0.0
        %4199 = vst.msk [vmem:[#allocation3 + $0x28] sm:$0x3] %vm4194, 0.0
        %4200 = vst.msk [vmem:[#allocation3 + $0x30] sm:$0xff] %vm4192, 0.0
        %4201 = vst.msk [vmem:[#allocation3 + $0x38] sm:$0x3] %vm4194, 0.0
        %4202 = vst.msk [vmem:[#allocation3 + $0x40] sm:$0xff] %vm4192, 0.0
        %4203 = vst.msk [vmem:[#allocation3 + $0x48] sm:$0x3] %vm4194, 0.0
        %4204 = vst.msk [vmem:[#allocation3 + $0x50] sm:$0xff] %vm4192, 0.0
        %4205 = vst.msk [vmem:[#allocation3 + $0x58] sm:$0x3] %vm4194, 0.0
        %4206 = vst.msk [vmem:[#allocation3 + $0x60] sm:$0xff] %vm4192, 0.0
        %4207 = vst.msk [vmem:[#allocation3 + $0x68] sm:$0x3] %vm4194, 0.0
        %4208 = vst.msk [vmem:[#allocation3 + $0x70] sm:$0xff] %vm4192, 0.0
        %4209 = vst.msk [vmem:[#allocation3 + $0x78] sm:$0x3] %vm4194, 0.0
        %4210 = vst.msk [vmem:[#allocation3 + $0x80] sm:$0xff] %vm4192, 0.0
        %4211 = vst.msk [vmem:[#allocation3 + $0x88] sm:$0x3] %vm4194, 0.0
        %4212 = vst.msk [vmem:[#allocation3 + $0x90] sm:$0xff] %vm4192, 0.0
        %4213 = vst.msk [vmem:[#allocation3 + $0x98] sm:$0x3] %vm4194, 0.0
        %4214 = vst.msk [vmem:[#allocation3 + $0xa0] sm:$0xff] %vm4192, 0.0
        %4215 = vst.msk [vmem:[#allocation3 + $0xa8] sm:$0x3] %vm4194, 0.0
        %4216 = vst.msk [vmem:[#allocation3 + $0xb0] sm:$0xff] %vm4192, 0.0
        %4217 = vst.msk [vmem:[#allocation3 + $0xb8] sm:$0x3] %vm4194, 0.0
        %4218 = vst.msk [vmem:[#allocation3 + $0xc0] sm:$0xff] %vm4192, 0.0
        %4219 = vst.msk [vmem:[#allocation3 + $0xc8] sm:$0x3] %vm4194, 0.0
        %4220 = vst.msk [vmem:[#allocation3 + $0xd0] sm:$0xff] %vm4192, 0.0
        %4221 = vst.msk [vmem:[#allocation3 + $0xd8] sm:$0x3] %vm4194, 0.0
        %4222 = vst.msk [vmem:[#allocation3 + $0xe0] sm:$0xff] %vm4192, 0.0
        %4223 = vst.msk [vmem:[#allocation3 + $0xe8] sm:$0x3] %vm4194, 0.0
        %4224 = vst.msk [vmem:[#allocation3 + $0xf0] sm:$0xff] %vm4192, 0.0
        %4225 = vst.msk [vmem:[#allocation3 + $0xf8] sm:$0x3] %vm4194, 0.0
        %4226 = vst.msk [vmem:[#allocation3 + $0x100] sm:$0xff] %vm4192, 0.0
        %4227 = vst.msk [vmem:[#allocation3 + $0x108] sm:$0x3] %vm4194, 0.0
        %4228 = vst.msk [vmem:[#allocation3 + $0x110] sm:$0xff] %vm4192, 0.0
        %4229 = vst.msk [vmem:[#allocation3 + $0x118] sm:$0x3] %vm4194, 0.0
        %4230 = vst.msk [vmem:[#allocation3 + $0x120] sm:$0xff] %vm4192, 0.0
        %4231 = vst.msk [vmem:[#allocation3 + $0x128] sm:$0x3] %vm4194, 0.0
        %4232 = vst.msk [vmem:[#allocation3 + $0x130] sm:$0xff] %vm4192, 0.0
        %4233 = vst.msk [vmem:[#allocation3 + $0x138] sm:$0x3] %vm4194, 0.0
        %v4362 = vperm.slane %v4064, 0
        %v4363 = vperm.slane %v4065, 0
        %v4364 = vperm.slane %v4066, 0
        %v4365 = vperm.slane %v4067, 0
        %v4366 = vperm.slane %v4068, 0
        %v4367 = vperm.slane %v4069, 0
        %v4368 = vperm.slane %v4070, 0
        %v4369 = vperm.slane %v4071, 0
        %v4370 = vperm.slane %v4072, 0
        %v4371 = vperm.slane %v4073, 0
        %v4372 = vperm.slane %v4074, 0
        %v4373 = vperm.slane %v4075, 0
        %v4374 = vperm.slane %v4076, 0
        %v4375 = vperm.slane %v4077, 0
        %v4376 = vperm.slane %v4078, 0
        %v4377 = vperm.slane %v4079, 0
        %v4378 = vperm.slane %v4080, 0
        %v4379 = vperm.slane %v4081, 0
        %v4380 = vperm.slane %v4082, 0
        %v4381 = vperm.slane %v4083, 0
        %v4382 = vperm.slane %v4084, 0
        %v4383 = vperm.slane %v4085, 0
        %v4384 = vperm.slane %v4086, 0
        %v4385 = vperm.slane %v4087, 0
        %v4386 = vperm.slane %v4088, 0
        %v4387 = vperm.slane %v4089, 0
        %v4388 = vperm.slane %v4090, 0
        %v4389 = vperm.slane %v4091, 0
        %v4390 = vperm.slane %v4092, 0
        %v4391 = vperm.slane %v4093, 0
        %v4392 = vperm.slane %v4094, 0
        %v4393 = vperm.slane %v4095, 0
        %v4394 = vperm.slane %v4096, 0
        %v4395 = vperm.slane %v4097, 0
        %v4396 = vperm.slane %v4098, 0
        %v4397 = vperm.slane %v4099, 0
        %v4398 = vperm.slane %v4100, 0
        %v4399 = vperm.slane %v4101, 0
        %v4400 = vperm.slane %v4102, 0
        %v4401 = vperm.slane %v4103, 0
        %v4402 = vperm.slane %v4104, 0
        %v4403 = vperm.slane %v4105, 0
        %v4404 = vperm.slane %v4106, 0
        %v4405 = vperm.slane %v4107, 0
        %v4406 = vperm.slane %v4108, 0
        %v4407 = vperm.slane %v4109, 0
        %v4408 = vperm.slane %v4110, 0
        %v4409 = vperm.slane %v4111, 0
        %v4410 = vperm.slane %v4112, 0
        %v4411 = vperm.slane %v4113, 0
        %v4412 = vperm.slane %v4114, 0
        %v4413 = vperm.slane %v4115, 0
        %v4414 = vperm.slane %v4116, 0
        %v4415 = vperm.slane %v4117, 0
        %v4416 = vperm.slane %v4118, 0
        %v4417 = vperm.slane %v4119, 0
        %v4418 = vperm.slane %v4120, 0
        %v4419 = vperm.slane %v4121, 0
        %v4420 = vperm.slane %v4122, 0
        %v4421 = vperm.slane %v4123, 0
        %v4422 = vperm.slane %v4124, 0
        %v4423 = vperm.slane %v4125, 0
        %v4424 = vperm.slane %v4126, 0
        %v4425 = vperm.slane %v4127, 0
        %v4426 = vperm.slane %v4128, 0
        %v4427 = vperm.slane %v4129, 0
        %v4428 = vperm.slane %v4130, 0
        %v4429 = vperm.slane %v4131, 0
        %v4430 = vperm.slane %v4132, 0
        %v4431 = vperm.slane %v4133, 0
        %v4432 = vperm.slane %v4134, 0
        %v4433 = vperm.slane %v4135, 0
        %v4434 = vperm.slane %v4136, 0
        %v4435 = vperm.slane %v4137, 0
        %v4436 = vperm.slane %v4138, 0
        %v4437 = vperm.slane %v4139, 0
        %v4438 = vperm.slane %v4140, 0
        %v4439 = vperm.slane %v4141, 0
        %v4440 = vperm.slane %v4142, 0
        %v4441 = vperm.slane %v4143, 0
        %v4442 = vperm.slane %v4144, 0
        %v4443 = vperm.slane %v4145, 0
        %v4444 = vperm.slane %v4146, 0
        %v4445 = vperm.slane %v4147, 0
        %v4446 = vperm.slane %v4148, 0
        %v4447 = vperm.slane %v4149, 0
        %v4448 = vperm.slane %v4150, 0
        %v4449 = vperm.slane %v4151, 0
        %v4450 = vperm.slane %v4152, 0
        %v4451 = vperm.slane %v4153, 0
        %v4452 = vperm.slane %v4154, 0
        %v4453 = vperm.slane %v4155, 0
        %v4454 = vperm.slane %v4156, 0
        %v4455 = vperm.slane %v4157, 0
        %v4456 = vperm.slane %v4158, 0
        %v4457 = vperm.slane %v4159, 0
        %v4458 = vperm.slane %v4160, 0
        %v4459 = vperm.slane %v4161, 0
        %v4460 = vperm.slane %v4162, 0
        %v4461 = vperm.slane %v4163, 0
        %v4462 = vperm.slane %v4164, 0
        %v4463 = vperm.slane %v4165, 0
        %v4464 = vperm.slane %v4166, 0
        %v4465 = vperm.slane %v4167, 0
        %v4466 = vperm.slane %v4168, 0
        %v4467 = vperm.slane %v4169, 0
        %v4468 = vperm.slane %v4170, 0
        %v4469 = vperm.slane %v4171, 0
        %v4470 = vperm.slane %v4172, 0
        %v4471 = vperm.slane %v4173, 0
        %v4472 = vperm.slane %v4174, 0
        %v4473 = vperm.slane %v4175, 0
        %v4474 = vperm.slane %v4176, 0
        %v4475 = vperm.slane %v4177, 0
        %v4476 = vperm.slane %v4178, 0
        %v4477 = vperm.slane %v4179, 0
        %v4478 = vperm.slane %v4180, 0
        %v4479 = vperm.slane %v4181, 0
        %v4480 = vperm.slane %v4182, 0
        %v4481 = vperm.slane %v4183, 0
        %v4482 = vperm.slane %v4184, 0
        %v4483 = vperm.slane %v4185, 0
        %v4484 = vperm.slane %v4186, 0
        %v4485 = vperm.slane %v4187, 0
        %v4486 = vperm.slane %v4188, 0
        %v4487 = vperm.slane %v4189, 0
        %v4488 = vperm.slane %v4190, 0
        %v4489 = vperm.slane %v4191, 0
        %vm4490 = vcmask 1041409
        %v4491 = vsel %vm4490, %v4363, %v4362
        %vm4492 = vcmask 1042434
        %v4493 = vsel %vm4492, %v4364, %v4491
        %vm4494 = vcmask 1043459
        %v4495 = vsel %vm4494, %v4365, %v4493
        %vm4496 = vcmask 1044484
        %v4497 = vsel %vm4496, %v4366, %v4495
        %vm4498 = vcmask 1045509
        %v4499 = vsel %vm4498, %v4367, %v4497
        %vm4500 = vcmask 1046534
        %v4501 = vsel %vm4500, %v4368, %v4499
        %vm4502 = vcmask 1047559
        %v4503 = vsel %vm4502, %v4369, %v4501
        %v4504 = vsel %vm4490, %v4371, %v4370
        %v4505 = vsel %vm4492, %v4372, %v4504
        %v4506 = vsel %vm4494, %v4373, %v4505
        %v4507 = vsel %vm4496, %v4374, %v4506
        %v4508 = vsel %vm4498, %v4375, %v4507
        %v4509 = vsel %vm4500, %v4376, %v4508
        %v4510 = vsel %vm4502, %v4377, %v4509
        %v4511 = vsel %vm4490, %v4379, %v4378
        %v4512 = vsel %vm4492, %v4380, %v4511
        %v4513 = vsel %vm4494, %v4381, %v4512
        %v4514 = vsel %vm4496, %v4382, %v4513
        %v4515 = vsel %vm4498, %v4383, %v4514
        %v4516 = vsel %vm4500, %v4384, %v4515
        %v4517 = vsel %vm4502, %v4385, %v4516
        %v4518 = vsel %vm4490, %v4387, %v4386
        %v4519 = vsel %vm4492, %v4388, %v4518
        %v4520 = vsel %vm4494, %v4389, %v4519
        %v4521 = vsel %vm4496, %v4390, %v4520
        %v4522 = vsel %vm4498, %v4391, %v4521
        %v4523 = vsel %vm4500, %v4392, %v4522
        %v4524 = vsel %vm4502, %v4393, %v4523
        %v4525 = vsel %vm4490, %v4395, %v4394
        %v4526 = vsel %vm4492, %v4396, %v4525
        %v4527 = vsel %vm4494, %v4397, %v4526
        %v4528 = vsel %vm4496, %v4398, %v4527
        %v4529 = vsel %vm4498, %v4399, %v4528
        %v4530 = vsel %vm4500, %v4400, %v4529
        %v4531 = vsel %vm4502, %v4401, %v4530
        %v4532 = vsel %vm4490, %v4403, %v4402
        %v4533 = vsel %vm4492, %v4404, %v4532
        %v4534 = vsel %vm4494, %v4405, %v4533
        %v4535 = vsel %vm4496, %v4406, %v4534
        %v4536 = vsel %vm4498, %v4407, %v4535
        %v4537 = vsel %vm4500, %v4408, %v4536
        %v4538 = vsel %vm4502, %v4409, %v4537
        %v4539 = vsel %vm4490, %v4411, %v4410
        %v4540 = vsel %vm4492, %v4412, %v4539
        %v4541 = vsel %vm4494, %v4413, %v4540
        %v4542 = vsel %vm4496, %v4414, %v4541
        %v4543 = vsel %vm4498, %v4415, %v4542
        %v4544 = vsel %vm4500, %v4416, %v4543
        %v4545 = vsel %vm4502, %v4417, %v4544
        %v4546 = vsel %vm4490, %v4419, %v4418
        %v4547 = vsel %vm4492, %v4420, %v4546
        %v4548 = vsel %vm4494, %v4421, %v4547
        %v4549 = vsel %vm4496, %v4422, %v4548
        %v4550 = vsel %vm4498, %v4423, %v4549
        %v4551 = vsel %vm4500, %v4424, %v4550
        %v4552 = vsel %vm4502, %v4425, %v4551
        %v4553 = vsel %vm4490, %v4427, %v4426
        %v4554 = vsel %vm4492, %v4428, %v4553
        %v4555 = vsel %vm4494, %v4429, %v4554
        %v4556 = vsel %vm4496, %v4430, %v4555
        %v4557 = vsel %vm4498, %v4431, %v4556
        %v4558 = vsel %vm4500, %v4432, %v4557
        %v4559 = vsel %vm4502, %v4433, %v4558
        %v4560 = vsel %vm4490, %v4435, %v4434
        %v4561 = vsel %vm4492, %v4436, %v4560
        %v4562 = vsel %vm4494, %v4437, %v4561
        %v4563 = vsel %vm4496, %v4438, %v4562
        %v4564 = vsel %vm4498, %v4439, %v4563
        %v4565 = vsel %vm4500, %v4440, %v4564
        %v4566 = vsel %vm4502, %v4441, %v4565
        %v4567 = vsel %vm4490, %v4443, %v4442
        %v4568 = vsel %vm4492, %v4444, %v4567
        %v4569 = vsel %vm4494, %v4445, %v4568
        %v4570 = vsel %vm4496, %v4446, %v4569
        %v4571 = vsel %vm4498, %v4447, %v4570
        %v4572 = vsel %vm4500, %v4448, %v4571
        %v4573 = vsel %vm4502, %v4449, %v4572
        %v4574 = vsel %vm4490, %v4451, %v4450
        %v4575 = vsel %vm4492, %v4452, %v4574
        %v4576 = vsel %vm4494, %v4453, %v4575
        %v4577 = vsel %vm4496, %v4454, %v4576
        %v4578 = vsel %vm4498, %v4455, %v4577
        %v4579 = vsel %vm4500, %v4456, %v4578
        %v4580 = vsel %vm4502, %v4457, %v4579
        %v4581 = vsel %vm4490, %v4459, %v4458
        %v4582 = vsel %vm4492, %v4460, %v4581
        %v4583 = vsel %vm4494, %v4461, %v4582
        %v4584 = vsel %vm4496, %v4462, %v4583
        %v4585 = vsel %vm4498, %v4463, %v4584
        %v4586 = vsel %vm4500, %v4464, %v4585
        %v4587 = vsel %vm4502, %v4465, %v4586
        %v4588 = vsel %vm4490, %v4467, %v4466
        %v4589 = vsel %vm4492, %v4468, %v4588
        %v4590 = vsel %vm4494, %v4469, %v4589
        %v4591 = vsel %vm4496, %v4470, %v4590
        %v4592 = vsel %vm4498, %v4471, %v4591
        %v4593 = vsel %vm4500, %v4472, %v4592
        %v4594 = vsel %vm4502, %v4473, %v4593
        %v4595 = vsel %vm4490, %v4475, %v4474
        %v4596 = vsel %vm4492, %v4476, %v4595
        %v4597 = vsel %vm4494, %v4477, %v4596
        %v4598 = vsel %vm4496, %v4478, %v4597
        %v4599 = vsel %vm4498, %v4479, %v4598
        %v4600 = vsel %vm4500, %v4480, %v4599
        %v4601 = vsel %vm4502, %v4481, %v4600
        %v4602 = vsel %vm4490, %v4483, %v4482
        %v4603 = vsel %vm4492, %v4484, %v4602
        %v4604 = vsel %vm4494, %v4485, %v4603
        %v4605 = vsel %vm4496, %v4486, %v4604
        %v4606 = vsel %vm4498, %v4487, %v4605
        %v4607 = vsel %vm4500, %v4488, %v4606
        %v4608 = vsel %vm4502, %v4489, %v4607
        %s4625 = scalar_lea.vmem [#allocation3], 16
        %4626 = vst.msk [vmem:[%s4625 + $0x1] sm:$0xff] %vm4192, %v4503
        %4627 = vst.msk [vmem:[%s4625 + $0x11] sm:$0xff] %vm4192, %v4510
        %4628 = vst.msk [vmem:[%s4625 + $0x21] sm:$0xff] %vm4192, %v4517
        %4629 = vst.msk [vmem:[%s4625 + $0x31] sm:$0xff] %vm4192, %v4524
        %4630 = vst.msk [vmem:[%s4625 + $0x41] sm:$0xff] %vm4192, %v4531
        %4631 = vst.msk [vmem:[%s4625 + $0x51] sm:$0xff] %vm4192, %v4538
        %4632 = vst.msk [vmem:[%s4625 + $0x61] sm:$0xff] %vm4192, %v4545
        %4633 = vst.msk [vmem:[%s4625 + $0x71] sm:$0xff] %vm4192, %v4552
        %4634 = vst.msk [vmem:[%s4625 + $0xa1] sm:$0xff] %vm4192, %v4559
        %4635 = vst.msk [vmem:[%s4625 + $0xb1] sm:$0xff] %vm4192, %v4566
        %4636 = vst.msk [vmem:[%s4625 + $0xc1] sm:$0xff] %vm4192, %v4573
        %4637 = vst.msk [vmem:[%s4625 + $0xd1] sm:$0xff] %vm4192, %v4580
        %4638 = vst.msk [vmem:[%s4625 + $0xe1] sm:$0xff] %vm4192, %v4587
        %4639 = vst.msk [vmem:[%s4625 + $0xf1] sm:$0xff] %vm4192, %v4594
        %4640 = vst.msk [vmem:[%s4625 + $0x101] sm:$0xff] %vm4192, %v4601
        %4641 = vst.msk [vmem:[%s4625 + $0x111] sm:$0xff] %vm4192, %v4608
        %v4642 = vld [vmem:[#allocation3] sm:$0xff]
        %v4643 = vld [vmem:[#allocation3 + $0x8] sm:$0x3]
        %v4644 = vld [vmem:[#allocation3 + $0x10] sm:$0xff]
        %v4645 = vld [vmem:[#allocation3 + $0x18] sm:$0x3]
        %v4646 = vld [vmem:[#allocation3 + $0x20] sm:$0xff]
        %v4647 = vld [vmem:[#allocation3 + $0x28] sm:$0x3]
        %v4648 = vld [vmem:[#allocation3 + $0x30] sm:$0xff]
        %v4649 = vld [vmem:[#allocation3 + $0x38] sm:$0x3]
        %v4650 = vld [vmem:[#allocation3 + $0x40] sm:$0xff]
        %v4651 = vld [vmem:[#allocation3 + $0x48] sm:$0x3]
        %v4652 = vld [vmem:[#allocation3 + $0x50] sm:$0xff]
        %v4653 = vld [vmem:[#allocation3 + $0x58] sm:$0x3]
        %v4654 = vld [vmem:[#allocation3 + $0x60] sm:$0xff]
        %v4655 = vld [vmem:[#allocation3 + $0x68] sm:$0x3]
        %v4656 = vld [vmem:[#allocation3 + $0x70] sm:$0xff]
        %v4657 = vld [vmem:[#allocation3 + $0x78] sm:$0x3]
        %v4658 = vld [vmem:[#allocation3 + $0x80] sm:$0xff]
        %v4659 = vld [vmem:[#allocation3 + $0x88] sm:$0x3]
        %v4660 = vld [vmem:[#allocation3 + $0x90] sm:$0xff]
        %v4661 = vld [vmem:[#allocation3 + $0x98] sm:$0x3]
        %v4662 = vld [vmem:[#allocation3 + $0xa0] sm:$0xff]
        %v4663 = vld [vmem:[#allocation3 + $0xa8] sm:$0x3]
        %v4664 = vld [vmem:[#allocation3 + $0xb0] sm:$0xff]
        %v4665 = vld [vmem:[#allocation3 + $0xb8] sm:$0x3]
        %v4666 = vld [vmem:[#allocation3 + $0xc0] sm:$0xff]
        %v4667 = vld [vmem:[#allocation3 + $0xc8] sm:$0x3]
        %v4668 = vld [vmem:[#allocation3 + $0xd0] sm:$0xff]
        %v4669 = vld [vmem:[#allocation3 + $0xd8] sm:$0x3]
        %v4670 = vld [vmem:[#allocation3 + $0xe0] sm:$0xff]
        %v4671 = vld [vmem:[#allocation3 + $0xe8] sm:$0x3]
        %v4672 = vld [vmem:[#allocation3 + $0xf0] sm:$0xff]
        %v4673 = vld [vmem:[#allocation3 + $0xf8] sm:$0x3]
        %v4674 = vld [vmem:[#allocation3 + $0x100] sm:$0xff]
        %v4675 = vld [vmem:[#allocation3 + $0x108] sm:$0x3]
        %v4676 = vld [vmem:[#allocation3 + $0x110] sm:$0xff]
        %v4677 = vld [vmem:[#allocation3 + $0x118] sm:$0x3]
        %v4678 = vld [vmem:[#allocation3 + $0x120] sm:$0xff]
        %v4679 = vld [vmem:[#allocation3 + $0x128] sm:$0x3]
        %v4680 = vld [vmem:[#allocation3 + $0x130] sm:$0xff]
        %v4681 = vld [vmem:[#allocation3 + $0x138] sm:$0x3]
        %v4682 = vld [vmem:[#allocation8] sm:$0xff]
        %v4683 = vld [vmem:[#allocation8 + $0x8] sm:$0xff]
        %v4684 = vld [vmem:[#allocation8 + $0x10] sm:$0xff]
        %v4685 = vld [vmem:[#allocation8 + $0x18] sm:$0xff]
        %v4718 = vrot.slane %v4642, 1
        %v4719 = vrot.slane %v4643, 1
        %v4720 = vsel %vm1270, %v4718, %v4719
        %v4721 = vrot.slane %v4644, 1
        %v4722 = vrot.slane %v4645, 1
        %v4723 = vsel %vm1270, %v4721, %v4722
        %v4724 = vrot.slane %v4646, 1
        %v4725 = vrot.slane %v4647, 1
        %v4726 = vsel %vm1270, %v4724, %v4725
        %v4727 = vrot.slane %v4648, 1
        %v4728 = vrot.slane %v4649, 1
        %v4729 = vsel %vm1270, %v4727, %v4728
        %v4730 = vrot.slane %v4650, 1
        %v4731 = vrot.slane %v4651, 1
        %v4732 = vsel %vm1270, %v4730, %v4731
        %v4733 = vrot.slane %v4652, 1
        %v4734 = vrot.slane %v4653, 1
        %v4735 = vsel %vm1270, %v4733, %v4734
        %v4736 = vrot.slane %v4654, 1
        %v4737 = vrot.slane %v4655, 1
        %v4738 = vsel %vm1270, %v4736, %v4737
        %v4739 = vrot.slane %v4656, 1
        %v4740 = vrot.slane %v4657, 1
        %v4741 = vsel %vm1270, %v4739, %v4740
        %v4742 = vrot.slane %v4662, 1
        %v4743 = vrot.slane %v4663, 1
        %v4744 = vsel %vm1270, %v4742, %v4743
        %v4745 = vrot.slane %v4664, 1
        %v4746 = vrot.slane %v4665, 1
        %v4747 = vsel %vm1270, %v4745, %v4746
        %v4748 = vrot.slane %v4666, 1
        %v4749 = vrot.slane %v4667, 1
        %v4750 = vsel %vm1270, %v4748, %v4749
        %v4751 = vrot.slane %v4668, 1
        %v4752 = vrot.slane %v4669, 1
        %v4753 = vsel %vm1270, %v4751, %v4752
        %v4754 = vrot.slane %v4670, 1
        %v4755 = vrot.slane %v4671, 1
        %v4756 = vsel %vm1270, %v4754, %v4755
        %v4757 = vrot.slane %v4672, 1
        %v4758 = vrot.slane %v4673, 1
        %v4759 = vsel %vm1270, %v4757, %v4758
        %v4760 = vrot.slane %v4674, 1
        %v4761 = vrot.slane %v4675, 1
        %v4762 = vsel %vm1270, %v4760, %v4761
        %v4763 = vrot.slane %v4676, 1
        %v4764 = vrot.slane %v4677, 1
        %v4765 = vsel %vm1270, %v4763, %v4764
        %s4766 = scalar_lea.vmem [#allocation8], 32
        %v4767 = vld [vmem:[%s4766] sm:$0xff]
        %v4768 = vld [vmem:[%s4766 + $0x8] sm:$0xff]
        %v4769 = vld [vmem:[%s4766 + $0x10] sm:$0xff]
        %v4770 = vld [vmem:[%s4766 + $0x18] sm:$0xff]
        %v4771 = vsel %vm4192, %v4720, 0
        %v4773 = vsel %vm4192, %v4723, 0
        %v4775 = vsel %vm4192, %v4726, 0
        %v4777 = vsel %vm4192, %v4729, 0
        %v4779 = vsel %vm4192, %v4732, 0
        %v4781 = vsel %vm4192, %v4735, 0
        %v4783 = vsel %vm4192, %v4738, 0
        %v4785 = vsel %vm4192, %v4741, 0
        %v4787 = vsel %vm4192, %v4744, 0
        %v4789 = vsel %vm4192, %v4747, 0
        %v4791 = vsel %vm4192, %v4750, 0
        %v4793 = vsel %vm4192, %v4753, 0
        %v4795 = vsel %vm4192, %v4756, 0
        %v4797 = vsel %vm4192, %v4759, 0
        %v4799 = vsel %vm4192, %v4762, 0
        %v4801 = vsel %vm4192, %v4765, 0
        %4803 = vmatpush.msra.mxu0 0.0
        %4804 = vmatpush.msra.mxu0 0.0
        %4805 = vmatpush.msra.mxu0 0.0
        %4806 = vmatpush.msra.mxu0 0.0
        %4807 = vmatpush.msra.mxu0 0.0
        %4808 = vmatpush.msra.mxu0 0.0
        %4809 = vmatpush.msra.mxu0 0.0
        %4810 = vmatpush.msra.mxu0 0.0
        %4811 = vmatpush.msra.mxu0 0.0
        %4812 = vmatpush.msra.mxu0 0.0
        %4813 = vmatpush.msra.mxu0 0.0
        %4814 = vmatpush.msra.mxu0 0.0
        %4815 = vmatpush.msra.mxu0 %v4770
        %4816 = vmatpush.msra.mxu0 %v4769
        %4817 = vmatpush.msra.mxu0 %v4768
        %4818 = vmatpush.msra.mxu0 %v4767
        %4819 = vmatmul.f32.gmra.mxu0 %v4771
        %v4820 = vpop.f32.mrf.mxu0
        %v4821 = vadd.f32 0.0, %v4820
        %4822 = vmatmul.f32.gmra.mxu0 %v4773
        %v4823 = vpop.f32.mrf.mxu0
        %v4824 = vadd.f32 0.0, %v4823
        %4825 = vmatmul.f32.gmra.mxu0 %v4775
        %v4826 = vpop.f32.mrf.mxu0
        %v4827 = vadd.f32 0.0, %v4826
        %4828 = vmatmul.f32.gmra.mxu0 %v4777
        %v4829 = vpop.f32.mrf.mxu0
        %v4830 = vadd.f32 0.0, %v4829
        %4831 = vmatmul.f32.gmra.mxu0 %v4779
        %v4832 = vpop.f32.mrf.mxu0
        %v4833 = vadd.f32 0.0, %v4832
        %4834 = vmatmul.f32.gmra.mxu0 %v4781
        %v4835 = vpop.f32.mrf.mxu0
        %v4836 = vadd.f32 0.0, %v4835
        %4837 = vmatmul.f32.gmra.mxu0 %v4783
        %v4838 = vpop.f32.mrf.mxu0
        %v4839 = vadd.f32 0.0, %v4838
        %4840 = vmatmul.f32.gmra.mxu0 %v4785
        %v4841 = vpop.f32.mrf.mxu0
        %v4842 = vadd.f32 0.0, %v4841
        %4843 = vmatmul.f32.gmra.mxu0 %v4787
        %v4844 = vpop.f32.mrf.mxu0
        %v4845 = vadd.f32 0.0, %v4844
        %4846 = vmatmul.f32.gmra.mxu0 %v4789
        %v4847 = vpop.f32.mrf.mxu0
        %v4848 = vadd.f32 0.0, %v4847
        %4849 = vmatmul.f32.gmra.mxu0 %v4791
        %v4850 = vpop.f32.mrf.mxu0
        %v4851 = vadd.f32 0.0, %v4850
        %4852 = vmatmul.f32.gmra.mxu0 %v4793
        %v4853 = vpop.f32.mrf.mxu0
        %v4854 = vadd.f32 0.0, %v4853
        %4855 = vmatmul.f32.gmra.mxu0 %v4795
        %v4856 = vpop.f32.mrf.mxu0
        %v4857 = vadd.f32 0.0, %v4856
        %4858 = vmatmul.f32.gmra.mxu0 %v4797
        %v4859 = vpop.f32.mrf.mxu0
        %v4860 = vadd.f32 0.0, %v4859
        %4861 = vmatmul.f32.gmra.mxu0 %v4799
        %v4862 = vpop.f32.mrf.mxu0
        %v4863 = vadd.f32 0.0, %v4862
        %4864 = vmatmul.f32.gmra.mxu0 %v4801
        %v4865 = vpop.f32.mrf.mxu0
        %v4866 = vadd.f32 0.0, %v4865
        %4867 = vdwg.mxu0
        %v4868 = vsel %vm4192, %v4642, 0
        %v4870 = vsel %vm4192, %v4644, 0
        %v4872 = vsel %vm4192, %v4646, 0
        %v4874 = vsel %vm4192, %v4648, 0
        %v4876 = vsel %vm4192, %v4650, 0
        %v4878 = vsel %vm4192, %v4652, 0
        %v4880 = vsel %vm4192, %v4654, 0
        %v4882 = vsel %vm4192, %v4656, 0
        %v4884 = vsel %vm4192, %v4662, 0
        %v4886 = vsel %vm4192, %v4664, 0
        %v4888 = vsel %vm4192, %v4666, 0
        %v4890 = vsel %vm4192, %v4668, 0
        %v4892 = vsel %vm4192, %v4670, 0
        %v4894 = vsel %vm4192, %v4672, 0
        %v4896 = vsel %vm4192, %v4674, 0
        %v4898 = vsel %vm4192, %v4676, 0
        %4900 = vmatpush.msra.mxu0 0.0
        %4901 = vmatpush.msra.mxu0 0.0
        %4902 = vmatpush.msra.mxu0 0.0
        %4903 = vmatpush.msra.mxu0 0.0
        %4904 = vmatpush.msra.mxu0 0.0
        %4905 = vmatpush.msra.mxu0 0.0
        %4906 = vmatpush.msra.mxu0 0.0
        %4907 = vmatpush.msra.mxu0 0.0
        %4908 = vmatpush.msra.mxu0 0.0
        %4909 = vmatpush.msra.mxu0 0.0
        %4910 = vmatpush.msra.mxu0 0.0
        %4911 = vmatpush.msra.mxu0 0.0
        %4912 = vmatpush.msra.mxu0 %v4685
        %4913 = vmatpush.msra.mxu0 %v4684
        %4914 = vmatpush.msra.mxu0 %v4683
        %4915 = vmatpush.msra.mxu0 %v4682
        %4916 = vmatmul.f32.gmra.mxu0 %v4868
        %v4917 = vpop.f32.mrf.mxu0
        %v4918 = vadd.f32 %v4821, %v4917
        %4919 = vmatmul.f32.gmra.mxu0 %v4870
        %v4920 = vpop.f32.mrf.mxu0
        %v4921 = vadd.f32 %v4824, %v4920
        %4922 = vmatmul.f32.gmra.mxu0 %v4872
        %v4923 = vpop.f32.mrf.mxu0
        %v4924 = vadd.f32 %v4827, %v4923
        %4925 = vmatmul.f32.gmra.mxu0 %v4874
        %v4926 = vpop.f32.mrf.mxu0
        %v4927 = vadd.f32 %v4830, %v4926
        %4928 = vmatmul.f32.gmra.mxu0 %v4876
        %v4929 = vpop.f32.mrf.mxu0
        %v4930 = vadd.f32 %v4833, %v4929
        %4931 = vmatmul.f32.gmra.mxu0 %v4878
        %v4932 = vpop.f32.mrf.mxu0
        %v4933 = vadd.f32 %v4836, %v4932
        %4934 = vmatmul.f32.gmra.mxu0 %v4880
        %v4935 = vpop.f32.mrf.mxu0
        %v4936 = vadd.f32 %v4839, %v4935
        %4937 = vmatmul.f32.gmra.mxu0 %v4882
        %v4938 = vpop.f32.mrf.mxu0
        %v4939 = vadd.f32 %v4842, %v4938
        %4940 = vmatmul.f32.gmra.mxu0 %v4884
        %v4941 = vpop.f32.mrf.mxu0
        %v4942 = vadd.f32 %v4845, %v4941
        %4943 = vmatmul.f32.gmra.mxu0 %v4886
        %v4944 = vpop.f32.mrf.mxu0
        %v4945 = vadd.f32 %v4848, %v4944
        %4946 = vmatmul.f32.gmra.mxu0 %v4888
        %v4947 = vpop.f32.mrf.mxu0
        %v4948 = vadd.f32 %v4851, %v4947
        %4949 = vmatmul.f32.gmra.mxu0 %v4890
        %v4950 = vpop.f32.mrf.mxu0
        %v4951 = vadd.f32 %v4854, %v4950
        %4952 = vmatmul.f32.gmra.mxu0 %v4892
        %v4953 = vpop.f32.mrf.mxu0
        %v4954 = vadd.f32 %v4857, %v4953
        %4955 = vmatmul.f32.gmra.mxu0 %v4894
        %v4956 = vpop.f32.mrf.mxu0
        %v4957 = vadd.f32 %v4860, %v4956
        %4958 = vmatmul.f32.gmra.mxu0 %v4896
        %v4959 = vpop.f32.mrf.mxu0
        %v4960 = vadd.f32 %v4863, %v4959
        %4961 = vmatmul.f32.gmra.mxu0 %v4898
        %v4962 = vpop.f32.mrf.mxu0
        %v4963 = vadd.f32 %v4866, %v4962
        %4964 = vdwg.mxu0
        %v4965 = vrot.slane %v4642, 2
        %v4966 = vrot.slane %v4643, 2
        %v4967 = vsel %vm1817, %v4965, %v4966
        %v4968 = vrot.slane %v4644, 2
        %v4969 = vrot.slane %v4645, 2
        %v4970 = vsel %vm1817, %v4968, %v4969
        %v4971 = vrot.slane %v4646, 2
        %v4972 = vrot.slane %v4647, 2
        %v4973 = vsel %vm1817, %v4971, %v4972
        %v4974 = vrot.slane %v4648, 2
        %v4975 = vrot.slane %v4649, 2
        %v4976 = vsel %vm1817, %v4974, %v4975
        %v4977 = vrot.slane %v4650, 2
        %v4978 = vrot.slane %v4651, 2
        %v4979 = vsel %vm1817, %v4977, %v4978
        %v4980 = vrot.slane %v4652, 2
        %v4981 = vrot.slane %v4653, 2
        %v4982 = vsel %vm1817, %v4980, %v4981
        %v4983 = vrot.slane %v4654, 2
        %v4984 = vrot.slane %v4655, 2
        %v4985 = vsel %vm1817, %v4983, %v4984
        %v4986 = vrot.slane %v4656, 2
        %v4987 = vrot.slane %v4657, 2
        %v4988 = vsel %vm1817, %v4986, %v4987
        %v4989 = vrot.slane %v4662, 2
        %v4990 = vrot.slane %v4663, 2
        %v4991 = vsel %vm1817, %v4989, %v4990
        %v4992 = vrot.slane %v4664, 2
        %v4993 = vrot.slane %v4665, 2
        %v4994 = vsel %vm1817, %v4992, %v4993
        %v4995 = vrot.slane %v4666, 2
        %v4996 = vrot.slane %v4667, 2
        %v4997 = vsel %vm1817, %v4995, %v4996
        %v4998 = vrot.slane %v4668, 2
        %v4999 = vrot.slane %v4669, 2
        %v5000 = vsel %vm1817, %v4998, %v4999
        %v5001 = vrot.slane %v4670, 2
        %v5002 = vrot.slane %v4671, 2
        %v5003 = vsel %vm1817, %v5001, %v5002
        %v5004 = vrot.slane %v4672, 2
        %v5005 = vrot.slane %v4673, 2
        %v5006 = vsel %vm1817, %v5004, %v5005
        %v5007 = vrot.slane %v4674, 2
        %v5008 = vrot.slane %v4675, 2
        %v5009 = vsel %vm1817, %v5007, %v5008
        %v5010 = vrot.slane %v4676, 2
        %v5011 = vrot.slane %v4677, 2
        %v5012 = vsel %vm1817, %v5010, %v5011
        %s5013 = scalar_lea.vmem [#allocation8], 64
        %v5014 = vld [vmem:[%s5013] sm:$0xff]
        %v5015 = vld [vmem:[%s5013 + $0x8] sm:$0xff]
        %v5016 = vld [vmem:[%s5013 + $0x10] sm:$0xff]
        %v5017 = vld [vmem:[%s5013 + $0x18] sm:$0xff]
        %v5018 = vsel %vm4192, %v4967, 0
        %v5020 = vsel %vm4192, %v4970, 0
        %v5022 = vsel %vm4192, %v4973, 0
        %v5024 = vsel %vm4192, %v4976, 0
        %v5026 = vsel %vm4192, %v4979, 0
        %v5028 = vsel %vm4192, %v4982, 0
        %v5030 = vsel %vm4192, %v4985, 0
        %v5032 = vsel %vm4192, %v4988, 0
        %v5034 = vsel %vm4192, %v4991, 0
        %v5036 = vsel %vm4192, %v4994, 0
        %v5038 = vsel %vm4192, %v4997, 0
        %v5040 = vsel %vm4192, %v5000, 0
        %v5042 = vsel %vm4192, %v5003, 0
        %v5044 = vsel %vm4192, %v5006, 0
        %v5046 = vsel %vm4192, %v5009, 0
        %v5048 = vsel %vm4192, %v5012, 0
        %5050 = vmatpush.msra.mxu0 0.0
        %5051 = vmatpush.msra.mxu0 0.0
        %5052 = vmatpush.msra.mxu0 0.0
        %5053 = vmatpush.msra.mxu0 0.0
        %5054 = vmatpush.msra.mxu0 0.0
        %5055 = vmatpush.msra.mxu0 0.0
        %5056 = vmatpush.msra.mxu0 0.0
        %5057 = vmatpush.msra.mxu0 0.0
        %5058 = vmatpush.msra.mxu0 0.0
        %5059 = vmatpush.msra.mxu0 0.0
        %5060 = vmatpush.msra.mxu0 0.0
        %5061 = vmatpush.msra.mxu0 0.0
        %5062 = vmatpush.msra.mxu0 %v5017
        %5063 = vmatpush.msra.mxu0 %v5016
        %5064 = vmatpush.msra.mxu0 %v5015
        %5065 = vmatpush.msra.mxu0 %v5014
        %5066 = vmatmul.f32.gmra.mxu0 %v5018
        %v5067 = vpop.f32.mrf.mxu0
        %v5068 = vadd.f32 0.0, %v5067
        %5069 = vmatmul.f32.gmra.mxu0 %v5020
        %v5070 = vpop.f32.mrf.mxu0
        %v5071 = vadd.f32 0.0, %v5070
        %5072 = vmatmul.f32.gmra.mxu0 %v5022
        %v5073 = vpop.f32.mrf.mxu0
        %v5074 = vadd.f32 0.0, %v5073
        %5075 = vmatmul.f32.gmra.mxu0 %v5024
        %v5076 = vpop.f32.mrf.mxu0
        %v5077 = vadd.f32 0.0, %v5076
        %5078 = vmatmul.f32.gmra.mxu0 %v5026
        %v5079 = vpop.f32.mrf.mxu0
        %v5080 = vadd.f32 0.0, %v5079
        %5081 = vmatmul.f32.gmra.mxu0 %v5028
        %v5082 = vpop.f32.mrf.mxu0
        %v5083 = vadd.f32 0.0, %v5082
        %5084 = vmatmul.f32.gmra.mxu0 %v5030
        %v5085 = vpop.f32.mrf.mxu0
        %v5086 = vadd.f32 0.0, %v5085
        %5087 = vmatmul.f32.gmra.mxu0 %v5032
        %v5088 = vpop.f32.mrf.mxu0
        %v5089 = vadd.f32 0.0, %v5088
        %5090 = vmatmul.f32.gmra.mxu0 %v5034
        %v5091 = vpop.f32.mrf.mxu0
        %v5092 = vadd.f32 0.0, %v5091
        %5093 = vmatmul.f32.gmra.mxu0 %v5036
        %v5094 = vpop.f32.mrf.mxu0
        %v5095 = vadd.f32 0.0, %v5094
        %5096 = vmatmul.f32.gmra.mxu0 %v5038
        %v5097 = vpop.f32.mrf.mxu0
        %v5098 = vadd.f32 0.0, %v5097
        %5099 = vmatmul.f32.gmra.mxu0 %v5040
        %v5100 = vpop.f32.mrf.mxu0
        %v5101 = vadd.f32 0.0, %v5100
        %5102 = vmatmul.f32.gmra.mxu0 %v5042
        %v5103 = vpop.f32.mrf.mxu0
        %v5104 = vadd.f32 0.0, %v5103
        %5105 = vmatmul.f32.gmra.mxu0 %v5044
        %v5106 = vpop.f32.mrf.mxu0
        %v5107 = vadd.f32 0.0, %v5106
        %5108 = vmatmul.f32.gmra.mxu0 %v5046
        %v5109 = vpop.f32.mrf.mxu0
        %v5110 = vadd.f32 0.0, %v5109
        %5111 = vmatmul.f32.gmra.mxu0 %v5048
        %v5112 = vpop.f32.mrf.mxu0
        %v5113 = vadd.f32 0.0, %v5112
        %5114 = vdwg.mxu0
        %v5115 = vadd.f32 %v4918, %v5068
        %v5116 = vadd.f32 %v4921, %v5071
        %v5117 = vadd.f32 %v4924, %v5074
        %v5118 = vadd.f32 %v4927, %v5077
        %v5119 = vadd.f32 %v4930, %v5080
        %v5120 = vadd.f32 %v4933, %v5083
        %v5121 = vadd.f32 %v4936, %v5086
        %v5122 = vadd.f32 %v4939, %v5089
        %v5123 = vadd.f32 %v4942, %v5092
        %v5124 = vadd.f32 %v4945, %v5095
        %v5125 = vadd.f32 %v4948, %v5098
        %v5126 = vadd.f32 %v4951, %v5101
        %v5127 = vadd.f32 %v4954, %v5104
        %v5128 = vadd.f32 %v4957, %v5107
        %v5129 = vadd.f32 %v4960, %v5110
        %v5130 = vadd.f32 %v4963, %v5113
        %s5131 = scalar_lea.vmem [#allocation8], 96
        %v5132 = vld [vmem:[%s5131] sm:$0xff]
        %v5133 = vld [vmem:[%s5131 + $0x8] sm:$0xff]
        %v5134 = vld [vmem:[%s5131 + $0x10] sm:$0xff]
        %v5135 = vld [vmem:[%s5131 + $0x18] sm:$0xff]
        %v5137 = vsel %vm4192, %v4658, 0
        %v5140 = vsel %vm4192, %v4678, 0
        %5142 = vmatpush.msra.mxu0 0.0
        %5143 = vmatpush.msra.mxu0 0.0
        %5144 = vmatpush.msra.mxu0 0.0
        %5145 = vmatpush.msra.mxu0 0.0
        %5146 = vmatpush.msra.mxu0 0.0
        %5147 = vmatpush.msra.mxu0 0.0
        %5148 = vmatpush.msra.mxu0 0.0
        %5149 = vmatpush.msra.mxu0 0.0
        %5150 = vmatpush.msra.mxu0 0.0
        %5151 = vmatpush.msra.mxu0 0.0
        %5152 = vmatpush.msra.mxu0 0.0
        %5153 = vmatpush.msra.mxu0 0.0
        %5154 = vmatpush.msra.mxu0 %v5135
        %5155 = vmatpush.msra.mxu0 %v5134
        %5156 = vmatpush.msra.mxu0 %v5133
        %5157 = vmatpush.msra.mxu0 %v5132
        %5158 = vmatmul.f32.gmra.mxu0 %v4870
        %v5159 = vpop.f32.mrf.mxu0
        %v5160 = vadd.f32 0.0, %v5159
        %5161 = vmatmul.f32.gmra.mxu0 %v4872
        %v5162 = vpop.f32.mrf.mxu0
        %v5163 = vadd.f32 0.0, %v5162
        %5164 = vmatmul.f32.gmra.mxu0 %v4874
        %v5165 = vpop.f32.mrf.mxu0
        %v5166 = vadd.f32 0.0, %v5165
        %5167 = vmatmul.f32.gmra.mxu0 %v4876
        %v5168 = vpop.f32.mrf.mxu0
        %v5169 = vadd.f32 0.0, %v5168
        %5170 = vmatmul.f32.gmra.mxu0 %v4878
        %v5171 = vpop.f32.mrf.mxu0
        %v5172 = vadd.f32 0.0, %v5171
        %5173 = vmatmul.f32.gmra.mxu0 %v4880
        %v5174 = vpop.f32.mrf.mxu0
        %v5175 = vadd.f32 0.0, %v5174
        %5176 = vmatmul.f32.gmra.mxu0 %v4882
        %v5177 = vpop.f32.mrf.mxu0
        %v5178 = vadd.f32 0.0, %v5177
        %5179 = vmatmul.f32.gmra.mxu0 %v5137
        %v5180 = vpop.f32.mrf.mxu0
        %v5181 = vadd.f32 0.0, %v5180
        %5182 = vmatmul.f32.gmra.mxu0 %v4886
        %v5183 = vpop.f32.mrf.mxu0
        %v5184 = vadd.f32 0.0, %v5183
        %5185 = vmatmul.f32.gmra.mxu0 %v4888
        %v5186 = vpop.f32.mrf.mxu0
        %v5187 = vadd.f32 0.0, %v5186
        %5188 = vmatmul.f32.gmra.mxu0 %v4890
        %v5189 = vpop.f32.mrf.mxu0
        %v5190 = vadd.f32 0.0, %v5189
        %5191 = vmatmul.f32.gmra.mxu0 %v4892
        %v5192 = vpop.f32.mrf.mxu0
        %v5193 = vadd.f32 0.0, %v5192
        %5194 = vmatmul.f32.gmra.mxu0 %v4894
        %v5195 = vpop.f32.mrf.mxu0
        %v5196 = vadd.f32 0.0, %v5195
        %5197 = vmatmul.f32.gmra.mxu0 %v4896
        %v5198 = vpop.f32.mrf.mxu0
        %v5199 = vadd.f32 0.0, %v5198
        %5200 = vmatmul.f32.gmra.mxu0 %v4898
        %v5201 = vpop.f32.mrf.mxu0
        %v5202 = vadd.f32 0.0, %v5201
        %5203 = vmatmul.f32.gmra.mxu0 %v5140
        %v5204 = vpop.f32.mrf.mxu0
        %v5205 = vadd.f32 0.0, %v5204
        %5206 = vdwg.mxu0
        %v5207 = vadd.f32 %v5115, %v5160
        %v5208 = vadd.f32 %v5116, %v5163
        %v5209 = vadd.f32 %v5117, %v5166
        %v5210 = vadd.f32 %v5118, %v5169
        %v5211 = vadd.f32 %v5119, %v5172
        %v5212 = vadd.f32 %v5120, %v5175
        %v5213 = vadd.f32 %v5121, %v5178
        %v5214 = vadd.f32 %v5122, %v5181
        %v5215 = vadd.f32 %v5123, %v5184
        %v5216 = vadd.f32 %v5124, %v5187
        %v5217 = vadd.f32 %v5125, %v5190
        %v5218 = vadd.f32 %v5126, %v5193
        %v5219 = vadd.f32 %v5127, %v5196
        %v5220 = vadd.f32 %v5128, %v5199
        %v5221 = vadd.f32 %v5129, %v5202
        %v5222 = vadd.f32 %v5130, %v5205
        %v5225 = vrot.slane %v4658, 1
        %v5226 = vrot.slane %v4659, 1
        %v5227 = vsel %vm1270, %v5225, %v5226
        %v5228 = vrot.slane %v4678, 1
        %v5229 = vrot.slane %v4679, 1
        %v5230 = vsel %vm1270, %v5228, %v5229
        %s5231 = scalar_lea.vmem [#allocation8], 128
        %v5232 = vld [vmem:[%s5231] sm:$0xff]
        %v5233 = vld [vmem:[%s5231 + $0x8] sm:$0xff]
        %v5234 = vld [vmem:[%s5231 + $0x10] sm:$0xff]
        %v5235 = vld [vmem:[%s5231 + $0x18] sm:$0xff]
        %v5236 = vsel %vm4192, %v5227, 0
        %v5238 = vsel %vm4192, %v5230, 0
        %5240 = vmatpush.msra.mxu0 0.0
        %5241 = vmatpush.msra.mxu0 0.0
        %5242 = vmatpush.msra.mxu0 0.0
        %5243 = vmatpush.msra.mxu0 0.0
        %5244 = vmatpush.msra.mxu0 0.0
        %5245 = vmatpush.msra.mxu0 0.0
        %5246 = vmatpush.msra.mxu0 0.0
        %5247 = vmatpush.msra.mxu0 0.0
        %5248 = vmatpush.msra.mxu0 0.0
        %5249 = vmatpush.msra.mxu0 0.0
        %5250 = vmatpush.msra.mxu0 0.0
        %5251 = vmatpush.msra.mxu0 0.0
        %5252 = vmatpush.msra.mxu0 %v5235
        %5253 = vmatpush.msra.mxu0 %v5234
        %5254 = vmatpush.msra.mxu0 %v5233
        %5255 = vmatpush.msra.mxu0 %v5232
        %5256 = vmatmul.f32.gmra.mxu0 %v4773
        %v5257 = vpop.f32.mrf.mxu0
        %v5258 = vadd.f32 0.0, %v5257
        %5259 = vmatmul.f32.gmra.mxu0 %v4775
        %v5260 = vpop.f32.mrf.mxu0
        %v5261 = vadd.f32 0.0, %v5260
        %5262 = vmatmul.f32.gmra.mxu0 %v4777
        %v5263 = vpop.f32.mrf.mxu0
        %v5264 = vadd.f32 0.0, %v5263
        %5265 = vmatmul.f32.gmra.mxu0 %v4779
        %v5266 = vpop.f32.mrf.mxu0
        %v5267 = vadd.f32 0.0, %v5266
        %5268 = vmatmul.f32.gmra.mxu0 %v4781
        %v5269 = vpop.f32.mrf.mxu0
        %v5270 = vadd.f32 0.0, %v5269
        %5271 = vmatmul.f32.gmra.mxu0 %v4783
        %v5272 = vpop.f32.mrf.mxu0
        %v5273 = vadd.f32 0.0, %v5272
        %5274 = vmatmul.f32.gmra.mxu0 %v4785
        %v5275 = vpop.f32.mrf.mxu0
        %v5276 = vadd.f32 0.0, %v5275
        %5277 = vmatmul.f32.gmra.mxu0 %v5236
        %v5278 = vpop.f32.mrf.mxu0
        %v5279 = vadd.f32 0.0, %v5278
        %5280 = vmatmul.f32.gmra.mxu0 %v4789
        %v5281 = vpop.f32.mrf.mxu0
        %v5282 = vadd.f32 0.0, %v5281
        %5283 = vmatmul.f32.gmra.mxu0 %v4791
        %v5284 = vpop.f32.mrf.mxu0
        %v5285 = vadd.f32 0.0, %v5284
        %5286 = vmatmul.f32.gmra.mxu0 %v4793
        %v5287 = vpop.f32.mrf.mxu0
        %v5288 = vadd.f32 0.0, %v5287
        %5289 = vmatmul.f32.gmra.mxu0 %v4795
        %v5290 = vpop.f32.mrf.mxu0
        %v5291 = vadd.f32 0.0, %v5290
        %5292 = vmatmul.f32.gmra.mxu0 %v4797
        %v5293 = vpop.f32.mrf.mxu0
        %v5294 = vadd.f32 0.0, %v5293
        %5295 = vmatmul.f32.gmra.mxu0 %v4799
        %v5296 = vpop.f32.mrf.mxu0
        %v5297 = vadd.f32 0.0, %v5296
        %5298 = vmatmul.f32.gmra.mxu0 %v4801
        %v5299 = vpop.f32.mrf.mxu0
        %v5300 = vadd.f32 0.0, %v5299
        %5301 = vmatmul.f32.gmra.mxu0 %v5238
        %v5302 = vpop.f32.mrf.mxu0
        %v5303 = vadd.f32 0.0, %v5302
        %5304 = vdwg.mxu0
        %v5305 = vadd.f32 %v5207, %v5258
        %v5306 = vadd.f32 %v5208, %v5261
        %v5307 = vadd.f32 %v5209, %v5264
        %v5308 = vadd.f32 %v5210, %v5267
        %v5309 = vadd.f32 %v5211, %v5270
        %v5310 = vadd.f32 %v5212, %v5273
        %v5311 = vadd.f32 %v5213, %v5276
        %v5312 = vadd.f32 %v5214, %v5279
        %v5313 = vadd.f32 %v5215, %v5282
        %v5314 = vadd.f32 %v5216, %v5285
        %v5315 = vadd.f32 %v5217, %v5288
        %v5316 = vadd.f32 %v5218, %v5291
        %v5317 = vadd.f32 %v5219, %v5294
        %v5318 = vadd.f32 %v5220, %v5297
        %v5319 = vadd.f32 %v5221, %v5300
        %v5320 = vadd.f32 %v5222, %v5303
        %v5321 = vrot.slane %v4658, 2
        %v5322 = vrot.slane %v4659, 2
        %v5323 = vsel %vm1817, %v5321, %v5322
        %v5324 = vrot.slane %v4678, 2
        %v5325 = vrot.slane %v4679, 2
        %v5326 = vsel %vm1817, %v5324, %v5325
        %s5327 = scalar_lea.vmem [#allocation8], 160
        %v5328 = vld [vmem:[%s5327] sm:$0xff]
        %v5329 = vld [vmem:[%s5327 + $0x8] sm:$0xff]
        %v5330 = vld [vmem:[%s5327 + $0x10] sm:$0xff]
        %v5331 = vld [vmem:[%s5327 + $0x18] sm:$0xff]
        %v5332 = vsel %vm4192, %v5323, 0
        %v5334 = vsel %vm4192, %v5326, 0
        %5336 = vmatpush.msra.mxu0 0.0
        %5337 = vmatpush.msra.mxu0 0.0
        %5338 = vmatpush.msra.mxu0 0.0
        %5339 = vmatpush.msra.mxu0 0.0
        %5340 = vmatpush.msra.mxu0 0.0
        %5341 = vmatpush.msra.mxu0 0.0
        %5342 = vmatpush.msra.mxu0 0.0
        %5343 = vmatpush.msra.mxu0 0.0
        %5344 = vmatpush.msra.mxu0 0.0
        %5345 = vmatpush.msra.mxu0 0.0
        %5346 = vmatpush.msra.mxu0 0.0
        %5347 = vmatpush.msra.mxu0 0.0
        %5348 = vmatpush.msra.mxu0 %v5331
        %5349 = vmatpush.msra.mxu0 %v5330
        %5350 = vmatpush.msra.mxu0 %v5329
        %5351 = vmatpush.msra.mxu0 %v5328
        %5352 = vmatmul.f32.gmra.mxu0 %v5020
        %v5353 = vpop.f32.mrf.mxu0
        %v5354 = vadd.f32 0.0, %v5353
        %5355 = vmatmul.f32.gmra.mxu0 %v5022
        %v5356 = vpop.f32.mrf.mxu0
        %v5357 = vadd.f32 0.0, %v5356
        %5358 = vmatmul.f32.gmra.mxu0 %v5024
        %v5359 = vpop.f32.mrf.mxu0
        %v5360 = vadd.f32 0.0, %v5359
        %5361 = vmatmul.f32.gmra.mxu0 %v5026
        %v5362 = vpop.f32.mrf.mxu0
        %v5363 = vadd.f32 0.0, %v5362
        %5364 = vmatmul.f32.gmra.mxu0 %v5028
        %v5365 = vpop.f32.mrf.mxu0
        %v5366 = vadd.f32 0.0, %v5365
        %5367 = vmatmul.f32.gmra.mxu0 %v5030
        %v5368 = vpop.f32.mrf.mxu0
        %v5369 = vadd.f32 0.0, %v5368
        %5370 = vmatmul.f32.gmra.mxu0 %v5032
        %v5371 = vpop.f32.mrf.mxu0
        %v5372 = vadd.f32 0.0, %v5371
        %5373 = vmatmul.f32.gmra.mxu0 %v5332
        %v5374 = vpop.f32.mrf.mxu0
        %v5375 = vadd.f32 0.0, %v5374
        %5376 = vmatmul.f32.gmra.mxu0 %v5036
        %v5377 = vpop.f32.mrf.mxu0
        %v5378 = vadd.f32 0.0, %v5377
        %5379 = vmatmul.f32.gmra.mxu0 %v5038
        %v5380 = vpop.f32.mrf.mxu0
        %v5381 = vadd.f32 0.0, %v5380
        %5382 = vmatmul.f32.gmra.mxu0 %v5040
        %v5383 = vpop.f32.mrf.mxu0
        %v5384 = vadd.f32 0.0, %v5383
        %5385 = vmatmul.f32.gmra.mxu0 %v5042
        %v5386 = vpop.f32.mrf.mxu0
        %v5387 = vadd.f32 0.0, %v5386
        %5388 = vmatmul.f32.gmra.mxu0 %v5044
        %v5389 = vpop.f32.mrf.mxu0
        %v5390 = vadd.f32 0.0, %v5389
        %5391 = vmatmul.f32.gmra.mxu0 %v5046
        %v5392 = vpop.f32.mrf.mxu0
        %v5393 = vadd.f32 0.0, %v5392
        %5394 = vmatmul.f32.gmra.mxu0 %v5048
        %v5395 = vpop.f32.mrf.mxu0
        %v5396 = vadd.f32 0.0, %v5395
        %5397 = vmatmul.f32.gmra.mxu0 %v5334
        %v5398 = vpop.f32.mrf.mxu0
        %v5399 = vadd.f32 0.0, %v5398
        %5400 = vdwg.mxu0
        %v5401 = vadd.f32 %v5305, %v5354
        %v5402 = vadd.f32 %v5306, %v5357
        %v5403 = vadd.f32 %v5307, %v5360
        %v5404 = vadd.f32 %v5308, %v5363
        %v5405 = vadd.f32 %v5309, %v5366
        %v5406 = vadd.f32 %v5310, %v5369
        %v5407 = vadd.f32 %v5311, %v5372
        %v5408 = vadd.f32 %v5312, %v5375
        %v5409 = vadd.f32 %v5313, %v5378
        %v5410 = vadd.f32 %v5314, %v5381
        %v5411 = vadd.f32 %v5315, %v5384
        %v5412 = vadd.f32 %v5316, %v5387
        %v5413 = vadd.f32 %v5317, %v5390
        %v5414 = vadd.f32 %v5318, %v5393
        %v5415 = vadd.f32 %v5319, %v5396
        %v5416 = vadd.f32 %v5320, %v5399
        %s5417 = scalar_lea.vmem [#allocation8], 192
        %v5418 = vld [vmem:[%s5417] sm:$0xff]
        %v5419 = vld [vmem:[%s5417 + $0x8] sm:$0xff]
        %v5420 = vld [vmem:[%s5417 + $0x10] sm:$0xff]
        %v5421 = vld [vmem:[%s5417 + $0x18] sm:$0xff]
        %v5423 = vsel %vm4192, %v4660, 0
        %v5426 = vsel %vm4192, %v4680, 0
        %5428 = vmatpush.msra.mxu0 0.0
        %5429 = vmatpush.msra.mxu0 0.0
        %5430 = vmatpush.msra.mxu0 0.0
        %5431 = vmatpush.msra.mxu0 0.0
        %5432 = vmatpush.msra.mxu0 0.0
        %5433 = vmatpush.msra.mxu0 0.0
        %5434 = vmatpush.msra.mxu0 0.0
        %5435 = vmatpush.msra.mxu0 0.0
        %5436 = vmatpush.msra.mxu0 0.0
        %5437 = vmatpush.msra.mxu0 0.0
        %5438 = vmatpush.msra.mxu0 0.0
        %5439 = vmatpush.msra.mxu0 0.0
        %5440 = vmatpush.msra.mxu0 %v5421
        %5441 = vmatpush.msra.mxu0 %v5420
        %5442 = vmatpush.msra.mxu0 %v5419
        %5443 = vmatpush.msra.mxu0 %v5418
        %5444 = vmatmul.f32.gmra.mxu0 %v4872
        %v5445 = vpop.f32.mrf.mxu0
        %v5446 = vadd.f32 0.0, %v5445
        %5447 = vmatmul.f32.gmra.mxu0 %v4874
        %v5448 = vpop.f32.mrf.mxu0
        %v5449 = vadd.f32 0.0, %v5448
        %5450 = vmatmul.f32.gmra.mxu0 %v4876
        %v5451 = vpop.f32.mrf.mxu0
        %v5452 = vadd.f32 0.0, %v5451
        %5453 = vmatmul.f32.gmra.mxu0 %v4878
        %v5454 = vpop.f32.mrf.mxu0
        %v5455 = vadd.f32 0.0, %v5454
        %5456 = vmatmul.f32.gmra.mxu0 %v4880
        %v5457 = vpop.f32.mrf.mxu0
        %v5458 = vadd.f32 0.0, %v5457
        %5459 = vmatmul.f32.gmra.mxu0 %v4882
        %v5460 = vpop.f32.mrf.mxu0
        %v5461 = vadd.f32 0.0, %v5460
        %5462 = vmatmul.f32.gmra.mxu0 %v5137
        %v5463 = vpop.f32.mrf.mxu0
        %v5464 = vadd.f32 0.0, %v5463
        %5465 = vmatmul.f32.gmra.mxu0 %v5423
        %v5466 = vpop.f32.mrf.mxu0
        %v5467 = vadd.f32 0.0, %v5466
        %5468 = vmatmul.f32.gmra.mxu0 %v4888
        %v5469 = vpop.f32.mrf.mxu0
        %v5470 = vadd.f32 0.0, %v5469
        %5471 = vmatmul.f32.gmra.mxu0 %v4890
        %v5472 = vpop.f32.mrf.mxu0
        %v5473 = vadd.f32 0.0, %v5472
        %5474 = vmatmul.f32.gmra.mxu0 %v4892
        %v5475 = vpop.f32.mrf.mxu0
        %v5476 = vadd.f32 0.0, %v5475
        %5477 = vmatmul.f32.gmra.mxu0 %v4894
        %v5478 = vpop.f32.mrf.mxu0
        %v5479 = vadd.f32 0.0, %v5478
        %5480 = vmatmul.f32.gmra.mxu0 %v4896
        %v5481 = vpop.f32.mrf.mxu0
        %v5482 = vadd.f32 0.0, %v5481
        %5483 = vmatmul.f32.gmra.mxu0 %v4898
        %v5484 = vpop.f32.mrf.mxu0
        %v5485 = vadd.f32 0.0, %v5484
        %5486 = vmatmul.f32.gmra.mxu0 %v5140
        %v5487 = vpop.f32.mrf.mxu0
        %v5488 = vadd.f32 0.0, %v5487
        %5489 = vmatmul.f32.gmra.mxu0 %v5426
        %v5490 = vpop.f32.mrf.mxu0
        %v5491 = vadd.f32 0.0, %v5490
        %5492 = vdwg.mxu0
        %v5493 = vadd.f32 %v5401, %v5446
        %v5494 = vadd.f32 %v5402, %v5449
        %v5495 = vadd.f32 %v5403, %v5452
        %v5496 = vadd.f32 %v5404, %v5455
        %v5497 = vadd.f32 %v5405, %v5458
        %v5498 = vadd.f32 %v5406, %v5461
        %v5499 = vadd.f32 %v5407, %v5464
        %v5500 = vadd.f32 %v5408, %v5467
        %v5501 = vadd.f32 %v5409, %v5470
        %v5502 = vadd.f32 %v5410, %v5473
        %v5503 = vadd.f32 %v5411, %v5476
        %v5504 = vadd.f32 %v5412, %v5479
        %v5505 = vadd.f32 %v5413, %v5482
        %v5506 = vadd.f32 %v5414, %v5485
        %v5507 = vadd.f32 %v5415, %v5488
        %v5508 = vadd.f32 %v5416, %v5491
        %v5511 = vrot.slane %v4660, 1
        %v5512 = vrot.slane %v4661, 1
        %v5513 = vsel %vm1270, %v5511, %v5512
        %v5514 = vrot.slane %v4680, 1
        %v5515 = vrot.slane %v4681, 1
        %v5516 = vsel %vm1270, %v5514, %v5515
        %s5517 = scalar_lea.vmem [#allocation8], 224
        %v5518 = vld [vmem:[%s5517] sm:$0xff]
        %v5519 = vld [vmem:[%s5517 + $0x8] sm:$0xff]
        %v5520 = vld [vmem:[%s5517 + $0x10] sm:$0xff]
        %v5521 = vld [vmem:[%s5517 + $0x18] sm:$0xff]
        %v5522 = vsel %vm4192, %v5513, 0
        %v5524 = vsel %vm4192, %v5516, 0
        %5526 = vmatpush.msra.mxu0 0.0
        %5527 = vmatpush.msra.mxu0 0.0
        %5528 = vmatpush.msra.mxu0 0.0
        %5529 = vmatpush.msra.mxu0 0.0
        %5530 = vmatpush.msra.mxu0 0.0
        %5531 = vmatpush.msra.mxu0 0.0
        %5532 = vmatpush.msra.mxu0 0.0
        %5533 = vmatpush.msra.mxu0 0.0
        %5534 = vmatpush.msra.mxu0 0.0
        %5535 = vmatpush.msra.mxu0 0.0
        %5536 = vmatpush.msra.mxu0 0.0
        %5537 = vmatpush.msra.mxu0 0.0
        %5538 = vmatpush.msra.mxu0 %v5521
        %5539 = vmatpush.msra.mxu0 %v5520
        %5540 = vmatpush.msra.mxu0 %v5519
        %5541 = vmatpush.msra.mxu0 %v5518
        %5542 = vmatmul.f32.gmra.mxu0 %v4775
        %v5543 = vpop.f32.mrf.mxu0
        %v5544 = vadd.f32 0.0, %v5543
        %5545 = vmatmul.f32.gmra.mxu0 %v4777
        %v5546 = vpop.f32.mrf.mxu0
        %v5547 = vadd.f32 0.0, %v5546
        %5548 = vmatmul.f32.gmra.mxu0 %v4779
        %v5549 = vpop.f32.mrf.mxu0
        %v5550 = vadd.f32 0.0, %v5549
        %5551 = vmatmul.f32.gmra.mxu0 %v4781
        %v5552 = vpop.f32.mrf.mxu0
        %v5553 = vadd.f32 0.0, %v5552
        %5554 = vmatmul.f32.gmra.mxu0 %v4783
        %v5555 = vpop.f32.mrf.mxu0
        %v5556 = vadd.f32 0.0, %v5555
        %5557 = vmatmul.f32.gmra.mxu0 %v4785
        %v5558 = vpop.f32.mrf.mxu0
        %v5559 = vadd.f32 0.0, %v5558
        %5560 = vmatmul.f32.gmra.mxu0 %v5236
        %v5561 = vpop.f32.mrf.mxu0
        %v5562 = vadd.f32 0.0, %v5561
        %5563 = vmatmul.f32.gmra.mxu0 %v5522
        %v5564 = vpop.f32.mrf.mxu0
        %v5565 = vadd.f32 0.0, %v5564
        %5566 = vmatmul.f32.gmra.mxu0 %v4791
        %v5567 = vpop.f32.mrf.mxu0
        %v5568 = vadd.f32 0.0, %v5567
        %5569 = vmatmul.f32.gmra.mxu0 %v4793
        %v5570 = vpop.f32.mrf.mxu0
        %v5571 = vadd.f32 0.0, %v5570
        %5572 = vmatmul.f32.gmra.mxu0 %v4795
        %v5573 = vpop.f32.mrf.mxu0
        %v5574 = vadd.f32 0.0, %v5573
        %5575 = vmatmul.f32.gmra.mxu0 %v4797
        %v5576 = vpop.f32.mrf.mxu0
        %v5577 = vadd.f32 0.0, %v5576
        %5578 = vmatmul.f32.gmra.mxu0 %v4799
        %v5579 = vpop.f32.mrf.mxu0
        %v5580 = vadd.f32 0.0, %v5579
        %5581 = vmatmul.f32.gmra.mxu0 %v4801
        %v5582 = vpop.f32.mrf.mxu0
        %v5583 = vadd.f32 0.0, %v5582
        %5584 = vmatmul.f32.gmra.mxu0 %v5238
        %v5585 = vpop.f32.mrf.mxu0
        %v5586 = vadd.f32 0.0, %v5585
        %5587 = vmatmul.f32.gmra.mxu0 %v5524
        %v5588 = vpop.f32.mrf.mxu0
        %v5589 = vadd.f32 0.0, %v5588
        %5590 = vdwg.mxu0
        %v5591 = vadd.f32 %v5493, %v5544
        %v5592 = vadd.f32 %v5494, %v5547
        %v5593 = vadd.f32 %v5495, %v5550
        %v5594 = vadd.f32 %v5496, %v5553
        %v5595 = vadd.f32 %v5497, %v5556
        %v5596 = vadd.f32 %v5498, %v5559
        %v5597 = vadd.f32 %v5499, %v5562
        %v5598 = vadd.f32 %v5500, %v5565
        %v5599 = vadd.f32 %v5501, %v5568
        %v5600 = vadd.f32 %v5502, %v5571
        %v5601 = vadd.f32 %v5503, %v5574
        %v5602 = vadd.f32 %v5504, %v5577
        %v5603 = vadd.f32 %v5505, %v5580
        %v5604 = vadd.f32 %v5506, %v5583
        %v5605 = vadd.f32 %v5507, %v5586
        %v5606 = vadd.f32 %v5508, %v5589
        %v5607 = vrot.slane %v4660, 2
        %v5608 = vrot.slane %v4661, 2
        %v5609 = vsel %vm1817, %v5607, %v5608
        %v5610 = vrot.slane %v4680, 2
        %v5611 = vrot.slane %v4681, 2
        %v5612 = vsel %vm1817, %v5610, %v5611
        %s5613 = scalar_lea.vmem [#allocation8], 256
        %v5614 = vld [vmem:[%s5613] sm:$0xff]
        %v5615 = vld [vmem:[%s5613 + $0x8] sm:$0xff]
        %v5616 = vld [vmem:[%s5613 + $0x10] sm:$0xff]
        %v5617 = vld [vmem:[%s5613 + $0x18] sm:$0xff]
        %v5618 = vsel %vm4192, %v5609, 0
        %v5620 = vsel %vm4192, %v5612, 0
        %5622 = vmatpush.msra.mxu0 0.0
        %5623 = vmatpush.msra.mxu0 0.0
        %5624 = vmatpush.msra.mxu0 0.0
        %5625 = vmatpush.msra.mxu0 0.0
        %5626 = vmatpush.msra.mxu0 0.0
        %5627 = vmatpush.msra.mxu0 0.0
        %5628 = vmatpush.msra.mxu0 0.0
        %5629 = vmatpush.msra.mxu0 0.0
        %5630 = vmatpush.msra.mxu0 0.0
        %5631 = vmatpush.msra.mxu0 0.0
        %5632 = vmatpush.msra.mxu0 0.0
        %5633 = vmatpush.msra.mxu0 0.0
        %5634 = vmatpush.msra.mxu0 %v5617
        %5635 = vmatpush.msra.mxu0 %v5616
        %5636 = vmatpush.msra.mxu0 %v5615
        %5637 = vmatpush.msra.mxu0 %v5614
        %5638 = vmatmul.f32.gmra.mxu0 %v5022
        %v5639 = vpop.f32.mrf.mxu0
        %v5640 = vadd.f32 0.0, %v5639
        %5641 = vmatmul.f32.gmra.mxu0 %v5024
        %v5642 = vpop.f32.mrf.mxu0
        %v5643 = vadd.f32 0.0, %v5642
        %5644 = vmatmul.f32.gmra.mxu0 %v5026
        %v5645 = vpop.f32.mrf.mxu0
        %v5646 = vadd.f32 0.0, %v5645
        %5647 = vmatmul.f32.gmra.mxu0 %v5028
        %v5648 = vpop.f32.mrf.mxu0
        %v5649 = vadd.f32 0.0, %v5648
        %5650 = vmatmul.f32.gmra.mxu0 %v5030
        %v5651 = vpop.f32.mrf.mxu0
        %v5652 = vadd.f32 0.0, %v5651
        %5653 = vmatmul.f32.gmra.mxu0 %v5032
        %v5654 = vpop.f32.mrf.mxu0
        %v5655 = vadd.f32 0.0, %v5654
        %5656 = vmatmul.f32.gmra.mxu0 %v5332
        %v5657 = vpop.f32.mrf.mxu0
        %v5658 = vadd.f32 0.0, %v5657
        %5659 = vmatmul.f32.gmra.mxu0 %v5618
        %v5660 = vpop.f32.mrf.mxu0
        %v5661 = vadd.f32 0.0, %v5660
        %5662 = vmatmul.f32.gmra.mxu0 %v5038
        %v5663 = vpop.f32.mrf.mxu0
        %v5664 = vadd.f32 0.0, %v5663
        %5665 = vmatmul.f32.gmra.mxu0 %v5040
        %v5666 = vpop.f32.mrf.mxu0
        %v5667 = vadd.f32 0.0, %v5666
        %5668 = vmatmul.f32.gmra.mxu0 %v5042
        %v5669 = vpop.f32.mrf.mxu0
        %v5670 = vadd.f32 0.0, %v5669
        %5671 = vmatmul.f32.gmra.mxu0 %v5044
        %v5672 = vpop.f32.mrf.mxu0
        %v5673 = vadd.f32 0.0, %v5672
        %5674 = vmatmul.f32.gmra.mxu0 %v5046
        %v5675 = vpop.f32.mrf.mxu0
        %v5676 = vadd.f32 0.0, %v5675
        %5677 = vmatmul.f32.gmra.mxu0 %v5048
        %v5678 = vpop.f32.mrf.mxu0
        %v5679 = vadd.f32 0.0, %v5678
        %5680 = vmatmul.f32.gmra.mxu0 %v5334
        %v5681 = vpop.f32.mrf.mxu0
        %v5682 = vadd.f32 0.0, %v5681
        %5683 = vmatmul.f32.gmra.mxu0 %v5620
        %v5684 = vpop.f32.mrf.mxu0
        %v5685 = vadd.f32 0.0, %v5684
        %5686 = vdwg.mxu0
        %v5687 = vadd.f32 %v5591, %v5640
        %v5688 = vadd.f32 %v5592, %v5643
        %v5689 = vadd.f32 %v5593, %v5646
        %v5690 = vadd.f32 %v5594, %v5649
        %v5691 = vadd.f32 %v5595, %v5652
        %v5692 = vadd.f32 %v5596, %v5655
        %v5693 = vadd.f32 %v5597, %v5658
        %v5694 = vadd.f32 %v5598, %v5661
        %v5695 = vadd.f32 %v5599, %v5664
        %v5696 = vadd.f32 %v5600, %v5667
        %v5697 = vadd.f32 %v5601, %v5670
        %v5698 = vadd.f32 %v5602, %v5673
        %v5699 = vadd.f32 %v5603, %v5676
        %v5700 = vadd.f32 %v5604, %v5679
        %v5701 = vadd.f32 %v5605, %v5682
        %v5702 = vadd.f32 %v5606, %v5685
        %v5703 = vld [vmem:[%s4] sm:$0x1]
        %v5705 = vperm.slane %v5703, 0
        %v5707 = vadd.f32 %v5687, %v5705
        %v5708 = vadd.f32 %v5688, %v5705
        %v5709 = vadd.f32 %v5689, %v5705
        %v5710 = vadd.f32 %v5690, %v5705
        %v5711 = vadd.f32 %v5691, %v5705
        %v5712 = vadd.f32 %v5692, %v5705
        %v5713 = vadd.f32 %v5693, %v5705
        %v5714 = vadd.f32 %v5694, %v5705
        %v5715 = vadd.f32 %v5695, %v5705
        %v5716 = vadd.f32 %v5696, %v5705
        %v5717 = vadd.f32 %v5697, %v5705
        %v5718 = vadd.f32 %v5698, %v5705
        %v5719 = vadd.f32 %v5699, %v5705
        %v5720 = vadd.f32 %v5700, %v5705
        %v5721 = vadd.f32 %v5701, %v5705
        %v5722 = vadd.f32 %v5702, %v5705
        %v5723 = vmax.f32 %v5707, 0.0
        %v5724 = vmax.f32 %v5708, 0.0
        %v5725 = vmax.f32 %v5709, 0.0
        %v5726 = vmax.f32 %v5710, 0.0
        %v5727 = vmax.f32 %v5711, 0.0
        %v5728 = vmax.f32 %v5712, 0.0
        %v5729 = vmax.f32 %v5713, 0.0
        %v5730 = vmax.f32 %v5714, 0.0
        %v5731 = vmax.f32 %v5715, 0.0
        %v5732 = vmax.f32 %v5716, 0.0
        %v5733 = vmax.f32 %v5717, 0.0
        %v5734 = vmax.f32 %v5718, 0.0
        %v5735 = vmax.f32 %v5719, 0.0
        %v5736 = vmax.f32 %v5720, 0.0
        %v5737 = vmax.f32 %v5721, 0.0
        %v5738 = vmax.f32 %v5722, 0.0
        %v5739 = vmax.f32 %v5723, %v5724
        %v5740 = vmax.f32 %v5725, %v5726
        %v5741 = vmax.f32 %v5727, %v5728
        %v5742 = vmax.f32 %v5729, %v5730
        %v5743 = vmax.f32 %v5731, %v5732
        %v5744 = vmax.f32 %v5733, %v5734
        %v5745 = vmax.f32 %v5735, %v5736
        %v5746 = vmax.f32 %v5737, %v5738
        %v5755 = vrot.slane %v5739, 2
        %v5756 = vrot.slane %v5739, 4
        %v5757 = vrot.slane %v5739, 6
        %v5758 = vrot.slane %v5740, 2
        %v5759 = vrot.slane %v5740, 4
        %v5760 = vrot.slane %v5740, 6
        %v5761 = vrot.slane %v5741, 2
        %v5762 = vrot.slane %v5741, 4
        %v5763 = vrot.slane %v5741, 6
        %v5764 = vrot.slane %v5742, 2
        %v5765 = vrot.slane %v5742, 4
        %v5766 = vrot.slane %v5742, 6
        %v5767 = vrot.slane %v5743, 2
        %v5768 = vrot.slane %v5743, 4
        %v5769 = vrot.slane %v5743, 6
        %v5770 = vrot.slane %v5744, 2
        %v5771 = vrot.slane %v5744, 4
        %v5772 = vrot.slane %v5744, 6
        %v5773 = vrot.slane %v5745, 2
        %v5774 = vrot.slane %v5745, 4
        %v5775 = vrot.slane %v5745, 6
        %v5776 = vrot.slane %v5746, 2
        %v5777 = vrot.slane %v5746, 4
        %v5778 = vrot.slane %v5746, 6
        %v5803 = vrot.slane %v5739, 7
        %v5804 = vrot.slane %v5803, 2
        %v5805 = vrot.slane %v5755, 7
        %v5806 = vrot.slane %v5805, 2
        %v5807 = vrot.slane %v5756, 7
        %v5808 = vrot.slane %v5807, 2
        %v5809 = vrot.slane %v5757, 7
        %v5810 = vrot.slane %v5809, 2
        %v5811 = vrot.slane %v5740, 7
        %v5812 = vrot.slane %v5811, 2
        %v5813 = vrot.slane %v5758, 7
        %v5814 = vrot.slane %v5813, 2
        %v5815 = vrot.slane %v5759, 7
        %v5816 = vrot.slane %v5815, 2
        %v5817 = vrot.slane %v5760, 7
        %v5818 = vrot.slane %v5817, 2
        %v5819 = vrot.slane %v5741, 7
        %v5820 = vrot.slane %v5819, 2
        %v5821 = vrot.slane %v5761, 7
        %v5822 = vrot.slane %v5821, 2
        %v5823 = vrot.slane %v5762, 7
        %v5824 = vrot.slane %v5823, 2
        %v5825 = vrot.slane %v5763, 7
        %v5826 = vrot.slane %v5825, 2
        %v5827 = vrot.slane %v5742, 7
        %v5828 = vrot.slane %v5827, 2
        %v5829 = vrot.slane %v5764, 7
        %v5830 = vrot.slane %v5829, 2
        %v5831 = vrot.slane %v5765, 7
        %v5832 = vrot.slane %v5831, 2
        %v5833 = vrot.slane %v5766, 7
        %v5834 = vrot.slane %v5833, 2
        %v5835 = vrot.slane %v5743, 7
        %v5836 = vrot.slane %v5835, 2
        %v5837 = vrot.slane %v5767, 7
        %v5838 = vrot.slane %v5837, 2
        %v5839 = vrot.slane %v5768, 7
        %v5840 = vrot.slane %v5839, 2
        %v5841 = vrot.slane %v5769, 7
        %v5842 = vrot.slane %v5841, 2
        %v5843 = vrot.slane %v5744, 7
        %v5844 = vrot.slane %v5843, 2
        %v5845 = vrot.slane %v5770, 7
        %v5846 = vrot.slane %v5845, 2
        %v5847 = vrot.slane %v5771, 7
        %v5848 = vrot.slane %v5847, 2
        %v5849 = vrot.slane %v5772, 7
        %v5850 = vrot.slane %v5849, 2
        %v5851 = vrot.slane %v5745, 7
        %v5852 = vrot.slane %v5851, 2
        %v5853 = vrot.slane %v5773, 7
        %v5854 = vrot.slane %v5853, 2
        %v5855 = vrot.slane %v5774, 7
        %v5856 = vrot.slane %v5855, 2
        %v5857 = vrot.slane %v5775, 7
        %v5858 = vrot.slane %v5857, 2
        %v5859 = vrot.slane %v5746, 7
        %v5860 = vrot.slane %v5859, 2
        %v5861 = vrot.slane %v5776, 7
        %v5862 = vrot.slane %v5861, 2
        %v5863 = vrot.slane %v5777, 7
        %v5864 = vrot.slane %v5863, 2
        %v5865 = vrot.slane %v5778, 7
        %v5866 = vrot.slane %v5865, 2
        %v5899 = vmax.f32 %v5739, %v5804
        %v5900 = vmax.f32 %v5755, %v5806
        %v5901 = vmax.f32 %v5756, %v5808
        %v5902 = vmax.f32 %v5757, %v5810
        %v5903 = vmax.f32 %v5740, %v5812
        %v5904 = vmax.f32 %v5758, %v5814
        %v5905 = vmax.f32 %v5759, %v5816
        %v5906 = vmax.f32 %v5760, %v5818
        %v5907 = vmax.f32 %v5741, %v5820
        %v5908 = vmax.f32 %v5761, %v5822
        %v5909 = vmax.f32 %v5762, %v5824
        %v5910 = vmax.f32 %v5763, %v5826
        %v5911 = vmax.f32 %v5742, %v5828
        %v5912 = vmax.f32 %v5764, %v5830
        %v5913 = vmax.f32 %v5765, %v5832
        %v5914 = vmax.f32 %v5766, %v5834
        %v5915 = vmax.f32 %v5743, %v5836
        %v5916 = vmax.f32 %v5767, %v5838
        %v5917 = vmax.f32 %v5768, %v5840
        %v5918 = vmax.f32 %v5769, %v5842
        %v5919 = vmax.f32 %v5744, %v5844
        %v5920 = vmax.f32 %v5770, %v5846
        %v5921 = vmax.f32 %v5771, %v5848
        %v5922 = vmax.f32 %v5772, %v5850
        %v5923 = vmax.f32 %v5745, %v5852
        %v5924 = vmax.f32 %v5773, %v5854
        %v5925 = vmax.f32 %v5774, %v5856
        %v5926 = vmax.f32 %v5775, %v5858
        %v5927 = vmax.f32 %v5746, %v5860
        %v5928 = vmax.f32 %v5776, %v5862
        %v5929 = vmax.f32 %v5777, %v5864
        %v5930 = vmax.f32 %v5778, %v5866
        %vm5931 = vcmask 521216
        %5932 = vst.msk [vmem:[#allocation4] sm:$0x3f] %vm5931, 0.0
        %5933 = vst.msk [vmem:[#allocation4 + $0x8] sm:$0x3f] %vm5931, 0.0
        %5934 = vst.msk [vmem:[#allocation4 + $0x10] sm:$0x3f] %vm5931, 0.0
        %5935 = vst.msk [vmem:[#allocation4 + $0x18] sm:$0x3f] %vm5931, 0.0
        %5936 = vst.msk [vmem:[#allocation4 + $0x20] sm:$0x3f] %vm5931, 0.0
        %5937 = vst.msk [vmem:[#allocation4 + $0x28] sm:$0x3f] %vm5931, 0.0
        %5938 = vst.msk [vmem:[#allocation4 + $0x30] sm:$0x3f] %vm5931, 0.0
        %5939 = vst.msk [vmem:[#allocation4 + $0x38] sm:$0x3f] %vm5931, 0.0
        %5940 = vst.msk [vmem:[#allocation4 + $0x40] sm:$0x3f] %vm5931, 0.0
        %5941 = vst.msk [vmem:[#allocation4 + $0x48] sm:$0x3f] %vm5931, 0.0
        %5942 = vst.msk [vmem:[#allocation4 + $0x50] sm:$0x3f] %vm5931, 0.0
        %5943 = vst.msk [vmem:[#allocation4 + $0x58] sm:$0x3f] %vm5931, 0.0
        %v5976 = vperm.slane %v5899, 0
        %v5977 = vperm.slane %v5900, 0
        %v5978 = vperm.slane %v5901, 0
        %v5979 = vperm.slane %v5902, 0
        %v5980 = vperm.slane %v5903, 0
        %v5981 = vperm.slane %v5904, 0
        %v5982 = vperm.slane %v5905, 0
        %v5983 = vperm.slane %v5906, 0
        %v5984 = vperm.slane %v5907, 0
        %v5985 = vperm.slane %v5908, 0
        %v5986 = vperm.slane %v5909, 0
        %v5987 = vperm.slane %v5910, 0
        %v5988 = vperm.slane %v5911, 0
        %v5989 = vperm.slane %v5912, 0
        %v5990 = vperm.slane %v5913, 0
        %v5991 = vperm.slane %v5914, 0
        %v5992 = vperm.slane %v5915, 0
        %v5993 = vperm.slane %v5916, 0
        %v5994 = vperm.slane %v5917, 0
        %v5995 = vperm.slane %v5918, 0
        %v5996 = vperm.slane %v5919, 0
        %v5997 = vperm.slane %v5920, 0
        %v5998 = vperm.slane %v5921, 0
        %v5999 = vperm.slane %v5922, 0
        %v6000 = vperm.slane %v5923, 0
        %v6001 = vperm.slane %v5924, 0
        %v6002 = vperm.slane %v5925, 0
        %v6003 = vperm.slane %v5926, 0
        %v6004 = vperm.slane %v5927, 0
        %v6005 = vperm.slane %v5928, 0
        %v6006 = vperm.slane %v5929, 0
        %v6007 = vperm.slane %v5930, 0
        %v6008 = vsel %vm4490, %v5977, %v5976
        %v6009 = vsel %vm4492, %v5978, %v6008
        %v6010 = vsel %vm4494, %v5979, %v6009
        %v6011 = vsel %vm4490, %v5981, %v5980
        %v6012 = vsel %vm4492, %v5982, %v6011
        %v6013 = vsel %vm4494, %v5983, %v6012
        %v6014 = vsel %vm4490, %v5985, %v5984
        %v6015 = vsel %vm4492, %v5986, %v6014
        %v6016 = vsel %vm4494, %v5987, %v6015
        %v6017 = vsel %vm4490, %v5989, %v5988
        %v6018 = vsel %vm4492, %v5990, %v6017
        %v6019 = vsel %vm4494, %v5991, %v6018
        %v6020 = vsel %vm4490, %v5993, %v5992
        %v6021 = vsel %vm4492, %v5994, %v6020
        %v6022 = vsel %vm4494, %v5995, %v6021
        %v6023 = vsel %vm4490, %v5997, %v5996
        %v6024 = vsel %vm4492, %v5998, %v6023
        %v6025 = vsel %vm4494, %v5999, %v6024
        %v6026 = vsel %vm4490, %v6001, %v6000
        %v6027 = vsel %vm4492, %v6002, %v6026
        %v6028 = vsel %vm4494, %v6003, %v6027
        %v6029 = vsel %vm4490, %v6005, %v6004
        %v6030 = vsel %vm4492, %v6006, %v6029
        %v6031 = vsel %vm4494, %v6007, %v6030
        %s6040 = scalar_lea.vmem [#allocation4], 8
        %vm6041 = vcmask 519168
        %6042 = vst.msk [vmem:[%s6040 + $0x1] sm:$0xf] %vm6041, %v6010
        %6043 = vst.msk [vmem:[%s6040 + $0x9] sm:$0xf] %vm6041, %v6013
        %6044 = vst.msk [vmem:[%s6040 + $0x11] sm:$0xf] %vm6041, %v6016
        %6045 = vst.msk [vmem:[%s6040 + $0x19] sm:$0xf] %vm6041, %v6019
        %6046 = vst.msk [vmem:[%s6040 + $0x31] sm:$0xf] %vm6041, %v6022
        %6047 = vst.msk [vmem:[%s6040 + $0x39] sm:$0xf] %vm6041, %v6025
        %6048 = vst.msk [vmem:[%s6040 + $0x41] sm:$0xf] %vm6041, %v6028
        %6049 = vst.msk [vmem:[%s6040 + $0x49] sm:$0xf] %vm6041, %v6031
        %v6050 = vld [vmem:[#allocation4] sm:$0x3f]
        %v6051 = vld [vmem:[#allocation4 + $0x8] sm:$0x3f]
        %v6052 = vld [vmem:[#allocation4 + $0x10] sm:$0x3f]
        %v6053 = vld [vmem:[#allocation4 + $0x18] sm:$0x3f]
        %v6054 = vld [vmem:[#allocation4 + $0x20] sm:$0x3f]
        %v6055 = vld [vmem:[#allocation4 + $0x28] sm:$0x3f]
        %v6056 = vld [vmem:[#allocation4 + $0x30] sm:$0x3f]
        %v6057 = vld [vmem:[#allocation4 + $0x38] sm:$0x3f]
        %v6058 = vld [vmem:[#allocation4 + $0x40] sm:$0x3f]
        %v6059 = vld [vmem:[#allocation4 + $0x48] sm:$0x3f]
        %v6060 = vld [vmem:[#allocation4 + $0x50] sm:$0x3f]
        %v6061 = vld [vmem:[#allocation4 + $0x58] sm:$0x3f]
        %v6062 = vld [vmem:[%s5] sm:$0xff]
        %v6063 = vld [vmem:[%s5 + $0x8] sm:$0xff]
        %v6064 = vld [vmem:[%s5 + $0x10] sm:$0xff]
        %v6065 = vld [vmem:[%s5 + $0x18] sm:$0xff]
        %v6066 = vld [vmem:[%s5 + $0x20] sm:$0xff]
        %v6067 = vld [vmem:[%s5 + $0x28] sm:$0xff]
        %v6068 = vld [vmem:[%s5 + $0x30] sm:$0xff]
        %v6069 = vld [vmem:[%s5 + $0x38] sm:$0xff]
        %v6078 = vrot.slane %v6050, 4
        %v6079 = vrot.slane %v6051, 4
        %v6080 = vrot.slane %v6052, 4
        %v6081 = vrot.slane %v6053, 4
        %v6082 = vrot.slane %v6056, 4
        %v6083 = vrot.slane %v6057, 4
        %v6084 = vrot.slane %v6058, 4
        %v6085 = vrot.slane %v6059, 4
        %vm6086 = vcmask 1042432
        %vm6087 = vcmask 1046532
        %vm6088 = vmor %vm6086, %vm6087
        %v6089 = vrot.slane %v6050, 5
        %v6090 = vrot.slane %v6089, 4
        %v6091 = vrot.slane %v6078, 5
        %v6092 = vsel %vm6088, %v6090, %v6091
        %v6093 = vrot.slane %v6051, 5
        %v6094 = vrot.slane %v6093, 4
        %v6095 = vrot.slane %v6079, 5
        %v6096 = vsel %vm6088, %v6094, %v6095
        %v6097 = vrot.slane %v6052, 5
        %v6098 = vrot.slane %v6097, 4
        %v6099 = vrot.slane %v6080, 5
        %v6100 = vsel %vm6088, %v6098, %v6099
        %v6101 = vrot.slane %v6053, 5
        %v6102 = vrot.slane %v6101, 4
        %v6103 = vrot.slane %v6081, 5
        %v6104 = vsel %vm6088, %v6102, %v6103
        %v6105 = vrot.slane %v6056, 5
        %v6106 = vrot.slane %v6105, 4
        %v6107 = vrot.slane %v6082, 5
        %v6108 = vsel %vm6088, %v6106, %v6107
        %v6109 = vrot.slane %v6057, 5
        %v6110 = vrot.slane %v6109, 4
        %v6111 = vrot.slane %v6083, 5
        %v6112 = vsel %vm6088, %v6110, %v6111
        %v6113 = vrot.slane %v6058, 5
        %v6114 = vrot.slane %v6113, 4
        %v6115 = vrot.slane %v6084, 5
        %v6116 = vsel %vm6088, %v6114, %v6115
        %v6117 = vrot.slane %v6059, 5
        %v6118 = vrot.slane %v6117, 4
        %v6119 = vrot.slane %v6085, 5
        %v6120 = vsel %vm6088, %v6118, %v6119
        %s6121 = scalar_lea.vmem %s5, 64
        %v6122 = vld [vmem:[%s6121] sm:$0xff]
        %v6123 = vld [vmem:[%s6121 + $0x8] sm:$0xff]
        %v6124 = vld [vmem:[%s6121 + $0x10] sm:$0xff]
        %v6125 = vld [vmem:[%s6121 + $0x18] sm:$0xff]
        %v6126 = vld [vmem:[%s6121 + $0x20] sm:$0xff]
        %v6127 = vld [vmem:[%s6121 + $0x28] sm:$0xff]
        %v6128 = vld [vmem:[%s6121 + $0x30] sm:$0xff]
        %v6129 = vld [vmem:[%s6121 + $0x38] sm:$0xff]
        %6130 = vst [vmem:[#allocation1] ss:$2 sm:$0xff] %v6092
        %s6131 = scalar_lea.vmem [#allocation1], 1
        %6132 = vst [vmem:[%s6131] ss:$2 sm:$0xff] %v6096
        %s6133 = scalar_lea.vmem [#allocation1], 16
        %6134 = vst [vmem:[%s6133] ss:$2 sm:$0xff] %v6100
        %s6135 = scalar_lea.vmem [#allocation1], 17
        %6136 = vst [vmem:[%s6135] ss:$2 sm:$0xff] %v6104
        %s6137 = scalar_lea.vmem [#allocation1], 32
        %6138 = vst [vmem:[%s6137] ss:$2 sm:$0xff] %v6108
        %s6139 = scalar_lea.vmem [#allocation1], 33
        %6140 = vst [vmem:[%s6139] ss:$2 sm:$0xff] %v6112
        %s6141 = scalar_lea.vmem [#allocation1], 48
        %6142 = vst [vmem:[%s6141] ss:$2 sm:$0xff] %v6116
        %s6143 = scalar_lea.vmem [#allocation1], 49
        %6144 = vst [vmem:[%s6143] ss:$2 sm:$0xff] %v6120
        %v6145 = vld.sshfl [vmem:[#allocation1] sm:$0xff pattern:$0x75316420]
        %v6146 = vld.sshfl [vmem:[#allocation1 + $0x10] sm:$0xff pattern:$0x75316420]
        %v6147 = vld.sshfl [vmem:[#allocation1 + $0x20] sm:$0xff pattern:$0x75316420]
        %v6148 = vld.sshfl [vmem:[#allocation1 + $0x30] sm:$0xff pattern:$0x75316420]
        %vm6149 = vcmask 523264
        %v6150 = vsel %vm6149, %v6145, 0
        %v6152 = vsel %vm6149, %v6146, 0
        %v6154 = vsel %vm6149, %v6147, 0
        %v6156 = vsel %vm6149, %v6148, 0
        %6158 = vmatpush.msra.mxu0 0.0
        %6159 = vmatpush.msra.mxu0 0.0
        %6160 = vmatpush.msra.mxu0 0.0
        %6161 = vmatpush.msra.mxu0 0.0
        %6162 = vmatpush.msra.mxu0 0.0
        %6163 = vmatpush.msra.mxu0 0.0
        %6164 = vmatpush.msra.mxu0 0.0
        %6165 = vmatpush.msra.mxu0 0.0
        %6166 = vmatpush.msra.mxu0 %v6129
        %6167 = vmatpush.msra.mxu0 %v6128
        %6168 = vmatpush.msra.mxu0 %v6127
        %6169 = vmatpush.msra.mxu0 %v6126
        %6170 = vmatpush.msra.mxu0 %v6125
        %6171 = vmatpush.msra.mxu0 %v6124
        %6172 = vmatpush.msra.mxu0 %v6123
        %6173 = vmatpush.msra.mxu0 %v6122
        %6174 = vmatmul.f32.gmra.mxu0 %v6150
        %v6175 = vpop.f32.mrf.mxu0
        %v6176 = vadd.f32 0.0, %v6175
        %6177 = vmatmul.f32.gmra.mxu0 %v6152
        %v6178 = vpop.f32.mrf.mxu0
        %v6179 = vadd.f32 0.0, %v6178
        %6180 = vmatmul.f32.gmra.mxu0 %v6154
        %v6181 = vpop.f32.mrf.mxu0
        %v6182 = vadd.f32 0.0, %v6181
        %6183 = vmatmul.f32.gmra.mxu0 %v6156
        %v6184 = vpop.f32.mrf.mxu0
        %v6185 = vadd.f32 0.0, %v6184
        %6186 = vdwg.mxu0
        %6187 = vst [vmem:[#allocation1] ss:$2 sm:$0xff] %v6050
        %s6188 = scalar_lea.vmem [#allocation1], 1
        %6189 = vst [vmem:[%s6188] ss:$2 sm:$0xff] %v6051
        %s6190 = scalar_lea.vmem [#allocation1], 16
        %6191 = vst [vmem:[%s6190] ss:$2 sm:$0xff] %v6052
        %s6192 = scalar_lea.vmem [#allocation1], 17
        %6193 = vst [vmem:[%s6192] ss:$2 sm:$0xff] %v6053
        %s6194 = scalar_lea.vmem [#allocation1], 32
        %6195 = vst [vmem:[%s6194] ss:$2 sm:$0xff] %v6056
        %s6196 = scalar_lea.vmem [#allocation1], 33
        %6197 = vst [vmem:[%s6196] ss:$2 sm:$0xff] %v6057
        %s6198 = scalar_lea.vmem [#allocation1], 48
        %6199 = vst [vmem:[%s6198] ss:$2 sm:$0xff] %v6058
        %s6200 = scalar_lea.vmem [#allocation1], 49
        %6201 = vst [vmem:[%s6200] ss:$2 sm:$0xff] %v6059
        %v6202 = vld.sshfl [vmem:[#allocation1] sm:$0xff pattern:$0x75316420]
        %v6203 = vld.sshfl [vmem:[#allocation1 + $0x10] sm:$0xff pattern:$0x75316420]
        %v6204 = vld.sshfl [vmem:[#allocation1 + $0x20] sm:$0xff pattern:$0x75316420]
        %v6205 = vld.sshfl [vmem:[#allocation1 + $0x30] sm:$0xff pattern:$0x75316420]
        %v6206 = vsel %vm6149, %v6202, 0
        %v6208 = vsel %vm6149, %v6203, 0
        %v6210 = vsel %vm6149, %v6204, 0
        %v6212 = vsel %vm6149, %v6205, 0
        %6214 = vmatpush.msra.mxu0 0.0
        %6215 = vmatpush.msra.mxu0 0.0
        %6216 = vmatpush.msra.mxu0 0.0
        %6217 = vmatpush.msra.mxu0 0.0
        %6218 = vmatpush.msra.mxu0 0.0
        %6219 = vmatpush.msra.mxu0 0.0
        %6220 = vmatpush.msra.mxu0 0.0
        %6221 = vmatpush.msra.mxu0 0.0
        %6222 = vmatpush.msra.mxu0 %v6069
        %6223 = vmatpush.msra.mxu0 %v6068
        %6224 = vmatpush.msra.mxu0 %v6067
        %6225 = vmatpush.msra.mxu0 %v6066
        %6226 = vmatpush.msra.mxu0 %v6065
        %6227 = vmatpush.msra.mxu0 %v6064
        %6228 = vmatpush.msra.mxu0 %v6063
        %6229 = vmatpush.msra.mxu0 %v6062
        %6230 = vmatmul.f32.gmra.mxu0 %v6206
        %v6231 = vpop.f32.mrf.mxu0
        %v6232 = vadd.f32 %v6176, %v6231
        %6233 = vmatmul.f32.gmra.mxu0 %v6208
        %v6234 = vpop.f32.mrf.mxu0
        %v6235 = vadd.f32 %v6179, %v6234
        %6236 = vmatmul.f32.gmra.mxu0 %v6210
        %v6237 = vpop.f32.mrf.mxu0
        %v6238 = vadd.f32 %v6182, %v6237
        %6239 = vmatmul.f32.gmra.mxu0 %v6212
        %v6240 = vpop.f32.mrf.mxu0
        %v6241 = vadd.f32 %v6185, %v6240
        %6242 = vdwg.mxu0
        %vm6243 = vcmask 1041408
        %vm6244 = vcmask 1045508
        %vm6245 = vmor %vm6243, %vm6244
        %v6246 = vrot.slane %v6050, 6
        %v6247 = vrot.slane %v6246, 4
        %v6248 = vrot.slane %v6078, 6
        %v6249 = vsel %vm6245, %v6247, %v6248
        %v6250 = vrot.slane %v6051, 6
        %v6251 = vrot.slane %v6250, 4
        %v6252 = vrot.slane %v6079, 6
        %v6253 = vsel %vm6245, %v6251, %v6252
        %v6254 = vrot.slane %v6052, 6
        %v6255 = vrot.slane %v6254, 4
        %v6256 = vrot.slane %v6080, 6
        %v6257 = vsel %vm6245, %v6255, %v6256
        %v6258 = vrot.slane %v6053, 6
        %v6259 = vrot.slane %v6258, 4
        %v6260 = vrot.slane %v6081, 6
        %v6261 = vsel %vm6245, %v6259, %v6260
        %v6262 = vrot.slane %v6056, 6
        %v6263 = vrot.slane %v6262, 4
        %v6264 = vrot.slane %v6082, 6
        %v6265 = vsel %vm6245, %v6263, %v6264
        %v6266 = vrot.slane %v6057, 6
        %v6267 = vrot.slane %v6266, 4
        %v6268 = vrot.slane %v6083, 6
        %v6269 = vsel %vm6245, %v6267, %v6268
        %v6270 = vrot.slane %v6058, 6
        %v6271 = vrot.slane %v6270, 4
        %v6272 = vrot.slane %v6084, 6
        %v6273 = vsel %vm6245, %v6271, %v6272
        %v6274 = vrot.slane %v6059, 6
        %v6275 = vrot.slane %v6274, 4
        %v6276 = vrot.slane %v6085, 6
        %v6277 = vsel %vm6245, %v6275, %v6276
        %s6278 = scalar_lea.vmem %s5, 128
        %v6279 = vld [vmem:[%s6278] sm:$0xff]
        %v6280 = vld [vmem:[%s6278 + $0x8] sm:$0xff]
        %v6281 = vld [vmem:[%s6278 + $0x10] sm:$0xff]
        %v6282 = vld [vmem:[%s6278 + $0x18] sm:$0xff]
        %v6283 = vld [vmem:[%s6278 + $0x20] sm:$0xff]
        %v6284 = vld [vmem:[%s6278 + $0x28] sm:$0xff]
        %v6285 = vld [vmem:[%s6278 + $0x30] sm:$0xff]
        %v6286 = vld [vmem:[%s6278 + $0x38] sm:$0xff]
        %6287 = vst [vmem:[#allocation1] ss:$2 sm:$0xff] %v6249
        %s6288 = scalar_lea.vmem [#allocation1], 1
        %6289 = vst [vmem:[%s6288] ss:$2 sm:$0xff] %v6253
        %s6290 = scalar_lea.vmem [#allocation1], 16
        %6291 = vst [vmem:[%s6290] ss:$2 sm:$0xff] %v6257
        %s6292 = scalar_lea.vmem [#allocation1], 17
        %6293 = vst [vmem:[%s6292] ss:$2 sm:$0xff] %v6261
        %s6294 = scalar_lea.vmem [#allocation1], 32
        %6295 = vst [vmem:[%s6294] ss:$2 sm:$0xff] %v6265
        %s6296 = scalar_lea.vmem [#allocation1], 33
        %6297 = vst [vmem:[%s6296] ss:$2 sm:$0xff] %v6269
        %s6298 = scalar_lea.vmem [#allocation1], 48
        %6299 = vst [vmem:[%s6298] ss:$2 sm:$0xff] %v6273
        %s6300 = scalar_lea.vmem [#allocation1], 49
        %6301 = vst [vmem:[%s6300] ss:$2 sm:$0xff] %v6277
        %v6302 = vld.sshfl [vmem:[#allocation1] sm:$0xff pattern:$0x75316420]
        %v6303 = vld.sshfl [vmem:[#allocation1 + $0x10] sm:$0xff pattern:$0x75316420]
        %v6304 = vld.sshfl [vmem:[#allocation1 + $0x20] sm:$0xff pattern:$0x75316420]
        %v6305 = vld.sshfl [vmem:[#allocation1 + $0x30] sm:$0xff pattern:$0x75316420]
        %v6306 = vsel %vm6149, %v6302, 0
        %v6308 = vsel %vm6149, %v6303, 0
        %v6310 = vsel %vm6149, %v6304, 0
        %v6312 = vsel %vm6149, %v6305, 0
        %6314 = vmatpush.msra.mxu0 0.0
        %6315 = vmatpush.msra.mxu0 0.0
        %6316 = vmatpush.msra.mxu0 0.0
        %6317 = vmatpush.msra.mxu0 0.0
        %6318 = vmatpush.msra.mxu0 0.0
        %6319 = vmatpush.msra.mxu0 0.0
        %6320 = vmatpush.msra.mxu0 0.0
        %6321 = vmatpush.msra.mxu0 0.0
        %6322 = vmatpush.msra.mxu0 %v6286
        %6323 = vmatpush.msra.mxu0 %v6285
        %6324 = vmatpush.msra.mxu0 %v6284
        %6325 = vmatpush.msra.mxu0 %v6283
        %6326 = vmatpush.msra.mxu0 %v6282
        %6327 = vmatpush.msra.mxu0 %v6281
        %6328 = vmatpush.msra.mxu0 %v6280
        %6329 = vmatpush.msra.mxu0 %v6279
        %6330 = vmatmul.f32.gmra.mxu0 %v6306
        %v6331 = vpop.f32.mrf.mxu0
        %v6332 = vadd.f32 0.0, %v6331
        %6333 = vmatmul.f32.gmra.mxu0 %v6308
        %v6334 = vpop.f32.mrf.mxu0
        %v6335 = vadd.f32 0.0, %v6334
        %6336 = vmatmul.f32.gmra.mxu0 %v6310
        %v6337 = vpop.f32.mrf.mxu0
        %v6338 = vadd.f32 0.0, %v6337
        %6339 = vmatmul.f32.gmra.mxu0 %v6312
        %v6340 = vpop.f32.mrf.mxu0
        %v6341 = vadd.f32 0.0, %v6340
        %6342 = vdwg.mxu0
        %v6343 = vadd.f32 %v6232, %v6332
        %v6344 = vadd.f32 %v6235, %v6335
        %v6345 = vadd.f32 %v6238, %v6338
        %v6346 = vadd.f32 %v6241, %v6341
        %s6347 = scalar_lea.vmem %s5, 192
        %v6348 = vld [vmem:[%s6347] sm:$0xff]
        %v6349 = vld [vmem:[%s6347 + $0x8] sm:$0xff]
        %v6350 = vld [vmem:[%s6347 + $0x10] sm:$0xff]
        %v6351 = vld [vmem:[%s6347 + $0x18] sm:$0xff]
        %v6352 = vld [vmem:[%s6347 + $0x20] sm:$0xff]
        %v6353 = vld [vmem:[%s6347 + $0x28] sm:$0xff]
        %v6354 = vld [vmem:[%s6347 + $0x30] sm:$0xff]
        %v6355 = vld [vmem:[%s6347 + $0x38] sm:$0xff]
        %6358 = vst [vmem:[#allocation1] ss:$2 sm:$0xff] %v6051
        %s6359 = scalar_lea.vmem [#allocation1], 1
        %6360 = vst [vmem:[%s6359] ss:$2 sm:$0xff] %v6052
        %s6361 = scalar_lea.vmem [#allocation1], 16
        %6362 = vst [vmem:[%s6361] ss:$2 sm:$0xff] %v6053
        %s6363 = scalar_lea.vmem [#allocation1], 17
        %6364 = vst [vmem:[%s6363] ss:$2 sm:$0xff] %v6054
        %s6365 = scalar_lea.vmem [#allocation1], 32
        %6366 = vst [vmem:[%s6365] ss:$2 sm:$0xff] %v6057
        %s6367 = scalar_lea.vmem [#allocation1], 33
        %6368 = vst [vmem:[%s6367] ss:$2 sm:$0xff] %v6058
        %s6369 = scalar_lea.vmem [#allocation1], 48
        %6370 = vst [vmem:[%s6369] ss:$2 sm:$0xff] %v6059
        %s6371 = scalar_lea.vmem [#allocation1], 49
        %6372 = vst [vmem:[%s6371] ss:$2 sm:$0xff] %v6060
        %v6373 = vld.sshfl [vmem:[#allocation1] sm:$0xff pattern:$0x75316420]
        %v6374 = vld.sshfl [vmem:[#allocation1 + $0x10] sm:$0xff pattern:$0x75316420]
        %v6375 = vld.sshfl [vmem:[#allocation1 + $0x20] sm:$0xff pattern:$0x75316420]
        %v6376 = vld.sshfl [vmem:[#allocation1 + $0x30] sm:$0xff pattern:$0x75316420]
        %v6377 = vsel %vm6149, %v6373, 0
        %v6379 = vsel %vm6149, %v6374, 0
        %v6381 = vsel %vm6149, %v6375, 0
        %v6383 = vsel %vm6149, %v6376, 0
        %6385 = vmatpush.msra.mxu0 0.0
        %6386 = vmatpush.msra.mxu0 0.0
        %6387 = vmatpush.msra.mxu0 0.0
        %6388 = vmatpush.msra.mxu0 0.0
        %6389 = vmatpush.msra.mxu0 0.0
        %6390 = vmatpush.msra.mxu0 0.0
        %6391 = vmatpush.msra.mxu0 0.0
        %6392 = vmatpush.msra.mxu0 0.0
        %6393 = vmatpush.msra.mxu0 %v6355
        %6394 = vmatpush.msra.mxu0 %v6354
        %6395 = vmatpush.msra.mxu0 %v6353
        %6396 = vmatpush.msra.mxu0 %v6352
        %6397 = vmatpush.msra.mxu0 %v6351
        %6398 = vmatpush.msra.mxu0 %v6350
        %6399 = vmatpush.msra.mxu0 %v6349
        %6400 = vmatpush.msra.mxu0 %v6348
        %6401 = vmatmul.f32.gmra.mxu0 %v6377
        %v6402 = vpop.f32.mrf.mxu0
        %v6403 = vadd.f32 0.0, %v6402
        %6404 = vmatmul.f32.gmra.mxu0 %v6379
        %v6405 = vpop.f32.mrf.mxu0
        %v6406 = vadd.f32 0.0, %v6405
        %6407 = vmatmul.f32.gmra.mxu0 %v6381
        %v6408 = vpop.f32.mrf.mxu0
        %v6409 = vadd.f32 0.0, %v6408
        %6410 = vmatmul.f32.gmra.mxu0 %v6383
        %v6411 = vpop.f32.mrf.mxu0
        %v6412 = vadd.f32 0.0, %v6411
        %6413 = vdwg.mxu0
        %v6414 = vadd.f32 %v6343, %v6403
        %v6415 = vadd.f32 %v6344, %v6406
        %v6416 = vadd.f32 %v6345, %v6409
        %v6417 = vadd.f32 %v6346, %v6412
        %v6418 = vrot.slane %v6054, 4
        %v6419 = vrot.slane %v6060, 4
        %v6420 = vrot.slane %v6054, 5
        %v6421 = vrot.slane %v6420, 4
        %v6422 = vrot.slane %v6418, 5
        %v6423 = vsel %vm6088, %v6421, %v6422
        %v6424 = vrot.slane %v6060, 5
        %v6425 = vrot.slane %v6424, 4
        %v6426 = vrot.slane %v6419, 5
        %v6427 = vsel %vm6088, %v6425, %v6426
        %s6428 = scalar_lea.vmem %s5, 256
        %v6429 = vld [vmem:[%s6428] sm:$0xff]
        %v6430 = vld [vmem:[%s6428 + $0x8] sm:$0xff]
        %v6431 = vld [vmem:[%s6428 + $0x10] sm:$0xff]
        %v6432 = vld [vmem:[%s6428 + $0x18] sm:$0xff]
        %v6433 = vld [vmem:[%s6428 + $0x20] sm:$0xff]
        %v6434 = vld [vmem:[%s6428 + $0x28] sm:$0xff]
        %v6435 = vld [vmem:[%s6428 + $0x30] sm:$0xff]
        %v6436 = vld [vmem:[%s6428 + $0x38] sm:$0xff]
        %6437 = vst [vmem:[#allocation1] ss:$2 sm:$0xff] %v6096
        %s6438 = scalar_lea.vmem [#allocation1], 1
        %6439 = vst [vmem:[%s6438] ss:$2 sm:$0xff] %v6100
        %s6440 = scalar_lea.vmem [#allocation1], 16
        %6441 = vst [vmem:[%s6440] ss:$2 sm:$0xff] %v6104
        %s6442 = scalar_lea.vmem [#allocation1], 17
        %6443 = vst [vmem:[%s6442] ss:$2 sm:$0xff] %v6423
        %s6444 = scalar_lea.vmem [#allocation1], 32
        %6445 = vst [vmem:[%s6444] ss:$2 sm:$0xff] %v6112
        %s6446 = scalar_lea.vmem [#allocation1], 33
        %6447 = vst [vmem:[%s6446] ss:$2 sm:$0xff] %v6116
        %s6448 = scalar_lea.vmem [#allocation1], 48
        %6449 = vst [vmem:[%s6448] ss:$2 sm:$0xff] %v6120
        %s6450 = scalar_lea.vmem [#allocation1], 49
        %6451 = vst [vmem:[%s6450] ss:$2 sm:$0xff] %v6427
        %v6452 = vld.sshfl [vmem:[#allocation1] sm:$0xff pattern:$0x75316420]
        %v6453 = vld.sshfl [vmem:[#allocation1 + $0x10] sm:$0xff pattern:$0x75316420]
        %v6454 = vld.sshfl [vmem:[#allocation1 + $0x20] sm:$0xff pattern:$0x75316420]
        %v6455 = vld.sshfl [vmem:[#allocation1 + $0x30] sm:$0xff pattern:$0x75316420]
        %v6456 = vsel %vm6149, %v6452, 0
        %v6458 = vsel %vm6149, %v6453, 0
        %v6460 = vsel %vm6149, %v6454, 0
        %v6462 = vsel %vm6149, %v6455, 0
        %6464 = vmatpush.msra.mxu0 0.0
        %6465 = vmatpush.msra.mxu0 0.0
        %6466 = vmatpush.msra.mxu0 0.0
        %6467 = vmatpush.msra.mxu0 0.0
        %6468 = vmatpush.msra.mxu0 0.0
        %6469 = vmatpush.msra.mxu0 0.0
        %6470 = vmatpush.msra.mxu0 0.0
        %6471 = vmatpush.msra.mxu0 0.0
        %6472 = vmatpush.msra.mxu0 %v6436
        %6473 = vmatpush.msra.mxu0 %v6435
        %6474 = vmatpush.msra.mxu0 %v6434
        %6475 = vmatpush.msra.mxu0 %v6433
        %6476 = vmatpush.msra.mxu0 %v6432
        %6477 = vmatpush.msra.mxu0 %v6431
        %6478 = vmatpush.msra.mxu0 %v6430
        %6479 = vmatpush.msra.mxu0 %v6429
        %6480 = vmatmul.f32.gmra.mxu0 %v6456
        %v6481 = vpop.f32.mrf.mxu0
        %v6482 = vadd.f32 0.0, %v6481
        %6483 = vmatmul.f32.gmra.mxu0 %v6458
        %v6484 = vpop.f32.mrf.mxu0
        %v6485 = vadd.f32 0.0, %v6484
        %6486 = vmatmul.f32.gmra.mxu0 %v6460
        %v6487 = vpop.f32.mrf.mxu0
        %v6488 = vadd.f32 0.0, %v6487
        %6489 = vmatmul.f32.gmra.mxu0 %v6462
        %v6490 = vpop.f32.mrf.mxu0
        %v6491 = vadd.f32 0.0, %v6490
        %6492 = vdwg.mxu0
        %v6493 = vadd.f32 %v6414, %v6482
        %v6494 = vadd.f32 %v6415, %v6485
        %v6495 = vadd.f32 %v6416, %v6488
        %v6496 = vadd.f32 %v6417, %v6491
        %v6497 = vrot.slane %v6054, 6
        %v6498 = vrot.slane %v6497, 4
        %v6499 = vrot.slane %v6418, 6
        %v6500 = vsel %vm6245, %v6498, %v6499
        %v6501 = vrot.slane %v6060, 6
        %v6502 = vrot.slane %v6501, 4
        %v6503 = vrot.slane %v6419, 6
        %v6504 = vsel %vm6245, %v6502, %v6503
        %s6505 = scalar_lea.vmem %s5, 320
        %v6506 = vld [vmem:[%s6505] sm:$0xff]
        %v6507 = vld [vmem:[%s6505 + $0x8] sm:$0xff]
        %v6508 = vld [vmem:[%s6505 + $0x10] sm:$0xff]
        %v6509 = vld [vmem:[%s6505 + $0x18] sm:$0xff]
        %v6510 = vld [vmem:[%s6505 + $0x20] sm:$0xff]
        %v6511 = vld [vmem:[%s6505 + $0x28] sm:$0xff]
        %v6512 = vld [vmem:[%s6505 + $0x30] sm:$0xff]
        %v6513 = vld [vmem:[%s6505 + $0x38] sm:$0xff]
        %6514 = vst [vmem:[#allocation1] ss:$2 sm:$0xff] %v6253
        %s6515 = scalar_lea.vmem [#allocation1], 1
        %6516 = vst [vmem:[%s6515] ss:$2 sm:$0xff] %v6257
        %s6517 = scalar_lea.vmem [#allocation1], 16
        %6518 = vst [vmem:[%s6517] ss:$2 sm:$0xff] %v6261
        %s6519 = scalar_lea.vmem [#allocation1], 17
        %6520 = vst [vmem:[%s6519] ss:$2 sm:$0xff] %v6500
        %s6521 = scalar_lea.vmem [#allocation1], 32
        %6522 = vst [vmem:[%s6521] ss:$2 sm:$0xff] %v6269
        %s6523 = scalar_lea.vmem [#allocation1], 33
        %6524 = vst [vmem:[%s6523] ss:$2 sm:$0xff] %v6273
        %s6525 = scalar_lea.vmem [#allocation1], 48
        %6526 = vst [vmem:[%s6525] ss:$2 sm:$0xff] %v6277
        %s6527 = scalar_lea.vmem [#allocation1], 49
        %6528 = vst [vmem:[%s6527] ss:$2 sm:$0xff] %v6504
        %v6529 = vld.sshfl [vmem:[#allocation1] sm:$0xff pattern:$0x75316420]
        %v6530 = vld.sshfl [vmem:[#allocation1 + $0x10] sm:$0xff pattern:$0x75316420]
        %v6531 = vld.sshfl [vmem:[#allocation1 + $0x20] sm:$0xff pattern:$0x75316420]
        %v6532 = vld.sshfl [vmem:[#allocation1 + $0x30] sm:$0xff pattern:$0x75316420]
        %v6533 = vsel %vm6149, %v6529, 0
        %v6535 = vsel %vm6149, %v6530, 0
        %v6537 = vsel %vm6149, %v6531, 0
        %v6539 = vsel %vm6149, %v6532, 0
        %6541 = vmatpush.msra.mxu0 0.0
        %6542 = vmatpush.msra.mxu0 0.0
        %6543 = vmatpush.msra.mxu0 0.0
        %6544 = vmatpush.msra.mxu0 0.0
        %6545 = vmatpush.msra.mxu0 0.0
        %6546 = vmatpush.msra.mxu0 0.0
        %6547 = vmatpush.msra.mxu0 0.0
        %6548 = vmatpush.msra.mxu0 0.0
        %6549 = vmatpush.msra.mxu0 %v6513
        %6550 = vmatpush.msra.mxu0 %v6512
        %6551 = vmatpush.msra.mxu0 %v6511
        %6552 = vmatpush.msra.mxu0 %v6510
        %6553 = vmatpush.msra.mxu0 %v6509
        %6554 = vmatpush.msra.mxu0 %v6508
        %6555 = vmatpush.msra.mxu0 %v6507
        %6556 = vmatpush.msra.mxu0 %v6506
        %6557 = vmatmul.f32.gmra.mxu0 %v6533
        %v6558 = vpop.f32.mrf.mxu0
        %v6559 = vadd.f32 0.0, %v6558
        %6560 = vmatmul.f32.gmra.mxu0 %v6535
        %v6561 = vpop.f32.mrf.mxu0
        %v6562 = vadd.f32 0.0, %v6561
        %6563 = vmatmul.f32.gmra.mxu0 %v6537
        %v6564 = vpop.f32.mrf.mxu0
        %v6565 = vadd.f32 0.0, %v6564
        %6566 = vmatmul.f32.gmra.mxu0 %v6539
        %v6567 = vpop.f32.mrf.mxu0
        %v6568 = vadd.f32 0.0, %v6567
        %6569 = vdwg.mxu0
        %v6570 = vadd.f32 %v6493, %v6559
        %v6571 = vadd.f32 %v6494, %v6562
        %v6572 = vadd.f32 %v6495, %v6565
        %v6573 = vadd.f32 %v6496, %v6568
        %s6574 = scalar_lea.vmem %s5, 384
        %v6575 = vld [vmem:[%s6574] sm:$0xff]
        %v6576 = vld [vmem:[%s6574 + $0x8] sm:$0xff]
        %v6577 = vld [vmem:[%s6574 + $0x10] sm:$0xff]
        %v6578 = vld [vmem:[%s6574 + $0x18] sm:$0xff]
        %v6579 = vld [vmem:[%s6574 + $0x20] sm:$0xff]
        %v6580 = vld [vmem:[%s6574 + $0x28] sm:$0xff]
        %v6581 = vld [vmem:[%s6574 + $0x30] sm:$0xff]
        %v6582 = vld [vmem:[%s6574 + $0x38] sm:$0xff]
        %6585 = vst [vmem:[#allocation1] ss:$2 sm:$0xff] %v6052
        %s6586 = scalar_lea.vmem [#allocation1], 1
        %6587 = vst [vmem:[%s6586] ss:$2 sm:$0xff] %v6053
        %s6588 = scalar_lea.vmem [#allocation1], 16
        %6589 = vst [vmem:[%s6588] ss:$2 sm:$0xff] %v6054
        %s6590 = scalar_lea.vmem [#allocation1], 17
        %6591 = vst [vmem:[%s6590] ss:$2 sm:$0xff] %v6055
        %s6592 = scalar_lea.vmem [#allocation1], 32
        %6593 = vst [vmem:[%s6592] ss:$2 sm:$0xff] %v6058
        %s6594 = scalar_lea.vmem [#allocation1], 33
        %6595 = vst [vmem:[%s6594] ss:$2 sm:$0xff] %v6059
        %s6596 = scalar_lea.vmem [#allocation1], 48
        %6597 = vst [vmem:[%s6596] ss:$2 sm:$0xff] %v6060
        %s6598 = scalar_lea.vmem [#allocation1], 49
        %6599 = vst [vmem:[%s6598] ss:$2 sm:$0xff] %v6061
        %v6600 = vld.sshfl [vmem:[#allocation1] sm:$0xff pattern:$0x75316420]
        %v6601 = vld.sshfl [vmem:[#allocation1 + $0x10] sm:$0xff pattern:$0x75316420]
        %v6602 = vld.sshfl [vmem:[#allocation1 + $0x20] sm:$0xff pattern:$0x75316420]
        %v6603 = vld.sshfl [vmem:[#allocation1 + $0x30] sm:$0xff pattern:$0x75316420]
        %v6604 = vsel %vm6149, %v6600, 0
        %v6606 = vsel %vm6149, %v6601, 0
        %v6608 = vsel %vm6149, %v6602, 0
        %v6610 = vsel %vm6149, %v6603, 0
        %6612 = vmatpush.msra.mxu0 0.0
        %6613 = vmatpush.msra.mxu0 0.0
        %6614 = vmatpush.msra.mxu0 0.0
        %6615 = vmatpush.msra.mxu0 0.0
        %6616 = vmatpush.msra.mxu0 0.0
        %6617 = vmatpush.msra.mxu0 0.0
        %6618 = vmatpush.msra.mxu0 0.0
        %6619 = vmatpush.msra.mxu0 0.0
        %6620 = vmatpush.msra.mxu0 %v6582
        %6621 = vmatpush.msra.mxu0 %v6581
        %6622 = vmatpush.msra.mxu0 %v6580
        %6623 = vmatpush.msra.mxu0 %v6579
        %6624 = vmatpush.msra.mxu0 %v6578
        %6625 = vmatpush.msra.mxu0 %v6577
        %6626 = vmatpush.msra.mxu0 %v6576
        %6627 = vmatpush.msra.mxu0 %v6575
        %6628 = vmatmul.f32.gmra.mxu0 %v6604
        %v6629 = vpop.f32.mrf.mxu0
        %v6630 = vadd.f32 0.0, %v6629
        %6631 = vmatmul.f32.gmra.mxu0 %v6606
        %v6632 = vpop.f32.mrf.mxu0
        %v6633 = vadd.f32 0.0, %v6632
        %6634 = vmatmul.f32.gmra.mxu0 %v6608
        %v6635 = vpop.f32.mrf.mxu0
        %v6636 = vadd.f32 0.0, %v6635
        %6637 = vmatmul.f32.gmra.mxu0 %v6610
        %v6638 = vpop.f32.mrf.mxu0
        %v6639 = vadd.f32 0.0, %v6638
        %6640 = vdwg.mxu0
        %v6641 = vadd.f32 %v6570, %v6630
        %v6642 = vadd.f32 %v6571, %v6633
        %v6643 = vadd.f32 %v6572, %v6636
        %v6644 = vadd.f32 %v6573, %v6639
        %v6645 = vrot.slane %v6055, 4
        %v6646 = vrot.slane %v6061, 4
        %v6647 = vrot.slane %v6055, 5
        %v6648 = vrot.slane %v6647, 4
        %v6649 = vrot.slane %v6645, 5
        %v6650 = vsel %vm6088, %v6648, %v6649
        %v6651 = vrot.slane %v6061, 5
        %v6652 = vrot.slane %v6651, 4
        %v6653 = vrot.slane %v6646, 5
        %v6654 = vsel %vm6088, %v6652, %v6653
        %s6655 = scalar_lea.vmem %s5, 448
        %v6656 = vld [vmem:[%s6655] sm:$0xff]
        %v6657 = vld [vmem:[%s6655 + $0x8] sm:$0xff]
        %v6658 = vld [vmem:[%s6655 + $0x10] sm:$0xff]
        %v6659 = vld [vmem:[%s6655 + $0x18] sm:$0xff]
        %v6660 = vld [vmem:[%s6655 + $0x20] sm:$0xff]
        %v6661 = vld [vmem:[%s6655 + $0x28] sm:$0xff]
        %v6662 = vld [vmem:[%s6655 + $0x30] sm:$0xff]
        %v6663 = vld [vmem:[%s6655 + $0x38] sm:$0xff]
        %6664 = vst [vmem:[#allocation1] ss:$2 sm:$0xff] %v6100
        %s6665 = scalar_lea.vmem [#allocation1], 1
        %6666 = vst [vmem:[%s6665] ss:$2 sm:$0xff] %v6104
        %s6667 = scalar_lea.vmem [#allocation1], 16
        %6668 = vst [vmem:[%s6667] ss:$2 sm:$0xff] %v6423
        %s6669 = scalar_lea.vmem [#allocation1], 17
        %6670 = vst [vmem:[%s6669] ss:$2 sm:$0xff] %v6650
        %s6671 = scalar_lea.vmem [#allocation1], 32
        %6672 = vst [vmem:[%s6671] ss:$2 sm:$0xff] %v6116
        %s6673 = scalar_lea.vmem [#allocation1], 33
        %6674 = vst [vmem:[%s6673] ss:$2 sm:$0xff] %v6120
        %s6675 = scalar_lea.vmem [#allocation1], 48
        %6676 = vst [vmem:[%s6675] ss:$2 sm:$0xff] %v6427
        %s6677 = scalar_lea.vmem [#allocation1], 49
        %6678 = vst [vmem:[%s6677] ss:$2 sm:$0xff] %v6654
        %v6679 = vld.sshfl [vmem:[#allocation1] sm:$0xff pattern:$0x75316420]
        %v6680 = vld.sshfl [vmem:[#allocation1 + $0x10] sm:$0xff pattern:$0x75316420]
        %v6681 = vld.sshfl [vmem:[#allocation1 + $0x20] sm:$0xff pattern:$0x75316420]
        %v6682 = vld.sshfl [vmem:[#allocation1 + $0x30] sm:$0xff pattern:$0x75316420]
        %v6683 = vsel %vm6149, %v6679, 0
        %v6685 = vsel %vm6149, %v6680, 0
        %v6687 = vsel %vm6149, %v6681, 0
        %v6689 = vsel %vm6149, %v6682, 0
        %6691 = vmatpush.msra.mxu0 0.0
        %6692 = vmatpush.msra.mxu0 0.0
        %6693 = vmatpush.msra.mxu0 0.0
        %6694 = vmatpush.msra.mxu0 0.0
        %6695 = vmatpush.msra.mxu0 0.0
        %6696 = vmatpush.msra.mxu0 0.0
        %6697 = vmatpush.msra.mxu0 0.0
        %6698 = vmatpush.msra.mxu0 0.0
        %6699 = vmatpush.msra.mxu0 %v6663
        %6700 = vmatpush.msra.mxu0 %v6662
        %6701 = vmatpush.msra.mxu0 %v6661
        %6702 = vmatpush.msra.mxu0 %v6660
        %6703 = vmatpush.msra.mxu0 %v6659
        %6704 = vmatpush.msra.mxu0 %v6658
        %6705 = vmatpush.msra.mxu0 %v6657
        %6706 = vmatpush.msra.mxu0 %v6656
        %6707 = vmatmul.f32.gmra.mxu0 %v6683
        %v6708 = vpop.f32.mrf.mxu0
        %v6709 = vadd.f32 0.0, %v6708
        %6710 = vmatmul.f32.gmra.mxu0 %v6685
        %v6711 = vpop.f32.mrf.mxu0
        %v6712 = vadd.f32 0.0, %v6711
        %6713 = vmatmul.f32.gmra.mxu0 %v6687
        %v6714 = vpop.f32.mrf.mxu0
        %v6715 = vadd.f32 0.0, %v6714
        %6716 = vmatmul.f32.gmra.mxu0 %v6689
        %v6717 = vpop.f32.mrf.mxu0
        %v6718 = vadd.f32 0.0, %v6717
        %6719 = vdwg.mxu0
        %v6720 = vadd.f32 %v6641, %v6709
        %v6721 = vadd.f32 %v6642, %v6712
        %v6722 = vadd.f32 %v6643, %v6715
        %v6723 = vadd.f32 %v6644, %v6718
        %v6724 = vrot.slane %v6055, 6
        %v6725 = vrot.slane %v6724, 4
        %v6726 = vrot.slane %v6645, 6
        %v6727 = vsel %vm6245, %v6725, %v6726
        %v6728 = vrot.slane %v6061, 6
        %v6729 = vrot.slane %v6728, 4
        %v6730 = vrot.slane %v6646, 6
        %v6731 = vsel %vm6245, %v6729, %v6730
        %s6732 = scalar_lea.vmem %s5, 512
        %v6733 = vld [vmem:[%s6732] sm:$0xff]
        %v6734 = vld [vmem:[%s6732 + $0x8] sm:$0xff]
        %v6735 = vld [vmem:[%s6732 + $0x10] sm:$0xff]
        %v6736 = vld [vmem:[%s6732 + $0x18] sm:$0xff]
        %v6737 = vld [vmem:[%s6732 + $0x20] sm:$0xff]
        %v6738 = vld [vmem:[%s6732 + $0x28] sm:$0xff]
        %v6739 = vld [vmem:[%s6732 + $0x30] sm:$0xff]
        %v6740 = vld [vmem:[%s6732 + $0x38] sm:$0xff]
        %6741 = vst [vmem:[#allocation1] ss:$2 sm:$0xff] %v6257
        %s6742 = scalar_lea.vmem [#allocation1], 1
        %6743 = vst [vmem:[%s6742] ss:$2 sm:$0xff] %v6261
        %s6744 = scalar_lea.vmem [#allocation1], 16
        %6745 = vst [vmem:[%s6744] ss:$2 sm:$0xff] %v6500
        %s6746 = scalar_lea.vmem [#allocation1], 17
        %6747 = vst [vmem:[%s6746] ss:$2 sm:$0xff] %v6727
        %s6748 = scalar_lea.vmem [#allocation1], 32
        %6749 = vst [vmem:[%s6748] ss:$2 sm:$0xff] %v6273
        %s6750 = scalar_lea.vmem [#allocation1], 33
        %6751 = vst [vmem:[%s6750] ss:$2 sm:$0xff] %v6277
        %s6752 = scalar_lea.vmem [#allocation1], 48
        %6753 = vst [vmem:[%s6752] ss:$2 sm:$0xff] %v6504
        %s6754 = scalar_lea.vmem [#allocation1], 49
        %6755 = vst [vmem:[%s6754] ss:$2 sm:$0xff] %v6731
        %v6756 = vld.sshfl [vmem:[#allocation1] sm:$0xff pattern:$0x75316420]
        %v6757 = vld.sshfl [vmem:[#allocation1 + $0x10] sm:$0xff pattern:$0x75316420]
        %v6758 = vld.sshfl [vmem:[#allocation1 + $0x20] sm:$0xff pattern:$0x75316420]
        %v6759 = vld.sshfl [vmem:[#allocation1 + $0x30] sm:$0xff pattern:$0x75316420]
        %v6760 = vsel %vm6149, %v6756, 0
        %v6762 = vsel %vm6149, %v6757, 0
        %v6764 = vsel %vm6149, %v6758, 0
        %v6766 = vsel %vm6149, %v6759, 0
        %6768 = vmatpush.msra.mxu0 0.0
        %6769 = vmatpush.msra.mxu0 0.0
        %6770 = vmatpush.msra.mxu0 0.0
        %6771 = vmatpush.msra.mxu0 0.0
        %6772 = vmatpush.msra.mxu0 0.0
        %6773 = vmatpush.msra.mxu0 0.0
        %6774 = vmatpush.msra.mxu0 0.0
        %6775 = vmatpush.msra.mxu0 0.0
        %6776 = vmatpush.msra.mxu0 %v6740
        %6777 = vmatpush.msra.mxu0 %v6739
        %6778 = vmatpush.msra.mxu0 %v6738
        %6779 = vmatpush.msra.mxu0 %v6737
        %6780 = vmatpush.msra.mxu0 %v6736
        %6781 = vmatpush.msra.mxu0 %v6735
        %6782 = vmatpush.msra.mxu0 %v6734
        %6783 = vmatpush.msra.mxu0 %v6733
        %6784 = vmatmul.f32.gmra.mxu0 %v6760
        %v6785 = vpop.f32.mrf.mxu0
        %v6786 = vadd.f32 0.0, %v6785
        %6787 = vmatmul.f32.gmra.mxu0 %v6762
        %v6788 = vpop.f32.mrf.mxu0
        %v6789 = vadd.f32 0.0, %v6788
        %6790 = vmatmul.f32.gmra.mxu0 %v6764
        %v6791 = vpop.f32.mrf.mxu0
        %v6792 = vadd.f32 0.0, %v6791
        %6793 = vmatmul.f32.gmra.mxu0 %v6766
        %v6794 = vpop.f32.mrf.mxu0
        %v6795 = vadd.f32 0.0, %v6794
        %6796 = vdwg.mxu0
        %v6797 = vadd.f32 %v6720, %v6786
        %v6798 = vadd.f32 %v6721, %v6789
        %v6799 = vadd.f32 %v6722, %v6792
        %v6800 = vadd.f32 %v6723, %v6795
        %v6801 = vld [vmem:[%s6] sm:$0x1]
        %v6803 = vperm.slane %v6801, 0
        %v6805 = vadd.f32 %v6797, %v6803
        %v6806 = vadd.f32 %v6798, %v6803
        %v6807 = vadd.f32 %v6799, %v6803
        %v6808 = vadd.f32 %v6800, %v6803
        %v6809 = vmax.f32 %v6805, 0.0
        %v6810 = vmax.f32 %v6806, 0.0
        %v6811 = vmax.f32 %v6807, 0.0
        %v6812 = vmax.f32 %v6808, 0.0
        %v6817 = vrot.slane %v6809, 4
        %v6818 = vrot.slane %v6810, 4
        %v6819 = vrot.slane %v6811, 4
        %v6820 = vrot.slane %v6812, 4
        %v6825 = vmax.f32 %v6809, %v6817
        %v6826 = vmax.f32 %v6810, %v6818
        %v6827 = vmax.f32 %v6811, %v6819
        %v6828 = vmax.f32 %v6812, %v6820
        %v6833 = vrot.slane %v6825, 2
        %v6834 = vrot.slane %v6826, 2
        %v6835 = vrot.slane %v6827, 2
        %v6836 = vrot.slane %v6828, 2
        %v6837 = vsel %vm6243, %v6825, %v6833
        %vm6838 = vcmask 1043458
        %v6839 = vsel %vm6838, %v6825, %v6833
        %v6840 = vrot.slane %v6839, 2
        %v6841 = vsel %vm6243, %v6826, %v6834
        %v6842 = vsel %vm6838, %v6826, %v6834
        %v6843 = vrot.slane %v6842, 2
        %v6844 = vsel %vm6243, %v6827, %v6835
        %v6845 = vsel %vm6838, %v6827, %v6835
        %v6846 = vrot.slane %v6845, 2
        %v6847 = vsel %vm6243, %v6828, %v6836
        %v6848 = vsel %vm6838, %v6828, %v6836
        %v6849 = vrot.slane %v6848, 2
        %v6858 = vrot.slane %v6837, 7
        %v6859 = vrot.slane %v6858, 2
        %v6860 = vrot.slane %v6840, 7
        %v6861 = vrot.slane %v6860, 2
        %v6862 = vrot.slane %v6841, 7
        %v6863 = vrot.slane %v6862, 2
        %v6864 = vrot.slane %v6843, 7
        %v6865 = vrot.slane %v6864, 2
        %v6866 = vrot.slane %v6844, 7
        %v6867 = vrot.slane %v6866, 2
        %v6868 = vrot.slane %v6846, 7
        %v6869 = vrot.slane %v6868, 2
        %v6870 = vrot.slane %v6847, 7
        %v6871 = vrot.slane %v6870, 2
        %v6872 = vrot.slane %v6849, 7
        %v6873 = vrot.slane %v6872, 2
        %v6882 = vmax.f32 %v6837, %v6859
        %v6883 = vmax.f32 %v6840, %v6861
        %v6884 = vmax.f32 %v6841, %v6863
        %v6885 = vmax.f32 %v6843, %v6865
        %v6886 = vmax.f32 %v6844, %v6867
        %v6887 = vmax.f32 %v6846, %v6869
        %v6888 = vmax.f32 %v6847, %v6871
        %v6889 = vmax.f32 %v6849, %v6873
        %v6890 = vld [vmem:[%s7] sm:$0xff]
        %v6891 = vld [vmem:[%s7 + $0x8] sm:$0xff]
        %v6892 = vld [vmem:[%s7 + $0x10] sm:$0xff]
        %v6893 = vld [vmem:[%s7 + $0x18] sm:$0xff]
        %v6894 = vld [vmem:[%s7 + $0x20] sm:$0xff]
        %v6895 = vld [vmem:[%s7 + $0x28] sm:$0xff]
        %v6896 = vld [vmem:[%s7 + $0x30] sm:$0xff]
        %v6897 = vld [vmem:[%s7 + $0x38] sm:$0xff]
        %v6898 = vld [vmem:[%s7 + $0x40] sm:$0xff]
        %v6899 = vld [vmem:[%s7 + $0x48] sm:$0xff]
        %v6900 = vld [vmem:[%s7 + $0x50] sm:$0xff]
        %v6901 = vld [vmem:[%s7 + $0x58] sm:$0xff]
        %v6902 = vld [vmem:[%s7 + $0x60] sm:$0xff]
        %v6903 = vld [vmem:[%s7 + $0x68] sm:$0xff]
        %v6904 = vld [vmem:[%s7 + $0x70] sm:$0xff]
        %v6905 = vld [vmem:[%s7 + $0x78] sm:$0xff]
        %s6906 = scalar_lea.vmem %s7, 128
        %v6907 = vld [vmem:[%s6906] sm:$0xff]
        %v6908 = vld [vmem:[%s6906 + $0x8] sm:$0xff]
        %v6909 = vld [vmem:[%s6906 + $0x10] sm:$0xff]
        %v6910 = vld [vmem:[%s6906 + $0x18] sm:$0xff]
        %v6911 = vld [vmem:[%s6906 + $0x20] sm:$0xff]
        %v6912 = vld [vmem:[%s6906 + $0x28] sm:$0xff]
        %v6913 = vld [vmem:[%s6906 + $0x30] sm:$0xff]
        %v6914 = vld [vmem:[%s6906 + $0x38] sm:$0xff]
        %v6915 = vld [vmem:[%s6906 + $0x40] sm:$0xff]
        %v6916 = vld [vmem:[%s6906 + $0x48] sm:$0xff]
        %v6917 = vld [vmem:[%s6906 + $0x50] sm:$0xff]
        %v6918 = vld [vmem:[%s6906 + $0x58] sm:$0xff]
        %v6919 = vld [vmem:[%s6906 + $0x60] sm:$0xff]
        %v6920 = vld [vmem:[%s6906 + $0x68] sm:$0xff]
        %v6921 = vld [vmem:[%s6906 + $0x70] sm:$0xff]
        %v6922 = vld [vmem:[%s6906 + $0x78] sm:$0xff]
        %v6925 = vperm.slane %v6883, 0
        %v6926 = vperm.slane %v6887, 0
        %v6927 = vsel %vm4490, %v6926, %v6925
        %6929 = vmatpush.msra.mxu0 %v6922
        %6930 = vmatpush.msra.mxu0 %v6921
        %6931 = vmatpush.msra.mxu0 %v6920
        %6932 = vmatpush.msra.mxu0 %v6919
        %6933 = vmatpush.msra.mxu0 %v6918
        %6934 = vmatpush.msra.mxu0 %v6917
        %6935 = vmatpush.msra.mxu0 %v6916
        %6936 = vmatpush.msra.mxu0 %v6915
        %6937 = vmatpush.msra.mxu0 %v6914
        %6938 = vmatpush.msra.mxu0 %v6913
        %6939 = vmatpush.msra.mxu0 %v6912
        %6940 = vmatpush.msra.mxu0 %v6911
        %6941 = vmatpush.msra.mxu0 %v6910
        %6942 = vmatpush.msra.mxu0 %v6909
        %6943 = vmatpush.msra.mxu0 %v6908
        %6944 = vmatpush.msra.mxu0 %v6907
        %6945 = vmatmul.f32.gmra.mxu0 %v6927
        %v6946 = vpop.f32.mrf.mxu0
        %v6947 = vadd.f32 0.0, %v6946
        %6948 = vdwg.mxu0
        %v6951 = vperm.slane %v6882, 0
        %v6952 = vperm.slane %v6886, 0
        %v6953 = vsel %vm4490, %v6952, %v6951
        %6955 = vmatpush.msra.mxu0 %v6905
        %6956 = vmatpush.msra.mxu0 %v6904
        %6957 = vmatpush.msra.mxu0 %v6903
        %6958 = vmatpush.msra.mxu0 %v6902
        %6959 = vmatpush.msra.mxu0 %v6901
        %6960 = vmatpush.msra.mxu0 %v6900
        %6961 = vmatpush.msra.mxu0 %v6899
        %6962 = vmatpush.msra.mxu0 %v6898
        %6963 = vmatpush.msra.mxu0 %v6897
        %6964 = vmatpush.msra.mxu0 %v6896
        %6965 = vmatpush.msra.mxu0 %v6895
        %6966 = vmatpush.msra.mxu0 %v6894
        %6967 = vmatpush.msra.mxu0 %v6893
        %6968 = vmatpush.msra.mxu0 %v6892
        %6969 = vmatpush.msra.mxu0 %v6891
        %6970 = vmatpush.msra.mxu0 %v6890
        %6971 = vmatmul.f32.gmra.mxu0 %v6953
        %v6972 = vpop.f32.mrf.mxu0
        %v6973 = vadd.f32 %v6947, %v6972
        %6974 = vdwg.mxu0
        %s6975 = scalar_lea.vmem %s7, 256
        %v6976 = vld [vmem:[%s6975] sm:$0xff]
        %v6977 = vld [vmem:[%s6975 + $0x8] sm:$0xff]
        %v6978 = vld [vmem:[%s6975 + $0x10] sm:$0xff]
        %v6979 = vld [vmem:[%s6975 + $0x18] sm:$0xff]
        %v6980 = vld [vmem:[%s6975 + $0x20] sm:$0xff]
        %v6981 = vld [vmem:[%s6975 + $0x28] sm:$0xff]
        %v6982 = vld [vmem:[%s6975 + $0x30] sm:$0xff]
        %v6983 = vld [vmem:[%s6975 + $0x38] sm:$0xff]
        %v6984 = vld [vmem:[%s6975 + $0x40] sm:$0xff]
        %v6985 = vld [vmem:[%s6975 + $0x48] sm:$0xff]
        %v6986 = vld [vmem:[%s6975 + $0x50] sm:$0xff]
        %v6987 = vld [vmem:[%s6975 + $0x58] sm:$0xff]
        %v6988 = vld [vmem:[%s6975 + $0x60] sm:$0xff]
        %v6989 = vld [vmem:[%s6975 + $0x68] sm:$0xff]
        %v6990 = vld [vmem:[%s6975 + $0x70] sm:$0xff]
        %v6991 = vld [vmem:[%s6975 + $0x78] sm:$0xff]
        %v6994 = vperm.slane %v6884, 0
        %v6995 = vperm.slane %v6888, 0
        %v6996 = vsel %vm4490, %v6995, %v6994
        %6998 = vmatpush.msra.mxu0 %v6991
        %6999 = vmatpush.msra.mxu0 %v6990
        %7000 = vmatpush.msra.mxu0 %v6989
        %7001 = vmatpush.msra.mxu0 %v6988
        %7002 = vmatpush.msra.mxu0 %v6987
        %7003 = vmatpush.msra.mxu0 %v6986
        %7004 = vmatpush.msra.mxu0 %v6985
        %7005 = vmatpush.msra.mxu0 %v6984
        %7006 = vmatpush.msra.mxu0 %v6983
        %7007 = vmatpush.msra.mxu0 %v6982
        %7008 = vmatpush.msra.mxu0 %v6981
        %7009 = vmatpush.msra.mxu0 %v6980
        %7010 = vmatpush.msra.mxu0 %v6979
        %7011 = vmatpush.msra.mxu0 %v6978
        %7012 = vmatpush.msra.mxu0 %v6977
        %7013 = vmatpush.msra.mxu0 %v6976
        %7014 = vmatmul.f32.gmra.mxu0 %v6996
        %v7015 = vpop.f32.mrf.mxu0
        %v7016 = vadd.f32 0.0, %v7015
        %7017 = vdwg.mxu0
        %v7018 = vadd.f32 %v6973, %v7016
        %s7019 = scalar_lea.vmem %s7, 384
        %v7020 = vld [vmem:[%s7019] sm:$0xff]
        %v7021 = vld [vmem:[%s7019 + $0x8] sm:$0xff]
        %v7022 = vld [vmem:[%s7019 + $0x10] sm:$0xff]
        %v7023 = vld [vmem:[%s7019 + $0x18] sm:$0xff]
        %v7024 = vld [vmem:[%s7019 + $0x20] sm:$0xff]
        %v7025 = vld [vmem:[%s7019 + $0x28] sm:$0xff]
        %v7026 = vld [vmem:[%s7019 + $0x30] sm:$0xff]
        %v7027 = vld [vmem:[%s7019 + $0x38] sm:$0xff]
        %v7028 = vld [vmem:[%s7019 + $0x40] sm:$0xff]
        %v7029 = vld [vmem:[%s7019 + $0x48] sm:$0xff]
        %v7030 = vld [vmem:[%s7019 + $0x50] sm:$0xff]
        %v7031 = vld [vmem:[%s7019 + $0x58] sm:$0xff]
        %v7032 = vld [vmem:[%s7019 + $0x60] sm:$0xff]
        %v7033 = vld [vmem:[%s7019 + $0x68] sm:$0xff]
        %v7034 = vld [vmem:[%s7019 + $0x70] sm:$0xff]
        %v7035 = vld [vmem:[%s7019 + $0x78] sm:$0xff]
        %v7038 = vperm.slane %v6885, 0
        %v7039 = vperm.slane %v6889, 0
        %v7040 = vsel %vm4490, %v7039, %v7038
        %7042 = vmatpush.msra.mxu0 %v7035
        %7043 = vmatpush.msra.mxu0 %v7034
        %7044 = vmatpush.msra.mxu0 %v7033
        %7045 = vmatpush.msra.mxu0 %v7032
        %7046 = vmatpush.msra.mxu0 %v7031
        %7047 = vmatpush.msra.mxu0 %v7030
        %7048 = vmatpush.msra.mxu0 %v7029
        %7049 = vmatpush.msra.mxu0 %v7028
        %7050 = vmatpush.msra.mxu0 %v7027
        %7051 = vmatpush.msra.mxu0 %v7026
        %7052 = vmatpush.msra.mxu0 %v7025
        %7053 = vmatpush.msra.mxu0 %v7024
        %7054 = vmatpush.msra.mxu0 %v7023
        %7055 = vmatpush.msra.mxu0 %v7022
        %7056 = vmatpush.msra.mxu0 %v7021
        %7057 = vmatpush.msra.mxu0 %v7020
        %7058 = vmatmul.f32.gmra.mxu0 %v7040
        %v7059 = vpop.f32.mrf.mxu0
        %v7060 = vadd.f32 0.0, %v7059
        %7061 = vdwg.mxu0
        %v7062 = vadd.f32 %v7018, %v7060
        %v7063 = vld [vmem:[%s8] sm:$0x1]
        %v7065 = vperm.slane %v7063, 0
        %v7067 = vadd.f32 %v7062, %v7065
        %v7068 = vmax.f32 %v7067, 0.0
        %v7069 = vld [vmem:[#allocation10] sm:$0xff]
        %v7070 = vld [vmem:[#allocation10 + $0x8] sm:$0xff]
        %v7071 = vld [vmem:[#allocation10 + $0x10] sm:$0xff]
        %v7072 = vld [vmem:[#allocation10 + $0x18] sm:$0xff]
        %v7073 = vld [vmem:[#allocation10 + $0x20] sm:$0xff]
        %v7074 = vld [vmem:[#allocation10 + $0x28] sm:$0xff]
        %v7075 = vld [vmem:[#allocation10 + $0x30] sm:$0xff]
        %v7076 = vld [vmem:[#allocation10 + $0x38] sm:$0xff]
        %v7077 = vld [vmem:[#allocation10 + $0x40] sm:$0xff]
        %v7078 = vld [vmem:[#allocation10 + $0x48] sm:$0xff]
        %v7079 = vld [vmem:[#allocation10 + $0x50] sm:$0xff]
        %v7080 = vld [vmem:[#allocation10 + $0x58] sm:$0xff]
        %v7081 = vld [vmem:[#allocation10 + $0x60] sm:$0xff]
        %v7082 = vld [vmem:[#allocation10 + $0x68] sm:$0xff]
        %v7083 = vld [vmem:[#allocation10 + $0x70] sm:$0xff]
        %v7084 = vld [vmem:[#allocation10 + $0x78] sm:$0xff]
        %v7085 = vld [vmem:[%s10] sm:$0x1]
        %v7087 = vperm.slane %v7085, 0
        %7089 = vmatpush.msra.mxu0 %v7084
        %7090 = vmatpush.msra.mxu0 %v7083
        %7091 = vmatpush.msra.mxu0 %v7082
        %7092 = vmatpush.msra.mxu0 %v7081
        %7093 = vmatpush.msra.mxu0 %v7080
        %7094 = vmatpush.msra.mxu0 %v7079
        %7095 = vmatpush.msra.mxu0 %v7078
        %7096 = vmatpush.msra.mxu0 %v7077
        %7097 = vmatpush.msra.mxu0 %v7076
        %7098 = vmatpush.msra.mxu0 %v7075
        %7099 = vmatpush.msra.mxu0 %v7074
        %7100 = vmatpush.msra.mxu0 %v7073
        %7101 = vmatpush.msra.mxu0 %v7072
        %7102 = vmatpush.msra.mxu0 %v7071
        %7103 = vmatpush.msra.mxu0 %v7070
        %7104 = vmatpush.msra.mxu0 %v7069
        %7105 = vmatmul.f32.gmra.mxu0 %v7068
        %v7106 = vpop.f32.mrf.mxu0
        %v7107 = vadd.f32 %v7087, %v7106
        %7108 = vdwg.mxu0
        %v7110 = vrot.slane %v7107, 1
        %7112 = vst [vmem:[%s432] sm:$0x1] %v7107
        %7113 = vst [vmem:[%s432 + $0x1] sm:$0x1] %v7110
        %s7114 = sand.u32 %s271, 1
        %s7115 = scalar_lea.sflag [#allocation7], %s7114
        %s7116 = sand.u32 %s271, 1
        %s7117 = smul.addr %s7116, 2
        %s7118 = scalar_lea.vmem [#allocation11], %s7117
        // Predicated region
        $region77: #{cnn_forward_pallas.1} parent=63 // pred_check
          %p7119 = pneg %p281
        $region78: #{cnn_forward_pallas.1} parent=63 // pred_check_branch
          %7121 = sbr.rel (%p7119) target = $region80
        $region79: #{cnn_forward_pallas.1} parent=63 // pred_region
          %s7122 = smul.u32 2, %s27
          %7124 = vsyncadd %s7115, 0
          %s7125 = scalar_lea.hbm %s11, %s7122
          %s7126 = sshll.u32 %s7118, 4
          %s7127 = int_to_ptr.vmem [resolvable:$true] %s7126
          %s7128 = sshll.u32 %s7125, 4
          %s7129 = int_to_ptr.hbm [resolvable:$true] %s7128
          %7134 = dma.vmem_to_hbm [thread:$0]  %s7127, 32, %s7129, %s7115, 16, 16, 1
        $region80: #{cnn_forward_pallas.1} parent=63 // pred_fallthru
          _
      $region64: #{cnn_forward_pallas.1} parent=5 // pred_fallthru
        _
      %p7135 = scmp.le.s32.totalorder 2, %s22
      // Predicated region
      $region81: #{cnn_forward_pallas.1} parent=5 // pred_check
        %p7136 = pneg %p7135
      $region82: #{cnn_forward_pallas.1} parent=5 // pred_check_branch
        %7138 = sbr.rel (%p7136) target = $region84
      $region83: #{cnn_forward_pallas.1} parent=5 // pred_region
        %s7139 = ssub.s32 %s22, 2
        // Predicated region
        $region85: #{cnn_forward_pallas.1} parent=83 // pred_check
          %p7140 = pneg %p287
        $region86: #{cnn_forward_pallas.1} parent=83 // pred_check_branch
          %7142 = sbr.rel (%p7140) target = $region88
        $region87: #{cnn_forward_pallas.1} parent=83 // pred_region
          %s7143 = sand.u32 %s272, 1
          %s7144 = scalar_lea.sflag [#allocation7], %s7143
          %s7145 = sand.u32 %s272, 1
          %s7146 = smul.addr %s7145, 2
          %s7147 = scalar_lea.vmem [#allocation11], %s7146
          %7149 = dma.done %s7144, 32
        $region88: #{cnn_forward_pallas.1} parent=83 // pred_fallthru
          _
      $region84: #{cnn_forward_pallas.1} parent=5 // pred_fallthru
        _
    $region6: #{cnn_forward_pallas.1} parent=1 // loop_footer
      %s26 = sadd.s32 1, %s22
    $region7: #{cnn_forward_pallas.1} parent=1 // loop_footer_branch
      %21 = sbr.rel target = $region3
    $region8: #{cnn_forward_pallas.1} parent=1 // loop_exit
      _
    %7150 = vsyncpa [#allocation6], 1
    %s7151 = scalar_lea.sflag [#allocation6], 1
    %7152 = vsyncpa %s7151, 1
    %7153 = vsyncpa [#allocation9], 1
    %7154 = vsyncpa [#allocation7], 1
    %s7155 = scalar_lea.sflag [#allocation7], 1
    %7156 = vsyncpa %s7155, 1

</llo_original>
